<compile_context>
chip_gen: v7x
topology: tpu7x:2x2x1
jax: 0.10.0
libtpu: 0.0.40
codegen_flags: <defaults>
</compile_context>

<pallas_src>
import functools

import jax
import jax.numpy as jnp
from jax.experimental import pallas as pl
from jax.experimental.pallas import tpu as pltpu

FEAT_DIM = 1024          # GoogLeNet feature dim expected by the final fc
EMB_DIM = 2000           # nn.Linear(num_question, 2000)
EMB_PAD = 2048           # 2000 padded to a multiple of 128 (lane-dense tiles)


def _round_up(x, m):
    return (x + m - 1) // m * m


def _cdiv(a, b):
    return -(-a // b)


def _pad_axis(x, axis, target):
    pad = target - x.shape[axis]
    if pad == 0:
        return x
    widths = [(0, 0)] * x.ndim
    widths[axis] = (0, pad)
    return jnp.pad(x, widths)


# ---------------------------------------------------------------------------
# Kernel
# ---------------------------------------------------------------------------
def vqa_kernel(img_ref, q_ref,
               wf_ref, bf_ref,            # image-feature projection head
               we_ref, be_ref,            # question embedding Linear(num_q, 2000)
               wfc_f_ref, wfc_e_ref,      # fc weight split: [feature rows | embedding rows]
               bfc_ref,
               out_ref,
               pooled_acc,                # VMEM scratch (tb, C) f32
               emb_acc,                   # VMEM scratch (tb, EMB_PAD) bf16
               *, hw, C):
    s = pl.program_id(1)                  # spatial-chunk index (reduction axis)
    ns = pl.num_programs(1)
    tb, ts = img_ref.shape

    @pl.when(s == 0)
    def _():
        pooled_acc[...] = jnp.zeros(pooled_acc.shape, pooled_acc.dtype)
        # The question-embedding matmul has no dependence on the image: run it on
        # the first spatial step so it overlaps with the image DMA stream instead
        # of serializing inside the finalize.
        emb = (jnp.dot(q_ref[...], we_ref[...],
                       preferred_element_type=jnp.float32) + be_ref[...])
        emb_acc[...] = emb.astype(emb_acc.dtype)

    # ---- global average pool, streamed over lane chunks of the C*H*W axis ----
    # Image rows = batch (dense sublanes), lanes = channel-major spatial.  Each
    # channel occupies a contiguous lane range [c*hw, (c+1)*hw); per channel we
    # mask that range and reduce.  The masks also drop the array-tail garbage of
    # the last chunk, so the wrapper never pads the image.  The masked selects run
    # on the (otherwise idle) VPU/XLU and stay hidden under the HBM-bound DMA for
    # small C (raw-image channels).
    chunk = img_ref[...]                                               # (tb, ts) f32
    lane = jax.lax.broadcasted_iota(jnp.int32, (1, ts), 1) + s * ts    # global lane ids
    col = jax.lax.broadcasted_iota(jnp.int32, (1, C), 1)
    update = jnp.zeros(pooled_acc.shape, pooled_acc.dtype)
    for c in range(C):                                                 # C is small & static
        m = (lane >= c * hw) & (lane < (c + 1) * hw)
        part = jnp.sum(jnp.where(m, chunk, 0.0), axis=-1, keepdims=True)   # (tb, 1) f32
        update = update + part * (col == c).astype(jnp.float32)            # scatter to col c
    pooled_acc[...] += update

    @pl.when(s == ns - 1)
    def _():
        pooled = (pooled_acc[...] * (1.0 / hw)).astype(jnp.bfloat16)   # (tb, C)

        # ---- image feature branch ----
        # TODO(synk): the pretrained GoogLeNet backbone has no clean Pallas
        # equivalent; global-average-pool + linear projection stands in for it.
        features = (jnp.dot(pooled, wf_ref[...],
                            preferred_element_type=jnp.float32)
                    + bf_ref[...])                                     # (tb, 1024) f32

        # ---- torch.cat((features, embeddings), dim=1) followed by self.fc ----
        # Split matmul: cat(x, y) @ W == x @ W[:1024] + y @ W[1024:]  (exact).
        out = (jnp.dot(features.astype(jnp.bfloat16), wfc_f_ref[...],
                       preferred_element_type=jnp.float32)
               + jnp.dot(emb_acc[...], wfc_e_ref[...],
                         preferred_element_type=jnp.float32)
               + bfc_ref[...])                                         # (tb, A_pad) f32
        out_ref[...] = out.astype(out_ref.dtype)


# ---------------------------------------------------------------------------
# Parameters
# ---------------------------------------------------------------------------
def init_raw_params(key, in_channels, num_question, num_answer):
    """Raw f32 parameters, layout (in, out) -- PyTorch Linear weights transposed."""
    k = jax.random.split(key, 6)
    s = 0.02
    return {
        "w_feat": s * jax.random.normal(k[0], (in_channels, FEAT_DIM), jnp.float32),
        "b_feat": s * jax.random.normal(k[1], (FEAT_DIM,), jnp.float32),
        "w_emb":  s * jax.random.normal(k[2], (num_question, EMB_DIM), jnp.float32),
        "b_emb":  s * jax.random.normal(k[3], (EMB_DIM,), jnp.float32),
        "w_fc":   s * jax.random.normal(k[4], (FEAT_DIM + EMB_DIM, num_answer), jnp.float32),
        "b_fc":   s * jax.random.normal(k[5], (num_answer,), jnp.float32),
    }


def prepare_params(raw, num_question, num_answer):
    """One-time prep (hoisted out of the call path): pad lane dims to multiples of
    128, split the fc weight, cast weights to bf16 (biases stay f32)."""
    nq_pad = _round_up(num_question, 128)
    a_pad = _round_up(num_answer, 128)

    w_emb = _pad_axis(_pad_axis(raw["w_emb"], 1, EMB_PAD), 0, nq_pad)     # (NQp, 2048)
    b_emb = _pad_axis(raw["b_emb"], 0, EMB_PAD)                           # (2048,)

    w_fc = _pad_axis(raw["w_fc"], 1, a_pad)                               # (3024, Ap)
    w_fc_feat = w_fc[:FEAT_DIM]                                           # (1024, Ap)
    w_fc_emb = _pad_axis(w_fc[FEAT_DIM:], 0, EMB_PAD)                     # (2048, Ap)
    b_fc = _pad_axis(raw["b_fc"], 0, a_pad)                               # (Ap,)

    return {
        "w_feat":     raw["w_feat"].astype(jnp.bfloat16),
        "b_feat":     raw["b_feat"].reshape(1, -1).astype(jnp.float32),
        "w_emb":      w_emb.astype(jnp.bfloat16),
        "b_emb":      b_emb.reshape(1, -1).astype(jnp.float32),
        "w_fc_feat":  w_fc_feat.astype(jnp.bfloat16),
        "w_fc_emb":   w_fc_emb.astype(jnp.bfloat16),
        "b_fc":       b_fc.reshape(1, -1).astype(jnp.float32),
        "nq_pad":     nq_pad,
        "a_pad":      a_pad,
        "num_answer": num_answer,
    }


# ---------------------------------------------------------------------------
# Tiling / VMEM budget
# ---------------------------------------------------------------------------
def _choose_tiles(B, C, hw, prep):
    # Batch tile: >=2 tiles when possible so both v7x TensorCores get work; grow
    # to 256 rows for big batches to fill the 256-wide MXU on v6e/v7x.
    half_b = (B + 1) // 2
    tb = max(8, min(128, _round_up(half_b, 8)))
    if B >= 512:
        tb = 256

    # Per-generation VMEM budget (v7x has only 64 MiB per core).
    try:
        vmem_cap = pltpu.get_tpu_info().vmem_capacity_bytes
    except Exception:
        vmem_cap = 64 << 20                       # conservative: v7x per-core VMEM
    vmem_budget = min(int(0.6 * vmem_cap), 96 << 20)   # ~38 MiB on v7x, ~77 MiB on v5e/v6e

    # Resident bytes (worst case: weights double-buffered) -> leftover goes to
    # the double-buffered f32 image chunk.
    weight_bytes = sum(int(prep[k].size) * prep[k].dtype.itemsize
                       for k in ("w_feat", "b_feat", "w_emb", "b_emb",
                                 "w_fc_feat", "w_fc_emb", "b_fc"))
    resident = 2 * weight_bytes
    resident += 2 * tb * prep["nq_pad"] * 2       # q block (bf16, 2 buffers)
    resident += 2 * tb * prep["a_pad"] * 4        # out block (f32, 2 buffers)
    resident += tb * EMB_PAD * 2                  # emb scratch (bf16)
    resident += tb * 128 * 4                      # pooled scratch (lane-padded)

    lanes_pad = _round_up(C * hw, 128)
    avail = vmem_budget - resident - (1 << 20)    # 1 MiB slack
    ts = (avail // (2 * tb * 4)) // 128 * 128 if avail > 0 else 512
    ts = min(max(ts, 512), lanes_pad, 64 * 1024)
    # TODO(synk): for a very large num_question vocab, stream K-tiles of w_emb
    # across the spatial grid axis instead of keeping it whole in VMEM.
    return tb, ts, vmem_budget


# ---------------------------------------------------------------------------
# Wrapper
# ---------------------------------------------------------------------------
def _forward(img2d, q, prep, *, tb, ts, C, hw, vmem_budget, weight_mode):
    B = img2d.shape[0]
    lanes = C * hw
    nb = _cdiv(B, tb)
    ns = _cdiv(lanes, ts)
    nq_pad, a_pad = prep["nq_pad"], prep["a_pad"]

    kernel = functools.partial(vqa_kernel, hw=hw, C=C)

    def const_spec(arr):
        shape = arr.shape
        idx = lambda b, s, _n=len(shape): (0,) * _n
        if weight_mode is None:
            return pl.BlockSpec(shape, idx)
        # Constant block index -> fetched once; single buffer halves the VMEM
        # footprint of the resident weights.
        return pl.BlockSpec(shape, idx, pipeline_mode=weight_mode)

    return pl.pallas_call(
        kernel,
        out_shape=jax.ShapeDtypeStruct((B, a_pad), jnp.float32),
        grid=(nb, ns),
        in_specs=[
            pl.BlockSpec((tb, ts), lambda b, s: (b, s)),        # f32 image lane chunk
            pl.BlockSpec((tb, nq_pad), lambda b, s: (b, 0)),    # question encoding
            const_spec(prep["w_feat"]), const_spec(prep["b_feat"]),
            const_spec(prep["w_emb"]), const_spec(prep["b_emb"]),
            const_spec(prep["w_fc_feat"]), const_spec(prep["w_fc_emb"]),
            const_spec(prep["b_fc"]),
        ],
        out_specs=pl.BlockSpec((tb, a_pad), lambda b, s: (b, 0)),
        scratch_shapes=[pltpu.VMEM((tb, C), jnp.float32),
                        pltpu.VMEM((tb, EMB_PAD), jnp.bfloat16)],
        compiler_params=pltpu.CompilerParams(
            dimension_semantics=("parallel", "arbitrary"),
            vmem_limit_bytes=int(vmem_budget),
        ),
    )(img2d, q,
      prep["w_feat"], prep["b_feat"],
      prep["w_emb"], prep["b_emb"],
      prep["w_fc_feat"], prep["w_fc_emb"], prep["b_fc"])


def simple_baseline_net(image, question_encoding, prep):
    B, C, H, W = image.shape
    hw = H * W

    # No bf16 cast / no jnp.pad of the image: a bare reshape to a dense 2-D slab.
    img2d = image.reshape(B, C * hw).astype(jnp.float32)
    # Question encoding is tiny: pad its lane (K) dim so zero-padded columns are exact.
    q = _pad_axis(question_encoding.astype(jnp.bfloat16), 1, prep["nq_pad"])

    tb, ts, vmem_budget = _choose_tiles(B, C, hw, prep)

    modes = [None]
    if hasattr(pl, "Buffered"):
        modes.insert(0, pl.Buffered(1))      # single-buffer the VMEM-resident weights

    last_err = None
    for mode in modes:
        try:
            out = _forward(img2d, q, prep, tb=tb, ts=ts, C=C, hw=hw,
                           vmem_budget=vmem_budget, weight_mode=mode)
            out = jax.block_until_ready(out)
            return out[:B, :prep["num_answer"]]
        except Exception as e:               # fall back if pipeline_mode is unsupported
            last_err = e
    raise last_err


# ---------------------------------------------------------------------------
# Pure-JAX reference (replicates the kernel's bf16 rounding so tolerances are tight)
# ---------------------------------------------------------------------------
def reference(image, question_encoding, prep):
    f32 = jnp.float32
    B, C, H, W = image.shape
    num_answer = prep["num_answer"]

    img = image.reshape(B, C, H * W).astype(f32)
    pooled = (img.sum(axis=-1) * (1.0 / (H * W))).astype(jnp.bfloat16).astype(f32)

    features = pooled @ prep["w_feat"].astype(f32) + prep["b_feat"]
    features = features.astype(jnp.bfloat16).astype(f32)

    nq = question_encoding.shape[1]
    qq = question_encoding.astype(jnp.bfloat16).astype(f32)
    emb = qq @ prep["w_emb"].astype(f32)[:nq] + prep["b_emb"]
    emb = emb.astype(jnp.bfloat16).astype(f32)

    out = (features @ prep["w_fc_feat"].astype(f32)
           + emb @ prep["w_fc_emb"].astype(f32)
           + prep["b_fc"])
    return out[:, :num_answer]


if __name__ == "__main__":
    key = jax.random.PRNGKey(0)
    k_img, k_q, k_p = jax.random.split(key, 3)

    B, C, H, W = 2, 4, 16, 16        # small NCHW image
    num_question = 32                # bag-of-words question encoding size
    num_answer = 16

    image = jax.random.normal(k_img, (B, C, H, W), jnp.float32)
    question_encoding = jax.random.normal(k_q, (B, num_question), jnp.float32)

    raw = init_raw_params(k_p, C, num_question, num_answer)
    prep = prepare_params(raw, num_question, num_answer)   # one-time prep, hoisted

    out = simple_baseline_net(image, question_encoding, prep)
    out = jax.block_until_ready(out)

    ref = reference(image, question_encoding, prep)
    assert out.shape == (B, num_answer)
    assert jnp.allclose(out, ref, atol=2e-3, rtol=2e-3), "mismatch vs JAX reference"

    print("KERNEL_OK")
</pallas_src>

<mosaic_0001>
module attributes {stable_mosaic.version = 11 : i64} {
  func.func @vqa_kernel(%arg0: i32, %arg1: i32, %arg2: memref<8x1024xf32, #tpu.memory_space<vmem>>, %arg3: memref<8x128xbf16, #tpu.memory_space<vmem>>, %arg4: memref<4x1024xbf16, #tpu.memory_space<vmem>>, %arg5: memref<1x1024xf32, #tpu.memory_space<vmem>>, %arg6: memref<128x2048xbf16, #tpu.memory_space<vmem>>, %arg7: memref<1x2048xf32, #tpu.memory_space<vmem>>, %arg8: memref<1024x128xbf16, #tpu.memory_space<vmem>>, %arg9: memref<2048x128xbf16, #tpu.memory_space<vmem>>, %arg10: memref<1x128xf32, #tpu.memory_space<vmem>>, %arg11: memref<8x128xf32, #tpu.memory_space<vmem>>, %arg12: memref<8x4xf32, #tpu.memory_space<vmem>>, %arg13: memref<8x2048xbf16, #tpu.memory_space<vmem>>) attributes {dimension_semantics = [#tpu.dimension_semantics<parallel>, #tpu.dimension_semantics<arbitrary>], iteration_bounds = array<i64: 1, 1>, scalar_prefetch = 0 : i64, scratch_operands = 2 : i64, tpu.core_type = #tpu.core_type<tc>, window_params = [{transform_indices = @transform_0, window_bounds = array<i64: 8, 1024>}, {transform_indices = @transform_1, window_bounds = array<i64: 8, 128>}, {pipeline_mode = #tpu.pipeline_mode<synchronous>, transform_indices = @transform_2, window_bounds = array<i64: 4, 1024>}, {pipeline_mode = #tpu.pipeline_mode<synchronous>, transform_indices = @transform_3, window_bounds = array<i64: 1, 1024>}, {pipeline_mode = #tpu.pipeline_mode<synchronous>, transform_indices = @transform_4, window_bounds = array<i64: 128, 2048>}, {pipeline_mode = #tpu.pipeline_mode<synchronous>, transform_indices = @transform_5, window_bounds = array<i64: 1, 2048>}, {pipeline_mode = #tpu.pipeline_mode<synchronous>, transform_indices = @transform_6, window_bounds = array<i64: 1024, 128>}, {pipeline_mode = #tpu.pipeline_mode<synchronous>, transform_indices = @transform_7, window_bounds = array<i64: 2048, 128>}, {pipeline_mode = #tpu.pipeline_mode<synchronous>, transform_indices = @transform_8, window_bounds = array<i64: 1, 128>}, {transform_indices = @transform_9, window_bounds = array<i64: 8, 128>}]} {
    %c0_i32 = arith.constant 0 : i32
    %0 = arith.cmpi eq, %arg1, %c0_i32 : i32
    %1 = arith.extui %0 : i1 to i32
    %c0_i32_0 = arith.constant 0 : i32
    %2 = arith.cmpi ne, %1, %c0_i32_0 : i32
    scf.if %2 {
      %cst_22 = arith.constant 0.000000e+00 : f32
      %92 = vector.broadcast %cst_22 : f32 to vector<8x4xf32>
      %c0_23 = arith.constant 0 : index
      %c0_24 = arith.constant 0 : index
      %93 = vector.load %arg12[%c0_23, %c0_24] : memref<8x4xf32, #tpu.memory_space<vmem>>, vector<8x4xf32>
      tpu.vector_store %arg12[%c0_23, %c0_24], %92 {strides = array<i32>} : memref<8x4xf32, #tpu.memory_space<vmem>>, vector<8x4xf32>,
      %c0_25 = arith.constant 0 : index
      %c0_26 = arith.constant 0 : index
      %94 = vector.load %arg3[%c0_25, %c0_26] : memref<8x128xbf16, #tpu.memory_space<vmem>>, vector<8x128xbf16>
      %c0_27 = arith.constant 0 : index
      %c0_28 = arith.constant 0 : index
      %95 = vector.load %arg6[%c0_27, %c0_28] : memref<128x2048xbf16, #tpu.memory_space<vmem>>, vector<128x2048xbf16>
      %cst_29 = arith.constant dense<0.000000e+00> : vector<8x2048xf32>
      %96 = tpu.matmul %94, %95, %cst_29 {dimension_numbers = #tpu.dot_dimension_numbers<[1], [0], [0], [1], [0, 0, 1, 1], [], []>} : vector<8x128xbf16>, vector<128x2048xbf16>, vector<8x2048xf32> -> vector<8x2048xf32>
      %c0_30 = arith.constant 0 : index
      %c0_31 = arith.constant 0 : index
      %97 = vector.load %arg7[%c0_30, %c0_31] : memref<1x2048xf32, #tpu.memory_space<vmem>>, vector<1x2048xf32>
      %98 = vector.broadcast %97 : vector<1x2048xf32> to vector<8x2048xf32>
      %99 = arith.addf %96, %98 : vector<8x2048xf32>
      %100 = arith.truncf %99 : vector<8x2048xf32> to vector<8x2048xbf16>
      %c0_32 = arith.constant 0 : index
      %c0_33 = arith.constant 0 : index
      %101 = vector.load %arg13[%c0_32, %c0_33] : memref<8x2048xbf16, #tpu.memory_space<vmem>>, vector<8x2048xbf16>
      tpu.vector_store %arg13[%c0_32, %c0_33], %100 {strides = array<i32>} : memref<8x2048xbf16, #tpu.memory_space<vmem>>, vector<8x2048xbf16>,
    } else {
    }
    %c0 = arith.constant 0 : index
    %c0_1 = arith.constant 0 : index
    %3 = vector.load %arg2[%c0, %c0_1] : memref<8x1024xf32, #tpu.memory_space<vmem>>, vector<8x1024xf32>
    %4 = tpu.iota {dimensions = array<i32: 1>} : vector<1x1024xi32>
    %c1024_i32 = arith.constant 1024 : i32
    %5 = arith.muli %arg1, %c1024_i32 : i32
    %6 = vector.broadcast %5 : i32 to vector<1x1024xi32>
    %7 = arith.addi %4, %6 : vector<1x1024xi32>
    %8 = tpu.iota {dimensions = array<i32: 1>} : vector<1x4xi32>
    %cst = arith.constant 0.000000e+00 : f32
    %9 = vector.broadcast %cst : f32 to vector<8x4xf32>
    %c0_i32_2 = arith.constant 0 : i32
    %10 = vector.broadcast %c0_i32_2 : i32 to vector<1x1024xi32>
    %11 = arith.cmpi sge, %7, %10 : vector<1x1024xi32>
    %c256_i32 = arith.constant 256 : i32
    %12 = vector.broadcast %c256_i32 : i32 to vector<1x1024xi32>
    %13 = arith.cmpi slt, %7, %12 : vector<1x1024xi32>
    %14 = arith.andi %11, %13 : vector<1x1024xi1>
    %cst_3 = arith.constant 0.000000e+00 : f32
    %15 = vector.shape_cast %14 : vector<1x1024xi1> to vector<1x1024xi1>
    %16 = vector.broadcast %15 : vector<1x1024xi1> to vector<8x1024xi1>
    %17 = vector.broadcast %cst_3 : f32 to vector<8x1024xf32>
    %18 = arith.select %16, %3, %17 : vector<8x1024xi1>, vector<8x1024xf32>
    %cst_4 = arith.constant dense<0.000000e+00> : vector<8xf32>
    %19 = vector.multi_reduction <add>, %18, %cst_4 [1] : vector<8x1024xf32> to vector<8xf32>
    %20 = vector.shape_cast %19 : vector<8xf32> to vector<8x1xf32>
    %c0_i32_5 = arith.constant 0 : i32
    %21 = vector.broadcast %c0_i32_5 : i32 to vector<1x4xi32>
    %22 = arith.cmpi eq, %8, %21 : vector<1x4xi32>
    %23 = arith.extui %22 : vector<1x4xi1> to vector<1x4xi32>
    %24 = arith.sitofp %23 : vector<1x4xi32> to vector<1x4xf32>
    %25 = vector.broadcast %20 : vector<8x1xf32> to vector<8x4xf32>
    %26 = vector.broadcast %24 : vector<1x4xf32> to vector<8x4xf32>
    %27 = arith.mulf %25, %26 : vector<8x4xf32>
    %28 = arith.addf %9, %27 : vector<8x4xf32>
    %c256_i32_6 = arith.constant 256 : i32
    %29 = vector.broadcast %c256_i32_6 : i32 to vector<1x1024xi32>
    %30 = arith.cmpi sge, %7, %29 : vector<1x1024xi32>
    %c512_i32 = arith.constant 512 : i32
    %31 = vector.broadcast %c512_i32 : i32 to vector<1x1024xi32>
    %32 = arith.cmpi slt, %7, %31 : vector<1x1024xi32>
    %33 = arith.andi %30, %32 : vector<1x1024xi1>
    %cst_7 = arith.constant 0.000000e+00 : f32
    %34 = vector.shape_cast %33 : vector<1x1024xi1> to vector<1x1024xi1>
    %35 = vector.broadcast %34 : vector<1x1024xi1> to vector<8x1024xi1>
    %36 = vector.broadcast %cst_7 : f32 to vector<8x1024xf32>
    %37 = arith.select %35, %3, %36 : vector<8x1024xi1>, vector<8x1024xf32>
    %cst_8 = arith.constant dense<0.000000e+00> : vector<8xf32>
    %38 = vector.multi_reduction <add>, %37, %cst_8 [1] : vector<8x1024xf32> to vector<8xf32>
    %39 = vector.shape_cast %38 : vector<8xf32> to vector<8x1xf32>
    %c1_i32 = arith.constant 1 : i32
    %40 = vector.broadcast %c1_i32 : i32 to vector<1x4xi32>
    %41 = arith.cmpi eq, %8, %40 : vector<1x4xi32>
    %42 = arith.extui %41 : vector<1x4xi1> to vector<1x4xi32>
    %43 = arith.sitofp %42 : vector<1x4xi32> to vector<1x4xf32>
    %44 = vector.broadcast %39 : vector<8x1xf32> to vector<8x4xf32>
    %45 = vector.broadcast %43 : vector<1x4xf32> to vector<8x4xf32>
    %46 = arith.mulf %44, %45 : vector<8x4xf32>
    %47 = arith.addf %28, %46 : vector<8x4xf32>
    %c512_i32_9 = arith.constant 512 : i32
    %48 = vector.broadcast %c512_i32_9 : i32 to vector<1x1024xi32>
    %49 = arith.cmpi sge, %7, %48 : vector<1x1024xi32>
    %c768_i32 = arith.constant 768 : i32
    %50 = vector.broadcast %c768_i32 : i32 to vector<1x1024xi32>
    %51 = arith.cmpi slt, %7, %50 : vector<1x1024xi32>
    %52 = arith.andi %49, %51 : vector<1x1024xi1>
    %cst_10 = arith.constant 0.000000e+00 : f32
    %53 = vector.shape_cast %52 : vector<1x1024xi1> to vector<1x1024xi1>
    %54 = vector.broadcast %53 : vector<1x1024xi1> to vector<8x1024xi1>
    %55 = vector.broadcast %cst_10 : f32 to vector<8x1024xf32>
    %56 = arith.select %54, %3, %55 : vector<8x1024xi1>, vector<8x1024xf32>
    %cst_11 = arith.constant dense<0.000000e+00> : vector<8xf32>
    %57 = vector.multi_reduction <add>, %56, %cst_11 [1] : vector<8x1024xf32> to vector<8xf32>
    %58 = vector.shape_cast %57 : vector<8xf32> to vector<8x1xf32>
    %c2_i32 = arith.constant 2 : i32
    %59 = vector.broadcast %c2_i32 : i32 to vector<1x4xi32>
    %60 = arith.cmpi eq, %8, %59 : vector<1x4xi32>
    %61 = arith.extui %60 : vector<1x4xi1> to vector<1x4xi32>
    %62 = arith.sitofp %61 : vector<1x4xi32> to vector<1x4xf32>
    %63 = vector.broadcast %58 : vector<8x1xf32> to vector<8x4xf32>
    %64 = vector.broadcast %62 : vector<1x4xf32> to vector<8x4xf32>
    %65 = arith.mulf %63, %64 : vector<8x4xf32>
    %66 = arith.addf %47, %65 : vector<8x4xf32>
    %c768_i32_12 = arith.constant 768 : i32
    %67 = vector.broadcast %c768_i32_12 : i32 to vector<1x1024xi32>
    %68 = arith.cmpi sge, %7, %67 : vector<1x1024xi32>
    %c1024_i32_13 = arith.constant 1024 : i32
    %69 = vector.broadcast %c1024_i32_13 : i32 to vector<1x1024xi32>
    %70 = arith.cmpi slt, %7, %69 : vector<1x1024xi32>
    %71 = arith.andi %68, %70 : vector<1x1024xi1>
    %cst_14 = arith.constant 0.000000e+00 : f32
    %72 = vector.shape_cast %71 : vector<1x1024xi1> to vector<1x1024xi1>
    %73 = vector.broadcast %72 : vector<1x1024xi1> to vector<8x1024xi1>
    %74 = vector.broadcast %cst_14 : f32 to vector<8x1024xf32>
    %75 = arith.select %73, %3, %74 : vector<8x1024xi1>, vector<8x1024xf32>
    %cst_15 = arith.constant dense<0.000000e+00> : vector<8xf32>
    %76 = vector.multi_reduction <add>, %75, %cst_15 [1] : vector<8x1024xf32> to vector<8xf32>
    %77 = vector.shape_cast %76 : vector<8xf32> to vector<8x1xf32>
    %c3_i32 = arith.constant 3 : i32
    %78 = vector.broadcast %c3_i32 : i32 to vector<1x4xi32>
    %79 = arith.cmpi eq, %8, %78 : vector<1x4xi32>
    %80 = arith.extui %79 : vector<1x4xi1> to vector<1x4xi32>
    %81 = arith.sitofp %80 : vector<1x4xi32> to vector<1x4xf32>
    %82 = vector.broadcast %77 : vector<8x1xf32> to vector<8x4xf32>
    %83 = vector.broadcast %81 : vector<1x4xf32> to vector<8x4xf32>
    %84 = arith.mulf %82, %83 : vector<8x4xf32>
    %85 = arith.addf %66, %84 : vector<8x4xf32>
    %c0_16 = arith.constant 0 : index
    %c0_17 = arith.constant 0 : index
    %86 = vector.load %arg12[%c0_16, %c0_17] : memref<8x4xf32, #tpu.memory_space<vmem>>, vector<8x4xf32>
    %87 = arith.addf %86, %85 : vector<8x4xf32>
    %c0_18 = arith.constant 0 : index
    %c0_19 = arith.constant 0 : index
    %88 = vector.load %arg12[%c0_18, %c0_19] : memref<8x4xf32, #tpu.memory_space<vmem>>, vector<8x4xf32>
    tpu.vector_store %arg12[%c0_18, %c0_19], %87 {strides = array<i32>} : memref<8x4xf32, #tpu.memory_space<vmem>>, vector<8x4xf32>,
    %c0_i32_20 = arith.constant 0 : i32
    %89 = arith.cmpi eq, %arg1, %c0_i32_20 : i32
    %90 = arith.extui %89 : i1 to i32
    %c0_i32_21 = arith.constant 0 : i32
    %91 = arith.cmpi ne, %90, %c0_i32_21 : i32
    scf.if %91 {
      %c0_22 = arith.constant 0 : index
      %c0_23 = arith.constant 0 : index
      %92 = vector.load %arg12[%c0_22, %c0_23] : memref<8x4xf32, #tpu.memory_space<vmem>>, vector<8x4xf32>
      %cst_24 = arith.constant 3.906250e-03 : f32
      %93 = vector.broadcast %cst_24 : f32 to vector<8x4xf32>
      %94 = arith.mulf %92, %93 : vector<8x4xf32>
      %95 = arith.truncf %94 : vector<8x4xf32> to vector<8x4xbf16>
      %c0_25 = arith.constant 0 : index
      %c0_26 = arith.constant 0 : index
      %96 = vector.load %arg4[%c0_25, %c0_26] : memref<4x1024xbf16, #tpu.memory_space<vmem>>, vector<4x1024xbf16>
      %cst_27 = arith.constant dense<0.000000e+00> : vector<8x1024xf32>
      %97 = tpu.matmul %95, %96, %cst_27 {dimension_numbers = #tpu.dot_dimension_numbers<[1], [0], [0], [1], [0, 0, 1, 1], [], []>} : vector<8x4xbf16>, vector<4x1024xbf16>, vector<8x1024xf32> -> vector<8x1024xf32>
      %c0_28 = arith.constant 0 : index
      %c0_29 = arith.constant 0 : index
      %98 = vector.load %arg5[%c0_28, %c0_29] : memref<1x1024xf32, #tpu.memory_space<vmem>>, vector<1x1024xf32>
      %99 = vector.broadcast %98 : vector<1x1024xf32> to vector<8x1024xf32>
      %100 = arith.addf %97, %99 : vector<8x1024xf32>
      %101 = arith.truncf %100 : vector<8x1024xf32> to vector<8x1024xbf16>
      %c0_30 = arith.constant 0 : index
      %c0_31 = arith.constant 0 : index
      %102 = vector.load %arg8[%c0_30, %c0_31] : memref<1024x128xbf16, #tpu.memory_space<vmem>>, vector<1024x128xbf16>
      %cst_32 = arith.constant dense<0.000000e+00> : vector<8x128xf32>
      %103 = tpu.matmul %101, %102, %cst_32 {dimension_numbers = #tpu.dot_dimension_numbers<[1], [0], [0], [1], [0, 0, 1, 1], [], []>} : vector<8x1024xbf16>, vector<1024x128xbf16>, vector<8x128xf32> -> vector<8x128xf32>
      %c0_33 = arith.constant 0 : index
      %c0_34 = arith.constant 0 : index
      %104 = vector.load %arg13[%c0_33, %c0_34] : memref<8x2048xbf16, #tpu.memory_space<vmem>>, vector<8x2048xbf16>
      %c0_35 = arith.constant 0 : index
      %c0_36 = arith.constant 0 : index
      %105 = vector.load %arg9[%c0_35, %c0_36] : memref<2048x128xbf16, #tpu.memory_space<vmem>>, vector<2048x128xbf16>
      %cst_37 = arith.constant dense<0.000000e+00> : vector<8x128xf32>
      %106 = tpu.matmul %104, %105, %cst_37 {dimension_numbers = #tpu.dot_dimension_numbers<[1], [0], [0], [1], [0, 0, 1, 1], [], []>} : vector<8x2048xbf16>, vector<2048x128xbf16>, vector<8x128xf32> -> vector<8x128xf32>
      %107 = arith.addf %103, %106 : vector<8x128xf32>
      %c0_38 = arith.constant 0 : index
      %c0_39 = arith.constant 0 : index
      %108 = vector.load %arg10[%c0_38, %c0_39] : memref<1x128xf32, #tpu.memory_space<vmem>>, vector<1x128xf32>
      %109 = vector.broadcast %108 : vector<1x128xf32> to vector<8x128xf32>
      %110 = arith.addf %107, %109 : vector<8x128xf32>
      %c0_40 = arith.constant 0 : index
      %c0_41 = arith.constant 0 : index
      %111 = vector.load %arg11[%c0_40, %c0_41] : memref<8x128xf32, #tpu.memory_space<vmem>>, vector<8x128xf32>
      tpu.vector_store %arg11[%c0_40, %c0_41], %110 {strides = array<i32>} : memref<8x128xf32, #tpu.memory_space<vmem>>, vector<8x128xf32>,
    } else {
    }
    return
  }
  func.func @transform_0(%arg0: i32, %arg1: i32) -> (i32, i32) {
    %c0_i32 = arith.constant 0 : i32
    return %arg0, %arg1 : i32, i32
  }
  func.func @transform_1(%arg0: i32, %arg1: i32) -> (i32, i32) {
    %c0_i32 = arith.constant 0 : i32
    %c0_i32_0 = arith.constant 0 : i32
    return %arg0, %c0_i32 : i32, i32
  }
  func.func @transform_2(%arg0: i32, %arg1: i32) -> (i32, i32) {
    %c0_i32 = arith.constant 0 : i32
    %c0_i32_0 = arith.constant 0 : i32
    %c0_i32_1 = arith.constant 0 : i32
    return %c0_i32, %c0_i32_0 : i32, i32
  }
  func.func @transform_3(%arg0: i32, %arg1: i32) -> (i32, i32) {
    %c0_i32 = arith.constant 0 : i32
    %c0_i32_0 = arith.constant 0 : i32
    %c0_i32_1 = arith.constant 0 : i32
    return %c0_i32, %c0_i32_0 : i32, i32
  }
  func.func @transform_4(%arg0: i32, %arg1: i32) -> (i32, i32) {
    %c0_i32 = arith.constant 0 : i32
    %c0_i32_0 = arith.constant 0 : i32
    %c0_i32_1 = arith.constant 0 : i32
    return %c0_i32, %c0_i32_0 : i32, i32
  }
  func.func @transform_5(%arg0: i32, %arg1: i32) -> (i32, i32) {
    %c0_i32 = arith.constant 0 : i32
    %c0_i32_0 = arith.constant 0 : i32
    %c0_i32_1 = arith.constant 0 : i32
    return %c0_i32, %c0_i32_0 : i32, i32
  }
  func.func @transform_6(%arg0: i32, %arg1: i32) -> (i32, i32) {
    %c0_i32 = arith.constant 0 : i32
    %c0_i32_0 = arith.constant 0 : i32
    %c0_i32_1 = arith.constant 0 : i32
    return %c0_i32, %c0_i32_0 : i32, i32
  }
  func.func @transform_7(%arg0: i32, %arg1: i32) -> (i32, i32) {
    %c0_i32 = arith.constant 0 : i32
    %c0_i32_0 = arith.constant 0 : i32
    %c0_i32_1 = arith.constant 0 : i32
    return %c0_i32, %c0_i32_0 : i32, i32
  }
  func.func @transform_8(%arg0: i32, %arg1: i32) -> (i32, i32) {
    %c0_i32 = arith.constant 0 : i32
    %c0_i32_0 = arith.constant 0 : i32
    %c0_i32_1 = arith.constant 0 : i32
    return %c0_i32, %c0_i32_0 : i32, i32
  }
  func.func @transform_9(%arg0: i32, %arg1: i32) -> (i32, i32) {
    %c0_i32 = arith.constant 0 : i32
    %c0_i32_0 = arith.constant 0 : i32
    return %arg0, %c0_i32 : i32, i32
  }
}

module attributes {stable_mosaic.version = 11 : i64} {
  func.func @vqa_kernel(%arg0: i32, %arg1: i32, %arg2: memref<8x1024xf32, #tpu.memory_space<vmem>>, %arg3: memref<8x128xbf16, #tpu.memory_space<vmem>>, %arg4: memref<4x1024xbf16, #tpu.memory_space<vmem>>, %arg5: memref<1x1024xf32, #tpu.memory_space<vmem>>, %arg6: memref<128x2048xbf16, #tpu.memory_space<vmem>>, %arg7: memref<1x2048xf32, #tpu.memory_space<vmem>>, %arg8: memref<1024x128xbf16, #tpu.memory_space<vmem>>, %arg9: memref<2048x128xbf16, #tpu.memory_space<vmem>>, %arg10: memref<1x128xf32, #tpu.memory_space<vmem>>, %arg11: memref<8x128xf32, #tpu.memory_space<vmem>>, %arg12: memref<8x4xf32, #tpu.memory_space<vmem>>, %arg13: memref<8x2048xbf16, #tpu.memory_space<vmem>>) attributes {dimension_semantics = [#tpu.dimension_semantics<parallel>, #tpu.dimension_semantics<arbitrary>], iteration_bounds = array<i64: 1, 1>, scalar_prefetch = 0 : i64, scratch_operands = 2 : i64, tpu.core_type = #tpu.core_type<tc>, window_params = [{transform_indices = @transform_0, window_bounds = array<i64: 8, 1024>}, {transform_indices = @transform_1, window_bounds = array<i64: 8, 128>}, {pipeline_mode = #tpu.pipeline_mode<synchronous>, transform_indices = @transform_2, window_bounds = array<i64: 4, 1024>}, {pipeline_mode = #tpu.pipeline_mode<synchronous>, transform_indices = @transform_3, window_bounds = array<i64: 1, 1024>}, {pipeline_mode = #tpu.pipeline_mode<synchronous>, transform_indices = @transform_4, window_bounds = array<i64: 128, 2048>}, {pipeline_mode = #tpu.pipeline_mode<synchronous>, transform_indices = @transform_5, window_bounds = array<i64: 1, 2048>}, {pipeline_mode = #tpu.pipeline_mode<synchronous>, transform_indices = @transform_6, window_bounds = array<i64: 1024, 128>}, {pipeline_mode = #tpu.pipeline_mode<synchronous>, transform_indices = @transform_7, window_bounds = array<i64: 2048, 128>}, {pipeline_mode = #tpu.pipeline_mode<synchronous>, transform_indices = @transform_8, window_bounds = array<i64: 1, 128>}, {transform_indices = @transform_9, window_bounds = array<i64: 8, 128>}]} {
    %c0_i32 = arith.constant 0 : i32
    %0 = arith.cmpi eq, %arg1, %c0_i32 : i32
    %1 = arith.extui %0 : i1 to i32
    %c0_i32_0 = arith.constant 0 : i32
    %2 = arith.cmpi ne, %1, %c0_i32_0 : i32
    scf.if %2 {
      %cst_22 = arith.constant 0.000000e+00 : f32
      %92 = vector.broadcast %cst_22 : f32 to vector<8x4xf32>
      %c0_23 = arith.constant 0 : index
      %c0_24 = arith.constant 0 : index
      %93 = vector.load %arg12[%c0_23, %c0_24] : memref<8x4xf32, #tpu.memory_space<vmem>>, vector<8x4xf32>
      tpu.vector_store %arg12[%c0_23, %c0_24], %92 {strides = array<i32>} : memref<8x4xf32, #tpu.memory_space<vmem>>, vector<8x4xf32>,
      %c0_25 = arith.constant 0 : index
      %c0_26 = arith.constant 0 : index
      %94 = vector.load %arg3[%c0_25, %c0_26] : memref<8x128xbf16, #tpu.memory_space<vmem>>, vector<8x128xbf16>
      %c0_27 = arith.constant 0 : index
      %c0_28 = arith.constant 0 : index
      %95 = vector.load %arg6[%c0_27, %c0_28] : memref<128x2048xbf16, #tpu.memory_space<vmem>>, vector<128x2048xbf16>
      %cst_29 = arith.constant dense<0.000000e+00> : vector<8x2048xf32>
      %96 = tpu.matmul %94, %95, %cst_29 {dimension_numbers = #tpu.dot_dimension_numbers<[1], [0], [0], [1], [0, 0, 1, 1], [], []>} : vector<8x128xbf16>, vector<128x2048xbf16>, vector<8x2048xf32> -> vector<8x2048xf32>
      %c0_30 = arith.constant 0 : index
      %c0_31 = arith.constant 0 : index
      %97 = vector.load %arg7[%c0_30, %c0_31] : memref<1x2048xf32, #tpu.memory_space<vmem>>, vector<1x2048xf32>
      %98 = vector.broadcast %97 : vector<1x2048xf32> to vector<8x2048xf32>
      %99 = arith.addf %96, %98 : vector<8x2048xf32>
      %100 = arith.truncf %99 : vector<8x2048xf32> to vector<8x2048xbf16>
      %c0_32 = arith.constant 0 : index
      %c0_33 = arith.constant 0 : index
      %101 = vector.load %arg13[%c0_32, %c0_33] : memref<8x2048xbf16, #tpu.memory_space<vmem>>, vector<8x2048xbf16>
      tpu.vector_store %arg13[%c0_32, %c0_33], %100 {strides = array<i32>} : memref<8x2048xbf16, #tpu.memory_space<vmem>>, vector<8x2048xbf16>,
    } else {
    }
    %c0 = arith.constant 0 : index
    %c0_1 = arith.constant 0 : index
    %3 = vector.load %arg2[%c0, %c0_1] : memref<8x1024xf32, #tpu.memory_space<vmem>>, vector<8x1024xf32>
    %4 = tpu.iota {dimensions = array<i32: 1>} : vector<1x1024xi32>
    %c1024_i32 = arith.constant 1024 : i32
    %5 = arith.muli %arg1, %c1024_i32 : i32
    %6 = vector.broadcast %5 : i32 to vector<1x1024xi32>
    %7 = arith.addi %4, %6 : vector<1x1024xi32>
    %8 = tpu.iota {dimensions = array<i32: 1>} : vector<1x4xi32>
    %cst = arith.constant 0.000000e+00 : f32
    %9 = vector.broadcast %cst : f32 to vector<8x4xf32>
    %c0_i32_2 = arith.constant 0 : i32
    %10 = vector.broadcast %c0_i32_2 : i32 to vector<1x1024xi32>
    %11 = arith.cmpi sge, %7, %10 : vector<1x1024xi32>
    %c256_i32 = arith.constant 256 : i32
    %12 = vector.broadcast %c256_i32 : i32 to vector<1x1024xi32>
    %13 = arith.cmpi slt, %7, %12 : vector<1x1024xi32>
    %14 = arith.andi %11, %13 : vector<1x1024xi1>
    %cst_3 = arith.constant 0.000000e+00 : f32
    %15 = vector.shape_cast %14 : vector<1x1024xi1> to vector<1x1024xi1>
    %16 = vector.broadcast %15 : vector<1x1024xi1> to vector<8x1024xi1>
    %17 = vector.broadcast %cst_3 : f32 to vector<8x1024xf32>
    %18 = arith.select %16, %3, %17 : vector<8x1024xi1>, vector<8x1024xf32>
    %cst_4 = arith.constant dense<0.000000e+00> : vector<8xf32>
    %19 = vector.multi_reduction <add>, %18, %cst_4 [1] : vector<8x1024xf32> to vector<8xf32>
    %20 = vector.shape_cast %19 : vector<8xf32> to vector<8x1xf32>
    %c0_i32_5 = arith.constant 0 : i32
    %21 = vector.broadcast %c0_i32_5 : i32 to vector<1x4xi32>
    %22 = arith.cmpi eq, %8, %21 : vector<1x4xi32>
    %23 = arith.extui %22 : vector<1x4xi1> to vector<1x4xi32>
    %24 = arith.sitofp %23 : vector<1x4xi32> to vector<1x4xf32>
    %25 = vector.broadcast %20 : vector<8x1xf32> to vector<8x4xf32>
    %26 = vector.broadcast %24 : vector<1x4xf32> to vector<8x4xf32>
    %27 = arith.mulf %25, %26 : vector<8x4xf32>
    %28 = arith.addf %9, %27 : vector<8x4xf32>
    %c256_i32_6 = arith.constant 256 : i32
    %29 = vector.broadcast %c256_i32_6 : i32 to vector<1x1024xi32>
    %30 = arith.cmpi sge, %7, %29 : vector<1x1024xi32>
    %c512_i32 = arith.constant 512 : i32
    %31 = vector.broadcast %c512_i32 : i32 to vector<1x1024xi32>
    %32 = arith.cmpi slt, %7, %31 : vector<1x1024xi32>
    %33 = arith.andi %30, %32 : vector<1x1024xi1>
    %cst_7 = arith.constant 0.000000e+00 : f32
    %34 = vector.shape_cast %33 : vector<1x1024xi1> to vector<1x1024xi1>
    %35 = vector.broadcast %34 : vector<1x1024xi1> to vector<8x1024xi1>
    %36 = vector.broadcast %cst_7 : f32 to vector<8x1024xf32>
    %37 = arith.select %35, %3, %36 : vector<8x1024xi1>, vector<8x1024xf32>
    %cst_8 = arith.constant dense<0.000000e+00> : vector<8xf32>
    %38 = vector.multi_reduction <add>, %37, %cst_8 [1] : vector<8x1024xf32> to vector<8xf32>
    %39 = vector.shape_cast %38 : vector<8xf32> to vector<8x1xf32>
    %c1_i32 = arith.constant 1 : i32
    %40 = vector.broadcast %c1_i32 : i32 to vector<1x4xi32>
    %41 = arith.cmpi eq, %8, %40 : vector<1x4xi32>
    %42 = arith.extui %41 : vector<1x4xi1> to vector<1x4xi32>
    %43 = arith.sitofp %42 : vector<1x4xi32> to vector<1x4xf32>
    %44 = vector.broadcast %39 : vector<8x1xf32> to vector<8x4xf32>
    %45 = vector.broadcast %43 : vector<1x4xf32> to vector<8x4xf32>
    %46 = arith.mulf %44, %45 : vector<8x4xf32>
    %47 = arith.addf %28, %46 : vector<8x4xf32>
    %c512_i32_9 = arith.constant 512 : i32
    %48 = vector.broadcast %c512_i32_9 : i32 to vector<1x1024xi32>
    %49 = arith.cmpi sge, %7, %48 : vector<1x1024xi32>
    %c768_i32 = arith.constant 768 : i32
    %50 = vector.broadcast %c768_i32 : i32 to vector<1x1024xi32>
    %51 = arith.cmpi slt, %7, %50 : vector<1x1024xi32>
    %52 = arith.andi %49, %51 : vector<1x1024xi1>
    %cst_10 = arith.constant 0.000000e+00 : f32
    %53 = vector.shape_cast %52 : vector<1x1024xi1> to vector<1x1024xi1>
    %54 = vector.broadcast %53 : vector<1x1024xi1> to vector<8x1024xi1>
    %55 = vector.broadcast %cst_10 : f32 to vector<8x1024xf32>
    %56 = arith.select %54, %3, %55 : vector<8x1024xi1>, vector<8x1024xf32>
    %cst_11 = arith.constant dense<0.000000e+00> : vector<8xf32>
    %57 = vector.multi_reduction <add>, %56, %cst_11 [1] : vector<8x1024xf32> to vector<8xf32>
    %58 = vector.shape_cast %57 : vector<8xf32> to vector<8x1xf32>
    %c2_i32 = arith.constant 2 : i32
    %59 = vector.broadcast %c2_i32 : i32 to vector<1x4xi32>
    %60 = arith.cmpi eq, %8, %59 : vector<1x4xi32>
    %61 = arith.extui %60 : vector<1x4xi1> to vector<1x4xi32>
    %62 = arith.sitofp %61 : vector<1x4xi32> to vector<1x4xf32>
    %63 = vector.broadcast %58 : vector<8x1xf32> to vector<8x4xf32>
    %64 = vector.broadcast %62 : vector<1x4xf32> to vector<8x4xf32>
    %65 = arith.mulf %63, %64 : vector<8x4xf32>
    %66 = arith.addf %47, %65 : vector<8x4xf32>
    %c768_i32_12 = arith.constant 768 : i32
    %67 = vector.broadcast %c768_i32_12 : i32 to vector<1x1024xi32>
    %68 = arith.cmpi sge, %7, %67 : vector<1x1024xi32>
    %c1024_i32_13 = arith.constant 1024 : i32
    %69 = vector.broadcast %c1024_i32_13 : i32 to vector<1x1024xi32>
    %70 = arith.cmpi slt, %7, %69 : vector<1x1024xi32>
    %71 = arith.andi %68, %70 : vector<1x1024xi1>
    %cst_14 = arith.constant 0.000000e+00 : f32
    %72 = vector.shape_cast %71 : vector<1x1024xi1> to vector<1x1024xi1>
    %73 = vector.broadcast %72 : vector<1x1024xi1> to vector<8x1024xi1>
    %74 = vector.broadcast %cst_14 : f32 to vector<8x1024xf32>
    %75 = arith.select %73, %3, %74 : vector<8x1024xi1>, vector<8x1024xf32>
    %cst_15 = arith.constant dense<0.000000e+00> : vector<8xf32>
    %76 = vector.multi_reduction <add>, %75, %cst_15 [1] : vector<8x1024xf32> to vector<8xf32>
    %77 = vector.shape_cast %76 : vector<8xf32> to vector<8x1xf32>
    %c3_i32 = arith.constant 3 : i32
    %78 = vector.broadcast %c3_i32 : i32 to vector<1x4xi32>
    %79 = arith.cmpi eq, %8, %78 : vector<1x4xi32>
    %80 = arith.extui %79 : vector<1x4xi1> to vector<1x4xi32>
    %81 = arith.sitofp %80 : vector<1x4xi32> to vector<1x4xf32>
    %82 = vector.broadcast %77 : vector<8x1xf32> to vector<8x4xf32>
    %83 = vector.broadcast %81 : vector<1x4xf32> to vector<8x4xf32>
    %84 = arith.mulf %82, %83 : vector<8x4xf32>
    %85 = arith.addf %66, %84 : vector<8x4xf32>
    %c0_16 = arith.constant 0 : index
    %c0_17 = arith.constant 0 : index
    %86 = vector.load %arg12[%c0_16, %c0_17] : memref<8x4xf32, #tpu.memory_space<vmem>>, vector<8x4xf32>
    %87 = arith.addf %86, %85 : vector<8x4xf32>
    %c0_18 = arith.constant 0 : index
    %c0_19 = arith.constant 0 : index
    %88 = vector.load %arg12[%c0_18, %c0_19] : memref<8x4xf32, #tpu.memory_space<vmem>>, vector<8x4xf32>
    tpu.vector_store %arg12[%c0_18, %c0_19], %87 {strides = array<i32>} : memref<8x4xf32, #tpu.memory_space<vmem>>, vector<8x4xf32>,
    %c0_i32_20 = arith.constant 0 : i32
    %89 = arith.cmpi eq, %arg1, %c0_i32_20 : i32
    %90 = arith.extui %89 : i1 to i32
    %c0_i32_21 = arith.constant 0 : i32
    %91 = arith.cmpi ne, %90, %c0_i32_21 : i32
    scf.if %91 {
      %c0_22 = arith.constant 0 : index
      %c0_23 = arith.constant 0 : index
      %92 = vector.load %arg12[%c0_22, %c0_23] : memref<8x4xf32, #tpu.memory_space<vmem>>, vector<8x4xf32>
      %cst_24 = arith.constant 3.906250e-03 : f32
      %93 = vector.broadcast %cst_24 : f32 to vector<8x4xf32>
      %94 = arith.mulf %92, %93 : vector<8x4xf32>
      %95 = arith.truncf %94 : vector<8x4xf32> to vector<8x4xbf16>
      %c0_25 = arith.constant 0 : index
      %c0_26 = arith.constant 0 : index
      %96 = vector.load %arg4[%c0_25, %c0_26] : memref<4x1024xbf16, #tpu.memory_space<vmem>>, vector<4x1024xbf16>
      %cst_27 = arith.constant dense<0.000000e+00> : vector<8x1024xf32>
      %97 = tpu.matmul %95, %96, %cst_27 {dimension_numbers = #tpu.dot_dimension_numbers<[1], [0], [0], [1], [0, 0, 1, 1], [], []>} : vector<8x4xbf16>, vector<4x1024xbf16>, vector<8x1024xf32> -> vector<8x1024xf32>
      %c0_28 = arith.constant 0 : index
      %c0_29 = arith.constant 0 : index
      %98 = vector.load %arg5[%c0_28, %c0_29] : memref<1x1024xf32, #tpu.memory_space<vmem>>, vector<1x1024xf32>
      %99 = vector.broadcast %98 : vector<1x1024xf32> to vector<8x1024xf32>
      %100 = arith.addf %97, %99 : vector<8x1024xf32>
      %101 = arith.truncf %100 : vector<8x1024xf32> to vector<8x1024xbf16>
      %c0_30 = arith.constant 0 : index
      %c0_31 = arith.constant 0 : index
      %102 = vector.load %arg8[%c0_30, %c0_31] : memref<1024x128xbf16, #tpu.memory_space<vmem>>, vector<1024x128xbf16>
      %cst_32 = arith.constant dense<0.000000e+00> : vector<8x128xf32>
      %103 = tpu.matmul %101, %102, %cst_32 {dimension_numbers = #tpu.dot_dimension_numbers<[1], [0], [0], [1], [0, 0, 1, 1], [], []>} : vector<8x1024xbf16>, vector<1024x128xbf16>, vector<8x128xf32> -> vector<8x128xf32>
      %c0_33 = arith.constant 0 : index
      %c0_34 = arith.constant 0 : index
      %104 = vector.load %arg13[%c0_33, %c0_34] : memref<8x2048xbf16, #tpu.memory_space<vmem>>, vector<8x2048xbf16>
      %c0_35 = arith.constant 0 : index
      %c0_36 = arith.constant 0 : index
      %105 = vector.load %arg9[%c0_35, %c0_36] : memref<2048x128xbf16, #tpu.memory_space<vmem>>, vector<2048x128xbf16>
      %cst_37 = arith.constant dense<0.000000e+00> : vector<8x128xf32>
      %106 = tpu.matmul %104, %105, %cst_37 {dimension_numbers = #tpu.dot_dimension_numbers<[1], [0], [0], [1], [0, 0, 1, 1], [], []>} : vector<8x2048xbf16>, vector<2048x128xbf16>, vector<8x128xf32> -> vector<8x128xf32>
      %107 = arith.addf %103, %106 : vector<8x128xf32>
      %c0_38 = arith.constant 0 : index
      %c0_39 = arith.constant 0 : index
      %108 = vector.load %arg10[%c0_38, %c0_39] : memref<1x128xf32, #tpu.memory_space<vmem>>, vector<1x128xf32>
      %109 = vector.broadcast %108 : vector<1x128xf32> to vector<8x128xf32>
      %110 = arith.addf %107, %109 : vector<8x128xf32>
      %c0_40 = arith.constant 0 : index
      %c0_41 = arith.constant 0 : index
      %111 = vector.load %arg11[%c0_40, %c0_41] : memref<8x128xf32, #tpu.memory_space<vmem>>, vector<8x128xf32>
      tpu.vector_store %arg11[%c0_40, %c0_41], %110 {strides = array<i32>} : memref<8x128xf32, #tpu.memory_space<vmem>>, vector<8x128xf32>,
    } else {
    }
    return
  }
  func.func @transform_0(%arg0: i32, %arg1: i32) -> (i32, i32) {
    %c0_i32 = arith.constant 0 : i32
    return %arg0, %arg1 : i32, i32
  }
  func.func @transform_1(%arg0: i32, %arg1: i32) -> (i32, i32) {
    %c0_i32 = arith.constant 0 : i32
    %c0_i32_0 = arith.constant 0 : i32
    return %arg0, %c0_i32 : i32, i32
  }
  func.func @transform_2(%arg0: i32, %arg1: i32) -> (i32, i32) {
    %c0_i32 = arith.constant 0 : i32
    %c0_i32_0 = arith.constant 0 : i32
    %c0_i32_1 = arith.constant 0 : i32
    return %c0_i32, %c0_i32_0 : i32, i32
  }
  func.func @transform_3(%arg0: i32, %arg1: i32) -> (i32, i32) {
    %c0_i32 = arith.constant 0 : i32
    %c0_i32_0 = arith.constant 0 : i32
    %c0_i32_1 = arith.constant 0 : i32
    return %c0_i32, %c0_i32_0 : i32, i32
  }
  func.func @transform_4(%arg0: i32, %arg1: i32) -> (i32, i32) {
    %c0_i32 = arith.constant 0 : i32
    %c0_i32_0 = arith.constant 0 : i32
    %c0_i32_1 = arith.constant 0 : i32
    return %c0_i32, %c0_i32_0 : i32, i32
  }
  func.func @transform_5(%arg0: i32, %arg1: i32) -> (i32, i32) {
    %c0_i32 = arith.constant 0 : i32
    %c0_i32_0 = arith.constant 0 : i32
    %c0_i32_1 = arith.constant 0 : i32
    return %c0_i32, %c0_i32_0 : i32, i32
  }
  func.func @transform_6(%arg0: i32, %arg1: i32) -> (i32, i32) {
    %c0_i32 = arith.constant 0 : i32
    %c0_i32_0 = arith.constant 0 : i32
    %c0_i32_1 = arith.constant 0 : i32
    return %c0_i32, %c0_i32_0 : i32, i32
  }
  func.func @transform_7(%arg0: i32, %arg1: i32) -> (i32, i32) {
    %c0_i32 = arith.constant 0 : i32
    %c0_i32_0 = arith.constant 0 : i32
    %c0_i32_1 = arith.constant 0 : i32
    return %c0_i32, %c0_i32_0 : i32, i32
  }
  func.func @transform_8(%arg0: i32, %arg1: i32) -> (i32, i32) {
    %c0_i32 = arith.constant 0 : i32
    %c0_i32_0 = arith.constant 0 : i32
    %c0_i32_1 = arith.constant 0 : i32
    return %c0_i32, %c0_i32_0 : i32, i32
  }
  func.func @transform_9(%arg0: i32, %arg1: i32) -> (i32, i32) {
    %c0_i32 = arith.constant 0 : i32
    %c0_i32_0 = arith.constant 0 : i32
    return %arg0, %c0_i32 : i32, i32
  }
}

</mosaic_0001>

<llo_original>
// kernel: tpu_custom_call.1
$region0: #{tpu_custom_call.1}
  #allocation0 [shape = 'u32[]', space=smem, size = 0x4, offset = 0x4, fixed_abs, tag = 'smem constant byte address 0x4 - core index']
  #allocation1 [shape = 'u32[144,128]{1,0:T(1,128)}', space=vmem, size = 0x12000, scoped, tag = 'internal scratch']
  #allocation2 [shape = 'f32[8,4]{1,0:T(8,128)}', space=vmem, size = 0x1000, scoped, tag = 'scratch operand']
  #allocation3 [shape = 'bf16[8,2048]{1,0:T(8,128)(2,1)}', space=vmem, size = 0x8000, scoped, tag = 'scratch operand']
  %s0 = inlined_call_operand.hbm [shape: f32[2,1024], index: 0, kind: input, shape index: {}]
  %s1 = inlined_call_operand.vmem [shape: bf16[2,128], index: 1, kind: input, shape index: {}]
  %s2 = inlined_call_operand.hbm [shape: bf16[4,1024], index: 2, kind: input, shape index: {}]
  %s3 = inlined_call_operand.hbm [shape: f32[1,1024], index: 3, kind: input, shape index: {}]
  %s4 = inlined_call_operand.hbm [shape: bf16[128,2048], index: 4, kind: input, shape index: {}]
  %s5 = inlined_call_operand.vmem [shape: f32[1,2048], index: 5, kind: input, shape index: {}]
  %s6 = inlined_call_operand.hbm [shape: bf16[1024,128], index: 6, kind: input, shape index: {}]
  %s7 = inlined_call_operand.hbm [shape: bf16[2048,128], index: 7, kind: input, shape index: {}]
  %s8 = inlined_call_operand.vmem [shape: f32[1,128], index: 8, kind: input, shape index: {}]
  %s9 = inlined_call_operand.hbm [shape: f32[2,128], index: 9, kind: output, shape index: {}]
  %s10 = sld [smem:[#allocation0]]
  $region78: #{tpu_custom_call.1} parent=0
    _
  %s12 = ssub.s32 1, %s10
  %s13 = scalar_select 0, %s12, %s10
  $region1: #{tpu_custom_call.1} parent=0
    #allocation4 [shape = 'u8[32768]{0}', space=vmem, size = 0x8000, scoped, tag = 'input window, operand 0, single buffered']
    #allocation5 [shape = 's32[1]{0}', space=sflag, size = 0x4, scoped, tag = 'scoped memory for tpu_custom_call.1']
    #allocation6 [shape = 's32[1]{0}', space=sflag, size = 0x4, scoped, tag = 'scoped memory for tpu_custom_call.1']
    #allocation7 [shape = 'u8[8192]{0}', space=vmem, size = 0x2000, scoped, tag = 'input window, operand 2, single buffered']
    #allocation8 [shape = 's32[1]{0}', space=sflag, size = 0x4, scoped, tag = 'scoped memory for tpu_custom_call.1']
    #allocation9 [shape = 'u8[4096]{0}', space=vmem, size = 0x1000, scoped, tag = 'input window, operand 3, single buffered']
    #allocation10 [shape = 'u8[524288]{0}', space=vmem, size = 0x80000, scoped, tag = 'input window, operand 4, single buffered']
    #allocation11 [shape = 's32[1]{0}', space=sflag, size = 0x4, scoped, tag = 'scoped memory for tpu_custom_call.1']
    #allocation12 [shape = 'u8[262144]{0}', space=vmem, size = 0x40000, scoped, tag = 'input window, operand 6, single buffered']
    #allocation13 [shape = 'u8[524288]{0}', space=vmem, size = 0x80000, scoped, tag = 'input window, operand 7, single buffered']
    #allocation14 [shape = 's32[1]{0}', space=sflag, size = 0x4, scoped, tag = 'scoped memory for tpu_custom_call.1']
    #allocation15 [shape = 'u8[4096]{0}', space=vmem, size = 0x1000, scoped, tag = 'output window, operand 0, single buffered']
    %14 = vsyncpa [#allocation5], 0
    %15 = vsyncpa [#allocation8], 0
    %16 = vsyncpa [#allocation11], 0
    %17 = vsyncpa [#allocation14], 0
    %18 = vsyncpa [#allocation6], 0
    // Predicated region
    $region2: #{tpu_custom_call.1} parent=1 // pred_check
      _
    $region3: #{tpu_custom_call.1} parent=1 // pred_check_branch
      %20 = sbr.rel (0) target = $region5
    $region4: #{tpu_custom_call.1} parent=1 // pred_region
      %s22 = ssub.s32 1024, 256
      %23 = vsyncadd [#allocation5], %s22
      %s24 = sshll.u32 [#allocation4], 4
      %s25 = int_to_ptr.vmem [resolvable:$true] %s24
      %30 = dma.hbm_to_vmem [thread:$0]  %s0, 256, %s25, [#allocation5], 256, 256, 16
    $region5: #{tpu_custom_call.1} parent=1 // pred_fallthru
      _
    // Predicated region
    $region6: #{tpu_custom_call.1} parent=1 // pred_check
      _
    $region7: #{tpu_custom_call.1} parent=1 // pred_check_branch
      %32 = sbr.rel (0) target = $region9
    $region8: #{tpu_custom_call.1} parent=1 // pred_region
      _
    $region9: #{tpu_custom_call.1} parent=1 // pred_fallthru
      _
    // Predicated region
    $region10: #{tpu_custom_call.1} parent=1 // pred_check
      _
    $region11: #{tpu_custom_call.1} parent=1 // pred_check_branch
      %34 = sbr.rel (0) target = $region13
    $region12: #{tpu_custom_call.1} parent=1 // pred_region
      %s36 = ssub.s32 256, 256
      %37 = vsyncadd [#allocation8], %s36
      %s39 = sshll.u32 [#allocation7], 4
      %s40 = int_to_ptr.vmem [resolvable:$true] %s39
      %42 = dma.hbm_to_vmem [thread:$0]  %s2, 256, %s40, [#allocation8]
    $region13: #{tpu_custom_call.1} parent=1 // pred_fallthru
      _
    // Predicated region
    $region14: #{tpu_custom_call.1} parent=1 // pred_check
      _
    $region15: #{tpu_custom_call.1} parent=1 // pred_check_branch
      %44 = sbr.rel (0) target = $region17
    $region16: #{tpu_custom_call.1} parent=1 // pred_region
      %s46 = ssub.s32 128, 128
      %47 = vsyncadd [#allocation8], %s46
      %s49 = sshll.u32 [#allocation9], 4
      %s50 = int_to_ptr.vmem [resolvable:$true] %s49
      %52 = dma.hbm_to_vmem [thread:$0]  %s3, 128, %s50, [#allocation8]
    $region17: #{tpu_custom_call.1} parent=1 // pred_fallthru
      _
    // Predicated region
    $region18: #{tpu_custom_call.1} parent=1 // pred_check
      _
    $region19: #{tpu_custom_call.1} parent=1 // pred_check_branch
      %54 = sbr.rel (0) target = $region21
    $region20: #{tpu_custom_call.1} parent=1 // pred_region
      %s56 = ssub.s32 16384, 16384
      %57 = vsyncadd [#allocation11], %s56
      %s58 = sshll.u32 [#allocation10], 4
      %s59 = int_to_ptr.vmem [resolvable:$true] %s58
      %64 = dma.hbm_to_vmem [thread:$0]  %s4, 16384, %s59, [#allocation11], 1024, 1024, 64
    $region21: #{tpu_custom_call.1} parent=1 // pred_fallthru
      _
    // Predicated region
    $region22: #{tpu_custom_call.1} parent=1 // pred_check
      _
    $region23: #{tpu_custom_call.1} parent=1 // pred_check_branch
      %66 = sbr.rel (0) target = $region25
    $region24: #{tpu_custom_call.1} parent=1 // pred_region
      _
    $region25: #{tpu_custom_call.1} parent=1 // pred_fallthru
      _
    // Predicated region
    $region26: #{tpu_custom_call.1} parent=1 // pred_check
      _
    $region27: #{tpu_custom_call.1} parent=1 // pred_check_branch
      %68 = sbr.rel (0) target = $region29
    $region28: #{tpu_custom_call.1} parent=1 // pred_region
      %s70 = ssub.s32 8192, 8192
      %71 = vsyncadd [#allocation11], %s70
      %s72 = sshll.u32 [#allocation12], 4
      %s73 = int_to_ptr.vmem [resolvable:$true] %s72
      %78 = dma.hbm_to_vmem [thread:$0]  %s6, 8192, %s73, [#allocation11], 64, 64, 4
    $region29: #{tpu_custom_call.1} parent=1 // pred_fallthru
      _
    // Predicated region
    $region30: #{tpu_custom_call.1} parent=1 // pred_check
      _
    $region31: #{tpu_custom_call.1} parent=1 // pred_check_branch
      %80 = sbr.rel (0) target = $region33
    $region32: #{tpu_custom_call.1} parent=1 // pred_region
      %s82 = ssub.s32 16384, 16384
      %83 = vsyncadd [#allocation14], %s82
      %s84 = sshll.u32 [#allocation13], 4
      %s85 = int_to_ptr.vmem [resolvable:$true] %s84
      %90 = dma.hbm_to_vmem [thread:$0]  %s7, 16384, %s85, [#allocation14], 64, 64, 4
    $region33: #{tpu_custom_call.1} parent=1 // pred_fallthru
      _
    // Predicated region
    $region34: #{tpu_custom_call.1} parent=1 // pred_check
      _
    $region35: #{tpu_custom_call.1} parent=1 // pred_check_branch
      %92 = sbr.rel (0) target = $region37
    $region36: #{tpu_custom_call.1} parent=1 // pred_region
      _
    $region37: #{tpu_custom_call.1} parent=1 // pred_fallthru
      _
    // Predicated region
    $region38: #{tpu_custom_call.1} parent=1 // pred_check
      _
    $region39: #{tpu_custom_call.1} parent=1 // pred_check_branch
      %94 = sbr.rel (0) target = $region41
    $region40: #{tpu_custom_call.1} parent=1 // pred_region
      %95 = dma.done [#allocation5], 1024
    $region41: #{tpu_custom_call.1} parent=1 // pred_fallthru
      _
    // Predicated region
    $region42: #{tpu_custom_call.1} parent=1 // pred_check
      _
    $region43: #{tpu_custom_call.1} parent=1 // pred_check_branch
      %97 = sbr.rel (0) target = $region45
    $region44: #{tpu_custom_call.1} parent=1 // pred_region
      %98 = dma.done [#allocation8], 256
    $region45: #{tpu_custom_call.1} parent=1 // pred_fallthru
      _
    // Predicated region
    $region46: #{tpu_custom_call.1} parent=1 // pred_check
      _
    $region47: #{tpu_custom_call.1} parent=1 // pred_check_branch
      %100 = sbr.rel (0) target = $region49
    $region48: #{tpu_custom_call.1} parent=1 // pred_region
      %101 = dma.done [#allocation8], 128
    $region49: #{tpu_custom_call.1} parent=1 // pred_fallthru
      _
    // Predicated region
    $region50: #{tpu_custom_call.1} parent=1 // pred_check
      _
    $region51: #{tpu_custom_call.1} parent=1 // pred_check_branch
      %103 = sbr.rel (0) target = $region53
    $region52: #{tpu_custom_call.1} parent=1 // pred_region
      %104 = dma.done [#allocation11], 16384
    $region53: #{tpu_custom_call.1} parent=1 // pred_fallthru
      _
    // Predicated region
    $region54: #{tpu_custom_call.1} parent=1 // pred_check
      _
    $region55: #{tpu_custom_call.1} parent=1 // pred_check_branch
      %106 = sbr.rel (0) target = $region57
    $region56: #{tpu_custom_call.1} parent=1 // pred_region
      %107 = dma.done [#allocation11], 8192
    $region57: #{tpu_custom_call.1} parent=1 // pred_fallthru
      _
    // Predicated region
    $region58: #{tpu_custom_call.1} parent=1 // pred_check
      _
    $region59: #{tpu_custom_call.1} parent=1 // pred_check_branch
      %109 = sbr.rel (0) target = $region61
    $region60: #{tpu_custom_call.1} parent=1 // pred_region
      %110 = dma.done [#allocation14], 16384
    $region61: #{tpu_custom_call.1} parent=1 // pred_fallthru
      _
    %p112 = scmp.eq.s32.totalorder 0, 0
    // Predicated region
    $region62: #{tpu_custom_call.1} parent=1 // pred_check
      %p113 = pneg %p112
    $region63: #{tpu_custom_call.1} parent=1 // pred_check_branch
      %115 = sbr.rel (%p113) target = $region65
    $region64: #{tpu_custom_call.1} parent=1 // pred_region
      %vm116 = vcmask 31744
      %117 = vst.msk [vmem:[#allocation2] sm:$0xff] %vm116, 0.0
      %v118 = vld [vmem:[%s1] sm:$0x1]
      %v119 = vld [vmem:[%s1 + $0x1] sm:$0x1]
      %v120 = vld [vmem:[%s1 + $0x2] sm:$0x1]
      %v121 = vld [vmem:[%s1 + $0x3] sm:$0x1]
      %v122 = vld [vmem:[#allocation10] sm:$0xff]
      %v123 = vld [vmem:[#allocation10 + $0x8] sm:$0xff]
      %v124 = vld [vmem:[#allocation10 + $0x10] sm:$0xff]
      %v125 = vld [vmem:[#allocation10 + $0x18] sm:$0xff]
      %v126 = vld [vmem:[#allocation10 + $0x20] sm:$0xff]
      %v127 = vld [vmem:[#allocation10 + $0x28] sm:$0xff]
      %v128 = vld [vmem:[#allocation10 + $0x30] sm:$0xff]
      %v129 = vld [vmem:[#allocation10 + $0x38] sm:$0xff]
      %v130 = vld [vmem:[#allocation10 + $0x40] sm:$0xff]
      %v131 = vld [vmem:[#allocation10 + $0x48] sm:$0xff]
      %v132 = vld [vmem:[#allocation10 + $0x50] sm:$0xff]
      %v133 = vld [vmem:[#allocation10 + $0x58] sm:$0xff]
      %v134 = vld [vmem:[#allocation10 + $0x60] sm:$0xff]
      %v135 = vld [vmem:[#allocation10 + $0x68] sm:$0xff]
      %v136 = vld [vmem:[#allocation10 + $0x70] sm:$0xff]
      %v137 = vld [vmem:[#allocation10 + $0x78] sm:$0xff]
      %v138 = vld [vmem:[#allocation10 + $0x80] sm:$0xff]
      %v139 = vld [vmem:[#allocation10 + $0x88] sm:$0xff]
      %v140 = vld [vmem:[#allocation10 + $0x90] sm:$0xff]
      %v141 = vld [vmem:[#allocation10 + $0x98] sm:$0xff]
      %v142 = vld [vmem:[#allocation10 + $0xa0] sm:$0xff]
      %v143 = vld [vmem:[#allocation10 + $0xa8] sm:$0xff]
      %v144 = vld [vmem:[#allocation10 + $0xb0] sm:$0xff]
      %v145 = vld [vmem:[#allocation10 + $0xb8] sm:$0xff]
      %v146 = vld [vmem:[#allocation10 + $0xc0] sm:$0xff]
      %v147 = vld [vmem:[#allocation10 + $0xc8] sm:$0xff]
      %v148 = vld [vmem:[#allocation10 + $0xd0] sm:$0xff]
      %v149 = vld [vmem:[#allocation10 + $0xd8] sm:$0xff]
      %v150 = vld [vmem:[#allocation10 + $0xe0] sm:$0xff]
      %v151 = vld [vmem:[#allocation10 + $0xe8] sm:$0xff]
      %v152 = vld [vmem:[#allocation10 + $0xf0] sm:$0xff]
      %v153 = vld [vmem:[#allocation10 + $0xf8] sm:$0xff]
      %v154 = vld [vmem:[#allocation10 + $0x100] sm:$0xff]
      %v155 = vld [vmem:[#allocation10 + $0x108] sm:$0xff]
      %v156 = vld [vmem:[#allocation10 + $0x110] sm:$0xff]
      %v157 = vld [vmem:[#allocation10 + $0x118] sm:$0xff]
      %v158 = vld [vmem:[#allocation10 + $0x120] sm:$0xff]
      %v159 = vld [vmem:[#allocation10 + $0x128] sm:$0xff]
      %v160 = vld [vmem:[#allocation10 + $0x130] sm:$0xff]
      %v161 = vld [vmem:[#allocation10 + $0x138] sm:$0xff]
      %v162 = vld [vmem:[#allocation10 + $0x140] sm:$0xff]
      %v163 = vld [vmem:[#allocation10 + $0x148] sm:$0xff]
      %v164 = vld [vmem:[#allocation10 + $0x150] sm:$0xff]
      %v165 = vld [vmem:[#allocation10 + $0x158] sm:$0xff]
      %v166 = vld [vmem:[#allocation10 + $0x160] sm:$0xff]
      %v167 = vld [vmem:[#allocation10 + $0x168] sm:$0xff]
      %v168 = vld [vmem:[#allocation10 + $0x170] sm:$0xff]
      %v169 = vld [vmem:[#allocation10 + $0x178] sm:$0xff]
      %v170 = vld [vmem:[#allocation10 + $0x180] sm:$0xff]
      %v171 = vld [vmem:[#allocation10 + $0x188] sm:$0xff]
      %v172 = vld [vmem:[#allocation10 + $0x190] sm:$0xff]
      %v173 = vld [vmem:[#allocation10 + $0x198] sm:$0xff]
      %v174 = vld [vmem:[#allocation10 + $0x1a0] sm:$0xff]
      %v175 = vld [vmem:[#allocation10 + $0x1a8] sm:$0xff]
      %v176 = vld [vmem:[#allocation10 + $0x1b0] sm:$0xff]
      %v177 = vld [vmem:[#allocation10 + $0x1b8] sm:$0xff]
      %v178 = vld [vmem:[#allocation10 + $0x1c0] sm:$0xff]
      %v179 = vld [vmem:[#allocation10 + $0x1c8] sm:$0xff]
      %v180 = vld [vmem:[#allocation10 + $0x1d0] sm:$0xff]
      %v181 = vld [vmem:[#allocation10 + $0x1d8] sm:$0xff]
      %v182 = vld [vmem:[#allocation10 + $0x1e0] sm:$0xff]
      %v183 = vld [vmem:[#allocation10 + $0x1e8] sm:$0xff]
      %v184 = vld [vmem:[#allocation10 + $0x1f0] sm:$0xff]
      %v185 = vld [vmem:[#allocation10 + $0x1f8] sm:$0xff]
      %v186 = vld [vmem:[#allocation10 + $0x200] sm:$0xff]
      %v187 = vld [vmem:[#allocation10 + $0x208] sm:$0xff]
      %v188 = vld [vmem:[#allocation10 + $0x210] sm:$0xff]
      %v189 = vld [vmem:[#allocation10 + $0x218] sm:$0xff]
      %v190 = vld [vmem:[#allocation10 + $0x220] sm:$0xff]
      %v191 = vld [vmem:[#allocation10 + $0x228] sm:$0xff]
      %v192 = vld [vmem:[#allocation10 + $0x230] sm:$0xff]
      %v193 = vld [vmem:[#allocation10 + $0x238] sm:$0xff]
      %v194 = vld [vmem:[#allocation10 + $0x240] sm:$0xff]
      %v195 = vld [vmem:[#allocation10 + $0x248] sm:$0xff]
      %v196 = vld [vmem:[#allocation10 + $0x250] sm:$0xff]
      %v197 = vld [vmem:[#allocation10 + $0x258] sm:$0xff]
      %v198 = vld [vmem:[#allocation10 + $0x260] sm:$0xff]
      %v199 = vld [vmem:[#allocation10 + $0x268] sm:$0xff]
      %v200 = vld [vmem:[#allocation10 + $0x270] sm:$0xff]
      %v201 = vld [vmem:[#allocation10 + $0x278] sm:$0xff]
      %v202 = vld [vmem:[#allocation10 + $0x280] sm:$0xff]
      %v203 = vld [vmem:[#allocation10 + $0x288] sm:$0xff]
      %v204 = vld [vmem:[#allocation10 + $0x290] sm:$0xff]
      %v205 = vld [vmem:[#allocation10 + $0x298] sm:$0xff]
      %v206 = vld [vmem:[#allocation10 + $0x2a0] sm:$0xff]
      %v207 = vld [vmem:[#allocation10 + $0x2a8] sm:$0xff]
      %v208 = vld [vmem:[#allocation10 + $0x2b0] sm:$0xff]
      %v209 = vld [vmem:[#allocation10 + $0x2b8] sm:$0xff]
      %v210 = vld [vmem:[#allocation10 + $0x2c0] sm:$0xff]
      %v211 = vld [vmem:[#allocation10 + $0x2c8] sm:$0xff]
      %v212 = vld [vmem:[#allocation10 + $0x2d0] sm:$0xff]
      %v213 = vld [vmem:[#allocation10 + $0x2d8] sm:$0xff]
      %v214 = vld [vmem:[#allocation10 + $0x2e0] sm:$0xff]
      %v215 = vld [vmem:[#allocation10 + $0x2e8] sm:$0xff]
      %v216 = vld [vmem:[#allocation10 + $0x2f0] sm:$0xff]
      %v217 = vld [vmem:[#allocation10 + $0x2f8] sm:$0xff]
      %v218 = vld [vmem:[#allocation10 + $0x300] sm:$0xff]
      %v219 = vld [vmem:[#allocation10 + $0x308] sm:$0xff]
      %v220 = vld [vmem:[#allocation10 + $0x310] sm:$0xff]
      %v221 = vld [vmem:[#allocation10 + $0x318] sm:$0xff]
      %v222 = vld [vmem:[#allocation10 + $0x320] sm:$0xff]
      %v223 = vld [vmem:[#allocation10 + $0x328] sm:$0xff]
      %v224 = vld [vmem:[#allocation10 + $0x330] sm:$0xff]
      %v225 = vld [vmem:[#allocation10 + $0x338] sm:$0xff]
      %v226 = vld [vmem:[#allocation10 + $0x340] sm:$0xff]
      %v227 = vld [vmem:[#allocation10 + $0x348] sm:$0xff]
      %v228 = vld [vmem:[#allocation10 + $0x350] sm:$0xff]
      %v229 = vld [vmem:[#allocation10 + $0x358] sm:$0xff]
      %v230 = vld [vmem:[#allocation10 + $0x360] sm:$0xff]
      %v231 = vld [vmem:[#allocation10 + $0x368] sm:$0xff]
      %v232 = vld [vmem:[#allocation10 + $0x370] sm:$0xff]
      %v233 = vld [vmem:[#allocation10 + $0x378] sm:$0xff]
      %v234 = vld [vmem:[#allocation10 + $0x380] sm:$0xff]
      %v235 = vld [vmem:[#allocation10 + $0x388] sm:$0xff]
      %v236 = vld [vmem:[#allocation10 + $0x390] sm:$0xff]
      %v237 = vld [vmem:[#allocation10 + $0x398] sm:$0xff]
      %v238 = vld [vmem:[#allocation10 + $0x3a0] sm:$0xff]
      %v239 = vld [vmem:[#allocation10 + $0x3a8] sm:$0xff]
      %v240 = vld [vmem:[#allocation10 + $0x3b0] sm:$0xff]
      %v241 = vld [vmem:[#allocation10 + $0x3b8] sm:$0xff]
      %v242 = vld [vmem:[#allocation10 + $0x3c0] sm:$0xff]
      %v243 = vld [vmem:[#allocation10 + $0x3c8] sm:$0xff]
      %v244 = vld [vmem:[#allocation10 + $0x3d0] sm:$0xff]
      %v245 = vld [vmem:[#allocation10 + $0x3d8] sm:$0xff]
      %v246 = vld [vmem:[#allocation10 + $0x3e0] sm:$0xff]
      %v247 = vld [vmem:[#allocation10 + $0x3e8] sm:$0xff]
      %v248 = vld [vmem:[#allocation10 + $0x3f0] sm:$0xff]
      %v249 = vld [vmem:[#allocation10 + $0x3f8] sm:$0xff]
      %v250 = vld [vmem:[%s5] sm:$0xff]
      %v251 = vld [vmem:[%s5 + $0x8] sm:$0xff]
      %v254 = vlaneseq
      %v255 = vshrl.u32 %v254, 7
      %v256 = vsub.s32 0, %v255
      %v257 = vrot.slane %v250, %v256
      %v258 = vlaneseq
      %v259 = vshrl.u32 %v258, 7
      %v260 = vsub.s32 1, %v259
      %v261 = vrot.slane %v250, %v260
      %v262 = vlaneseq
      %v263 = vshrl.u32 %v262, 7
      %v264 = vsub.s32 2, %v263
      %v265 = vrot.slane %v250, %v264
      %v266 = vlaneseq
      %v267 = vshrl.u32 %v266, 7
      %v268 = vsub.s32 3, %v267
      %v269 = vrot.slane %v250, %v268
      %v270 = vlaneseq
      %v271 = vshrl.u32 %v270, 7
      %v272 = vsub.s32 4, %v271
      %v273 = vrot.slane %v250, %v272
      %v274 = vlaneseq
      %v275 = vshrl.u32 %v274, 7
      %v276 = vsub.s32 5, %v275
      %v277 = vrot.slane %v250, %v276
      %v278 = vlaneseq
      %v279 = vshrl.u32 %v278, 7
      %v280 = vsub.s32 6, %v279
      %v281 = vrot.slane %v250, %v280
      %v282 = vlaneseq
      %v283 = vshrl.u32 %v282, 7
      %v284 = vsub.s32 7, %v283
      %v285 = vrot.slane %v250, %v284
      %v286 = vlaneseq
      %v287 = vshrl.u32 %v286, 7
      %v288 = vsub.s32 0, %v287
      %v289 = vrot.slane %v251, %v288
      %v290 = vlaneseq
      %v291 = vshrl.u32 %v290, 7
      %v292 = vsub.s32 1, %v291
      %v293 = vrot.slane %v251, %v292
      %v294 = vlaneseq
      %v295 = vshrl.u32 %v294, 7
      %v296 = vsub.s32 2, %v295
      %v297 = vrot.slane %v251, %v296
      %v298 = vlaneseq
      %v299 = vshrl.u32 %v298, 7
      %v300 = vsub.s32 3, %v299
      %v301 = vrot.slane %v251, %v300
      %v302 = vlaneseq
      %v303 = vshrl.u32 %v302, 7
      %v304 = vsub.s32 4, %v303
      %v305 = vrot.slane %v251, %v304
      %v306 = vlaneseq
      %v307 = vshrl.u32 %v306, 7
      %v308 = vsub.s32 5, %v307
      %v309 = vrot.slane %v251, %v308
      %v310 = vlaneseq
      %v311 = vshrl.u32 %v310, 7
      %v312 = vsub.s32 6, %v311
      %v313 = vrot.slane %v251, %v312
      %v314 = vlaneseq
      %v315 = vshrl.u32 %v314, 7
      %v316 = vsub.s32 7, %v315
      %v317 = vrot.slane %v251, %v316
      %v338 = vcombine.low %v118, %v119
      %v339 = vcombine.low %v120, %v121
      %v341 = vunpack.c.l.s4 1966171168
      %v342 = vunpack.c.0.s8 %v341
      %v343 = vlaneseq
      %v344 = vshrl.u32 %v343, 7
      %v345 = vsub.s32 %v342, %v344
      %v346 = vrot.slane %v338, %v345
      %v348 = vunpack.c.l.s4 1966171168
      %v349 = vunpack.c.0.s8 %v348
      %v350 = vlaneseq
      %v351 = vshrl.u32 %v350, 7
      %v352 = vsub.s32 %v349, %v351
      %v353 = vrot.slane %v339, %v352
      %v354 = vcombine.low %v346, %v353
      %v356 = vunpack.c.l.s4 1966171168
      %v357 = vunpack.c.0.s8 %v356
      %v358 = vlaneseq
      %v359 = vshrl.u32 %v358, 7
      %v360 = vsub.s32 %v357, %v359
      %v361 = vrot.slane %v354, %v360
      %v491 = vunpack.c.l.b16 %v122
      %v492 = vunpack.c.h.b16 %v122
      %v493 = vunpack.c.l.b16 %v123
      %v494 = vunpack.c.h.b16 %v123
      %v495 = vunpack.c.l.b16 %v124
      %v496 = vunpack.c.h.b16 %v124
      %v497 = vunpack.c.l.b16 %v125
      %v498 = vunpack.c.h.b16 %v125
      %v499 = vunpack.c.l.b16 %v126
      %v500 = vunpack.c.h.b16 %v126
      %v501 = vunpack.c.l.b16 %v127
      %v502 = vunpack.c.h.b16 %v127
      %v503 = vunpack.c.l.b16 %v128
      %v504 = vunpack.c.h.b16 %v128
      %v505 = vunpack.c.l.b16 %v129
      %v506 = vunpack.c.h.b16 %v129
      %v507 = vunpack.c.l.b16 %v130
      %v508 = vunpack.c.h.b16 %v130
      %v509 = vunpack.c.l.b16 %v131
      %v510 = vunpack.c.h.b16 %v131
      %v511 = vunpack.c.l.b16 %v132
      %v512 = vunpack.c.h.b16 %v132
      %v513 = vunpack.c.l.b16 %v133
      %v514 = vunpack.c.h.b16 %v133
      %v515 = vunpack.c.l.b16 %v134
      %v516 = vunpack.c.h.b16 %v134
      %v517 = vunpack.c.l.b16 %v135
      %v518 = vunpack.c.h.b16 %v135
      %v519 = vunpack.c.l.b16 %v136
      %v520 = vunpack.c.h.b16 %v136
      %v521 = vunpack.c.l.b16 %v137
      %v522 = vunpack.c.h.b16 %v137
      %v523 = vunpack.c.l.b16 %v138
      %v524 = vunpack.c.h.b16 %v138
      %v525 = vunpack.c.l.b16 %v139
      %v526 = vunpack.c.h.b16 %v139
      %v527 = vunpack.c.l.b16 %v140
      %v528 = vunpack.c.h.b16 %v140
      %v529 = vunpack.c.l.b16 %v141
      %v530 = vunpack.c.h.b16 %v141
      %v531 = vunpack.c.l.b16 %v142
      %v532 = vunpack.c.h.b16 %v142
      %v533 = vunpack.c.l.b16 %v143
      %v534 = vunpack.c.h.b16 %v143
      %v535 = vunpack.c.l.b16 %v144
      %v536 = vunpack.c.h.b16 %v144
      %v537 = vunpack.c.l.b16 %v145
      %v538 = vunpack.c.h.b16 %v145
      %v539 = vunpack.c.l.b16 %v146
      %v540 = vunpack.c.h.b16 %v146
      %v541 = vunpack.c.l.b16 %v147
      %v542 = vunpack.c.h.b16 %v147
      %v543 = vunpack.c.l.b16 %v148
      %v544 = vunpack.c.h.b16 %v148
      %v545 = vunpack.c.l.b16 %v149
      %v546 = vunpack.c.h.b16 %v149
      %v547 = vunpack.c.l.b16 %v150
      %v548 = vunpack.c.h.b16 %v150
      %v549 = vunpack.c.l.b16 %v151
      %v550 = vunpack.c.h.b16 %v151
      %v551 = vunpack.c.l.b16 %v152
      %v552 = vunpack.c.h.b16 %v152
      %v553 = vunpack.c.l.b16 %v153
      %v554 = vunpack.c.h.b16 %v153
      %v555 = vunpack.c.l.b16 %v154
      %v556 = vunpack.c.h.b16 %v154
      %v557 = vunpack.c.l.b16 %v155
      %v558 = vunpack.c.h.b16 %v155
      %v559 = vunpack.c.l.b16 %v156
      %v560 = vunpack.c.h.b16 %v156
      %v561 = vunpack.c.l.b16 %v157
      %v562 = vunpack.c.h.b16 %v157
      %v563 = vunpack.c.l.b16 %v158
      %v564 = vunpack.c.h.b16 %v158
      %v565 = vunpack.c.l.b16 %v159
      %v566 = vunpack.c.h.b16 %v159
      %v567 = vunpack.c.l.b16 %v160
      %v568 = vunpack.c.h.b16 %v160
      %v569 = vunpack.c.l.b16 %v161
      %v570 = vunpack.c.h.b16 %v161
      %v571 = vunpack.c.l.b16 %v162
      %v572 = vunpack.c.h.b16 %v162
      %v573 = vunpack.c.l.b16 %v163
      %v574 = vunpack.c.h.b16 %v163
      %v575 = vunpack.c.l.b16 %v164
      %v576 = vunpack.c.h.b16 %v164
      %v577 = vunpack.c.l.b16 %v165
      %v578 = vunpack.c.h.b16 %v165
      %v579 = vunpack.c.l.b16 %v166
      %v580 = vunpack.c.h.b16 %v166
      %v581 = vunpack.c.l.b16 %v167
      %v582 = vunpack.c.h.b16 %v167
      %v583 = vunpack.c.l.b16 %v168
      %v584 = vunpack.c.h.b16 %v168
      %v585 = vunpack.c.l.b16 %v169
      %v586 = vunpack.c.h.b16 %v169
      %v587 = vunpack.c.l.b16 %v170
      %v588 = vunpack.c.h.b16 %v170
      %v589 = vunpack.c.l.b16 %v171
      %v590 = vunpack.c.h.b16 %v171
      %v591 = vunpack.c.l.b16 %v172
      %v592 = vunpack.c.h.b16 %v172
      %v593 = vunpack.c.l.b16 %v173
      %v594 = vunpack.c.h.b16 %v173
      %v595 = vunpack.c.l.b16 %v174
      %v596 = vunpack.c.h.b16 %v174
      %v597 = vunpack.c.l.b16 %v175
      %v598 = vunpack.c.h.b16 %v175
      %v599 = vunpack.c.l.b16 %v176
      %v600 = vunpack.c.h.b16 %v176
      %v601 = vunpack.c.l.b16 %v177
      %v602 = vunpack.c.h.b16 %v177
      %v603 = vunpack.c.l.b16 %v178
      %v604 = vunpack.c.h.b16 %v178
      %v605 = vunpack.c.l.b16 %v179
      %v606 = vunpack.c.h.b16 %v179
      %v607 = vunpack.c.l.b16 %v180
      %v608 = vunpack.c.h.b16 %v180
      %v609 = vunpack.c.l.b16 %v181
      %v610 = vunpack.c.h.b16 %v181
      %v611 = vunpack.c.l.b16 %v182
      %v612 = vunpack.c.h.b16 %v182
      %v613 = vunpack.c.l.b16 %v183
      %v614 = vunpack.c.h.b16 %v183
      %v615 = vunpack.c.l.b16 %v184
      %v616 = vunpack.c.h.b16 %v184
      %v617 = vunpack.c.l.b16 %v185
      %v618 = vunpack.c.h.b16 %v185
      %v619 = vunpack.c.l.b16 %v186
      %v620 = vunpack.c.h.b16 %v186
      %v621 = vunpack.c.l.b16 %v187
      %v622 = vunpack.c.h.b16 %v187
      %v623 = vunpack.c.l.b16 %v188
      %v624 = vunpack.c.h.b16 %v188
      %v625 = vunpack.c.l.b16 %v189
      %v626 = vunpack.c.h.b16 %v189
      %v627 = vunpack.c.l.b16 %v190
      %v628 = vunpack.c.h.b16 %v190
      %v629 = vunpack.c.l.b16 %v191
      %v630 = vunpack.c.h.b16 %v191
      %v631 = vunpack.c.l.b16 %v192
      %v632 = vunpack.c.h.b16 %v192
      %v633 = vunpack.c.l.b16 %v193
      %v634 = vunpack.c.h.b16 %v193
      %v635 = vunpack.c.l.b16 %v194
      %v636 = vunpack.c.h.b16 %v194
      %v637 = vunpack.c.l.b16 %v195
      %v638 = vunpack.c.h.b16 %v195
      %v639 = vunpack.c.l.b16 %v196
      %v640 = vunpack.c.h.b16 %v196
      %v641 = vunpack.c.l.b16 %v197
      %v642 = vunpack.c.h.b16 %v197
      %v643 = vunpack.c.l.b16 %v198
      %v644 = vunpack.c.h.b16 %v198
      %v645 = vunpack.c.l.b16 %v199
      %v646 = vunpack.c.h.b16 %v199
      %v647 = vunpack.c.l.b16 %v200
      %v648 = vunpack.c.h.b16 %v200
      %v649 = vunpack.c.l.b16 %v201
      %v650 = vunpack.c.h.b16 %v201
      %v651 = vunpack.c.l.b16 %v202
      %v652 = vunpack.c.h.b16 %v202
      %v653 = vunpack.c.l.b16 %v203
      %v654 = vunpack.c.h.b16 %v203
      %v655 = vunpack.c.l.b16 %v204
      %v656 = vunpack.c.h.b16 %v204
      %v657 = vunpack.c.l.b16 %v205
      %v658 = vunpack.c.h.b16 %v205
      %v659 = vunpack.c.l.b16 %v206
      %v660 = vunpack.c.h.b16 %v206
      %v661 = vunpack.c.l.b16 %v207
      %v662 = vunpack.c.h.b16 %v207
      %v663 = vunpack.c.l.b16 %v208
      %v664 = vunpack.c.h.b16 %v208
      %v665 = vunpack.c.l.b16 %v209
      %v666 = vunpack.c.h.b16 %v209
      %v667 = vunpack.c.l.b16 %v210
      %v668 = vunpack.c.h.b16 %v210
      %v669 = vunpack.c.l.b16 %v211
      %v670 = vunpack.c.h.b16 %v211
      %v671 = vunpack.c.l.b16 %v212
      %v672 = vunpack.c.h.b16 %v212
      %v673 = vunpack.c.l.b16 %v213
      %v674 = vunpack.c.h.b16 %v213
      %v675 = vunpack.c.l.b16 %v214
      %v676 = vunpack.c.h.b16 %v214
      %v677 = vunpack.c.l.b16 %v215
      %v678 = vunpack.c.h.b16 %v215
      %v679 = vunpack.c.l.b16 %v216
      %v680 = vunpack.c.h.b16 %v216
      %v681 = vunpack.c.l.b16 %v217
      %v682 = vunpack.c.h.b16 %v217
      %v683 = vunpack.c.l.b16 %v218
      %v684 = vunpack.c.h.b16 %v218
      %v685 = vunpack.c.l.b16 %v219
      %v686 = vunpack.c.h.b16 %v219
      %v687 = vunpack.c.l.b16 %v220
      %v688 = vunpack.c.h.b16 %v220
      %v689 = vunpack.c.l.b16 %v221
      %v690 = vunpack.c.h.b16 %v221
      %v691 = vunpack.c.l.b16 %v222
      %v692 = vunpack.c.h.b16 %v222
      %v693 = vunpack.c.l.b16 %v223
      %v694 = vunpack.c.h.b16 %v223
      %v695 = vunpack.c.l.b16 %v224
      %v696 = vunpack.c.h.b16 %v224
      %v697 = vunpack.c.l.b16 %v225
      %v698 = vunpack.c.h.b16 %v225
      %v699 = vunpack.c.l.b16 %v226
      %v700 = vunpack.c.h.b16 %v226
      %v701 = vunpack.c.l.b16 %v227
      %v702 = vunpack.c.h.b16 %v227
      %v703 = vunpack.c.l.b16 %v228
      %v704 = vunpack.c.h.b16 %v228
      %v705 = vunpack.c.l.b16 %v229
      %v706 = vunpack.c.h.b16 %v229
      %v707 = vunpack.c.l.b16 %v230
      %v708 = vunpack.c.h.b16 %v230
      %v709 = vunpack.c.l.b16 %v231
      %v710 = vunpack.c.h.b16 %v231
      %v711 = vunpack.c.l.b16 %v232
      %v712 = vunpack.c.h.b16 %v232
      %v713 = vunpack.c.l.b16 %v233
      %v714 = vunpack.c.h.b16 %v233
      %v715 = vunpack.c.l.b16 %v234
      %v716 = vunpack.c.h.b16 %v234
      %v717 = vunpack.c.l.b16 %v235
      %v718 = vunpack.c.h.b16 %v235
      %v719 = vunpack.c.l.b16 %v236
      %v720 = vunpack.c.h.b16 %v236
      %v721 = vunpack.c.l.b16 %v237
      %v722 = vunpack.c.h.b16 %v237
      %v723 = vunpack.c.l.b16 %v238
      %v724 = vunpack.c.h.b16 %v238
      %v725 = vunpack.c.l.b16 %v239
      %v726 = vunpack.c.h.b16 %v239
      %v727 = vunpack.c.l.b16 %v240
      %v728 = vunpack.c.h.b16 %v240
      %v729 = vunpack.c.l.b16 %v241
      %v730 = vunpack.c.h.b16 %v241
      %v731 = vunpack.c.l.b16 %v242
      %v732 = vunpack.c.h.b16 %v242
      %v733 = vunpack.c.l.b16 %v243
      %v734 = vunpack.c.h.b16 %v243
      %v735 = vunpack.c.l.b16 %v244
      %v736 = vunpack.c.h.b16 %v244
      %v737 = vunpack.c.l.b16 %v245
      %v738 = vunpack.c.h.b16 %v245
      %v739 = vunpack.c.l.b16 %v246
      %v740 = vunpack.c.h.b16 %v246
      %v741 = vunpack.c.l.b16 %v247
      %v742 = vunpack.c.h.b16 %v247
      %v743 = vunpack.c.l.b16 %v248
      %v744 = vunpack.c.h.b16 %v248
      %v745 = vunpack.c.l.b16 %v249
      %v746 = vunpack.c.h.b16 %v249
      %v747 = vpack.c.b16 %v507, %v491
      %v748 = vpack.c.b16 %v508, %v492
      %v749 = vpack.c.b16 %v509, %v493
      %v750 = vpack.c.b16 %v510, %v494
      %v751 = vpack.c.b16 %v511, %v495
      %v752 = vpack.c.b16 %v512, %v496
      %v753 = vpack.c.b16 %v513, %v497
      %v754 = vpack.c.b16 %v514, %v498
      %v755 = vpack.c.b16 %v515, %v499
      %v756 = vpack.c.b16 %v516, %v500
      %v757 = vpack.c.b16 %v517, %v501
      %v758 = vpack.c.b16 %v518, %v502
      %v759 = vpack.c.b16 %v519, %v503
      %v760 = vpack.c.b16 %v520, %v504
      %v761 = vpack.c.b16 %v521, %v505
      %v762 = vpack.c.b16 %v522, %v506
      %v763 = vpack.c.b16 %v539, %v523
      %v764 = vpack.c.b16 %v540, %v524
      %v765 = vpack.c.b16 %v541, %v525
      %v766 = vpack.c.b16 %v542, %v526
      %v767 = vpack.c.b16 %v543, %v527
      %v768 = vpack.c.b16 %v544, %v528
      %v769 = vpack.c.b16 %v545, %v529
      %v770 = vpack.c.b16 %v546, %v530
      %v771 = vpack.c.b16 %v547, %v531
      %v772 = vpack.c.b16 %v548, %v532
      %v773 = vpack.c.b16 %v549, %v533
      %v774 = vpack.c.b16 %v550, %v534
      %v775 = vpack.c.b16 %v551, %v535
      %v776 = vpack.c.b16 %v552, %v536
      %v777 = vpack.c.b16 %v553, %v537
      %v778 = vpack.c.b16 %v554, %v538
      %v779 = vpack.c.b16 %v571, %v555
      %v780 = vpack.c.b16 %v572, %v556
      %v781 = vpack.c.b16 %v573, %v557
      %v782 = vpack.c.b16 %v574, %v558
      %v783 = vpack.c.b16 %v575, %v559
      %v784 = vpack.c.b16 %v576, %v560
      %v785 = vpack.c.b16 %v577, %v561
      %v786 = vpack.c.b16 %v578, %v562
      %v787 = vpack.c.b16 %v579, %v563
      %v788 = vpack.c.b16 %v580, %v564
      %v789 = vpack.c.b16 %v581, %v565
      %v790 = vpack.c.b16 %v582, %v566
      %v791 = vpack.c.b16 %v583, %v567
      %v792 = vpack.c.b16 %v584, %v568
      %v793 = vpack.c.b16 %v585, %v569
      %v794 = vpack.c.b16 %v586, %v570
      %v795 = vpack.c.b16 %v603, %v587
      %v796 = vpack.c.b16 %v604, %v588
      %v797 = vpack.c.b16 %v605, %v589
      %v798 = vpack.c.b16 %v606, %v590
      %v799 = vpack.c.b16 %v607, %v591
      %v800 = vpack.c.b16 %v608, %v592
      %v801 = vpack.c.b16 %v609, %v593
      %v802 = vpack.c.b16 %v610, %v594
      %v803 = vpack.c.b16 %v611, %v595
      %v804 = vpack.c.b16 %v612, %v596
      %v805 = vpack.c.b16 %v613, %v597
      %v806 = vpack.c.b16 %v614, %v598
      %v807 = vpack.c.b16 %v615, %v599
      %v808 = vpack.c.b16 %v616, %v600
      %v809 = vpack.c.b16 %v617, %v601
      %v810 = vpack.c.b16 %v618, %v602
      %v811 = vpack.c.b16 %v635, %v619
      %v812 = vpack.c.b16 %v636, %v620
      %v813 = vpack.c.b16 %v637, %v621
      %v814 = vpack.c.b16 %v638, %v622
      %v815 = vpack.c.b16 %v639, %v623
      %v816 = vpack.c.b16 %v640, %v624
      %v817 = vpack.c.b16 %v641, %v625
      %v818 = vpack.c.b16 %v642, %v626
      %v819 = vpack.c.b16 %v643, %v627
      %v820 = vpack.c.b16 %v644, %v628
      %v821 = vpack.c.b16 %v645, %v629
      %v822 = vpack.c.b16 %v646, %v630
      %v823 = vpack.c.b16 %v647, %v631
      %v824 = vpack.c.b16 %v648, %v632
      %v825 = vpack.c.b16 %v649, %v633
      %v826 = vpack.c.b16 %v650, %v634
      %v827 = vpack.c.b16 %v667, %v651
      %v828 = vpack.c.b16 %v668, %v652
      %v829 = vpack.c.b16 %v669, %v653
      %v830 = vpack.c.b16 %v670, %v654
      %v831 = vpack.c.b16 %v671, %v655
      %v832 = vpack.c.b16 %v672, %v656
      %v833 = vpack.c.b16 %v673, %v657
      %v834 = vpack.c.b16 %v674, %v658
      %v835 = vpack.c.b16 %v675, %v659
      %v836 = vpack.c.b16 %v676, %v660
      %v837 = vpack.c.b16 %v677, %v661
      %v838 = vpack.c.b16 %v678, %v662
      %v839 = vpack.c.b16 %v679, %v663
      %v840 = vpack.c.b16 %v680, %v664
      %v841 = vpack.c.b16 %v681, %v665
      %v842 = vpack.c.b16 %v682, %v666
      %v843 = vpack.c.b16 %v699, %v683
      %v844 = vpack.c.b16 %v700, %v684
      %v845 = vpack.c.b16 %v701, %v685
      %v846 = vpack.c.b16 %v702, %v686
      %v847 = vpack.c.b16 %v703, %v687
      %v848 = vpack.c.b16 %v704, %v688
      %v849 = vpack.c.b16 %v705, %v689
      %v850 = vpack.c.b16 %v706, %v690
      %v851 = vpack.c.b16 %v707, %v691
      %v852 = vpack.c.b16 %v708, %v692
      %v853 = vpack.c.b16 %v709, %v693
      %v854 = vpack.c.b16 %v710, %v694
      %v855 = vpack.c.b16 %v711, %v695
      %v856 = vpack.c.b16 %v712, %v696
      %v857 = vpack.c.b16 %v713, %v697
      %v858 = vpack.c.b16 %v714, %v698
      %v859 = vpack.c.b16 %v731, %v715
      %v860 = vpack.c.b16 %v732, %v716
      %v861 = vpack.c.b16 %v733, %v717
      %v862 = vpack.c.b16 %v734, %v718
      %v863 = vpack.c.b16 %v735, %v719
      %v864 = vpack.c.b16 %v736, %v720
      %v865 = vpack.c.b16 %v737, %v721
      %v866 = vpack.c.b16 %v738, %v722
      %v867 = vpack.c.b16 %v739, %v723
      %v868 = vpack.c.b16 %v740, %v724
      %v869 = vpack.c.b16 %v741, %v725
      %v870 = vpack.c.b16 %v742, %v726
      %v871 = vpack.c.b16 %v743, %v727
      %v872 = vpack.c.b16 %v744, %v728
      %v873 = vpack.c.b16 %v745, %v729
      %v874 = vpack.c.b16 %v746, %v730
      %1003 = vmatprep.subr.bf16.mxu0 %v748
      %1004 = vmatpush1.bf16.msra.mxu0 %v747
      %1005 = vmatprep.subr.bf16.mxu0 %v764
      %1006 = vmatpush1.bf16.msra.mxu0 %v763
      %1007 = vmatprep.subr.bf16.mxu0 %v780
      %1008 = vmatpush1.bf16.msra.mxu0 %v779
      %1009 = vmatprep.subr.bf16.mxu0 %v796
      %1010 = vmatpush1.bf16.msra.mxu0 %v795
      %1011 = vmatprep.subr.bf16.mxu0 %v812
      %1012 = vmatpush1.bf16.msra.mxu0 %v811
      %1013 = vmatprep.subr.bf16.mxu0 %v828
      %1014 = vmatpush1.bf16.msra.mxu0 %v827
      %1015 = vmatprep.subr.bf16.mxu0 %v844
      %1016 = vmatpush1.bf16.msra.mxu0 %v843
      %1017 = vmatprep.subr.bf16.mxu0 %v860
      %1018 = vmatpush1.bf16.msra.mxu0 %v859
      %1019 = vmatprep.subr.bf16.mxu0 0
      %1020 = vmatpush1.bf16.msra.mxu0 0
      %1021 = vmatprep.subr.bf16.mxu0 0
      %1022 = vmatpush1.bf16.msra.mxu0 0
      %1023 = vmatprep.subr.bf16.mxu0 0
      %1024 = vmatpush1.bf16.msra.mxu0 0
      %1025 = vmatprep.subr.bf16.mxu0 0
      %1026 = vmatpush1.bf16.msra.mxu0 0
      %1027 = vmatprep.subr.bf16.mxu0 0
      %1028 = vmatpush1.bf16.msra.mxu0 0
      %1029 = vmatprep.subr.bf16.mxu0 0
      %1030 = vmatpush1.bf16.msra.mxu0 0
      %1031 = vmatprep.subr.bf16.mxu0 0
      %1032 = vmatpush1.bf16.msra.mxu0 0
      %1033 = vmatprep.subr.bf16.mxu0 0
      %1034 = vmatpush1.bf16.msra.mxu0 0
      %1035 = vmatprep.mubr.bf16.mxu0 0
      %1036 = vmatmul.mubr.bf16.gmra.mrb[0].mxu0 %v361
      %v1037 = vpop.f32.mrb[0].mxu0
      %v1038 = vadd.f32 %v257, %v1037
      %v1039 = vpop.f32.mrb[0].mxu0
      %v1040 = vadd.f32 %v261, %v1039
      %v1041 = vpop.f32.mrb[0].mxu0
      %v1042 = vpop.f32.mrb[0].mxu0
      %1043 = vdwg.mxu0
      %1044 = vmatprep.subr.bf16.mxu0 %v750
      %1045 = vmatpush1.bf16.msra.mxu0 %v749
      %1046 = vmatprep.subr.bf16.mxu0 %v766
      %1047 = vmatpush1.bf16.msra.mxu0 %v765
      %1048 = vmatprep.subr.bf16.mxu0 %v782
      %1049 = vmatpush1.bf16.msra.mxu0 %v781
      %1050 = vmatprep.subr.bf16.mxu0 %v798
      %1051 = vmatpush1.bf16.msra.mxu0 %v797
      %1052 = vmatprep.subr.bf16.mxu0 %v814
      %1053 = vmatpush1.bf16.msra.mxu0 %v813
      %1054 = vmatprep.subr.bf16.mxu0 %v830
      %1055 = vmatpush1.bf16.msra.mxu0 %v829
      %1056 = vmatprep.subr.bf16.mxu0 %v846
      %1057 = vmatpush1.bf16.msra.mxu0 %v845
      %1058 = vmatprep.subr.bf16.mxu0 %v862
      %1059 = vmatpush1.bf16.msra.mxu0 %v861
      %1060 = vmatprep.subr.bf16.mxu0 0
      %1061 = vmatpush1.bf16.msra.mxu0 0
      %1062 = vmatprep.subr.bf16.mxu0 0
      %1063 = vmatpush1.bf16.msra.mxu0 0
      %1064 = vmatprep.subr.bf16.mxu0 0
      %1065 = vmatpush1.bf16.msra.mxu0 0
      %1066 = vmatprep.subr.bf16.mxu0 0
      %1067 = vmatpush1.bf16.msra.mxu0 0
      %1068 = vmatprep.subr.bf16.mxu0 0
      %1069 = vmatpush1.bf16.msra.mxu0 0
      %1070 = vmatprep.subr.bf16.mxu0 0
      %1071 = vmatpush1.bf16.msra.mxu0 0
      %1072 = vmatprep.subr.bf16.mxu0 0
      %1073 = vmatpush1.bf16.msra.mxu0 0
      %1074 = vmatprep.subr.bf16.mxu0 0
      %1075 = vmatpush1.bf16.msra.mxu0 0
      %1076 = vmatprep.mubr.bf16.mxu0 0
      %1077 = vmatmul.mubr.bf16.gmra.mrb[0].mxu0 %v361
      %v1078 = vpop.f32.mrb[0].mxu0
      %v1079 = vadd.f32 %v265, %v1078
      %v1080 = vpop.f32.mrb[0].mxu0
      %v1081 = vadd.f32 %v269, %v1080
      %v1082 = vpop.f32.mrb[0].mxu0
      %v1083 = vpop.f32.mrb[0].mxu0
      %1084 = vdwg.mxu0
      %1085 = vmatprep.subr.bf16.mxu0 %v752
      %1086 = vmatpush1.bf16.msra.mxu0 %v751
      %1087 = vmatprep.subr.bf16.mxu0 %v768
      %1088 = vmatpush1.bf16.msra.mxu0 %v767
      %1089 = vmatprep.subr.bf16.mxu0 %v784
      %1090 = vmatpush1.bf16.msra.mxu0 %v783
      %1091 = vmatprep.subr.bf16.mxu0 %v800
      %1092 = vmatpush1.bf16.msra.mxu0 %v799
      %1093 = vmatprep.subr.bf16.mxu0 %v816
      %1094 = vmatpush1.bf16.msra.mxu0 %v815
      %1095 = vmatprep.subr.bf16.mxu0 %v832
      %1096 = vmatpush1.bf16.msra.mxu0 %v831
      %1097 = vmatprep.subr.bf16.mxu0 %v848
      %1098 = vmatpush1.bf16.msra.mxu0 %v847
      %1099 = vmatprep.subr.bf16.mxu0 %v864
      %1100 = vmatpush1.bf16.msra.mxu0 %v863
      %1101 = vmatprep.subr.bf16.mxu0 0
      %1102 = vmatpush1.bf16.msra.mxu0 0
      %1103 = vmatprep.subr.bf16.mxu0 0
      %1104 = vmatpush1.bf16.msra.mxu0 0
      %1105 = vmatprep.subr.bf16.mxu0 0
      %1106 = vmatpush1.bf16.msra.mxu0 0
      %1107 = vmatprep.subr.bf16.mxu0 0
      %1108 = vmatpush1.bf16.msra.mxu0 0
      %1109 = vmatprep.subr.bf16.mxu0 0
      %1110 = vmatpush1.bf16.msra.mxu0 0
      %1111 = vmatprep.subr.bf16.mxu0 0
      %1112 = vmatpush1.bf16.msra.mxu0 0
      %1113 = vmatprep.subr.bf16.mxu0 0
      %1114 = vmatpush1.bf16.msra.mxu0 0
      %1115 = vmatprep.subr.bf16.mxu0 0
      %1116 = vmatpush1.bf16.msra.mxu0 0
      %1117 = vmatprep.mubr.bf16.mxu0 0
      %1118 = vmatmul.mubr.bf16.gmra.mrb[0].mxu0 %v361
      %v1119 = vpop.f32.mrb[0].mxu0
      %v1120 = vadd.f32 %v273, %v1119
      %v1121 = vpop.f32.mrb[0].mxu0
      %v1122 = vadd.f32 %v277, %v1121
      %v1123 = vpop.f32.mrb[0].mxu0
      %v1124 = vpop.f32.mrb[0].mxu0
      %1125 = vdwg.mxu0
      %1126 = vmatprep.subr.bf16.mxu0 %v754
      %1127 = vmatpush1.bf16.msra.mxu0 %v753
      %1128 = vmatprep.subr.bf16.mxu0 %v770
      %1129 = vmatpush1.bf16.msra.mxu0 %v769
      %1130 = vmatprep.subr.bf16.mxu0 %v786
      %1131 = vmatpush1.bf16.msra.mxu0 %v785
      %1132 = vmatprep.subr.bf16.mxu0 %v802
      %1133 = vmatpush1.bf16.msra.mxu0 %v801
      %1134 = vmatprep.subr.bf16.mxu0 %v818
      %1135 = vmatpush1.bf16.msra.mxu0 %v817
      %1136 = vmatprep.subr.bf16.mxu0 %v834
      %1137 = vmatpush1.bf16.msra.mxu0 %v833
      %1138 = vmatprep.subr.bf16.mxu0 %v850
      %1139 = vmatpush1.bf16.msra.mxu0 %v849
      %1140 = vmatprep.subr.bf16.mxu0 %v866
      %1141 = vmatpush1.bf16.msra.mxu0 %v865
      %1142 = vmatprep.subr.bf16.mxu0 0
      %1143 = vmatpush1.bf16.msra.mxu0 0
      %1144 = vmatprep.subr.bf16.mxu0 0
      %1145 = vmatpush1.bf16.msra.mxu0 0
      %1146 = vmatprep.subr.bf16.mxu0 0
      %1147 = vmatpush1.bf16.msra.mxu0 0
      %1148 = vmatprep.subr.bf16.mxu0 0
      %1149 = vmatpush1.bf16.msra.mxu0 0
      %1150 = vmatprep.subr.bf16.mxu0 0
      %1151 = vmatpush1.bf16.msra.mxu0 0
      %1152 = vmatprep.subr.bf16.mxu0 0
      %1153 = vmatpush1.bf16.msra.mxu0 0
      %1154 = vmatprep.subr.bf16.mxu0 0
      %1155 = vmatpush1.bf16.msra.mxu0 0
      %1156 = vmatprep.subr.bf16.mxu0 0
      %1157 = vmatpush1.bf16.msra.mxu0 0
      %1158 = vmatprep.mubr.bf16.mxu0 0
      %1159 = vmatmul.mubr.bf16.gmra.mrb[0].mxu0 %v361
      %v1160 = vpop.f32.mrb[0].mxu0
      %v1161 = vadd.f32 %v281, %v1160
      %v1162 = vpop.f32.mrb[0].mxu0
      %v1163 = vadd.f32 %v285, %v1162
      %v1164 = vpop.f32.mrb[0].mxu0
      %v1165 = vpop.f32.mrb[0].mxu0
      %1166 = vdwg.mxu0
      %1167 = vmatprep.subr.bf16.mxu0 %v756
      %1168 = vmatpush1.bf16.msra.mxu0 %v755
      %1169 = vmatprep.subr.bf16.mxu0 %v772
      %1170 = vmatpush1.bf16.msra.mxu0 %v771
      %1171 = vmatprep.subr.bf16.mxu0 %v788
      %1172 = vmatpush1.bf16.msra.mxu0 %v787
      %1173 = vmatprep.subr.bf16.mxu0 %v804
      %1174 = vmatpush1.bf16.msra.mxu0 %v803
      %1175 = vmatprep.subr.bf16.mxu0 %v820
      %1176 = vmatpush1.bf16.msra.mxu0 %v819
      %1177 = vmatprep.subr.bf16.mxu0 %v836
      %1178 = vmatpush1.bf16.msra.mxu0 %v835
      %1179 = vmatprep.subr.bf16.mxu0 %v852
      %1180 = vmatpush1.bf16.msra.mxu0 %v851
      %1181 = vmatprep.subr.bf16.mxu0 %v868
      %1182 = vmatpush1.bf16.msra.mxu0 %v867
      %1183 = vmatprep.subr.bf16.mxu0 0
      %1184 = vmatpush1.bf16.msra.mxu0 0
      %1185 = vmatprep.subr.bf16.mxu0 0
      %1186 = vmatpush1.bf16.msra.mxu0 0
      %1187 = vmatprep.subr.bf16.mxu0 0
      %1188 = vmatpush1.bf16.msra.mxu0 0
      %1189 = vmatprep.subr.bf16.mxu0 0
      %1190 = vmatpush1.bf16.msra.mxu0 0
      %1191 = vmatprep.subr.bf16.mxu0 0
      %1192 = vmatpush1.bf16.msra.mxu0 0
      %1193 = vmatprep.subr.bf16.mxu0 0
      %1194 = vmatpush1.bf16.msra.mxu0 0
      %1195 = vmatprep.subr.bf16.mxu0 0
      %1196 = vmatpush1.bf16.msra.mxu0 0
      %1197 = vmatprep.subr.bf16.mxu0 0
      %1198 = vmatpush1.bf16.msra.mxu0 0
      %1199 = vmatprep.mubr.bf16.mxu0 0
      %1200 = vmatmul.mubr.bf16.gmra.mrb[0].mxu0 %v361
      %v1201 = vpop.f32.mrb[0].mxu0
      %v1202 = vadd.f32 %v289, %v1201
      %v1203 = vpop.f32.mrb[0].mxu0
      %v1204 = vadd.f32 %v293, %v1203
      %v1205 = vpop.f32.mrb[0].mxu0
      %v1206 = vpop.f32.mrb[0].mxu0
      %1207 = vdwg.mxu0
      %1208 = vmatprep.subr.bf16.mxu0 %v758
      %1209 = vmatpush1.bf16.msra.mxu0 %v757
      %1210 = vmatprep.subr.bf16.mxu0 %v774
      %1211 = vmatpush1.bf16.msra.mxu0 %v773
      %1212 = vmatprep.subr.bf16.mxu0 %v790
      %1213 = vmatpush1.bf16.msra.mxu0 %v789
      %1214 = vmatprep.subr.bf16.mxu0 %v806
      %1215 = vmatpush1.bf16.msra.mxu0 %v805
      %1216 = vmatprep.subr.bf16.mxu0 %v822
      %1217 = vmatpush1.bf16.msra.mxu0 %v821
      %1218 = vmatprep.subr.bf16.mxu0 %v838
      %1219 = vmatpush1.bf16.msra.mxu0 %v837
      %1220 = vmatprep.subr.bf16.mxu0 %v854
      %1221 = vmatpush1.bf16.msra.mxu0 %v853
      %1222 = vmatprep.subr.bf16.mxu0 %v870
      %1223 = vmatpush1.bf16.msra.mxu0 %v869
      %1224 = vmatprep.subr.bf16.mxu0 0
      %1225 = vmatpush1.bf16.msra.mxu0 0
      %1226 = vmatprep.subr.bf16.mxu0 0
      %1227 = vmatpush1.bf16.msra.mxu0 0
      %1228 = vmatprep.subr.bf16.mxu0 0
      %1229 = vmatpush1.bf16.msra.mxu0 0
      %1230 = vmatprep.subr.bf16.mxu0 0
      %1231 = vmatpush1.bf16.msra.mxu0 0
      %1232 = vmatprep.subr.bf16.mxu0 0
      %1233 = vmatpush1.bf16.msra.mxu0 0
      %1234 = vmatprep.subr.bf16.mxu0 0
      %1235 = vmatpush1.bf16.msra.mxu0 0
      %1236 = vmatprep.subr.bf16.mxu0 0
      %1237 = vmatpush1.bf16.msra.mxu0 0
      %1238 = vmatprep.subr.bf16.mxu0 0
      %1239 = vmatpush1.bf16.msra.mxu0 0
      %1240 = vmatprep.mubr.bf16.mxu0 0
      %1241 = vmatmul.mubr.bf16.gmra.mrb[0].mxu0 %v361
      %v1242 = vpop.f32.mrb[0].mxu0
      %v1243 = vadd.f32 %v297, %v1242
      %v1244 = vpop.f32.mrb[0].mxu0
      %v1245 = vadd.f32 %v301, %v1244
      %v1246 = vpop.f32.mrb[0].mxu0
      %v1247 = vpop.f32.mrb[0].mxu0
      %1248 = vdwg.mxu0
      %1249 = vmatprep.subr.bf16.mxu0 %v760
      %1250 = vmatpush1.bf16.msra.mxu0 %v759
      %1251 = vmatprep.subr.bf16.mxu0 %v776
      %1252 = vmatpush1.bf16.msra.mxu0 %v775
      %1253 = vmatprep.subr.bf16.mxu0 %v792
      %1254 = vmatpush1.bf16.msra.mxu0 %v791
      %1255 = vmatprep.subr.bf16.mxu0 %v808
      %1256 = vmatpush1.bf16.msra.mxu0 %v807
      %1257 = vmatprep.subr.bf16.mxu0 %v824
      %1258 = vmatpush1.bf16.msra.mxu0 %v823
      %1259 = vmatprep.subr.bf16.mxu0 %v840
      %1260 = vmatpush1.bf16.msra.mxu0 %v839
      %1261 = vmatprep.subr.bf16.mxu0 %v856
      %1262 = vmatpush1.bf16.msra.mxu0 %v855
      %1263 = vmatprep.subr.bf16.mxu0 %v872
      %1264 = vmatpush1.bf16.msra.mxu0 %v871
      %1265 = vmatprep.subr.bf16.mxu0 0
      %1266 = vmatpush1.bf16.msra.mxu0 0
      %1267 = vmatprep.subr.bf16.mxu0 0
      %1268 = vmatpush1.bf16.msra.mxu0 0
      %1269 = vmatprep.subr.bf16.mxu0 0
      %1270 = vmatpush1.bf16.msra.mxu0 0
      %1271 = vmatprep.subr.bf16.mxu0 0
      %1272 = vmatpush1.bf16.msra.mxu0 0
      %1273 = vmatprep.subr.bf16.mxu0 0
      %1274 = vmatpush1.bf16.msra.mxu0 0
      %1275 = vmatprep.subr.bf16.mxu0 0
      %1276 = vmatpush1.bf16.msra.mxu0 0
      %1277 = vmatprep.subr.bf16.mxu0 0
      %1278 = vmatpush1.bf16.msra.mxu0 0
      %1279 = vmatprep.subr.bf16.mxu0 0
      %1280 = vmatpush1.bf16.msra.mxu0 0
      %1281 = vmatprep.mubr.bf16.mxu0 0
      %1282 = vmatmul.mubr.bf16.gmra.mrb[0].mxu0 %v361
      %v1283 = vpop.f32.mrb[0].mxu0
      %v1284 = vadd.f32 %v305, %v1283
      %v1285 = vpop.f32.mrb[0].mxu0
      %v1286 = vadd.f32 %v309, %v1285
      %v1287 = vpop.f32.mrb[0].mxu0
      %v1288 = vpop.f32.mrb[0].mxu0
      %1289 = vdwg.mxu0
      %1290 = vmatprep.subr.bf16.mxu0 %v762
      %1291 = vmatpush1.bf16.msra.mxu0 %v761
      %1292 = vmatprep.subr.bf16.mxu0 %v778
      %1293 = vmatpush1.bf16.msra.mxu0 %v777
      %1294 = vmatprep.subr.bf16.mxu0 %v794
      %1295 = vmatpush1.bf16.msra.mxu0 %v793
      %1296 = vmatprep.subr.bf16.mxu0 %v810
      %1297 = vmatpush1.bf16.msra.mxu0 %v809
      %1298 = vmatprep.subr.bf16.mxu0 %v826
      %1299 = vmatpush1.bf16.msra.mxu0 %v825
      %1300 = vmatprep.subr.bf16.mxu0 %v842
      %1301 = vmatpush1.bf16.msra.mxu0 %v841
      %1302 = vmatprep.subr.bf16.mxu0 %v858
      %1303 = vmatpush1.bf16.msra.mxu0 %v857
      %1304 = vmatprep.subr.bf16.mxu0 %v874
      %1305 = vmatpush1.bf16.msra.mxu0 %v873
      %1306 = vmatprep.subr.bf16.mxu0 0
      %1307 = vmatpush1.bf16.msra.mxu0 0
      %1308 = vmatprep.subr.bf16.mxu0 0
      %1309 = vmatpush1.bf16.msra.mxu0 0
      %1310 = vmatprep.subr.bf16.mxu0 0
      %1311 = vmatpush1.bf16.msra.mxu0 0
      %1312 = vmatprep.subr.bf16.mxu0 0
      %1313 = vmatpush1.bf16.msra.mxu0 0
      %1314 = vmatprep.subr.bf16.mxu0 0
      %1315 = vmatpush1.bf16.msra.mxu0 0
      %1316 = vmatprep.subr.bf16.mxu0 0
      %1317 = vmatpush1.bf16.msra.mxu0 0
      %1318 = vmatprep.subr.bf16.mxu0 0
      %1319 = vmatpush1.bf16.msra.mxu0 0
      %1320 = vmatprep.subr.bf16.mxu0 0
      %1321 = vmatpush1.bf16.msra.mxu0 0
      %1322 = vmatprep.mubr.bf16.mxu0 0
      %1323 = vmatmul.mubr.bf16.gmra.mrb[0].mxu0 %v361
      %v1324 = vpop.f32.mrb[0].mxu0
      %v1325 = vadd.f32 %v313, %v1324
      %v1326 = vpop.f32.mrb[0].mxu0
      %v1327 = vadd.f32 %v317, %v1326
      %v1328 = vpop.f32.mrb[0].mxu0
      %v1329 = vpop.f32.mrb[0].mxu0
      %1330 = vdwg.mxu0
      %v1331 = vpack.c.bf16 %v1038, %v1038
      %v1332 = vpack.c.bf16 %v1040, %v1040
      %v1333 = vpack.c.bf16 %v1079, %v1079
      %v1334 = vpack.c.bf16 %v1081, %v1081
      %v1335 = vpack.c.bf16 %v1120, %v1120
      %v1336 = vpack.c.bf16 %v1122, %v1122
      %v1337 = vpack.c.bf16 %v1161, %v1161
      %v1338 = vpack.c.bf16 %v1163, %v1163
      %v1339 = vpack.c.bf16 %v1202, %v1202
      %v1340 = vpack.c.bf16 %v1204, %v1204
      %v1341 = vpack.c.bf16 %v1243, %v1243
      %v1342 = vpack.c.bf16 %v1245, %v1245
      %v1343 = vpack.c.bf16 %v1284, %v1284
      %v1344 = vpack.c.bf16 %v1286, %v1286
      %v1345 = vpack.c.bf16 %v1325, %v1325
      %v1346 = vpack.c.bf16 %v1327, %v1327
      %v1363 = vunpack.c.l.b16 %v1331
      %v1364 = vunpack.c.l.b16 %v1332
      %v1365 = vunpack.c.l.b16 %v1333
      %v1366 = vunpack.c.l.b16 %v1334
      %v1367 = vunpack.c.l.b16 %v1335
      %v1368 = vunpack.c.l.b16 %v1336
      %v1369 = vunpack.c.l.b16 %v1337
      %v1370 = vunpack.c.l.b16 %v1338
      %v1371 = vunpack.c.l.b16 %v1339
      %v1372 = vunpack.c.l.b16 %v1340
      %v1373 = vunpack.c.l.b16 %v1341
      %v1374 = vunpack.c.l.b16 %v1342
      %v1375 = vunpack.c.l.b16 %v1343
      %v1376 = vunpack.c.l.b16 %v1344
      %v1377 = vunpack.c.l.b16 %v1345
      %v1378 = vunpack.c.l.b16 %v1346
      %v1379 = vpack.c.b16 %v1364, %v1363
      %v1380 = vpack.c.b16 %v1366, %v1365
      %v1381 = vpack.c.b16 %v1368, %v1367
      %v1382 = vpack.c.b16 %v1370, %v1369
      %v1383 = vpack.c.b16 %v1372, %v1371
      %v1384 = vpack.c.b16 %v1374, %v1373
      %v1385 = vpack.c.b16 %v1376, %v1375
      %v1386 = vpack.c.b16 %v1378, %v1377
      %1395 = vst [vmem:[#allocation3] sm:$0xff] %v1379
      %1396 = vst [vmem:[#allocation3 + $0x8] sm:$0xff] %v1380
      %1397 = vst [vmem:[#allocation3 + $0x10] sm:$0xff] %v1381
      %1398 = vst [vmem:[#allocation3 + $0x18] sm:$0xff] %v1382
      %1399 = vst [vmem:[#allocation3 + $0x20] sm:$0xff] %v1383
      %1400 = vst [vmem:[#allocation3 + $0x28] sm:$0xff] %v1384
      %1401 = vst [vmem:[#allocation3 + $0x30] sm:$0xff] %v1385
      %1402 = vst [vmem:[#allocation3 + $0x38] sm:$0xff] %v1386
    $region65: #{tpu_custom_call.1} parent=1 // pred_fallthru
      _
    %v1403 = vld [vmem:[#allocation4] sm:$0xff]
    %v1404 = vld [vmem:[#allocation4 + $0x8] sm:$0xff]
    %v1405 = vld [vmem:[#allocation4 + $0x10] sm:$0xff]
    %v1406 = vld [vmem:[#allocation4 + $0x18] sm:$0xff]
    %v1407 = vld [vmem:[#allocation4 + $0x20] sm:$0xff]
    %v1408 = vld [vmem:[#allocation4 + $0x28] sm:$0xff]
    %v1409 = vld [vmem:[#allocation4 + $0x30] sm:$0xff]
    %v1410 = vld [vmem:[#allocation4 + $0x38] sm:$0xff]
    %v1411 = vlaneseq
    %v1412 = vand.u32 %v1411, 127
    %v1413 = vadd.s32 %v1412, 128
    %v1414 = vadd.s32 %v1412, 256
    %v1415 = vadd.s32 %v1412, 384
    %v1416 = vadd.s32 %v1412, 512
    %v1417 = vadd.s32 %v1412, 640
    %v1418 = vadd.s32 %v1412, 768
    %v1419 = vadd.s32 %v1412, 896
    %s1420 = smul.u32 0, 1024
    %v1421 = vstv %s1420
    %v1422 = vadd.s32 %v1412, %v1421
    %v1423 = vadd.s32 %v1413, %v1421
    %v1424 = vadd.s32 %v1414, %v1421
    %v1425 = vadd.s32 %v1415, %v1421
    %v1426 = vadd.s32 %v1416, %v1421
    %v1427 = vadd.s32 %v1417, %v1421
    %v1428 = vadd.s32 %v1418, %v1421
    %v1429 = vadd.s32 %v1419, %v1421
    %vm1430 = vcmp.ge.s32.totalorder %v1422, 0
    %vm1431 = vcmp.ge.s32.totalorder %v1423, 0
    %vm1432 = vcmp.ge.s32.totalorder %v1424, 0
    %vm1433 = vcmp.ge.s32.totalorder %v1425, 0
    %vm1434 = vcmp.ge.s32.totalorder %v1426, 0
    %vm1435 = vcmp.ge.s32.totalorder %v1427, 0
    %vm1436 = vcmp.ge.s32.totalorder %v1428, 0
    %vm1437 = vcmp.ge.s32.totalorder %v1429, 0
    %vm1438 = vcmp.lt.s32.totalorder %v1422, 256
    %vm1439 = vcmp.lt.s32.totalorder %v1423, 256
    %vm1440 = vcmp.lt.s32.totalorder %v1424, 256
    %vm1441 = vcmp.lt.s32.totalorder %v1425, 256
    %vm1442 = vcmp.lt.s32.totalorder %v1426, 256
    %vm1443 = vcmp.lt.s32.totalorder %v1427, 256
    %vm1444 = vcmp.lt.s32.totalorder %v1428, 256
    %vm1445 = vcmp.lt.s32.totalorder %v1429, 256
    %vm1446 = vmand %vm1430, %vm1438
    %vm1447 = vmand %vm1431, %vm1439
    %vm1448 = vmand %vm1432, %vm1440
    %vm1449 = vmand %vm1433, %vm1441
    %vm1450 = vmand %vm1434, %vm1442
    %vm1451 = vmand %vm1435, %vm1443
    %vm1452 = vmand %vm1436, %vm1444
    %vm1453 = vmand %vm1437, %vm1445
    %v1454 = vsel %vm1446, 1, 0
    %v1455 = vsel %vm1447, 1, 0
    %v1456 = vsel %vm1448, 1, 0
    %v1457 = vsel %vm1449, 1, 0
    %v1458 = vsel %vm1450, 1, 0
    %v1459 = vsel %vm1451, 1, 0
    %v1460 = vsel %vm1452, 1, 0
    %v1461 = vsel %vm1453, 1, 0
    %vm1462 = vcmp.eq.s32.totalorder %v1454, 1
    %vm1463 = vcmp.eq.s32.totalorder %v1455, 1
    %vm1464 = vcmp.eq.s32.totalorder %v1456, 1
    %vm1465 = vcmp.eq.s32.totalorder %v1457, 1
    %vm1466 = vcmp.eq.s32.totalorder %v1458, 1
    %vm1467 = vcmp.eq.s32.totalorder %v1459, 1
    %vm1468 = vcmp.eq.s32.totalorder %v1460, 1
    %vm1469 = vcmp.eq.s32.totalorder %v1461, 1
    %v1478 = vcombine.low %v1403, %v1405
    %v1479 = vcombine.high %v1403, %v1405
    %v1480 = vcombine.low %v1407, %v1409
    %v1481 = vcombine.high %v1407, %v1409
    %v1483 = vunpack.c.l.s4 1983009808
    %v1484 = vunpack.c.0.s8 %v1483
    %v1485 = vlaneseq
    %v1486 = vshrl.u32 %v1485, 7
    %v1487 = vsub.s32 %v1484, %v1486
    %v1488 = vrot.slane %v1478, %v1487
    %v1490 = vunpack.c.l.s4 1983009808
    %v1491 = vunpack.c.0.s8 %v1490
    %v1492 = vlaneseq
    %v1493 = vshrl.u32 %v1492, 7
    %v1494 = vsub.s32 %v1491, %v1493
    %v1495 = vrot.slane %v1479, %v1494
    %v1497 = vunpack.c.l.s4 1983009808
    %v1498 = vunpack.c.0.s8 %v1497
    %v1499 = vlaneseq
    %v1500 = vshrl.u32 %v1499, 7
    %v1501 = vsub.s32 %v1498, %v1500
    %v1502 = vrot.slane %v1480, %v1501
    %v1504 = vunpack.c.l.s4 1983009808
    %v1505 = vunpack.c.0.s8 %v1504
    %v1506 = vlaneseq
    %v1507 = vshrl.u32 %v1506, 7
    %v1508 = vsub.s32 %v1505, %v1507
    %v1509 = vrot.slane %v1481, %v1508
    %v1510 = vcombine.low %v1488, %v1502
    %v1511 = vcombine.high %v1488, %v1502
    %v1512 = vcombine.low %v1495, %v1509
    %v1513 = vcombine.high %v1495, %v1509
    %v1514 = vcombine.low %v1404, %v1406
    %v1515 = vcombine.high %v1404, %v1406
    %v1516 = vcombine.low %v1408, %v1410
    %v1517 = vcombine.high %v1408, %v1410
    %v1519 = vunpack.c.l.s4 1983009808
    %v1520 = vunpack.c.0.s8 %v1519
    %v1521 = vlaneseq
    %v1522 = vshrl.u32 %v1521, 7
    %v1523 = vsub.s32 %v1520, %v1522
    %v1524 = vrot.slane %v1514, %v1523
    %v1526 = vunpack.c.l.s4 1983009808
    %v1527 = vunpack.c.0.s8 %v1526
    %v1528 = vlaneseq
    %v1529 = vshrl.u32 %v1528, 7
    %v1530 = vsub.s32 %v1527, %v1529
    %v1531 = vrot.slane %v1515, %v1530
    %v1533 = vunpack.c.l.s4 1983009808
    %v1534 = vunpack.c.0.s8 %v1533
    %v1535 = vlaneseq
    %v1536 = vshrl.u32 %v1535, 7
    %v1537 = vsub.s32 %v1534, %v1536
    %v1538 = vrot.slane %v1516, %v1537
    %v1540 = vunpack.c.l.s4 1983009808
    %v1541 = vunpack.c.0.s8 %v1540
    %v1542 = vlaneseq
    %v1543 = vshrl.u32 %v1542, 7
    %v1544 = vsub.s32 %v1541, %v1543
    %v1545 = vrot.slane %v1517, %v1544
    %v1546 = vcombine.low %v1524, %v1538
    %v1547 = vcombine.high %v1524, %v1538
    %v1548 = vcombine.low %v1531, %v1545
    %v1549 = vcombine.high %v1531, %v1545
    %v1558 = vsel %vm1462, %v1510, 0.0
    %v1559 = vsel %vm1463, %v1511, 0.0
    %v1560 = vsel %vm1464, %v1512, 0.0
    %v1561 = vsel %vm1465, %v1513, 0.0
    %v1562 = vsel %vm1466, %v1546, 0.0
    %v1563 = vsel %vm1467, %v1547, 0.0
    %v1564 = vsel %vm1468, %v1548, 0.0
    %v1565 = vsel %vm1469, %v1549, 0.0
    %v1566 = vadd.f32 %v1558, %v1559
    %v1567 = vadd.f32 %v1566, %v1560
    %v1568 = vadd.f32 %v1567, %v1561
    %v1569 = vadd.f32 %v1568, %v1562
    %v1570 = vadd.f32 %v1569, %v1563
    %v1571 = vadd.f32 %v1570, %v1564
    %v1572 = vadd.f32 %v1571, %v1565
    %1573 = vadd.xlane.f32.xlu0 %v1572
    %v1574 = vpop.xlane.xlu0 %1573
    %vm1575 = vcmp.eq.s32.totalorder %v1412, 0
    %v1576 = vsel %vm1575, 1, 0
    %v1577 = vcvt.s32.f32 %v1576
    %v1578 = vmul.f32 %v1574, %v1577
    %v1579 = vadd.f32 %v1578, 0.0
    %vm1580 = vcmp.ge.s32.totalorder %v1422, 256
    %vm1581 = vcmp.ge.s32.totalorder %v1423, 256
    %vm1582 = vcmp.ge.s32.totalorder %v1424, 256
    %vm1583 = vcmp.ge.s32.totalorder %v1425, 256
    %vm1584 = vcmp.ge.s32.totalorder %v1426, 256
    %vm1585 = vcmp.ge.s32.totalorder %v1427, 256
    %vm1586 = vcmp.ge.s32.totalorder %v1428, 256
    %vm1587 = vcmp.ge.s32.totalorder %v1429, 256
    %vm1588 = vcmp.lt.s32.totalorder %v1422, 512
    %vm1589 = vcmp.lt.s32.totalorder %v1423, 512
    %vm1590 = vcmp.lt.s32.totalorder %v1424, 512
    %vm1591 = vcmp.lt.s32.totalorder %v1425, 512
    %vm1592 = vcmp.lt.s32.totalorder %v1426, 512
    %vm1593 = vcmp.lt.s32.totalorder %v1427, 512
    %vm1594 = vcmp.lt.s32.totalorder %v1428, 512
    %vm1595 = vcmp.lt.s32.totalorder %v1429, 512
    %vm1596 = vmand %vm1580, %vm1588
    %vm1597 = vmand %vm1581, %vm1589
    %vm1598 = vmand %vm1582, %vm1590
    %vm1599 = vmand %vm1583, %vm1591
    %vm1600 = vmand %vm1584, %vm1592
    %vm1601 = vmand %vm1585, %vm1593
    %vm1602 = vmand %vm1586, %vm1594
    %vm1603 = vmand %vm1587, %vm1595
    %v1604 = vsel %vm1596, 1, 0
    %v1605 = vsel %vm1597, 1, 0
    %v1606 = vsel %vm1598, 1, 0
    %v1607 = vsel %vm1599, 1, 0
    %v1608 = vsel %vm1600, 1, 0
    %v1609 = vsel %vm1601, 1, 0
    %v1610 = vsel %vm1602, 1, 0
    %v1611 = vsel %vm1603, 1, 0
    %vm1612 = vcmp.eq.s32.totalorder %v1604, 1
    %vm1613 = vcmp.eq.s32.totalorder %v1605, 1
    %vm1614 = vcmp.eq.s32.totalorder %v1606, 1
    %vm1615 = vcmp.eq.s32.totalorder %v1607, 1
    %vm1616 = vcmp.eq.s32.totalorder %v1608, 1
    %vm1617 = vcmp.eq.s32.totalorder %v1609, 1
    %vm1618 = vcmp.eq.s32.totalorder %v1610, 1
    %vm1619 = vcmp.eq.s32.totalorder %v1611, 1
    %v1620 = vsel %vm1612, %v1510, 0.0
    %v1621 = vsel %vm1613, %v1511, 0.0
    %v1622 = vsel %vm1614, %v1512, 0.0
    %v1623 = vsel %vm1615, %v1513, 0.0
    %v1624 = vsel %vm1616, %v1546, 0.0
    %v1625 = vsel %vm1617, %v1547, 0.0
    %v1626 = vsel %vm1618, %v1548, 0.0
    %v1627 = vsel %vm1619, %v1549, 0.0
    %v1628 = vadd.f32 %v1620, %v1621
    %v1629 = vadd.f32 %v1628, %v1622
    %v1630 = vadd.f32 %v1629, %v1623
    %v1631 = vadd.f32 %v1630, %v1624
    %v1632 = vadd.f32 %v1631, %v1625
    %v1633 = vadd.f32 %v1632, %v1626
    %v1634 = vadd.f32 %v1633, %v1627
    %1635 = vadd.xlane.f32.xlu0 %v1634
    %v1636 = vpop.xlane.xlu0 %1635
    %vm1637 = vcmp.eq.s32.totalorder %v1412, 1
    %v1638 = vsel %vm1637, 1, 0
    %v1639 = vcvt.s32.f32 %v1638
    %v1640 = vmul.f32 %v1636, %v1639
    %v1641 = vadd.f32 %v1579, %v1640
    %vm1642 = vcmp.ge.s32.totalorder %v1422, 512
    %vm1643 = vcmp.ge.s32.totalorder %v1423, 512
    %vm1644 = vcmp.ge.s32.totalorder %v1424, 512
    %vm1645 = vcmp.ge.s32.totalorder %v1425, 512
    %vm1646 = vcmp.ge.s32.totalorder %v1426, 512
    %vm1647 = vcmp.ge.s32.totalorder %v1427, 512
    %vm1648 = vcmp.ge.s32.totalorder %v1428, 512
    %vm1649 = vcmp.ge.s32.totalorder %v1429, 512
    %vm1650 = vcmp.lt.s32.totalorder %v1422, 768
    %vm1651 = vcmp.lt.s32.totalorder %v1423, 768
    %vm1652 = vcmp.lt.s32.totalorder %v1424, 768
    %vm1653 = vcmp.lt.s32.totalorder %v1425, 768
    %vm1654 = vcmp.lt.s32.totalorder %v1426, 768
    %vm1655 = vcmp.lt.s32.totalorder %v1427, 768
    %vm1656 = vcmp.lt.s32.totalorder %v1428, 768
    %vm1657 = vcmp.lt.s32.totalorder %v1429, 768
    %vm1658 = vmand %vm1642, %vm1650
    %vm1659 = vmand %vm1643, %vm1651
    %vm1660 = vmand %vm1644, %vm1652
    %vm1661 = vmand %vm1645, %vm1653
    %vm1662 = vmand %vm1646, %vm1654
    %vm1663 = vmand %vm1647, %vm1655
    %vm1664 = vmand %vm1648, %vm1656
    %vm1665 = vmand %vm1649, %vm1657
    %v1666 = vsel %vm1658, 1, 0
    %v1667 = vsel %vm1659, 1, 0
    %v1668 = vsel %vm1660, 1, 0
    %v1669 = vsel %vm1661, 1, 0
    %v1670 = vsel %vm1662, 1, 0
    %v1671 = vsel %vm1663, 1, 0
    %v1672 = vsel %vm1664, 1, 0
    %v1673 = vsel %vm1665, 1, 0
    %vm1674 = vcmp.eq.s32.totalorder %v1666, 1
    %vm1675 = vcmp.eq.s32.totalorder %v1667, 1
    %vm1676 = vcmp.eq.s32.totalorder %v1668, 1
    %vm1677 = vcmp.eq.s32.totalorder %v1669, 1
    %vm1678 = vcmp.eq.s32.totalorder %v1670, 1
    %vm1679 = vcmp.eq.s32.totalorder %v1671, 1
    %vm1680 = vcmp.eq.s32.totalorder %v1672, 1
    %vm1681 = vcmp.eq.s32.totalorder %v1673, 1
    %v1682 = vsel %vm1674, %v1510, 0.0
    %v1683 = vsel %vm1675, %v1511, 0.0
    %v1684 = vsel %vm1676, %v1512, 0.0
    %v1685 = vsel %vm1677, %v1513, 0.0
    %v1686 = vsel %vm1678, %v1546, 0.0
    %v1687 = vsel %vm1679, %v1547, 0.0
    %v1688 = vsel %vm1680, %v1548, 0.0
    %v1689 = vsel %vm1681, %v1549, 0.0
    %v1690 = vadd.f32 %v1682, %v1683
    %v1691 = vadd.f32 %v1690, %v1684
    %v1692 = vadd.f32 %v1691, %v1685
    %v1693 = vadd.f32 %v1692, %v1686
    %v1694 = vadd.f32 %v1693, %v1687
    %v1695 = vadd.f32 %v1694, %v1688
    %v1696 = vadd.f32 %v1695, %v1689
    %1697 = vadd.xlane.f32.xlu0 %v1696
    %v1698 = vpop.xlane.xlu0 %1697
    %vm1699 = vcmp.eq.s32.totalorder %v1412, 2
    %v1700 = vsel %vm1699, 1, 0
    %v1701 = vcvt.s32.f32 %v1700
    %v1702 = vmul.f32 %v1698, %v1701
    %v1703 = vadd.f32 %v1641, %v1702
    %vm1704 = vcmp.ge.s32.totalorder %v1422, 768
    %vm1705 = vcmp.ge.s32.totalorder %v1423, 768
    %vm1706 = vcmp.ge.s32.totalorder %v1424, 768
    %vm1707 = vcmp.ge.s32.totalorder %v1425, 768
    %vm1708 = vcmp.ge.s32.totalorder %v1426, 768
    %vm1709 = vcmp.ge.s32.totalorder %v1427, 768
    %vm1710 = vcmp.ge.s32.totalorder %v1428, 768
    %vm1711 = vcmp.ge.s32.totalorder %v1429, 768
    %vm1712 = vcmp.lt.s32.totalorder %v1422, 1024
    %vm1713 = vcmp.lt.s32.totalorder %v1423, 1024
    %vm1714 = vcmp.lt.s32.totalorder %v1424, 1024
    %vm1715 = vcmp.lt.s32.totalorder %v1425, 1024
    %vm1716 = vcmp.lt.s32.totalorder %v1426, 1024
    %vm1717 = vcmp.lt.s32.totalorder %v1427, 1024
    %vm1718 = vcmp.lt.s32.totalorder %v1428, 1024
    %vm1719 = vcmp.lt.s32.totalorder %v1429, 1024
    %vm1720 = vmand %vm1704, %vm1712
    %vm1721 = vmand %vm1705, %vm1713
    %vm1722 = vmand %vm1706, %vm1714
    %vm1723 = vmand %vm1707, %vm1715
    %vm1724 = vmand %vm1708, %vm1716
    %vm1725 = vmand %vm1709, %vm1717
    %vm1726 = vmand %vm1710, %vm1718
    %vm1727 = vmand %vm1711, %vm1719
    %v1728 = vsel %vm1720, 1, 0
    %v1729 = vsel %vm1721, 1, 0
    %v1730 = vsel %vm1722, 1, 0
    %v1731 = vsel %vm1723, 1, 0
    %v1732 = vsel %vm1724, 1, 0
    %v1733 = vsel %vm1725, 1, 0
    %v1734 = vsel %vm1726, 1, 0
    %v1735 = vsel %vm1727, 1, 0
    %vm1736 = vcmp.eq.s32.totalorder %v1728, 1
    %vm1737 = vcmp.eq.s32.totalorder %v1729, 1
    %vm1738 = vcmp.eq.s32.totalorder %v1730, 1
    %vm1739 = vcmp.eq.s32.totalorder %v1731, 1
    %vm1740 = vcmp.eq.s32.totalorder %v1732, 1
    %vm1741 = vcmp.eq.s32.totalorder %v1733, 1
    %vm1742 = vcmp.eq.s32.totalorder %v1734, 1
    %vm1743 = vcmp.eq.s32.totalorder %v1735, 1
    %v1744 = vsel %vm1736, %v1510, 0.0
    %v1745 = vsel %vm1737, %v1511, 0.0
    %v1746 = vsel %vm1738, %v1512, 0.0
    %v1747 = vsel %vm1739, %v1513, 0.0
    %v1748 = vsel %vm1740, %v1546, 0.0
    %v1749 = vsel %vm1741, %v1547, 0.0
    %v1750 = vsel %vm1742, %v1548, 0.0
    %v1751 = vsel %vm1743, %v1549, 0.0
    %v1752 = vadd.f32 %v1744, %v1745
    %v1753 = vadd.f32 %v1752, %v1746
    %v1754 = vadd.f32 %v1753, %v1747
    %v1755 = vadd.f32 %v1754, %v1748
    %v1756 = vadd.f32 %v1755, %v1749
    %v1757 = vadd.f32 %v1756, %v1750
    %v1758 = vadd.f32 %v1757, %v1751
    %1759 = vadd.xlane.f32.xlu0 %v1758
    %v1760 = vpop.xlane.xlu0 %1759
    %vm1761 = vcmp.eq.s32.totalorder %v1412, 3
    %v1762 = vsel %vm1761, 1, 0
    %v1763 = vcvt.s32.f32 %v1762
    %v1764 = vmul.f32 %v1760, %v1763
    %v1765 = vadd.f32 %v1703, %v1764
    %v1766 = vld [vmem:[#allocation2] sm:$0xff]
    %v1767 = vadd.f32 %v1766, %v1765
    %vm1768 = vcmask 31744
    %1769 = vst.msk [vmem:[#allocation2] sm:$0xff] %vm1768, %v1767
    // Predicated region
    $region66: #{tpu_custom_call.1} parent=1 // pred_check
      %p1770 = pneg %p112
    $region67: #{tpu_custom_call.1} parent=1 // pred_check_branch
      %1772 = sbr.rel (%p1770) target = $region69
    $region68: #{tpu_custom_call.1} parent=1 // pred_region
      %v1773 = vld [vmem:[#allocation2] sm:$0xff]
      %v1774 = vmul.f32 %v1773, 0.00390625
      %v1775 = vpack.c.bf16 %v1774, %v1774
      %v1776 = vld [vmem:[#allocation7] sm:$0xff]
      %v1777 = vld [vmem:[#allocation7 + $0x8] sm:$0xff]
      %v1778 = vld [vmem:[#allocation9] sm:$0xff]
      %v1780 = vlaneseq
      %v1781 = vshrl.u32 %v1780, 7
      %v1782 = vsub.s32 0, %v1781
      %v1783 = vrot.slane %v1778, %v1782
      %v1784 = vlaneseq
      %v1785 = vshrl.u32 %v1784, 7
      %v1786 = vsub.s32 1, %v1785
      %v1787 = vrot.slane %v1778, %v1786
      %v1788 = vlaneseq
      %v1789 = vshrl.u32 %v1788, 7
      %v1790 = vsub.s32 2, %v1789
      %v1791 = vrot.slane %v1778, %v1790
      %v1792 = vlaneseq
      %v1793 = vshrl.u32 %v1792, 7
      %v1794 = vsub.s32 3, %v1793
      %v1795 = vrot.slane %v1778, %v1794
      %v1796 = vlaneseq
      %v1797 = vshrl.u32 %v1796, 7
      %v1798 = vsub.s32 4, %v1797
      %v1799 = vrot.slane %v1778, %v1798
      %v1800 = vlaneseq
      %v1801 = vshrl.u32 %v1800, 7
      %v1802 = vsub.s32 5, %v1801
      %v1803 = vrot.slane %v1778, %v1802
      %v1804 = vlaneseq
      %v1805 = vshrl.u32 %v1804, 7
      %v1806 = vsub.s32 6, %v1805
      %v1807 = vrot.slane %v1778, %v1806
      %v1808 = vlaneseq
      %v1809 = vshrl.u32 %v1808, 7
      %v1810 = vsub.s32 7, %v1809
      %v1811 = vrot.slane %v1778, %v1810
      %v1822 = vcombine.high %v1776, %v1776
      %v1824 = vunpack.c.l.s4 1983009808
      %v1825 = vunpack.c.0.s8 %v1824
      %v1826 = vlaneseq
      %v1827 = vshrl.u32 %v1826, 7
      %v1828 = vsub.s32 %v1825, %v1827
      %v1829 = vrot.slane %v1776, %v1828
      %v1831 = vunpack.c.l.s4 1983009808
      %v1832 = vunpack.c.0.s8 %v1831
      %v1833 = vlaneseq
      %v1834 = vshrl.u32 %v1833, 7
      %v1835 = vsub.s32 %v1832, %v1834
      %v1836 = vrot.slane %v1822, %v1835
      %v1837 = vcombine.high %v1829, %v1829
      %v1838 = vcombine.high %v1836, %v1836
      %v1839 = vcombine.high %v1777, %v1777
      %v1841 = vunpack.c.l.s4 1983009808
      %v1842 = vunpack.c.0.s8 %v1841
      %v1843 = vlaneseq
      %v1844 = vshrl.u32 %v1843, 7
      %v1845 = vsub.s32 %v1842, %v1844
      %v1846 = vrot.slane %v1777, %v1845
      %v1848 = vunpack.c.l.s4 1983009808
      %v1849 = vunpack.c.0.s8 %v1848
      %v1850 = vlaneseq
      %v1851 = vshrl.u32 %v1850, 7
      %v1852 = vsub.s32 %v1849, %v1851
      %v1853 = vrot.slane %v1839, %v1852
      %v1854 = vcombine.high %v1846, %v1846
      %v1855 = vcombine.high %v1853, %v1853
      %v1857 = vsel %vm1768, %v1775, 0
      %vm1859 = vcmask 1041408
      %v1861 = vsel %vm1859, %v1829, 0
      %v1864 = vsel %vm1859, %v1837, 0
      %v1867 = vsel %vm1859, %v1836, 0
      %v1870 = vsel %vm1859, %v1838, 0
      %v1873 = vsel %vm1859, %v1846, 0
      %v1876 = vsel %vm1859, %v1854, 0
      %v1879 = vsel %vm1859, %v1853, 0
      %v1882 = vsel %vm1859, %v1855, 0
      %1884 = vmatprep.subr.bf16.mxu0 %v1864
      %1885 = vmatpush1.bf16.msra.mxu0 %v1861
      %1886 = vmatprep.subr.bf16.mxu0 0
      %1887 = vmatpush1.bf16.msra.mxu0 0
      %1888 = vmatprep.subr.bf16.mxu0 0
      %1889 = vmatpush1.bf16.msra.mxu0 0
      %1890 = vmatprep.subr.bf16.mxu0 0
      %1891 = vmatpush1.bf16.msra.mxu0 0
      %1892 = vmatprep.subr.bf16.mxu0 0
      %1893 = vmatpush1.bf16.msra.mxu0 0
      %1894 = vmatprep.subr.bf16.mxu0 0
      %1895 = vmatpush1.bf16.msra.mxu0 0
      %1896 = vmatprep.subr.bf16.mxu0 0
      %1897 = vmatpush1.bf16.msra.mxu0 0
      %1898 = vmatprep.subr.bf16.mxu0 0
      %1899 = vmatpush1.bf16.msra.mxu0 0
      %1900 = vmatprep.subr.bf16.mxu0 0
      %1901 = vmatpush1.bf16.msra.mxu0 0
      %1902 = vmatprep.subr.bf16.mxu0 0
      %1903 = vmatpush1.bf16.msra.mxu0 0
      %1904 = vmatprep.subr.bf16.mxu0 0
      %1905 = vmatpush1.bf16.msra.mxu0 0
      %1906 = vmatprep.subr.bf16.mxu0 0
      %1907 = vmatpush1.bf16.msra.mxu0 0
      %1908 = vmatprep.subr.bf16.mxu0 0
      %1909 = vmatpush1.bf16.msra.mxu0 0
      %1910 = vmatprep.subr.bf16.mxu0 0
      %1911 = vmatpush1.bf16.msra.mxu0 0
      %1912 = vmatprep.subr.bf16.mxu0 0
      %1913 = vmatpush1.bf16.msra.mxu0 0
      %1914 = vmatprep.subr.bf16.mxu0 0
      %1915 = vmatpush1.bf16.msra.mxu0 0
      %1916 = vmatprep.mubr.bf16.mxu0 0
      %1917 = vmatmul.mubr.bf16.gmra.mrb[0].mxu0 %v1857
      %v1918 = vpop.f32.mrb[0].mxu0
      %v1919 = vadd.f32 %v1783, %v1918
      %v1920 = vpop.f32.mrb[0].mxu0
      %v1921 = vadd.f32 %v1787, %v1920
      %v1922 = vpop.f32.mrb[0].mxu0
      %v1923 = vpop.f32.mrb[0].mxu0
      %1924 = vdwg.mxu0
      %1925 = vmatprep.subr.bf16.mxu0 %v1870
      %1926 = vmatpush1.bf16.msra.mxu0 %v1867
      %1927 = vmatprep.subr.bf16.mxu0 0
      %1928 = vmatpush1.bf16.msra.mxu0 0
      %1929 = vmatprep.subr.bf16.mxu0 0
      %1930 = vmatpush1.bf16.msra.mxu0 0
      %1931 = vmatprep.subr.bf16.mxu0 0
      %1932 = vmatpush1.bf16.msra.mxu0 0
      %1933 = vmatprep.subr.bf16.mxu0 0
      %1934 = vmatpush1.bf16.msra.mxu0 0
      %1935 = vmatprep.subr.bf16.mxu0 0
      %1936 = vmatpush1.bf16.msra.mxu0 0
      %1937 = vmatprep.subr.bf16.mxu0 0
      %1938 = vmatpush1.bf16.msra.mxu0 0
      %1939 = vmatprep.subr.bf16.mxu0 0
      %1940 = vmatpush1.bf16.msra.mxu0 0
      %1941 = vmatprep.subr.bf16.mxu0 0
      %1942 = vmatpush1.bf16.msra.mxu0 0
      %1943 = vmatprep.subr.bf16.mxu0 0
      %1944 = vmatpush1.bf16.msra.mxu0 0
      %1945 = vmatprep.subr.bf16.mxu0 0
      %1946 = vmatpush1.bf16.msra.mxu0 0
      %1947 = vmatprep.subr.bf16.mxu0 0
      %1948 = vmatpush1.bf16.msra.mxu0 0
      %1949 = vmatprep.subr.bf16.mxu0 0
      %1950 = vmatpush1.bf16.msra.mxu0 0
      %1951 = vmatprep.subr.bf16.mxu0 0
      %1952 = vmatpush1.bf16.msra.mxu0 0
      %1953 = vmatprep.subr.bf16.mxu0 0
      %1954 = vmatpush1.bf16.msra.mxu0 0
      %1955 = vmatprep.subr.bf16.mxu0 0
      %1956 = vmatpush1.bf16.msra.mxu0 0
      %1957 = vmatprep.mubr.bf16.mxu0 0
      %1958 = vmatmul.mubr.bf16.gmra.mrb[0].mxu0 %v1857
      %v1959 = vpop.f32.mrb[0].mxu0
      %v1960 = vadd.f32 %v1791, %v1959
      %v1961 = vpop.f32.mrb[0].mxu0
      %v1962 = vadd.f32 %v1795, %v1961
      %v1963 = vpop.f32.mrb[0].mxu0
      %v1964 = vpop.f32.mrb[0].mxu0
      %1965 = vdwg.mxu0
      %1966 = vmatprep.subr.bf16.mxu0 %v1876
      %1967 = vmatpush1.bf16.msra.mxu0 %v1873
      %1968 = vmatprep.subr.bf16.mxu0 0
      %1969 = vmatpush1.bf16.msra.mxu0 0
      %1970 = vmatprep.subr.bf16.mxu0 0
      %1971 = vmatpush1.bf16.msra.mxu0 0
      %1972 = vmatprep.subr.bf16.mxu0 0
      %1973 = vmatpush1.bf16.msra.mxu0 0
      %1974 = vmatprep.subr.bf16.mxu0 0
      %1975 = vmatpush1.bf16.msra.mxu0 0
      %1976 = vmatprep.subr.bf16.mxu0 0
      %1977 = vmatpush1.bf16.msra.mxu0 0
      %1978 = vmatprep.subr.bf16.mxu0 0
      %1979 = vmatpush1.bf16.msra.mxu0 0
      %1980 = vmatprep.subr.bf16.mxu0 0
      %1981 = vmatpush1.bf16.msra.mxu0 0
      %1982 = vmatprep.subr.bf16.mxu0 0
      %1983 = vmatpush1.bf16.msra.mxu0 0
      %1984 = vmatprep.subr.bf16.mxu0 0
      %1985 = vmatpush1.bf16.msra.mxu0 0
      %1986 = vmatprep.subr.bf16.mxu0 0
      %1987 = vmatpush1.bf16.msra.mxu0 0
      %1988 = vmatprep.subr.bf16.mxu0 0
      %1989 = vmatpush1.bf16.msra.mxu0 0
      %1990 = vmatprep.subr.bf16.mxu0 0
      %1991 = vmatpush1.bf16.msra.mxu0 0
      %1992 = vmatprep.subr.bf16.mxu0 0
      %1993 = vmatpush1.bf16.msra.mxu0 0
      %1994 = vmatprep.subr.bf16.mxu0 0
      %1995 = vmatpush1.bf16.msra.mxu0 0
      %1996 = vmatprep.subr.bf16.mxu0 0
      %1997 = vmatpush1.bf16.msra.mxu0 0
      %1998 = vmatprep.mubr.bf16.mxu0 0
      %1999 = vmatmul.mubr.bf16.gmra.mrb[0].mxu0 %v1857
      %v2000 = vpop.f32.mrb[0].mxu0
      %v2001 = vadd.f32 %v1799, %v2000
      %v2002 = vpop.f32.mrb[0].mxu0
      %v2003 = vadd.f32 %v1803, %v2002
      %v2004 = vpop.f32.mrb[0].mxu0
      %v2005 = vpop.f32.mrb[0].mxu0
      %2006 = vdwg.mxu0
      %2007 = vmatprep.subr.bf16.mxu0 %v1882
      %2008 = vmatpush1.bf16.msra.mxu0 %v1879
      %2009 = vmatprep.subr.bf16.mxu0 0
      %2010 = vmatpush1.bf16.msra.mxu0 0
      %2011 = vmatprep.subr.bf16.mxu0 0
      %2012 = vmatpush1.bf16.msra.mxu0 0
      %2013 = vmatprep.subr.bf16.mxu0 0
      %2014 = vmatpush1.bf16.msra.mxu0 0
      %2015 = vmatprep.subr.bf16.mxu0 0
      %2016 = vmatpush1.bf16.msra.mxu0 0
      %2017 = vmatprep.subr.bf16.mxu0 0
      %2018 = vmatpush1.bf16.msra.mxu0 0
      %2019 = vmatprep.subr.bf16.mxu0 0
      %2020 = vmatpush1.bf16.msra.mxu0 0
      %2021 = vmatprep.subr.bf16.mxu0 0
      %2022 = vmatpush1.bf16.msra.mxu0 0
      %2023 = vmatprep.subr.bf16.mxu0 0
      %2024 = vmatpush1.bf16.msra.mxu0 0
      %2025 = vmatprep.subr.bf16.mxu0 0
      %2026 = vmatpush1.bf16.msra.mxu0 0
      %2027 = vmatprep.subr.bf16.mxu0 0
      %2028 = vmatpush1.bf16.msra.mxu0 0
      %2029 = vmatprep.subr.bf16.mxu0 0
      %2030 = vmatpush1.bf16.msra.mxu0 0
      %2031 = vmatprep.subr.bf16.mxu0 0
      %2032 = vmatpush1.bf16.msra.mxu0 0
      %2033 = vmatprep.subr.bf16.mxu0 0
      %2034 = vmatpush1.bf16.msra.mxu0 0
      %2035 = vmatprep.subr.bf16.mxu0 0
      %2036 = vmatpush1.bf16.msra.mxu0 0
      %2037 = vmatprep.subr.bf16.mxu0 0
      %2038 = vmatpush1.bf16.msra.mxu0 0
      %2039 = vmatprep.mubr.bf16.mxu0 0
      %2040 = vmatmul.mubr.bf16.gmra.mrb[0].mxu0 %v1857
      %v2041 = vpop.f32.mrb[0].mxu0
      %v2042 = vadd.f32 %v1807, %v2041
      %v2043 = vpop.f32.mrb[0].mxu0
      %v2044 = vadd.f32 %v1811, %v2043
      %v2045 = vpop.f32.mrb[0].mxu0
      %v2046 = vpop.f32.mrb[0].mxu0
      %2047 = vdwg.mxu0
      %v2048 = vpack.c.bf16 %v1919, %v1919
      %v2049 = vpack.c.bf16 %v1921, %v1921
      %v2050 = vpack.c.bf16 %v1960, %v1960
      %v2051 = vpack.c.bf16 %v1962, %v1962
      %v2052 = vpack.c.bf16 %v2001, %v2001
      %v2053 = vpack.c.bf16 %v2003, %v2003
      %v2054 = vpack.c.bf16 %v2042, %v2042
      %v2055 = vpack.c.bf16 %v2044, %v2044
      %v2056 = vld [vmem:[#allocation12] sm:$0xf]
      %v2057 = vld [vmem:[#allocation12 + $0x4] sm:$0xf]
      %v2058 = vld [vmem:[#allocation12 + $0x8] sm:$0xf]
      %v2059 = vld [vmem:[#allocation12 + $0xc] sm:$0xf]
      %v2060 = vld [vmem:[#allocation12 + $0x10] sm:$0xf]
      %v2061 = vld [vmem:[#allocation12 + $0x14] sm:$0xf]
      %v2062 = vld [vmem:[#allocation12 + $0x18] sm:$0xf]
      %v2063 = vld [vmem:[#allocation12 + $0x1c] sm:$0xf]
      %v2064 = vld [vmem:[#allocation12 + $0x20] sm:$0xf]
      %v2065 = vld [vmem:[#allocation12 + $0x24] sm:$0xf]
      %v2066 = vld [vmem:[#allocation12 + $0x28] sm:$0xf]
      %v2067 = vld [vmem:[#allocation12 + $0x2c] sm:$0xf]
      %v2068 = vld [vmem:[#allocation12 + $0x30] sm:$0xf]
      %v2069 = vld [vmem:[#allocation12 + $0x34] sm:$0xf]
      %v2070 = vld [vmem:[#allocation12 + $0x38] sm:$0xf]
      %v2071 = vld [vmem:[#allocation12 + $0x3c] sm:$0xf]
      %v2072 = vld [vmem:[#allocation12 + $0x40] sm:$0xf]
      %v2073 = vld [vmem:[#allocation12 + $0x44] sm:$0xf]
      %v2074 = vld [vmem:[#allocation12 + $0x48] sm:$0xf]
      %v2075 = vld [vmem:[#allocation12 + $0x4c] sm:$0xf]
      %v2076 = vld [vmem:[#allocation12 + $0x50] sm:$0xf]
      %v2077 = vld [vmem:[#allocation12 + $0x54] sm:$0xf]
      %v2078 = vld [vmem:[#allocation12 + $0x58] sm:$0xf]
      %v2079 = vld [vmem:[#allocation12 + $0x5c] sm:$0xf]
      %v2080 = vld [vmem:[#allocation12 + $0x60] sm:$0xf]
      %v2081 = vld [vmem:[#allocation12 + $0x64] sm:$0xf]
      %v2082 = vld [vmem:[#allocation12 + $0x68] sm:$0xf]
      %v2083 = vld [vmem:[#allocation12 + $0x6c] sm:$0xf]
      %v2084 = vld [vmem:[#allocation12 + $0x70] sm:$0xf]
      %v2085 = vld [vmem:[#allocation12 + $0x74] sm:$0xf]
      %v2086 = vld [vmem:[#allocation12 + $0x78] sm:$0xf]
      %v2087 = vld [vmem:[#allocation12 + $0x7c] sm:$0xf]
      %v2088 = vld [vmem:[#allocation12 + $0x80] sm:$0xf]
      %v2089 = vld [vmem:[#allocation12 + $0x84] sm:$0xf]
      %v2090 = vld [vmem:[#allocation12 + $0x88] sm:$0xf]
      %v2091 = vld [vmem:[#allocation12 + $0x8c] sm:$0xf]
      %v2092 = vld [vmem:[#allocation12 + $0x90] sm:$0xf]
      %v2093 = vld [vmem:[#allocation12 + $0x94] sm:$0xf]
      %v2094 = vld [vmem:[#allocation12 + $0x98] sm:$0xf]
      %v2095 = vld [vmem:[#allocation12 + $0x9c] sm:$0xf]
      %v2096 = vld [vmem:[#allocation12 + $0xa0] sm:$0xf]
      %v2097 = vld [vmem:[#allocation12 + $0xa4] sm:$0xf]
      %v2098 = vld [vmem:[#allocation12 + $0xa8] sm:$0xf]
      %v2099 = vld [vmem:[#allocation12 + $0xac] sm:$0xf]
      %v2100 = vld [vmem:[#allocation12 + $0xb0] sm:$0xf]
      %v2101 = vld [vmem:[#allocation12 + $0xb4] sm:$0xf]
      %v2102 = vld [vmem:[#allocation12 + $0xb8] sm:$0xf]
      %v2103 = vld [vmem:[#allocation12 + $0xbc] sm:$0xf]
      %v2104 = vld [vmem:[#allocation12 + $0xc0] sm:$0xf]
      %v2105 = vld [vmem:[#allocation12 + $0xc4] sm:$0xf]
      %v2106 = vld [vmem:[#allocation12 + $0xc8] sm:$0xf]
      %v2107 = vld [vmem:[#allocation12 + $0xcc] sm:$0xf]
      %v2108 = vld [vmem:[#allocation12 + $0xd0] sm:$0xf]
      %v2109 = vld [vmem:[#allocation12 + $0xd4] sm:$0xf]
      %v2110 = vld [vmem:[#allocation12 + $0xd8] sm:$0xf]
      %v2111 = vld [vmem:[#allocation12 + $0xdc] sm:$0xf]
      %v2112 = vld [vmem:[#allocation12 + $0xe0] sm:$0xf]
      %v2113 = vld [vmem:[#allocation12 + $0xe4] sm:$0xf]
      %v2114 = vld [vmem:[#allocation12 + $0xe8] sm:$0xf]
      %v2115 = vld [vmem:[#allocation12 + $0xec] sm:$0xf]
      %v2116 = vld [vmem:[#allocation12 + $0xf0] sm:$0xf]
      %v2117 = vld [vmem:[#allocation12 + $0xf4] sm:$0xf]
      %v2118 = vld [vmem:[#allocation12 + $0xf8] sm:$0xf]
      %v2119 = vld [vmem:[#allocation12 + $0xfc] sm:$0xf]
      %v2120 = vld [vmem:[#allocation12 + $0x100] sm:$0xf]
      %v2121 = vld [vmem:[#allocation12 + $0x104] sm:$0xf]
      %v2122 = vld [vmem:[#allocation12 + $0x108] sm:$0xf]
      %v2123 = vld [vmem:[#allocation12 + $0x10c] sm:$0xf]
      %v2124 = vld [vmem:[#allocation12 + $0x110] sm:$0xf]
      %v2125 = vld [vmem:[#allocation12 + $0x114] sm:$0xf]
      %v2126 = vld [vmem:[#allocation12 + $0x118] sm:$0xf]
      %v2127 = vld [vmem:[#allocation12 + $0x11c] sm:$0xf]
      %v2128 = vld [vmem:[#allocation12 + $0x120] sm:$0xf]
      %v2129 = vld [vmem:[#allocation12 + $0x124] sm:$0xf]
      %v2130 = vld [vmem:[#allocation12 + $0x128] sm:$0xf]
      %v2131 = vld [vmem:[#allocation12 + $0x12c] sm:$0xf]
      %v2132 = vld [vmem:[#allocation12 + $0x130] sm:$0xf]
      %v2133 = vld [vmem:[#allocation12 + $0x134] sm:$0xf]
      %v2134 = vld [vmem:[#allocation12 + $0x138] sm:$0xf]
      %v2135 = vld [vmem:[#allocation12 + $0x13c] sm:$0xf]
      %v2136 = vld [vmem:[#allocation12 + $0x140] sm:$0xf]
      %v2137 = vld [vmem:[#allocation12 + $0x144] sm:$0xf]
      %v2138 = vld [vmem:[#allocation12 + $0x148] sm:$0xf]
      %v2139 = vld [vmem:[#allocation12 + $0x14c] sm:$0xf]
      %v2140 = vld [vmem:[#allocation12 + $0x150] sm:$0xf]
      %v2141 = vld [vmem:[#allocation12 + $0x154] sm:$0xf]
      %v2142 = vld [vmem:[#allocation12 + $0x158] sm:$0xf]
      %v2143 = vld [vmem:[#allocation12 + $0x15c] sm:$0xf]
      %v2144 = vld [vmem:[#allocation12 + $0x160] sm:$0xf]
      %v2145 = vld [vmem:[#allocation12 + $0x164] sm:$0xf]
      %v2146 = vld [vmem:[#allocation12 + $0x168] sm:$0xf]
      %v2147 = vld [vmem:[#allocation12 + $0x16c] sm:$0xf]
      %v2148 = vld [vmem:[#allocation12 + $0x170] sm:$0xf]
      %v2149 = vld [vmem:[#allocation12 + $0x174] sm:$0xf]
      %v2150 = vld [vmem:[#allocation12 + $0x178] sm:$0xf]
      %v2151 = vld [vmem:[#allocation12 + $0x17c] sm:$0xf]
      %v2152 = vld [vmem:[#allocation12 + $0x180] sm:$0xf]
      %v2153 = vld [vmem:[#allocation12 + $0x184] sm:$0xf]
      %v2154 = vld [vmem:[#allocation12 + $0x188] sm:$0xf]
      %v2155 = vld [vmem:[#allocation12 + $0x18c] sm:$0xf]
      %v2156 = vld [vmem:[#allocation12 + $0x190] sm:$0xf]
      %v2157 = vld [vmem:[#allocation12 + $0x194] sm:$0xf]
      %v2158 = vld [vmem:[#allocation12 + $0x198] sm:$0xf]
      %v2159 = vld [vmem:[#allocation12 + $0x19c] sm:$0xf]
      %v2160 = vld [vmem:[#allocation12 + $0x1a0] sm:$0xf]
      %v2161 = vld [vmem:[#allocation12 + $0x1a4] sm:$0xf]
      %v2162 = vld [vmem:[#allocation12 + $0x1a8] sm:$0xf]
      %v2163 = vld [vmem:[#allocation12 + $0x1ac] sm:$0xf]
      %v2164 = vld [vmem:[#allocation12 + $0x1b0] sm:$0xf]
      %v2165 = vld [vmem:[#allocation12 + $0x1b4] sm:$0xf]
      %v2166 = vld [vmem:[#allocation12 + $0x1b8] sm:$0xf]
      %v2167 = vld [vmem:[#allocation12 + $0x1bc] sm:$0xf]
      %v2168 = vld [vmem:[#allocation12 + $0x1c0] sm:$0xf]
      %v2169 = vld [vmem:[#allocation12 + $0x1c4] sm:$0xf]
      %v2170 = vld [vmem:[#allocation12 + $0x1c8] sm:$0xf]
      %v2171 = vld [vmem:[#allocation12 + $0x1cc] sm:$0xf]
      %v2172 = vld [vmem:[#allocation12 + $0x1d0] sm:$0xf]
      %v2173 = vld [vmem:[#allocation12 + $0x1d4] sm:$0xf]
      %v2174 = vld [vmem:[#allocation12 + $0x1d8] sm:$0xf]
      %v2175 = vld [vmem:[#allocation12 + $0x1dc] sm:$0xf]
      %v2176 = vld [vmem:[#allocation12 + $0x1e0] sm:$0xf]
      %v2177 = vld [vmem:[#allocation12 + $0x1e4] sm:$0xf]
      %v2178 = vld [vmem:[#allocation12 + $0x1e8] sm:$0xf]
      %v2179 = vld [vmem:[#allocation12 + $0x1ec] sm:$0xf]
      %v2180 = vld [vmem:[#allocation12 + $0x1f0] sm:$0xf]
      %v2181 = vld [vmem:[#allocation12 + $0x1f4] sm:$0xf]
      %v2182 = vld [vmem:[#allocation12 + $0x1f8] sm:$0xf]
      %v2183 = vld [vmem:[#allocation12 + $0x1fc] sm:$0xf]
      %v2184 = vld [vmem:[#allocation3] sm:$0xff]
      %v2185 = vld [vmem:[#allocation3 + $0x8] sm:$0xff]
      %v2186 = vld [vmem:[#allocation3 + $0x10] sm:$0xff]
      %v2187 = vld [vmem:[#allocation3 + $0x18] sm:$0xff]
      %v2188 = vld [vmem:[#allocation3 + $0x20] sm:$0xff]
      %v2189 = vld [vmem:[#allocation3 + $0x28] sm:$0xff]
      %v2190 = vld [vmem:[#allocation3 + $0x30] sm:$0xff]
      %v2191 = vld [vmem:[#allocation3 + $0x38] sm:$0xff]
      %v2192 = vld [vmem:[#allocation13] sm:$0xf]
      %v2193 = vld [vmem:[#allocation13 + $0x4] sm:$0xf]
      %v2194 = vld [vmem:[#allocation13 + $0x8] sm:$0xf]
      %v2195 = vld [vmem:[#allocation13 + $0xc] sm:$0xf]
      %v2196 = vld [vmem:[#allocation13 + $0x10] sm:$0xf]
      %v2197 = vld [vmem:[#allocation13 + $0x14] sm:$0xf]
      %v2198 = vld [vmem:[#allocation13 + $0x18] sm:$0xf]
      %v2199 = vld [vmem:[#allocation13 + $0x1c] sm:$0xf]
      %v2200 = vld [vmem:[#allocation13 + $0x20] sm:$0xf]
      %v2201 = vld [vmem:[#allocation13 + $0x24] sm:$0xf]
      %v2202 = vld [vmem:[#allocation13 + $0x28] sm:$0xf]
      %v2203 = vld [vmem:[#allocation13 + $0x2c] sm:$0xf]
      %v2204 = vld [vmem:[#allocation13 + $0x30] sm:$0xf]
      %v2205 = vld [vmem:[#allocation13 + $0x34] sm:$0xf]
      %v2206 = vld [vmem:[#allocation13 + $0x38] sm:$0xf]
      %v2207 = vld [vmem:[#allocation13 + $0x3c] sm:$0xf]
      %v2208 = vld [vmem:[#allocation13 + $0x40] sm:$0xf]
      %v2209 = vld [vmem:[#allocation13 + $0x44] sm:$0xf]
      %v2210 = vld [vmem:[#allocation13 + $0x48] sm:$0xf]
      %v2211 = vld [vmem:[#allocation13 + $0x4c] sm:$0xf]
      %v2212 = vld [vmem:[#allocation13 + $0x50] sm:$0xf]
      %v2213 = vld [vmem:[#allocation13 + $0x54] sm:$0xf]
      %v2214 = vld [vmem:[#allocation13 + $0x58] sm:$0xf]
      %v2215 = vld [vmem:[#allocation13 + $0x5c] sm:$0xf]
      %v2216 = vld [vmem:[#allocation13 + $0x60] sm:$0xf]
      %v2217 = vld [vmem:[#allocation13 + $0x64] sm:$0xf]
      %v2218 = vld [vmem:[#allocation13 + $0x68] sm:$0xf]
      %v2219 = vld [vmem:[#allocation13 + $0x6c] sm:$0xf]
      %v2220 = vld [vmem:[#allocation13 + $0x70] sm:$0xf]
      %v2221 = vld [vmem:[#allocation13 + $0x74] sm:$0xf]
      %v2222 = vld [vmem:[#allocation13 + $0x78] sm:$0xf]
      %v2223 = vld [vmem:[#allocation13 + $0x7c] sm:$0xf]
      %v2224 = vld [vmem:[#allocation13 + $0x80] sm:$0xf]
      %v2225 = vld [vmem:[#allocation13 + $0x84] sm:$0xf]
      %v2226 = vld [vmem:[#allocation13 + $0x88] sm:$0xf]
      %v2227 = vld [vmem:[#allocation13 + $0x8c] sm:$0xf]
      %v2228 = vld [vmem:[#allocation13 + $0x90] sm:$0xf]
      %v2229 = vld [vmem:[#allocation13 + $0x94] sm:$0xf]
      %v2230 = vld [vmem:[#allocation13 + $0x98] sm:$0xf]
      %v2231 = vld [vmem:[#allocation13 + $0x9c] sm:$0xf]
      %v2232 = vld [vmem:[#allocation13 + $0xa0] sm:$0xf]
      %v2233 = vld [vmem:[#allocation13 + $0xa4] sm:$0xf]
      %v2234 = vld [vmem:[#allocation13 + $0xa8] sm:$0xf]
      %v2235 = vld [vmem:[#allocation13 + $0xac] sm:$0xf]
      %v2236 = vld [vmem:[#allocation13 + $0xb0] sm:$0xf]
      %v2237 = vld [vmem:[#allocation13 + $0xb4] sm:$0xf]
      %v2238 = vld [vmem:[#allocation13 + $0xb8] sm:$0xf]
      %v2239 = vld [vmem:[#allocation13 + $0xbc] sm:$0xf]
      %v2240 = vld [vmem:[#allocation13 + $0xc0] sm:$0xf]
      %v2241 = vld [vmem:[#allocation13 + $0xc4] sm:$0xf]
      %v2242 = vld [vmem:[#allocation13 + $0xc8] sm:$0xf]
      %v2243 = vld [vmem:[#allocation13 + $0xcc] sm:$0xf]
      %v2244 = vld [vmem:[#allocation13 + $0xd0] sm:$0xf]
      %v2245 = vld [vmem:[#allocation13 + $0xd4] sm:$0xf]
      %v2246 = vld [vmem:[#allocation13 + $0xd8] sm:$0xf]
      %v2247 = vld [vmem:[#allocation13 + $0xdc] sm:$0xf]
      %v2248 = vld [vmem:[#allocation13 + $0xe0] sm:$0xf]
      %v2249 = vld [vmem:[#allocation13 + $0xe4] sm:$0xf]
      %v2250 = vld [vmem:[#allocation13 + $0xe8] sm:$0xf]
      %v2251 = vld [vmem:[#allocation13 + $0xec] sm:$0xf]
      %v2252 = vld [vmem:[#allocation13 + $0xf0] sm:$0xf]
      %v2253 = vld [vmem:[#allocation13 + $0xf4] sm:$0xf]
      %v2254 = vld [vmem:[#allocation13 + $0xf8] sm:$0xf]
      %v2255 = vld [vmem:[#allocation13 + $0xfc] sm:$0xf]
      %v2256 = vld [vmem:[#allocation13 + $0x100] sm:$0xf]
      %v2257 = vld [vmem:[#allocation13 + $0x104] sm:$0xf]
      %v2258 = vld [vmem:[#allocation13 + $0x108] sm:$0xf]
      %v2259 = vld [vmem:[#allocation13 + $0x10c] sm:$0xf]
      %v2260 = vld [vmem:[#allocation13 + $0x110] sm:$0xf]
      %v2261 = vld [vmem:[#allocation13 + $0x114] sm:$0xf]
      %v2262 = vld [vmem:[#allocation13 + $0x118] sm:$0xf]
      %v2263 = vld [vmem:[#allocation13 + $0x11c] sm:$0xf]
      %v2264 = vld [vmem:[#allocation13 + $0x120] sm:$0xf]
      %v2265 = vld [vmem:[#allocation13 + $0x124] sm:$0xf]
      %v2266 = vld [vmem:[#allocation13 + $0x128] sm:$0xf]
      %v2267 = vld [vmem:[#allocation13 + $0x12c] sm:$0xf]
      %v2268 = vld [vmem:[#allocation13 + $0x130] sm:$0xf]
      %v2269 = vld [vmem:[#allocation13 + $0x134] sm:$0xf]
      %v2270 = vld [vmem:[#allocation13 + $0x138] sm:$0xf]
      %v2271 = vld [vmem:[#allocation13 + $0x13c] sm:$0xf]
      %v2272 = vld [vmem:[#allocation13 + $0x140] sm:$0xf]
      %v2273 = vld [vmem:[#allocation13 + $0x144] sm:$0xf]
      %v2274 = vld [vmem:[#allocation13 + $0x148] sm:$0xf]
      %v2275 = vld [vmem:[#allocation13 + $0x14c] sm:$0xf]
      %v2276 = vld [vmem:[#allocation13 + $0x150] sm:$0xf]
      %v2277 = vld [vmem:[#allocation13 + $0x154] sm:$0xf]
      %v2278 = vld [vmem:[#allocation13 + $0x158] sm:$0xf]
      %v2279 = vld [vmem:[#allocation13 + $0x15c] sm:$0xf]
      %v2280 = vld [vmem:[#allocation13 + $0x160] sm:$0xf]
      %v2281 = vld [vmem:[#allocation13 + $0x164] sm:$0xf]
      %v2282 = vld [vmem:[#allocation13 + $0x168] sm:$0xf]
      %v2283 = vld [vmem:[#allocation13 + $0x16c] sm:$0xf]
      %v2284 = vld [vmem:[#allocation13 + $0x170] sm:$0xf]
      %v2285 = vld [vmem:[#allocation13 + $0x174] sm:$0xf]
      %v2286 = vld [vmem:[#allocation13 + $0x178] sm:$0xf]
      %v2287 = vld [vmem:[#allocation13 + $0x17c] sm:$0xf]
      %v2288 = vld [vmem:[#allocation13 + $0x180] sm:$0xf]
      %v2289 = vld [vmem:[#allocation13 + $0x184] sm:$0xf]
      %v2290 = vld [vmem:[#allocation13 + $0x188] sm:$0xf]
      %v2291 = vld [vmem:[#allocation13 + $0x18c] sm:$0xf]
      %v2292 = vld [vmem:[#allocation13 + $0x190] sm:$0xf]
      %v2293 = vld [vmem:[#allocation13 + $0x194] sm:$0xf]
      %v2294 = vld [vmem:[#allocation13 + $0x198] sm:$0xf]
      %v2295 = vld [vmem:[#allocation13 + $0x19c] sm:$0xf]
      %v2296 = vld [vmem:[#allocation13 + $0x1a0] sm:$0xf]
      %v2297 = vld [vmem:[#allocation13 + $0x1a4] sm:$0xf]
      %v2298 = vld [vmem:[#allocation13 + $0x1a8] sm:$0xf]
      %v2299 = vld [vmem:[#allocation13 + $0x1ac] sm:$0xf]
      %v2300 = vld [vmem:[#allocation13 + $0x1b0] sm:$0xf]
      %v2301 = vld [vmem:[#allocation13 + $0x1b4] sm:$0xf]
      %v2302 = vld [vmem:[#allocation13 + $0x1b8] sm:$0xf]
      %v2303 = vld [vmem:[#allocation13 + $0x1bc] sm:$0xf]
      %v2304 = vld [vmem:[#allocation13 + $0x1c0] sm:$0xf]
      %v2305 = vld [vmem:[#allocation13 + $0x1c4] sm:$0xf]
      %v2306 = vld [vmem:[#allocation13 + $0x1c8] sm:$0xf]
      %v2307 = vld [vmem:[#allocation13 + $0x1cc] sm:$0xf]
      %v2308 = vld [vmem:[#allocation13 + $0x1d0] sm:$0xf]
      %v2309 = vld [vmem:[#allocation13 + $0x1d4] sm:$0xf]
      %v2310 = vld [vmem:[#allocation13 + $0x1d8] sm:$0xf]
      %v2311 = vld [vmem:[#allocation13 + $0x1dc] sm:$0xf]
      %v2312 = vld [vmem:[#allocation13 + $0x1e0] sm:$0xf]
      %v2313 = vld [vmem:[#allocation13 + $0x1e4] sm:$0xf]
      %v2314 = vld [vmem:[#allocation13 + $0x1e8] sm:$0xf]
      %v2315 = vld [vmem:[#allocation13 + $0x1ec] sm:$0xf]
      %v2316 = vld [vmem:[#allocation13 + $0x1f0] sm:$0xf]
      %v2317 = vld [vmem:[#allocation13 + $0x1f4] sm:$0xf]
      %v2318 = vld [vmem:[#allocation13 + $0x1f8] sm:$0xf]
      %v2319 = vld [vmem:[#allocation13 + $0x1fc] sm:$0xf]
      %v2320 = vld [vmem:[#allocation13 + $0x200] sm:$0xf]
      %v2321 = vld [vmem:[#allocation13 + $0x204] sm:$0xf]
      %v2322 = vld [vmem:[#allocation13 + $0x208] sm:$0xf]
      %v2323 = vld [vmem:[#allocation13 + $0x20c] sm:$0xf]
      %v2324 = vld [vmem:[#allocation13 + $0x210] sm:$0xf]
      %v2325 = vld [vmem:[#allocation13 + $0x214] sm:$0xf]
      %v2326 = vld [vmem:[#allocation13 + $0x218] sm:$0xf]
      %v2327 = vld [vmem:[#allocation13 + $0x21c] sm:$0xf]
      %v2328 = vld [vmem:[#allocation13 + $0x220] sm:$0xf]
      %v2329 = vld [vmem:[#allocation13 + $0x224] sm:$0xf]
      %v2330 = vld [vmem:[#allocation13 + $0x228] sm:$0xf]
      %v2331 = vld [vmem:[#allocation13 + $0x22c] sm:$0xf]
      %v2332 = vld [vmem:[#allocation13 + $0x230] sm:$0xf]
      %v2333 = vld [vmem:[#allocation13 + $0x234] sm:$0xf]
      %v2334 = vld [vmem:[#allocation13 + $0x238] sm:$0xf]
      %v2335 = vld [vmem:[#allocation13 + $0x23c] sm:$0xf]
      %v2336 = vld [vmem:[#allocation13 + $0x240] sm:$0xf]
      %v2337 = vld [vmem:[#allocation13 + $0x244] sm:$0xf]
      %v2338 = vld [vmem:[#allocation13 + $0x248] sm:$0xf]
      %v2339 = vld [vmem:[#allocation13 + $0x24c] sm:$0xf]
      %v2340 = vld [vmem:[#allocation13 + $0x250] sm:$0xf]
      %v2341 = vld [vmem:[#allocation13 + $0x254] sm:$0xf]
      %v2342 = vld [vmem:[#allocation13 + $0x258] sm:$0xf]
      %v2343 = vld [vmem:[#allocation13 + $0x25c] sm:$0xf]
      %v2344 = vld [vmem:[#allocation13 + $0x260] sm:$0xf]
      %v2345 = vld [vmem:[#allocation13 + $0x264] sm:$0xf]
      %v2346 = vld [vmem:[#allocation13 + $0x268] sm:$0xf]
      %v2347 = vld [vmem:[#allocation13 + $0x26c] sm:$0xf]
      %v2348 = vld [vmem:[#allocation13 + $0x270] sm:$0xf]
      %v2349 = vld [vmem:[#allocation13 + $0x274] sm:$0xf]
      %v2350 = vld [vmem:[#allocation13 + $0x278] sm:$0xf]
      %v2351 = vld [vmem:[#allocation13 + $0x27c] sm:$0xf]
      %v2352 = vld [vmem:[#allocation13 + $0x280] sm:$0xf]
      %v2353 = vld [vmem:[#allocation13 + $0x284] sm:$0xf]
      %v2354 = vld [vmem:[#allocation13 + $0x288] sm:$0xf]
      %v2355 = vld [vmem:[#allocation13 + $0x28c] sm:$0xf]
      %v2356 = vld [vmem:[#allocation13 + $0x290] sm:$0xf]
      %v2357 = vld [vmem:[#allocation13 + $0x294] sm:$0xf]
      %v2358 = vld [vmem:[#allocation13 + $0x298] sm:$0xf]
      %v2359 = vld [vmem:[#allocation13 + $0x29c] sm:$0xf]
      %v2360 = vld [vmem:[#allocation13 + $0x2a0] sm:$0xf]
      %v2361 = vld [vmem:[#allocation13 + $0x2a4] sm:$0xf]
      %v2362 = vld [vmem:[#allocation13 + $0x2a8] sm:$0xf]
      %v2363 = vld [vmem:[#allocation13 + $0x2ac] sm:$0xf]
      %v2364 = vld [vmem:[#allocation13 + $0x2b0] sm:$0xf]
      %v2365 = vld [vmem:[#allocation13 + $0x2b4] sm:$0xf]
      %v2366 = vld [vmem:[#allocation13 + $0x2b8] sm:$0xf]
      %v2367 = vld [vmem:[#allocation13 + $0x2bc] sm:$0xf]
      %v2368 = vld [vmem:[#allocation13 + $0x2c0] sm:$0xf]
      %v2369 = vld [vmem:[#allocation13 + $0x2c4] sm:$0xf]
      %v2370 = vld [vmem:[#allocation13 + $0x2c8] sm:$0xf]
      %v2371 = vld [vmem:[#allocation13 + $0x2cc] sm:$0xf]
      %v2372 = vld [vmem:[#allocation13 + $0x2d0] sm:$0xf]
      %v2373 = vld [vmem:[#allocation13 + $0x2d4] sm:$0xf]
      %v2374 = vld [vmem:[#allocation13 + $0x2d8] sm:$0xf]
      %v2375 = vld [vmem:[#allocation13 + $0x2dc] sm:$0xf]
      %v2376 = vld [vmem:[#allocation13 + $0x2e0] sm:$0xf]
      %v2377 = vld [vmem:[#allocation13 + $0x2e4] sm:$0xf]
      %v2378 = vld [vmem:[#allocation13 + $0x2e8] sm:$0xf]
      %v2379 = vld [vmem:[#allocation13 + $0x2ec] sm:$0xf]
      %v2380 = vld [vmem:[#allocation13 + $0x2f0] sm:$0xf]
      %v2381 = vld [vmem:[#allocation13 + $0x2f4] sm:$0xf]
      %v2382 = vld [vmem:[#allocation13 + $0x2f8] sm:$0xf]
      %v2383 = vld [vmem:[#allocation13 + $0x2fc] sm:$0xf]
      %v2384 = vld [vmem:[#allocation13 + $0x300] sm:$0xf]
      %v2385 = vld [vmem:[#allocation13 + $0x304] sm:$0xf]
      %v2386 = vld [vmem:[#allocation13 + $0x308] sm:$0xf]
      %v2387 = vld [vmem:[#allocation13 + $0x30c] sm:$0xf]
      %v2388 = vld [vmem:[#allocation13 + $0x310] sm:$0xf]
      %v2389 = vld [vmem:[#allocation13 + $0x314] sm:$0xf]
      %v2390 = vld [vmem:[#allocation13 + $0x318] sm:$0xf]
      %v2391 = vld [vmem:[#allocation13 + $0x31c] sm:$0xf]
      %v2392 = vld [vmem:[#allocation13 + $0x320] sm:$0xf]
      %v2393 = vld [vmem:[#allocation13 + $0x324] sm:$0xf]
      %v2394 = vld [vmem:[#allocation13 + $0x328] sm:$0xf]
      %v2395 = vld [vmem:[#allocation13 + $0x32c] sm:$0xf]
      %v2396 = vld [vmem:[#allocation13 + $0x330] sm:$0xf]
      %v2397 = vld [vmem:[#allocation13 + $0x334] sm:$0xf]
      %v2398 = vld [vmem:[#allocation13 + $0x338] sm:$0xf]
      %v2399 = vld [vmem:[#allocation13 + $0x33c] sm:$0xf]
      %v2400 = vld [vmem:[#allocation13 + $0x340] sm:$0xf]
      %v2401 = vld [vmem:[#allocation13 + $0x344] sm:$0xf]
      %v2402 = vld [vmem:[#allocation13 + $0x348] sm:$0xf]
      %v2403 = vld [vmem:[#allocation13 + $0x34c] sm:$0xf]
      %v2404 = vld [vmem:[#allocation13 + $0x350] sm:$0xf]
      %v2405 = vld [vmem:[#allocation13 + $0x354] sm:$0xf]
      %v2406 = vld [vmem:[#allocation13 + $0x358] sm:$0xf]
      %v2407 = vld [vmem:[#allocation13 + $0x35c] sm:$0xf]
      %v2408 = vld [vmem:[#allocation13 + $0x360] sm:$0xf]
      %v2409 = vld [vmem:[#allocation13 + $0x364] sm:$0xf]
      %v2410 = vld [vmem:[#allocation13 + $0x368] sm:$0xf]
      %v2411 = vld [vmem:[#allocation13 + $0x36c] sm:$0xf]
      %v2412 = vld [vmem:[#allocation13 + $0x370] sm:$0xf]
      %v2413 = vld [vmem:[#allocation13 + $0x374] sm:$0xf]
      %v2414 = vld [vmem:[#allocation13 + $0x378] sm:$0xf]
      %v2415 = vld [vmem:[#allocation13 + $0x37c] sm:$0xf]
      %v2416 = vld [vmem:[#allocation13 + $0x380] sm:$0xf]
      %v2417 = vld [vmem:[#allocation13 + $0x384] sm:$0xf]
      %v2418 = vld [vmem:[#allocation13 + $0x388] sm:$0xf]
      %v2419 = vld [vmem:[#allocation13 + $0x38c] sm:$0xf]
      %v2420 = vld [vmem:[#allocation13 + $0x390] sm:$0xf]
      %v2421 = vld [vmem:[#allocation13 + $0x394] sm:$0xf]
      %v2422 = vld [vmem:[#allocation13 + $0x398] sm:$0xf]
      %v2423 = vld [vmem:[#allocation13 + $0x39c] sm:$0xf]
      %v2424 = vld [vmem:[#allocation13 + $0x3a0] sm:$0xf]
      %v2425 = vld [vmem:[#allocation13 + $0x3a4] sm:$0xf]
      %v2426 = vld [vmem:[#allocation13 + $0x3a8] sm:$0xf]
      %v2427 = vld [vmem:[#allocation13 + $0x3ac] sm:$0xf]
      %v2428 = vld [vmem:[#allocation13 + $0x3b0] sm:$0xf]
      %v2429 = vld [vmem:[#allocation13 + $0x3b4] sm:$0xf]
      %v2430 = vld [vmem:[#allocation13 + $0x3b8] sm:$0xf]
      %v2431 = vld [vmem:[#allocation13 + $0x3bc] sm:$0xf]
      %v2432 = vld [vmem:[#allocation13 + $0x3c0] sm:$0xf]
      %v2433 = vld [vmem:[#allocation13 + $0x3c4] sm:$0xf]
      %v2434 = vld [vmem:[#allocation13 + $0x3c8] sm:$0xf]
      %v2435 = vld [vmem:[#allocation13 + $0x3cc] sm:$0xf]
      %v2436 = vld [vmem:[#allocation13 + $0x3d0] sm:$0xf]
      %v2437 = vld [vmem:[#allocation13 + $0x3d4] sm:$0xf]
      %v2438 = vld [vmem:[#allocation13 + $0x3d8] sm:$0xf]
      %v2439 = vld [vmem:[#allocation13 + $0x3dc] sm:$0xf]
      %v2440 = vld [vmem:[#allocation13 + $0x3e0] sm:$0xf]
      %v2441 = vld [vmem:[#allocation13 + $0x3e4] sm:$0xf]
      %v2442 = vld [vmem:[#allocation13 + $0x3e8] sm:$0xf]
      %v2443 = vld [vmem:[#allocation13 + $0x3ec] sm:$0xf]
      %v2444 = vld [vmem:[#allocation13 + $0x3f0] sm:$0xf]
      %v2445 = vld [vmem:[#allocation13 + $0x3f4] sm:$0xf]
      %v2446 = vld [vmem:[#allocation13 + $0x3f8] sm:$0xf]
      %v2447 = vld [vmem:[#allocation13 + $0x3fc] sm:$0xf]
      %v2456 = vunpack.c.l.b16 %v2184
      %v2457 = vunpack.c.h.b16 %v2184
      %v2458 = vunpack.c.l.b16 %v2185
      %v2459 = vunpack.c.h.b16 %v2185
      %v2460 = vunpack.c.l.b16 %v2186
      %v2461 = vunpack.c.h.b16 %v2186
      %v2462 = vunpack.c.l.b16 %v2187
      %v2463 = vunpack.c.h.b16 %v2187
      %v2464 = vunpack.c.l.b16 %v2188
      %v2465 = vunpack.c.h.b16 %v2188
      %v2466 = vunpack.c.l.b16 %v2189
      %v2467 = vunpack.c.h.b16 %v2189
      %v2468 = vunpack.c.l.b16 %v2190
      %v2469 = vunpack.c.h.b16 %v2190
      %v2470 = vunpack.c.l.b16 %v2191
      %v2471 = vunpack.c.h.b16 %v2191
      %v2472 = vpack.c.b16 %v2456, %v2456
      %v2473 = vpack.c.b16 %v2457, %v2457
      %v2474 = vpack.c.b16 %v2458, %v2458
      %v2475 = vpack.c.b16 %v2459, %v2459
      %v2476 = vpack.c.b16 %v2460, %v2460
      %v2477 = vpack.c.b16 %v2461, %v2461
      %v2478 = vpack.c.b16 %v2462, %v2462
      %v2479 = vpack.c.b16 %v2463, %v2463
      %v2480 = vpack.c.b16 %v2464, %v2464
      %v2481 = vpack.c.b16 %v2465, %v2465
      %v2482 = vpack.c.b16 %v2466, %v2466
      %v2483 = vpack.c.b16 %v2467, %v2467
      %v2484 = vpack.c.b16 %v2468, %v2468
      %v2485 = vpack.c.b16 %v2469, %v2469
      %v2486 = vpack.c.b16 %v2470, %v2470
      %v2487 = vpack.c.b16 %v2471, %v2471
      %v2760 = vunpack.c.l.b16 %v2192
      %v2761 = vunpack.c.l.b16 %v2193
      %v2762 = vunpack.c.l.b16 %v2194
      %v2763 = vunpack.c.l.b16 %v2195
      %v2764 = vunpack.c.l.b16 %v2196
      %v2765 = vunpack.c.l.b16 %v2197
      %v2766 = vunpack.c.l.b16 %v2198
      %v2767 = vunpack.c.l.b16 %v2199
      %v2768 = vunpack.c.l.b16 %v2200
      %v2769 = vunpack.c.l.b16 %v2201
      %v2770 = vunpack.c.l.b16 %v2202
      %v2771 = vunpack.c.l.b16 %v2203
      %v2772 = vunpack.c.l.b16 %v2204
      %v2773 = vunpack.c.l.b16 %v2205
      %v2774 = vunpack.c.l.b16 %v2206
      %v2775 = vunpack.c.l.b16 %v2207
      %v2776 = vunpack.c.l.b16 %v2208
      %v2777 = vunpack.c.l.b16 %v2209
      %v2778 = vunpack.c.l.b16 %v2210
      %v2779 = vunpack.c.l.b16 %v2211
      %v2780 = vunpack.c.l.b16 %v2212
      %v2781 = vunpack.c.l.b16 %v2213
      %v2782 = vunpack.c.l.b16 %v2214
      %v2783 = vunpack.c.l.b16 %v2215
      %v2784 = vunpack.c.l.b16 %v2216
      %v2785 = vunpack.c.l.b16 %v2217
      %v2786 = vunpack.c.l.b16 %v2218
      %v2787 = vunpack.c.l.b16 %v2219
      %v2788 = vunpack.c.l.b16 %v2220
      %v2789 = vunpack.c.l.b16 %v2221
      %v2790 = vunpack.c.l.b16 %v2222
      %v2791 = vunpack.c.l.b16 %v2223
      %v2792 = vunpack.c.l.b16 %v2224
      %v2793 = vunpack.c.l.b16 %v2225
      %v2794 = vunpack.c.l.b16 %v2226
      %v2795 = vunpack.c.l.b16 %v2227
      %v2796 = vunpack.c.l.b16 %v2228
      %v2797 = vunpack.c.l.b16 %v2229
      %v2798 = vunpack.c.l.b16 %v2230
      %v2799 = vunpack.c.l.b16 %v2231
      %v2800 = vunpack.c.l.b16 %v2232
      %v2801 = vunpack.c.l.b16 %v2233
      %v2802 = vunpack.c.l.b16 %v2234
      %v2803 = vunpack.c.l.b16 %v2235
      %v2804 = vunpack.c.l.b16 %v2236
      %v2805 = vunpack.c.l.b16 %v2237
      %v2806 = vunpack.c.l.b16 %v2238
      %v2807 = vunpack.c.l.b16 %v2239
      %v2808 = vunpack.c.l.b16 %v2240
      %v2809 = vunpack.c.l.b16 %v2241
      %v2810 = vunpack.c.l.b16 %v2242
      %v2811 = vunpack.c.l.b16 %v2243
      %v2812 = vunpack.c.l.b16 %v2244
      %v2813 = vunpack.c.l.b16 %v2245
      %v2814 = vunpack.c.l.b16 %v2246
      %v2815 = vunpack.c.l.b16 %v2247
      %v2816 = vunpack.c.l.b16 %v2248
      %v2817 = vunpack.c.l.b16 %v2249
      %v2818 = vunpack.c.l.b16 %v2250
      %v2819 = vunpack.c.l.b16 %v2251
      %v2820 = vunpack.c.l.b16 %v2252
      %v2821 = vunpack.c.l.b16 %v2253
      %v2822 = vunpack.c.l.b16 %v2254
      %v2823 = vunpack.c.l.b16 %v2255
      %v2824 = vunpack.c.l.b16 %v2256
      %v2825 = vunpack.c.l.b16 %v2257
      %v2826 = vunpack.c.l.b16 %v2258
      %v2827 = vunpack.c.l.b16 %v2259
      %v2828 = vunpack.c.l.b16 %v2260
      %v2829 = vunpack.c.l.b16 %v2261
      %v2830 = vunpack.c.l.b16 %v2262
      %v2831 = vunpack.c.l.b16 %v2263
      %v2832 = vunpack.c.l.b16 %v2264
      %v2833 = vunpack.c.l.b16 %v2265
      %v2834 = vunpack.c.l.b16 %v2266
      %v2835 = vunpack.c.l.b16 %v2267
      %v2836 = vunpack.c.l.b16 %v2268
      %v2837 = vunpack.c.l.b16 %v2269
      %v2838 = vunpack.c.l.b16 %v2270
      %v2839 = vunpack.c.l.b16 %v2271
      %v2840 = vunpack.c.l.b16 %v2272
      %v2841 = vunpack.c.l.b16 %v2273
      %v2842 = vunpack.c.l.b16 %v2274
      %v2843 = vunpack.c.l.b16 %v2275
      %v2844 = vunpack.c.l.b16 %v2276
      %v2845 = vunpack.c.l.b16 %v2277
      %v2846 = vunpack.c.l.b16 %v2278
      %v2847 = vunpack.c.l.b16 %v2279
      %v2848 = vunpack.c.l.b16 %v2280
      %v2849 = vunpack.c.l.b16 %v2281
      %v2850 = vunpack.c.l.b16 %v2282
      %v2851 = vunpack.c.l.b16 %v2283
      %v2852 = vunpack.c.l.b16 %v2284
      %v2853 = vunpack.c.l.b16 %v2285
      %v2854 = vunpack.c.l.b16 %v2286
      %v2855 = vunpack.c.l.b16 %v2287
      %v2856 = vunpack.c.l.b16 %v2288
      %v2857 = vunpack.c.l.b16 %v2289
      %v2858 = vunpack.c.l.b16 %v2290
      %v2859 = vunpack.c.l.b16 %v2291
      %v2860 = vunpack.c.l.b16 %v2292
      %v2861 = vunpack.c.l.b16 %v2293
      %v2862 = vunpack.c.l.b16 %v2294
      %v2863 = vunpack.c.l.b16 %v2295
      %v2864 = vunpack.c.l.b16 %v2296
      %v2865 = vunpack.c.l.b16 %v2297
      %v2866 = vunpack.c.l.b16 %v2298
      %v2867 = vunpack.c.l.b16 %v2299
      %v2868 = vunpack.c.l.b16 %v2300
      %v2869 = vunpack.c.l.b16 %v2301
      %v2870 = vunpack.c.l.b16 %v2302
      %v2871 = vunpack.c.l.b16 %v2303
      %v2872 = vunpack.c.l.b16 %v2304
      %v2873 = vunpack.c.l.b16 %v2305
      %v2874 = vunpack.c.l.b16 %v2306
      %v2875 = vunpack.c.l.b16 %v2307
      %v2876 = vunpack.c.l.b16 %v2308
      %v2877 = vunpack.c.l.b16 %v2309
      %v2878 = vunpack.c.l.b16 %v2310
      %v2879 = vunpack.c.l.b16 %v2311
      %v2880 = vunpack.c.l.b16 %v2312
      %v2881 = vunpack.c.l.b16 %v2313
      %v2882 = vunpack.c.l.b16 %v2314
      %v2883 = vunpack.c.l.b16 %v2315
      %v2884 = vunpack.c.l.b16 %v2316
      %v2885 = vunpack.c.l.b16 %v2317
      %v2886 = vunpack.c.l.b16 %v2318
      %v2887 = vunpack.c.l.b16 %v2319
      %v2888 = vunpack.c.l.b16 %v2320
      %v2889 = vunpack.c.l.b16 %v2321
      %v2890 = vunpack.c.l.b16 %v2322
      %v2891 = vunpack.c.l.b16 %v2323
      %v2892 = vunpack.c.l.b16 %v2324
      %v2893 = vunpack.c.l.b16 %v2325
      %v2894 = vunpack.c.l.b16 %v2326
      %v2895 = vunpack.c.l.b16 %v2327
      %v2896 = vunpack.c.l.b16 %v2328
      %v2897 = vunpack.c.l.b16 %v2329
      %v2898 = vunpack.c.l.b16 %v2330
      %v2899 = vunpack.c.l.b16 %v2331
      %v2900 = vunpack.c.l.b16 %v2332
      %v2901 = vunpack.c.l.b16 %v2333
      %v2902 = vunpack.c.l.b16 %v2334
      %v2903 = vunpack.c.l.b16 %v2335
      %v2904 = vunpack.c.l.b16 %v2336
      %v2905 = vunpack.c.l.b16 %v2337
      %v2906 = vunpack.c.l.b16 %v2338
      %v2907 = vunpack.c.l.b16 %v2339
      %v2908 = vunpack.c.l.b16 %v2340
      %v2909 = vunpack.c.l.b16 %v2341
      %v2910 = vunpack.c.l.b16 %v2342
      %v2911 = vunpack.c.l.b16 %v2343
      %v2912 = vunpack.c.l.b16 %v2344
      %v2913 = vunpack.c.l.b16 %v2345
      %v2914 = vunpack.c.l.b16 %v2346
      %v2915 = vunpack.c.l.b16 %v2347
      %v2916 = vunpack.c.l.b16 %v2348
      %v2917 = vunpack.c.l.b16 %v2349
      %v2918 = vunpack.c.l.b16 %v2350
      %v2919 = vunpack.c.l.b16 %v2351
      %v2920 = vunpack.c.l.b16 %v2352
      %v2921 = vunpack.c.l.b16 %v2353
      %v2922 = vunpack.c.l.b16 %v2354
      %v2923 = vunpack.c.l.b16 %v2355
      %v2924 = vunpack.c.l.b16 %v2356
      %v2925 = vunpack.c.l.b16 %v2357
      %v2926 = vunpack.c.l.b16 %v2358
      %v2927 = vunpack.c.l.b16 %v2359
      %v2928 = vunpack.c.l.b16 %v2360
      %v2929 = vunpack.c.l.b16 %v2361
      %v2930 = vunpack.c.l.b16 %v2362
      %v2931 = vunpack.c.l.b16 %v2363
      %v2932 = vunpack.c.l.b16 %v2364
      %v2933 = vunpack.c.l.b16 %v2365
      %v2934 = vunpack.c.l.b16 %v2366
      %v2935 = vunpack.c.l.b16 %v2367
      %v2936 = vunpack.c.l.b16 %v2368
      %v2937 = vunpack.c.l.b16 %v2369
      %v2938 = vunpack.c.l.b16 %v2370
      %v2939 = vunpack.c.l.b16 %v2371
      %v2940 = vunpack.c.l.b16 %v2372
      %v2941 = vunpack.c.l.b16 %v2373
      %v2942 = vunpack.c.l.b16 %v2374
      %v2943 = vunpack.c.l.b16 %v2375
      %v2944 = vunpack.c.l.b16 %v2376
      %v2945 = vunpack.c.l.b16 %v2377
      %v2946 = vunpack.c.l.b16 %v2378
      %v2947 = vunpack.c.l.b16 %v2379
      %v2948 = vunpack.c.l.b16 %v2380
      %v2949 = vunpack.c.l.b16 %v2381
      %v2950 = vunpack.c.l.b16 %v2382
      %v2951 = vunpack.c.l.b16 %v2383
      %v2952 = vunpack.c.l.b16 %v2384
      %v2953 = vunpack.c.l.b16 %v2385
      %v2954 = vunpack.c.l.b16 %v2386
      %v2955 = vunpack.c.l.b16 %v2387
      %v2956 = vunpack.c.l.b16 %v2388
      %v2957 = vunpack.c.l.b16 %v2389
      %v2958 = vunpack.c.l.b16 %v2390
      %v2959 = vunpack.c.l.b16 %v2391
      %v2960 = vunpack.c.l.b16 %v2392
      %v2961 = vunpack.c.l.b16 %v2393
      %v2962 = vunpack.c.l.b16 %v2394
      %v2963 = vunpack.c.l.b16 %v2395
      %v2964 = vunpack.c.l.b16 %v2396
      %v2965 = vunpack.c.l.b16 %v2397
      %v2966 = vunpack.c.l.b16 %v2398
      %v2967 = vunpack.c.l.b16 %v2399
      %v2968 = vunpack.c.l.b16 %v2400
      %v2969 = vunpack.c.l.b16 %v2401
      %v2970 = vunpack.c.l.b16 %v2402
      %v2971 = vunpack.c.l.b16 %v2403
      %v2972 = vunpack.c.l.b16 %v2404
      %v2973 = vunpack.c.l.b16 %v2405
      %v2974 = vunpack.c.l.b16 %v2406
      %v2975 = vunpack.c.l.b16 %v2407
      %v2976 = vunpack.c.l.b16 %v2408
      %v2977 = vunpack.c.l.b16 %v2409
      %v2978 = vunpack.c.l.b16 %v2410
      %v2979 = vunpack.c.l.b16 %v2411
      %v2980 = vunpack.c.l.b16 %v2412
      %v2981 = vunpack.c.l.b16 %v2413
      %v2982 = vunpack.c.l.b16 %v2414
      %v2983 = vunpack.c.l.b16 %v2415
      %v2984 = vunpack.c.l.b16 %v2416
      %v2985 = vunpack.c.l.b16 %v2417
      %v2986 = vunpack.c.l.b16 %v2418
      %v2987 = vunpack.c.l.b16 %v2419
      %v2988 = vunpack.c.l.b16 %v2420
      %v2989 = vunpack.c.l.b16 %v2421
      %v2990 = vunpack.c.l.b16 %v2422
      %v2991 = vunpack.c.l.b16 %v2423
      %v2992 = vunpack.c.l.b16 %v2424
      %v2993 = vunpack.c.l.b16 %v2425
      %v2994 = vunpack.c.l.b16 %v2426
      %v2995 = vunpack.c.l.b16 %v2427
      %v2996 = vunpack.c.l.b16 %v2428
      %v2997 = vunpack.c.l.b16 %v2429
      %v2998 = vunpack.c.l.b16 %v2430
      %v2999 = vunpack.c.l.b16 %v2431
      %v3000 = vunpack.c.l.b16 %v2432
      %v3001 = vunpack.c.l.b16 %v2433
      %v3002 = vunpack.c.l.b16 %v2434
      %v3003 = vunpack.c.l.b16 %v2435
      %v3004 = vunpack.c.l.b16 %v2436
      %v3005 = vunpack.c.l.b16 %v2437
      %v3006 = vunpack.c.l.b16 %v2438
      %v3007 = vunpack.c.l.b16 %v2439
      %v3008 = vunpack.c.l.b16 %v2440
      %v3009 = vunpack.c.l.b16 %v2441
      %v3010 = vunpack.c.l.b16 %v2442
      %v3011 = vunpack.c.l.b16 %v2443
      %v3012 = vunpack.c.l.b16 %v2444
      %v3013 = vunpack.c.l.b16 %v2445
      %v3014 = vunpack.c.l.b16 %v2446
      %v3015 = vunpack.c.l.b16 %v2447
      %v3016 = vpack.c.b16 %v2761, %v2760
      %v3017 = vpack.c.b16 %v2763, %v2762
      %v3018 = vpack.c.b16 %v2765, %v2764
      %v3019 = vpack.c.b16 %v2767, %v2766
      %v3020 = vpack.c.b16 %v2769, %v2768
      %v3021 = vpack.c.b16 %v2771, %v2770
      %v3022 = vpack.c.b16 %v2773, %v2772
      %v3023 = vpack.c.b16 %v2775, %v2774
      %v3024 = vpack.c.b16 %v2777, %v2776
      %v3025 = vpack.c.b16 %v2779, %v2778
      %v3026 = vpack.c.b16 %v2781, %v2780
      %v3027 = vpack.c.b16 %v2783, %v2782
      %v3028 = vpack.c.b16 %v2785, %v2784
      %v3029 = vpack.c.b16 %v2787, %v2786
      %v3030 = vpack.c.b16 %v2789, %v2788
      %v3031 = vpack.c.b16 %v2791, %v2790
      %v3032 = vpack.c.b16 %v2793, %v2792
      %v3033 = vpack.c.b16 %v2795, %v2794
      %v3034 = vpack.c.b16 %v2797, %v2796
      %v3035 = vpack.c.b16 %v2799, %v2798
      %v3036 = vpack.c.b16 %v2801, %v2800
      %v3037 = vpack.c.b16 %v2803, %v2802
      %v3038 = vpack.c.b16 %v2805, %v2804
      %v3039 = vpack.c.b16 %v2807, %v2806
      %v3040 = vpack.c.b16 %v2809, %v2808
      %v3041 = vpack.c.b16 %v2811, %v2810
      %v3042 = vpack.c.b16 %v2813, %v2812
      %v3043 = vpack.c.b16 %v2815, %v2814
      %v3044 = vpack.c.b16 %v2817, %v2816
      %v3045 = vpack.c.b16 %v2819, %v2818
      %v3046 = vpack.c.b16 %v2821, %v2820
      %v3047 = vpack.c.b16 %v2823, %v2822
      %v3048 = vpack.c.b16 %v2825, %v2824
      %v3049 = vpack.c.b16 %v2827, %v2826
      %v3050 = vpack.c.b16 %v2829, %v2828
      %v3051 = vpack.c.b16 %v2831, %v2830
      %v3052 = vpack.c.b16 %v2833, %v2832
      %v3053 = vpack.c.b16 %v2835, %v2834
      %v3054 = vpack.c.b16 %v2837, %v2836
      %v3055 = vpack.c.b16 %v2839, %v2838
      %v3056 = vpack.c.b16 %v2841, %v2840
      %v3057 = vpack.c.b16 %v2843, %v2842
      %v3058 = vpack.c.b16 %v2845, %v2844
      %v3059 = vpack.c.b16 %v2847, %v2846
      %v3060 = vpack.c.b16 %v2849, %v2848
      %v3061 = vpack.c.b16 %v2851, %v2850
      %v3062 = vpack.c.b16 %v2853, %v2852
      %v3063 = vpack.c.b16 %v2855, %v2854
      %v3064 = vpack.c.b16 %v2857, %v2856
      %v3065 = vpack.c.b16 %v2859, %v2858
      %v3066 = vpack.c.b16 %v2861, %v2860
      %v3067 = vpack.c.b16 %v2863, %v2862
      %v3068 = vpack.c.b16 %v2865, %v2864
      %v3069 = vpack.c.b16 %v2867, %v2866
      %v3070 = vpack.c.b16 %v2869, %v2868
      %v3071 = vpack.c.b16 %v2871, %v2870
      %v3072 = vpack.c.b16 %v2873, %v2872
      %v3073 = vpack.c.b16 %v2875, %v2874
      %v3074 = vpack.c.b16 %v2877, %v2876
      %v3075 = vpack.c.b16 %v2879, %v2878
      %v3076 = vpack.c.b16 %v2881, %v2880
      %v3077 = vpack.c.b16 %v2883, %v2882
      %v3078 = vpack.c.b16 %v2885, %v2884
      %v3079 = vpack.c.b16 %v2887, %v2886
      %v3080 = vpack.c.b16 %v2889, %v2888
      %v3081 = vpack.c.b16 %v2891, %v2890
      %v3082 = vpack.c.b16 %v2893, %v2892
      %v3083 = vpack.c.b16 %v2895, %v2894
      %v3084 = vpack.c.b16 %v2897, %v2896
      %v3085 = vpack.c.b16 %v2899, %v2898
      %v3086 = vpack.c.b16 %v2901, %v2900
      %v3087 = vpack.c.b16 %v2903, %v2902
      %v3088 = vpack.c.b16 %v2905, %v2904
      %v3089 = vpack.c.b16 %v2907, %v2906
      %v3090 = vpack.c.b16 %v2909, %v2908
      %v3091 = vpack.c.b16 %v2911, %v2910
      %v3092 = vpack.c.b16 %v2913, %v2912
      %v3093 = vpack.c.b16 %v2915, %v2914
      %v3094 = vpack.c.b16 %v2917, %v2916
      %v3095 = vpack.c.b16 %v2919, %v2918
      %v3096 = vpack.c.b16 %v2921, %v2920
      %v3097 = vpack.c.b16 %v2923, %v2922
      %v3098 = vpack.c.b16 %v2925, %v2924
      %v3099 = vpack.c.b16 %v2927, %v2926
      %v3100 = vpack.c.b16 %v2929, %v2928
      %v3101 = vpack.c.b16 %v2931, %v2930
      %v3102 = vpack.c.b16 %v2933, %v2932
      %v3103 = vpack.c.b16 %v2935, %v2934
      %v3104 = vpack.c.b16 %v2937, %v2936
      %v3105 = vpack.c.b16 %v2939, %v2938
      %v3106 = vpack.c.b16 %v2941, %v2940
      %v3107 = vpack.c.b16 %v2943, %v2942
      %v3108 = vpack.c.b16 %v2945, %v2944
      %v3109 = vpack.c.b16 %v2947, %v2946
      %v3110 = vpack.c.b16 %v2949, %v2948
      %v3111 = vpack.c.b16 %v2951, %v2950
      %v3112 = vpack.c.b16 %v2953, %v2952
      %v3113 = vpack.c.b16 %v2955, %v2954
      %v3114 = vpack.c.b16 %v2957, %v2956
      %v3115 = vpack.c.b16 %v2959, %v2958
      %v3116 = vpack.c.b16 %v2961, %v2960
      %v3117 = vpack.c.b16 %v2963, %v2962
      %v3118 = vpack.c.b16 %v2965, %v2964
      %v3119 = vpack.c.b16 %v2967, %v2966
      %v3120 = vpack.c.b16 %v2969, %v2968
      %v3121 = vpack.c.b16 %v2971, %v2970
      %v3122 = vpack.c.b16 %v2973, %v2972
      %v3123 = vpack.c.b16 %v2975, %v2974
      %v3124 = vpack.c.b16 %v2977, %v2976
      %v3125 = vpack.c.b16 %v2979, %v2978
      %v3126 = vpack.c.b16 %v2981, %v2980
      %v3127 = vpack.c.b16 %v2983, %v2982
      %v3128 = vpack.c.b16 %v2985, %v2984
      %v3129 = vpack.c.b16 %v2987, %v2986
      %v3130 = vpack.c.b16 %v2989, %v2988
      %v3131 = vpack.c.b16 %v2991, %v2990
      %v3132 = vpack.c.b16 %v2993, %v2992
      %v3133 = vpack.c.b16 %v2995, %v2994
      %v3134 = vpack.c.b16 %v2997, %v2996
      %v3135 = vpack.c.b16 %v2999, %v2998
      %v3136 = vpack.c.b16 %v3001, %v3000
      %v3137 = vpack.c.b16 %v3003, %v3002
      %v3138 = vpack.c.b16 %v3005, %v3004
      %v3139 = vpack.c.b16 %v3007, %v3006
      %v3140 = vpack.c.b16 %v3009, %v3008
      %v3141 = vpack.c.b16 %v3011, %v3010
      %v3142 = vpack.c.b16 %v3013, %v3012
      %v3143 = vpack.c.b16 %v3015, %v3014
      %3272 = vmatprep.subr.bf16.mxu0 0
      %3273 = vmatpush1.bf16.msra.mxu0 %v3016
      %3274 = vmatprep.subr.bf16.mxu0 0
      %3275 = vmatpush1.bf16.msra.mxu0 %v3017
      %3276 = vmatprep.subr.bf16.mxu0 0
      %3277 = vmatpush1.bf16.msra.mxu0 %v3018
      %3278 = vmatprep.subr.bf16.mxu0 0
      %3279 = vmatpush1.bf16.msra.mxu0 %v3019
      %3280 = vmatprep.subr.bf16.mxu0 0
      %3281 = vmatpush1.bf16.msra.mxu0 %v3020
      %3282 = vmatprep.subr.bf16.mxu0 0
      %3283 = vmatpush1.bf16.msra.mxu0 %v3021
      %3284 = vmatprep.subr.bf16.mxu0 0
      %3285 = vmatpush1.bf16.msra.mxu0 %v3022
      %3286 = vmatprep.subr.bf16.mxu0 0
      %3287 = vmatpush1.bf16.msra.mxu0 %v3023
      %3288 = vmatprep.subr.bf16.mxu0 0
      %3289 = vmatpush1.bf16.msra.mxu0 %v3024
      %3290 = vmatprep.subr.bf16.mxu0 0
      %3291 = vmatpush1.bf16.msra.mxu0 %v3025
      %3292 = vmatprep.subr.bf16.mxu0 0
      %3293 = vmatpush1.bf16.msra.mxu0 %v3026
      %3294 = vmatprep.subr.bf16.mxu0 0
      %3295 = vmatpush1.bf16.msra.mxu0 %v3027
      %3296 = vmatprep.subr.bf16.mxu0 0
      %3297 = vmatpush1.bf16.msra.mxu0 %v3028
      %3298 = vmatprep.subr.bf16.mxu0 0
      %3299 = vmatpush1.bf16.msra.mxu0 %v3029
      %3300 = vmatprep.subr.bf16.mxu0 0
      %3301 = vmatpush1.bf16.msra.mxu0 %v3030
      %3302 = vmatprep.subr.bf16.mxu0 0
      %3303 = vmatpush1.bf16.msra.mxu0 %v3031
      %3304 = vmatprep.mubr.bf16.mxu0 %v2473
      %3305 = vmatmul.mubr.bf16.gmra.mrb[0].mxu0 %v2472
      %v3306 = vpop.f32.mrb[0].mxu0
      %v3307 = vadd.f32 0.0, %v3306
      %v3308 = vpop.f32.mrb[0].mxu0
      %v3309 = vpop.f32.mrb[0].mxu0
      %v3310 = vpop.f32.mrb[0].mxu0
      %3311 = vdwg.mxu0
      %3312 = vmatprep.subr.bf16.mxu0 0
      %3313 = vmatpush1.bf16.msra.mxu0 %v3032
      %3314 = vmatprep.subr.bf16.mxu0 0
      %3315 = vmatpush1.bf16.msra.mxu0 %v3033
      %3316 = vmatprep.subr.bf16.mxu0 0
      %3317 = vmatpush1.bf16.msra.mxu0 %v3034
      %3318 = vmatprep.subr.bf16.mxu0 0
      %3319 = vmatpush1.bf16.msra.mxu0 %v3035
      %3320 = vmatprep.subr.bf16.mxu0 0
      %3321 = vmatpush1.bf16.msra.mxu0 %v3036
      %3322 = vmatprep.subr.bf16.mxu0 0
      %3323 = vmatpush1.bf16.msra.mxu0 %v3037
      %3324 = vmatprep.subr.bf16.mxu0 0
      %3325 = vmatpush1.bf16.msra.mxu0 %v3038
      %3326 = vmatprep.subr.bf16.mxu0 0
      %3327 = vmatpush1.bf16.msra.mxu0 %v3039
      %3328 = vmatprep.subr.bf16.mxu0 0
      %3329 = vmatpush1.bf16.msra.mxu0 %v3040
      %3330 = vmatprep.subr.bf16.mxu0 0
      %3331 = vmatpush1.bf16.msra.mxu0 %v3041
      %3332 = vmatprep.subr.bf16.mxu0 0
      %3333 = vmatpush1.bf16.msra.mxu0 %v3042
      %3334 = vmatprep.subr.bf16.mxu0 0
      %3335 = vmatpush1.bf16.msra.mxu0 %v3043
      %3336 = vmatprep.subr.bf16.mxu0 0
      %3337 = vmatpush1.bf16.msra.mxu0 %v3044
      %3338 = vmatprep.subr.bf16.mxu0 0
      %3339 = vmatpush1.bf16.msra.mxu0 %v3045
      %3340 = vmatprep.subr.bf16.mxu0 0
      %3341 = vmatpush1.bf16.msra.mxu0 %v3046
      %3342 = vmatprep.subr.bf16.mxu0 0
      %3343 = vmatpush1.bf16.msra.mxu0 %v3047
      %3344 = vmatprep.mubr.bf16.mxu0 %v2475
      %3345 = vmatmul.mubr.bf16.gmra.mrb[0].mxu0 %v2474
      %v3346 = vpop.f32.mrb[0].mxu0
      %v3347 = vadd.f32 %v3307, %v3346
      %v3348 = vpop.f32.mrb[0].mxu0
      %v3349 = vpop.f32.mrb[0].mxu0
      %v3350 = vpop.f32.mrb[0].mxu0
      %3351 = vdwg.mxu0
      %3352 = vmatprep.subr.bf16.mxu0 0
      %3353 = vmatpush1.bf16.msra.mxu0 %v3048
      %3354 = vmatprep.subr.bf16.mxu0 0
      %3355 = vmatpush1.bf16.msra.mxu0 %v3049
      %3356 = vmatprep.subr.bf16.mxu0 0
      %3357 = vmatpush1.bf16.msra.mxu0 %v3050
      %3358 = vmatprep.subr.bf16.mxu0 0
      %3359 = vmatpush1.bf16.msra.mxu0 %v3051
      %3360 = vmatprep.subr.bf16.mxu0 0
      %3361 = vmatpush1.bf16.msra.mxu0 %v3052
      %3362 = vmatprep.subr.bf16.mxu0 0
      %3363 = vmatpush1.bf16.msra.mxu0 %v3053
      %3364 = vmatprep.subr.bf16.mxu0 0
      %3365 = vmatpush1.bf16.msra.mxu0 %v3054
      %3366 = vmatprep.subr.bf16.mxu0 0
      %3367 = vmatpush1.bf16.msra.mxu0 %v3055
      %3368 = vmatprep.subr.bf16.mxu0 0
      %3369 = vmatpush1.bf16.msra.mxu0 %v3056
      %3370 = vmatprep.subr.bf16.mxu0 0
      %3371 = vmatpush1.bf16.msra.mxu0 %v3057
      %3372 = vmatprep.subr.bf16.mxu0 0
      %3373 = vmatpush1.bf16.msra.mxu0 %v3058
      %3374 = vmatprep.subr.bf16.mxu0 0
      %3375 = vmatpush1.bf16.msra.mxu0 %v3059
      %3376 = vmatprep.subr.bf16.mxu0 0
      %3377 = vmatpush1.bf16.msra.mxu0 %v3060
      %3378 = vmatprep.subr.bf16.mxu0 0
      %3379 = vmatpush1.bf16.msra.mxu0 %v3061
      %3380 = vmatprep.subr.bf16.mxu0 0
      %3381 = vmatpush1.bf16.msra.mxu0 %v3062
      %3382 = vmatprep.subr.bf16.mxu0 0
      %3383 = vmatpush1.bf16.msra.mxu0 %v3063
      %3384 = vmatprep.mubr.bf16.mxu0 %v2477
      %3385 = vmatmul.mubr.bf16.gmra.mrb[0].mxu0 %v2476
      %v3386 = vpop.f32.mrb[0].mxu0
      %v3387 = vadd.f32 %v3347, %v3386
      %v3388 = vpop.f32.mrb[0].mxu0
      %v3389 = vpop.f32.mrb[0].mxu0
      %v3390 = vpop.f32.mrb[0].mxu0
      %3391 = vdwg.mxu0
      %3392 = vmatprep.subr.bf16.mxu0 0
      %3393 = vmatpush1.bf16.msra.mxu0 %v3064
      %3394 = vmatprep.subr.bf16.mxu0 0
      %3395 = vmatpush1.bf16.msra.mxu0 %v3065
      %3396 = vmatprep.subr.bf16.mxu0 0
      %3397 = vmatpush1.bf16.msra.mxu0 %v3066
      %3398 = vmatprep.subr.bf16.mxu0 0
      %3399 = vmatpush1.bf16.msra.mxu0 %v3067
      %3400 = vmatprep.subr.bf16.mxu0 0
      %3401 = vmatpush1.bf16.msra.mxu0 %v3068
      %3402 = vmatprep.subr.bf16.mxu0 0
      %3403 = vmatpush1.bf16.msra.mxu0 %v3069
      %3404 = vmatprep.subr.bf16.mxu0 0
      %3405 = vmatpush1.bf16.msra.mxu0 %v3070
      %3406 = vmatprep.subr.bf16.mxu0 0
      %3407 = vmatpush1.bf16.msra.mxu0 %v3071
      %3408 = vmatprep.subr.bf16.mxu0 0
      %3409 = vmatpush1.bf16.msra.mxu0 %v3072
      %3410 = vmatprep.subr.bf16.mxu0 0
      %3411 = vmatpush1.bf16.msra.mxu0 %v3073
      %3412 = vmatprep.subr.bf16.mxu0 0
      %3413 = vmatpush1.bf16.msra.mxu0 %v3074
      %3414 = vmatprep.subr.bf16.mxu0 0
      %3415 = vmatpush1.bf16.msra.mxu0 %v3075
      %3416 = vmatprep.subr.bf16.mxu0 0
      %3417 = vmatpush1.bf16.msra.mxu0 %v3076
      %3418 = vmatprep.subr.bf16.mxu0 0
      %3419 = vmatpush1.bf16.msra.mxu0 %v3077
      %3420 = vmatprep.subr.bf16.mxu0 0
      %3421 = vmatpush1.bf16.msra.mxu0 %v3078
      %3422 = vmatprep.subr.bf16.mxu0 0
      %3423 = vmatpush1.bf16.msra.mxu0 %v3079
      %3424 = vmatprep.mubr.bf16.mxu0 %v2479
      %3425 = vmatmul.mubr.bf16.gmra.mrb[0].mxu0 %v2478
      %v3426 = vpop.f32.mrb[0].mxu0
      %v3427 = vadd.f32 %v3387, %v3426
      %v3428 = vpop.f32.mrb[0].mxu0
      %v3429 = vpop.f32.mrb[0].mxu0
      %v3430 = vpop.f32.mrb[0].mxu0
      %3431 = vdwg.mxu0
      %3432 = vmatprep.subr.bf16.mxu0 0
      %3433 = vmatpush1.bf16.msra.mxu0 %v3080
      %3434 = vmatprep.subr.bf16.mxu0 0
      %3435 = vmatpush1.bf16.msra.mxu0 %v3081
      %3436 = vmatprep.subr.bf16.mxu0 0
      %3437 = vmatpush1.bf16.msra.mxu0 %v3082
      %3438 = vmatprep.subr.bf16.mxu0 0
      %3439 = vmatpush1.bf16.msra.mxu0 %v3083
      %3440 = vmatprep.subr.bf16.mxu0 0
      %3441 = vmatpush1.bf16.msra.mxu0 %v3084
      %3442 = vmatprep.subr.bf16.mxu0 0
      %3443 = vmatpush1.bf16.msra.mxu0 %v3085
      %3444 = vmatprep.subr.bf16.mxu0 0
      %3445 = vmatpush1.bf16.msra.mxu0 %v3086
      %3446 = vmatprep.subr.bf16.mxu0 0
      %3447 = vmatpush1.bf16.msra.mxu0 %v3087
      %3448 = vmatprep.subr.bf16.mxu0 0
      %3449 = vmatpush1.bf16.msra.mxu0 %v3088
      %3450 = vmatprep.subr.bf16.mxu0 0
      %3451 = vmatpush1.bf16.msra.mxu0 %v3089
      %3452 = vmatprep.subr.bf16.mxu0 0
      %3453 = vmatpush1.bf16.msra.mxu0 %v3090
      %3454 = vmatprep.subr.bf16.mxu0 0
      %3455 = vmatpush1.bf16.msra.mxu0 %v3091
      %3456 = vmatprep.subr.bf16.mxu0 0
      %3457 = vmatpush1.bf16.msra.mxu0 %v3092
      %3458 = vmatprep.subr.bf16.mxu0 0
      %3459 = vmatpush1.bf16.msra.mxu0 %v3093
      %3460 = vmatprep.subr.bf16.mxu0 0
      %3461 = vmatpush1.bf16.msra.mxu0 %v3094
      %3462 = vmatprep.subr.bf16.mxu0 0
      %3463 = vmatpush1.bf16.msra.mxu0 %v3095
      %3464 = vmatprep.mubr.bf16.mxu0 %v2481
      %3465 = vmatmul.mubr.bf16.gmra.mrb[0].mxu0 %v2480
      %v3466 = vpop.f32.mrb[0].mxu0
      %v3467 = vadd.f32 %v3427, %v3466
      %v3468 = vpop.f32.mrb[0].mxu0
      %v3469 = vpop.f32.mrb[0].mxu0
      %v3470 = vpop.f32.mrb[0].mxu0
      %3471 = vdwg.mxu0
      %3472 = vmatprep.subr.bf16.mxu0 0
      %3473 = vmatpush1.bf16.msra.mxu0 %v3096
      %3474 = vmatprep.subr.bf16.mxu0 0
      %3475 = vmatpush1.bf16.msra.mxu0 %v3097
      %3476 = vmatprep.subr.bf16.mxu0 0
      %3477 = vmatpush1.bf16.msra.mxu0 %v3098
      %3478 = vmatprep.subr.bf16.mxu0 0
      %3479 = vmatpush1.bf16.msra.mxu0 %v3099
      %3480 = vmatprep.subr.bf16.mxu0 0
      %3481 = vmatpush1.bf16.msra.mxu0 %v3100
      %3482 = vmatprep.subr.bf16.mxu0 0
      %3483 = vmatpush1.bf16.msra.mxu0 %v3101
      %3484 = vmatprep.subr.bf16.mxu0 0
      %3485 = vmatpush1.bf16.msra.mxu0 %v3102
      %3486 = vmatprep.subr.bf16.mxu0 0
      %3487 = vmatpush1.bf16.msra.mxu0 %v3103
      %3488 = vmatprep.subr.bf16.mxu0 0
      %3489 = vmatpush1.bf16.msra.mxu0 %v3104
      %3490 = vmatprep.subr.bf16.mxu0 0
      %3491 = vmatpush1.bf16.msra.mxu0 %v3105
      %3492 = vmatprep.subr.bf16.mxu0 0
      %3493 = vmatpush1.bf16.msra.mxu0 %v3106
      %3494 = vmatprep.subr.bf16.mxu0 0
      %3495 = vmatpush1.bf16.msra.mxu0 %v3107
      %3496 = vmatprep.subr.bf16.mxu0 0
      %3497 = vmatpush1.bf16.msra.mxu0 %v3108
      %3498 = vmatprep.subr.bf16.mxu0 0
      %3499 = vmatpush1.bf16.msra.mxu0 %v3109
      %3500 = vmatprep.subr.bf16.mxu0 0
      %3501 = vmatpush1.bf16.msra.mxu0 %v3110
      %3502 = vmatprep.subr.bf16.mxu0 0
      %3503 = vmatpush1.bf16.msra.mxu0 %v3111
      %3504 = vmatprep.mubr.bf16.mxu0 %v2483
      %3505 = vmatmul.mubr.bf16.gmra.mrb[0].mxu0 %v2482
      %v3506 = vpop.f32.mrb[0].mxu0
      %v3507 = vadd.f32 %v3467, %v3506
      %v3508 = vpop.f32.mrb[0].mxu0
      %v3509 = vpop.f32.mrb[0].mxu0
      %v3510 = vpop.f32.mrb[0].mxu0
      %3511 = vdwg.mxu0
      %3512 = vmatprep.subr.bf16.mxu0 0
      %3513 = vmatpush1.bf16.msra.mxu0 %v3112
      %3514 = vmatprep.subr.bf16.mxu0 0
      %3515 = vmatpush1.bf16.msra.mxu0 %v3113
      %3516 = vmatprep.subr.bf16.mxu0 0
      %3517 = vmatpush1.bf16.msra.mxu0 %v3114
      %3518 = vmatprep.subr.bf16.mxu0 0
      %3519 = vmatpush1.bf16.msra.mxu0 %v3115
      %3520 = vmatprep.subr.bf16.mxu0 0
      %3521 = vmatpush1.bf16.msra.mxu0 %v3116
      %3522 = vmatprep.subr.bf16.mxu0 0
      %3523 = vmatpush1.bf16.msra.mxu0 %v3117
      %3524 = vmatprep.subr.bf16.mxu0 0
      %3525 = vmatpush1.bf16.msra.mxu0 %v3118
      %3526 = vmatprep.subr.bf16.mxu0 0
      %3527 = vmatpush1.bf16.msra.mxu0 %v3119
      %3528 = vmatprep.subr.bf16.mxu0 0
      %3529 = vmatpush1.bf16.msra.mxu0 %v3120
      %3530 = vmatprep.subr.bf16.mxu0 0
      %3531 = vmatpush1.bf16.msra.mxu0 %v3121
      %3532 = vmatprep.subr.bf16.mxu0 0
      %3533 = vmatpush1.bf16.msra.mxu0 %v3122
      %3534 = vmatprep.subr.bf16.mxu0 0
      %3535 = vmatpush1.bf16.msra.mxu0 %v3123
      %3536 = vmatprep.subr.bf16.mxu0 0
      %3537 = vmatpush1.bf16.msra.mxu0 %v3124
      %3538 = vmatprep.subr.bf16.mxu0 0
      %3539 = vmatpush1.bf16.msra.mxu0 %v3125
      %3540 = vmatprep.subr.bf16.mxu0 0
      %3541 = vmatpush1.bf16.msra.mxu0 %v3126
      %3542 = vmatprep.subr.bf16.mxu0 0
      %3543 = vmatpush1.bf16.msra.mxu0 %v3127
      %3544 = vmatprep.mubr.bf16.mxu0 %v2485
      %3545 = vmatmul.mubr.bf16.gmra.mrb[0].mxu0 %v2484
      %v3546 = vpop.f32.mrb[0].mxu0
      %v3547 = vadd.f32 %v3507, %v3546
      %v3548 = vpop.f32.mrb[0].mxu0
      %v3549 = vpop.f32.mrb[0].mxu0
      %v3550 = vpop.f32.mrb[0].mxu0
      %3551 = vdwg.mxu0
      %3552 = vmatprep.subr.bf16.mxu0 0
      %3553 = vmatpush1.bf16.msra.mxu0 %v3128
      %3554 = vmatprep.subr.bf16.mxu0 0
      %3555 = vmatpush1.bf16.msra.mxu0 %v3129
      %3556 = vmatprep.subr.bf16.mxu0 0
      %3557 = vmatpush1.bf16.msra.mxu0 %v3130
      %3558 = vmatprep.subr.bf16.mxu0 0
      %3559 = vmatpush1.bf16.msra.mxu0 %v3131
      %3560 = vmatprep.subr.bf16.mxu0 0
      %3561 = vmatpush1.bf16.msra.mxu0 %v3132
      %3562 = vmatprep.subr.bf16.mxu0 0
      %3563 = vmatpush1.bf16.msra.mxu0 %v3133
      %3564 = vmatprep.subr.bf16.mxu0 0
      %3565 = vmatpush1.bf16.msra.mxu0 %v3134
      %3566 = vmatprep.subr.bf16.mxu0 0
      %3567 = vmatpush1.bf16.msra.mxu0 %v3135
      %3568 = vmatprep.subr.bf16.mxu0 0
      %3569 = vmatpush1.bf16.msra.mxu0 %v3136
      %3570 = vmatprep.subr.bf16.mxu0 0
      %3571 = vmatpush1.bf16.msra.mxu0 %v3137
      %3572 = vmatprep.subr.bf16.mxu0 0
      %3573 = vmatpush1.bf16.msra.mxu0 %v3138
      %3574 = vmatprep.subr.bf16.mxu0 0
      %3575 = vmatpush1.bf16.msra.mxu0 %v3139
      %3576 = vmatprep.subr.bf16.mxu0 0
      %3577 = vmatpush1.bf16.msra.mxu0 %v3140
      %3578 = vmatprep.subr.bf16.mxu0 0
      %3579 = vmatpush1.bf16.msra.mxu0 %v3141
      %3580 = vmatprep.subr.bf16.mxu0 0
      %3581 = vmatpush1.bf16.msra.mxu0 %v3142
      %3582 = vmatprep.subr.bf16.mxu0 0
      %3583 = vmatpush1.bf16.msra.mxu0 %v3143
      %3584 = vmatprep.mubr.bf16.mxu0 %v2487
      %3585 = vmatmul.mubr.bf16.gmra.mrb[0].mxu0 %v2486
      %v3586 = vpop.f32.mrb[0].mxu0
      %v3587 = vadd.f32 %v3547, %v3586
      %v3588 = vpop.f32.mrb[0].mxu0
      %v3589 = vpop.f32.mrb[0].mxu0
      %v3590 = vpop.f32.mrb[0].mxu0
      %3591 = vdwg.mxu0
      %v3720 = vunpack.c.l.b16 %v2056
      %v3721 = vunpack.c.l.b16 %v2057
      %v3722 = vunpack.c.l.b16 %v2058
      %v3723 = vunpack.c.l.b16 %v2059
      %v3724 = vunpack.c.l.b16 %v2060
      %v3725 = vunpack.c.l.b16 %v2061
      %v3726 = vunpack.c.l.b16 %v2062
      %v3727 = vunpack.c.l.b16 %v2063
      %v3728 = vunpack.c.l.b16 %v2064
      %v3729 = vunpack.c.l.b16 %v2065
      %v3730 = vunpack.c.l.b16 %v2066
      %v3731 = vunpack.c.l.b16 %v2067
      %v3732 = vunpack.c.l.b16 %v2068
      %v3733 = vunpack.c.l.b16 %v2069
      %v3734 = vunpack.c.l.b16 %v2070
      %v3735 = vunpack.c.l.b16 %v2071
      %v3736 = vunpack.c.l.b16 %v2072
      %v3737 = vunpack.c.l.b16 %v2073
      %v3738 = vunpack.c.l.b16 %v2074
      %v3739 = vunpack.c.l.b16 %v2075
      %v3740 = vunpack.c.l.b16 %v2076
      %v3741 = vunpack.c.l.b16 %v2077
      %v3742 = vunpack.c.l.b16 %v2078
      %v3743 = vunpack.c.l.b16 %v2079
      %v3744 = vunpack.c.l.b16 %v2080
      %v3745 = vunpack.c.l.b16 %v2081
      %v3746 = vunpack.c.l.b16 %v2082
      %v3747 = vunpack.c.l.b16 %v2083
      %v3748 = vunpack.c.l.b16 %v2084
      %v3749 = vunpack.c.l.b16 %v2085
      %v3750 = vunpack.c.l.b16 %v2086
      %v3751 = vunpack.c.l.b16 %v2087
      %v3752 = vunpack.c.l.b16 %v2088
      %v3753 = vunpack.c.l.b16 %v2089
      %v3754 = vunpack.c.l.b16 %v2090
      %v3755 = vunpack.c.l.b16 %v2091
      %v3756 = vunpack.c.l.b16 %v2092
      %v3757 = vunpack.c.l.b16 %v2093
      %v3758 = vunpack.c.l.b16 %v2094
      %v3759 = vunpack.c.l.b16 %v2095
      %v3760 = vunpack.c.l.b16 %v2096
      %v3761 = vunpack.c.l.b16 %v2097
      %v3762 = vunpack.c.l.b16 %v2098
      %v3763 = vunpack.c.l.b16 %v2099
      %v3764 = vunpack.c.l.b16 %v2100
      %v3765 = vunpack.c.l.b16 %v2101
      %v3766 = vunpack.c.l.b16 %v2102
      %v3767 = vunpack.c.l.b16 %v2103
      %v3768 = vunpack.c.l.b16 %v2104
      %v3769 = vunpack.c.l.b16 %v2105
      %v3770 = vunpack.c.l.b16 %v2106
      %v3771 = vunpack.c.l.b16 %v2107
      %v3772 = vunpack.c.l.b16 %v2108
      %v3773 = vunpack.c.l.b16 %v2109
      %v3774 = vunpack.c.l.b16 %v2110
      %v3775 = vunpack.c.l.b16 %v2111
      %v3776 = vunpack.c.l.b16 %v2112
      %v3777 = vunpack.c.l.b16 %v2113
      %v3778 = vunpack.c.l.b16 %v2114
      %v3779 = vunpack.c.l.b16 %v2115
      %v3780 = vunpack.c.l.b16 %v2116
      %v3781 = vunpack.c.l.b16 %v2117
      %v3782 = vunpack.c.l.b16 %v2118
      %v3783 = vunpack.c.l.b16 %v2119
      %v3784 = vunpack.c.l.b16 %v2120
      %v3785 = vunpack.c.l.b16 %v2121
      %v3786 = vunpack.c.l.b16 %v2122
      %v3787 = vunpack.c.l.b16 %v2123
      %v3788 = vunpack.c.l.b16 %v2124
      %v3789 = vunpack.c.l.b16 %v2125
      %v3790 = vunpack.c.l.b16 %v2126
      %v3791 = vunpack.c.l.b16 %v2127
      %v3792 = vunpack.c.l.b16 %v2128
      %v3793 = vunpack.c.l.b16 %v2129
      %v3794 = vunpack.c.l.b16 %v2130
      %v3795 = vunpack.c.l.b16 %v2131
      %v3796 = vunpack.c.l.b16 %v2132
      %v3797 = vunpack.c.l.b16 %v2133
      %v3798 = vunpack.c.l.b16 %v2134
      %v3799 = vunpack.c.l.b16 %v2135
      %v3800 = vunpack.c.l.b16 %v2136
      %v3801 = vunpack.c.l.b16 %v2137
      %v3802 = vunpack.c.l.b16 %v2138
      %v3803 = vunpack.c.l.b16 %v2139
      %v3804 = vunpack.c.l.b16 %v2140
      %v3805 = vunpack.c.l.b16 %v2141
      %v3806 = vunpack.c.l.b16 %v2142
      %v3807 = vunpack.c.l.b16 %v2143
      %v3808 = vunpack.c.l.b16 %v2144
      %v3809 = vunpack.c.l.b16 %v2145
      %v3810 = vunpack.c.l.b16 %v2146
      %v3811 = vunpack.c.l.b16 %v2147
      %v3812 = vunpack.c.l.b16 %v2148
      %v3813 = vunpack.c.l.b16 %v2149
      %v3814 = vunpack.c.l.b16 %v2150
      %v3815 = vunpack.c.l.b16 %v2151
      %v3816 = vunpack.c.l.b16 %v2152
      %v3817 = vunpack.c.l.b16 %v2153
      %v3818 = vunpack.c.l.b16 %v2154
      %v3819 = vunpack.c.l.b16 %v2155
      %v3820 = vunpack.c.l.b16 %v2156
      %v3821 = vunpack.c.l.b16 %v2157
      %v3822 = vunpack.c.l.b16 %v2158
      %v3823 = vunpack.c.l.b16 %v2159
      %v3824 = vunpack.c.l.b16 %v2160
      %v3825 = vunpack.c.l.b16 %v2161
      %v3826 = vunpack.c.l.b16 %v2162
      %v3827 = vunpack.c.l.b16 %v2163
      %v3828 = vunpack.c.l.b16 %v2164
      %v3829 = vunpack.c.l.b16 %v2165
      %v3830 = vunpack.c.l.b16 %v2166
      %v3831 = vunpack.c.l.b16 %v2167
      %v3832 = vunpack.c.l.b16 %v2168
      %v3833 = vunpack.c.l.b16 %v2169
      %v3834 = vunpack.c.l.b16 %v2170
      %v3835 = vunpack.c.l.b16 %v2171
      %v3836 = vunpack.c.l.b16 %v2172
      %v3837 = vunpack.c.l.b16 %v2173
      %v3838 = vunpack.c.l.b16 %v2174
      %v3839 = vunpack.c.l.b16 %v2175
      %v3840 = vunpack.c.l.b16 %v2176
      %v3841 = vunpack.c.l.b16 %v2177
      %v3842 = vunpack.c.l.b16 %v2178
      %v3843 = vunpack.c.l.b16 %v2179
      %v3844 = vunpack.c.l.b16 %v2180
      %v3845 = vunpack.c.l.b16 %v2181
      %v3846 = vunpack.c.l.b16 %v2182
      %v3847 = vunpack.c.l.b16 %v2183
      %v3848 = vpack.c.b16 %v3721, %v3720
      %v3849 = vpack.c.b16 %v3723, %v3722
      %v3850 = vpack.c.b16 %v3725, %v3724
      %v3851 = vpack.c.b16 %v3727, %v3726
      %v3852 = vpack.c.b16 %v3729, %v3728
      %v3853 = vpack.c.b16 %v3731, %v3730
      %v3854 = vpack.c.b16 %v3733, %v3732
      %v3855 = vpack.c.b16 %v3735, %v3734
      %v3856 = vpack.c.b16 %v3737, %v3736
      %v3857 = vpack.c.b16 %v3739, %v3738
      %v3858 = vpack.c.b16 %v3741, %v3740
      %v3859 = vpack.c.b16 %v3743, %v3742
      %v3860 = vpack.c.b16 %v3745, %v3744
      %v3861 = vpack.c.b16 %v3747, %v3746
      %v3862 = vpack.c.b16 %v3749, %v3748
      %v3863 = vpack.c.b16 %v3751, %v3750
      %v3864 = vpack.c.b16 %v3753, %v3752
      %v3865 = vpack.c.b16 %v3755, %v3754
      %v3866 = vpack.c.b16 %v3757, %v3756
      %v3867 = vpack.c.b16 %v3759, %v3758
      %v3868 = vpack.c.b16 %v3761, %v3760
      %v3869 = vpack.c.b16 %v3763, %v3762
      %v3870 = vpack.c.b16 %v3765, %v3764
      %v3871 = vpack.c.b16 %v3767, %v3766
      %v3872 = vpack.c.b16 %v3769, %v3768
      %v3873 = vpack.c.b16 %v3771, %v3770
      %v3874 = vpack.c.b16 %v3773, %v3772
      %v3875 = vpack.c.b16 %v3775, %v3774
      %v3876 = vpack.c.b16 %v3777, %v3776
      %v3877 = vpack.c.b16 %v3779, %v3778
      %v3878 = vpack.c.b16 %v3781, %v3780
      %v3879 = vpack.c.b16 %v3783, %v3782
      %v3880 = vpack.c.b16 %v3785, %v3784
      %v3881 = vpack.c.b16 %v3787, %v3786
      %v3882 = vpack.c.b16 %v3789, %v3788
      %v3883 = vpack.c.b16 %v3791, %v3790
      %v3884 = vpack.c.b16 %v3793, %v3792
      %v3885 = vpack.c.b16 %v3795, %v3794
      %v3886 = vpack.c.b16 %v3797, %v3796
      %v3887 = vpack.c.b16 %v3799, %v3798
      %v3888 = vpack.c.b16 %v3801, %v3800
      %v3889 = vpack.c.b16 %v3803, %v3802
      %v3890 = vpack.c.b16 %v3805, %v3804
      %v3891 = vpack.c.b16 %v3807, %v3806
      %v3892 = vpack.c.b16 %v3809, %v3808
      %v3893 = vpack.c.b16 %v3811, %v3810
      %v3894 = vpack.c.b16 %v3813, %v3812
      %v3895 = vpack.c.b16 %v3815, %v3814
      %v3896 = vpack.c.b16 %v3817, %v3816
      %v3897 = vpack.c.b16 %v3819, %v3818
      %v3898 = vpack.c.b16 %v3821, %v3820
      %v3899 = vpack.c.b16 %v3823, %v3822
      %v3900 = vpack.c.b16 %v3825, %v3824
      %v3901 = vpack.c.b16 %v3827, %v3826
      %v3902 = vpack.c.b16 %v3829, %v3828
      %v3903 = vpack.c.b16 %v3831, %v3830
      %v3904 = vpack.c.b16 %v3833, %v3832
      %v3905 = vpack.c.b16 %v3835, %v3834
      %v3906 = vpack.c.b16 %v3837, %v3836
      %v3907 = vpack.c.b16 %v3839, %v3838
      %v3908 = vpack.c.b16 %v3841, %v3840
      %v3909 = vpack.c.b16 %v3843, %v3842
      %v3910 = vpack.c.b16 %v3845, %v3844
      %v3911 = vpack.c.b16 %v3847, %v3846
      %3976 = vmatprep.subr.bf16.mxu0 0
      %3977 = vmatpush1.bf16.msra.mxu0 %v3848
      %3978 = vmatprep.subr.bf16.mxu0 0
      %3979 = vmatpush1.bf16.msra.mxu0 %v3849
      %3980 = vmatprep.subr.bf16.mxu0 0
      %3981 = vmatpush1.bf16.msra.mxu0 %v3850
      %3982 = vmatprep.subr.bf16.mxu0 0
      %3983 = vmatpush1.bf16.msra.mxu0 %v3851
      %3984 = vmatprep.subr.bf16.mxu0 0
      %3985 = vmatpush1.bf16.msra.mxu0 %v3852
      %3986 = vmatprep.subr.bf16.mxu0 0
      %3987 = vmatpush1.bf16.msra.mxu0 %v3853
      %3988 = vmatprep.subr.bf16.mxu0 0
      %3989 = vmatpush1.bf16.msra.mxu0 %v3854
      %3990 = vmatprep.subr.bf16.mxu0 0
      %3991 = vmatpush1.bf16.msra.mxu0 %v3855
      %3992 = vmatprep.subr.bf16.mxu0 0
      %3993 = vmatpush1.bf16.msra.mxu0 %v3856
      %3994 = vmatprep.subr.bf16.mxu0 0
      %3995 = vmatpush1.bf16.msra.mxu0 %v3857
      %3996 = vmatprep.subr.bf16.mxu0 0
      %3997 = vmatpush1.bf16.msra.mxu0 %v3858
      %3998 = vmatprep.subr.bf16.mxu0 0
      %3999 = vmatpush1.bf16.msra.mxu0 %v3859
      %4000 = vmatprep.subr.bf16.mxu0 0
      %4001 = vmatpush1.bf16.msra.mxu0 %v3860
      %4002 = vmatprep.subr.bf16.mxu0 0
      %4003 = vmatpush1.bf16.msra.mxu0 %v3861
      %4004 = vmatprep.subr.bf16.mxu0 0
      %4005 = vmatpush1.bf16.msra.mxu0 %v3862
      %4006 = vmatprep.subr.bf16.mxu0 0
      %4007 = vmatpush1.bf16.msra.mxu0 %v3863
      %4008 = vmatprep.mubr.bf16.mxu0 %v2049
      %4009 = vmatmul.mubr.bf16.gmra.mrb[0].mxu0 %v2048
      %v4010 = vpop.f32.mrb[0].mxu0
      %v4011 = vadd.f32 %v3587, %v4010
      %v4012 = vpop.f32.mrb[0].mxu0
      %v4013 = vpop.f32.mrb[0].mxu0
      %v4014 = vpop.f32.mrb[0].mxu0
      %4015 = vdwg.mxu0
      %4016 = vmatprep.subr.bf16.mxu0 0
      %4017 = vmatpush1.bf16.msra.mxu0 %v3864
      %4018 = vmatprep.subr.bf16.mxu0 0
      %4019 = vmatpush1.bf16.msra.mxu0 %v3865
      %4020 = vmatprep.subr.bf16.mxu0 0
      %4021 = vmatpush1.bf16.msra.mxu0 %v3866
      %4022 = vmatprep.subr.bf16.mxu0 0
      %4023 = vmatpush1.bf16.msra.mxu0 %v3867
      %4024 = vmatprep.subr.bf16.mxu0 0
      %4025 = vmatpush1.bf16.msra.mxu0 %v3868
      %4026 = vmatprep.subr.bf16.mxu0 0
      %4027 = vmatpush1.bf16.msra.mxu0 %v3869
      %4028 = vmatprep.subr.bf16.mxu0 0
      %4029 = vmatpush1.bf16.msra.mxu0 %v3870
      %4030 = vmatprep.subr.bf16.mxu0 0
      %4031 = vmatpush1.bf16.msra.mxu0 %v3871
      %4032 = vmatprep.subr.bf16.mxu0 0
      %4033 = vmatpush1.bf16.msra.mxu0 %v3872
      %4034 = vmatprep.subr.bf16.mxu0 0
      %4035 = vmatpush1.bf16.msra.mxu0 %v3873
      %4036 = vmatprep.subr.bf16.mxu0 0
      %4037 = vmatpush1.bf16.msra.mxu0 %v3874
      %4038 = vmatprep.subr.bf16.mxu0 0
      %4039 = vmatpush1.bf16.msra.mxu0 %v3875
      %4040 = vmatprep.subr.bf16.mxu0 0
      %4041 = vmatpush1.bf16.msra.mxu0 %v3876
      %4042 = vmatprep.subr.bf16.mxu0 0
      %4043 = vmatpush1.bf16.msra.mxu0 %v3877
      %4044 = vmatprep.subr.bf16.mxu0 0
      %4045 = vmatpush1.bf16.msra.mxu0 %v3878
      %4046 = vmatprep.subr.bf16.mxu0 0
      %4047 = vmatpush1.bf16.msra.mxu0 %v3879
      %4048 = vmatprep.mubr.bf16.mxu0 %v2051
      %4049 = vmatmul.mubr.bf16.gmra.mrb[0].mxu0 %v2050
      %v4050 = vpop.f32.mrb[0].mxu0
      %v4051 = vadd.f32 %v4011, %v4050
      %v4052 = vpop.f32.mrb[0].mxu0
      %v4053 = vpop.f32.mrb[0].mxu0
      %v4054 = vpop.f32.mrb[0].mxu0
      %4055 = vdwg.mxu0
      %4056 = vmatprep.subr.bf16.mxu0 0
      %4057 = vmatpush1.bf16.msra.mxu0 %v3880
      %4058 = vmatprep.subr.bf16.mxu0 0
      %4059 = vmatpush1.bf16.msra.mxu0 %v3881
      %4060 = vmatprep.subr.bf16.mxu0 0
      %4061 = vmatpush1.bf16.msra.mxu0 %v3882
      %4062 = vmatprep.subr.bf16.mxu0 0
      %4063 = vmatpush1.bf16.msra.mxu0 %v3883
      %4064 = vmatprep.subr.bf16.mxu0 0
      %4065 = vmatpush1.bf16.msra.mxu0 %v3884
      %4066 = vmatprep.subr.bf16.mxu0 0
      %4067 = vmatpush1.bf16.msra.mxu0 %v3885
      %4068 = vmatprep.subr.bf16.mxu0 0
      %4069 = vmatpush1.bf16.msra.mxu0 %v3886
      %4070 = vmatprep.subr.bf16.mxu0 0
      %4071 = vmatpush1.bf16.msra.mxu0 %v3887
      %4072 = vmatprep.subr.bf16.mxu0 0
      %4073 = vmatpush1.bf16.msra.mxu0 %v3888
      %4074 = vmatprep.subr.bf16.mxu0 0
      %4075 = vmatpush1.bf16.msra.mxu0 %v3889
      %4076 = vmatprep.subr.bf16.mxu0 0
      %4077 = vmatpush1.bf16.msra.mxu0 %v3890
      %4078 = vmatprep.subr.bf16.mxu0 0
      %4079 = vmatpush1.bf16.msra.mxu0 %v3891
      %4080 = vmatprep.subr.bf16.mxu0 0
      %4081 = vmatpush1.bf16.msra.mxu0 %v3892
      %4082 = vmatprep.subr.bf16.mxu0 0
      %4083 = vmatpush1.bf16.msra.mxu0 %v3893
      %4084 = vmatprep.subr.bf16.mxu0 0
      %4085 = vmatpush1.bf16.msra.mxu0 %v3894
      %4086 = vmatprep.subr.bf16.mxu0 0
      %4087 = vmatpush1.bf16.msra.mxu0 %v3895
      %4088 = vmatprep.mubr.bf16.mxu0 %v2053
      %4089 = vmatmul.mubr.bf16.gmra.mrb[0].mxu0 %v2052
      %v4090 = vpop.f32.mrb[0].mxu0
      %v4091 = vadd.f32 %v4051, %v4090
      %v4092 = vpop.f32.mrb[0].mxu0
      %v4093 = vpop.f32.mrb[0].mxu0
      %v4094 = vpop.f32.mrb[0].mxu0
      %4095 = vdwg.mxu0
      %4096 = vmatprep.subr.bf16.mxu0 0
      %4097 = vmatpush1.bf16.msra.mxu0 %v3896
      %4098 = vmatprep.subr.bf16.mxu0 0
      %4099 = vmatpush1.bf16.msra.mxu0 %v3897
      %4100 = vmatprep.subr.bf16.mxu0 0
      %4101 = vmatpush1.bf16.msra.mxu0 %v3898
      %4102 = vmatprep.subr.bf16.mxu0 0
      %4103 = vmatpush1.bf16.msra.mxu0 %v3899
      %4104 = vmatprep.subr.bf16.mxu0 0
      %4105 = vmatpush1.bf16.msra.mxu0 %v3900
      %4106 = vmatprep.subr.bf16.mxu0 0
      %4107 = vmatpush1.bf16.msra.mxu0 %v3901
      %4108 = vmatprep.subr.bf16.mxu0 0
      %4109 = vmatpush1.bf16.msra.mxu0 %v3902
      %4110 = vmatprep.subr.bf16.mxu0 0
      %4111 = vmatpush1.bf16.msra.mxu0 %v3903
      %4112 = vmatprep.subr.bf16.mxu0 0
      %4113 = vmatpush1.bf16.msra.mxu0 %v3904
      %4114 = vmatprep.subr.bf16.mxu0 0
      %4115 = vmatpush1.bf16.msra.mxu0 %v3905
      %4116 = vmatprep.subr.bf16.mxu0 0
      %4117 = vmatpush1.bf16.msra.mxu0 %v3906
      %4118 = vmatprep.subr.bf16.mxu0 0
      %4119 = vmatpush1.bf16.msra.mxu0 %v3907
      %4120 = vmatprep.subr.bf16.mxu0 0
      %4121 = vmatpush1.bf16.msra.mxu0 %v3908
      %4122 = vmatprep.subr.bf16.mxu0 0
      %4123 = vmatpush1.bf16.msra.mxu0 %v3909
      %4124 = vmatprep.subr.bf16.mxu0 0
      %4125 = vmatpush1.bf16.msra.mxu0 %v3910
      %4126 = vmatprep.subr.bf16.mxu0 0
      %4127 = vmatpush1.bf16.msra.mxu0 %v3911
      %4128 = vmatprep.mubr.bf16.mxu0 %v2055
      %4129 = vmatmul.mubr.bf16.gmra.mrb[0].mxu0 %v2054
      %v4130 = vpop.f32.mrb[0].mxu0
      %v4131 = vadd.f32 %v4091, %v4130
      %v4132 = vpop.f32.mrb[0].mxu0
      %v4133 = vpop.f32.mrb[0].mxu0
      %v4134 = vpop.f32.mrb[0].mxu0
      %4135 = vdwg.mxu0
      %v4136 = vld [vmem:[%s8] sm:$0x1]
      %v4138 = vlaneseq
      %v4139 = vshrl.u32 %v4138, 7
      %v4140 = vsub.s32 0, %v4139
      %v4141 = vrot.slane %v4136, %v4140
      %v4143 = vadd.f32 %v4131, %v4141
      %4144 = vst [vmem:[#allocation15] sm:$0xff] %v4143
    $region69: #{tpu_custom_call.1} parent=1 // pred_fallthru
      _
    // Predicated region
    $region70: #{tpu_custom_call.1} parent=1 // pred_check
      _
    $region71: #{tpu_custom_call.1} parent=1 // pred_check_branch
      %4146 = sbr.rel (0) target = $region73
    $region72: #{tpu_custom_call.1} parent=1 // pred_region
      %s4148 = ssub.s32 128, 32
      %4149 = vsyncadd [#allocation6], %s4148
      %s4150 = sshll.u32 [#allocation15], 4
      %s4151 = int_to_ptr.vmem [resolvable:$true] %s4150
      %4156 = dma.vmem_to_hbm [thread:$0]  %s4151, 32, %s9, [#allocation6], 32, 32, 2
    $region73: #{tpu_custom_call.1} parent=1 // pred_fallthru
      _
    // Predicated region
    $region74: #{tpu_custom_call.1} parent=1 // pred_check
      _
    $region75: #{tpu_custom_call.1} parent=1 // pred_check_branch
      %4158 = sbr.rel (0) target = $region77
    $region76: #{tpu_custom_call.1} parent=1 // pred_region
      %4159 = dma.done [#allocation6], 128
    $region77: #{tpu_custom_call.1} parent=1 // pred_fallthru
      _
    %4160 = vsyncpa [#allocation5], 1
    %4161 = vsyncpa [#allocation8], 1
    %4162 = vsyncpa [#allocation11], 1
    %4163 = vsyncpa [#allocation14], 1
    %4164 = vsyncpa [#allocation6], 1

// kernel: tpu_custom_call.1
$region0: #{tpu_custom_call.1}
  #allocation0 [shape = 'u32[]', space=smem, size = 0x4, offset = 0x4, fixed_abs, tag = 'smem constant byte address 0x4 - core index']
  #allocation1 [shape = 'u32[144,128]{1,0:T(1,128)}', space=vmem, size = 0x12000, scoped, tag = 'internal scratch']
  #allocation2 [shape = 'f32[8,4]{1,0:T(8,128)}', space=vmem, size = 0x1000, scoped, tag = 'scratch operand']
  #allocation3 [shape = 'bf16[8,2048]{1,0:T(8,128)(2,1)}', space=vmem, size = 0x8000, scoped, tag = 'scratch operand']
  %s0 = inlined_call_operand.hbm [shape: f32[2,1024], index: 0, kind: input, shape index: {}]
  %s1 = inlined_call_operand.vmem [shape: bf16[2,128], index: 1, kind: input, shape index: {}]
  %s2 = inlined_call_operand.hbm [shape: bf16[4,1024], index: 2, kind: input, shape index: {}]
  %s3 = inlined_call_operand.hbm [shape: f32[1,1024], index: 3, kind: input, shape index: {}]
  %s4 = inlined_call_operand.hbm [shape: bf16[128,2048], index: 4, kind: input, shape index: {}]
  %s5 = inlined_call_operand.vmem [shape: f32[1,2048], index: 5, kind: input, shape index: {}]
  %s6 = inlined_call_operand.hbm [shape: bf16[1024,128], index: 6, kind: input, shape index: {}]
  %s7 = inlined_call_operand.hbm [shape: bf16[2048,128], index: 7, kind: input, shape index: {}]
  %s8 = inlined_call_operand.vmem [shape: f32[1,128], index: 8, kind: input, shape index: {}]
  %s9 = inlined_call_operand.hbm [shape: f32[2,128], index: 9, kind: output, shape index: {}]
  %s10 = sld [smem:[#allocation0]]
  $region78: #{tpu_custom_call.1} parent=0
    _
  %s12 = ssub.s32 1, %s10
  %s13 = scalar_select 0, %s12, %s10
  $region1: #{tpu_custom_call.1} parent=0
    #allocation4 [shape = 'u8[32768]{0}', space=vmem, size = 0x8000, scoped, tag = 'input window, operand 0, single buffered']
    #allocation5 [shape = 's32[1]{0}', space=sflag, size = 0x4, scoped, tag = 'scoped memory for tpu_custom_call.1']
    #allocation6 [shape = 's32[1]{0}', space=sflag, size = 0x4, scoped, tag = 'scoped memory for tpu_custom_call.1']
    #allocation7 [shape = 'u8[8192]{0}', space=vmem, size = 0x2000, scoped, tag = 'input window, operand 2, single buffered']
    #allocation8 [shape = 's32[1]{0}', space=sflag, size = 0x4, scoped, tag = 'scoped memory for tpu_custom_call.1']
    #allocation9 [shape = 'u8[4096]{0}', space=vmem, size = 0x1000, scoped, tag = 'input window, operand 3, single buffered']
    #allocation10 [shape = 'u8[524288]{0}', space=vmem, size = 0x80000, scoped, tag = 'input window, operand 4, single buffered']
    #allocation11 [shape = 's32[1]{0}', space=sflag, size = 0x4, scoped, tag = 'scoped memory for tpu_custom_call.1']
    #allocation12 [shape = 'u8[262144]{0}', space=vmem, size = 0x40000, scoped, tag = 'input window, operand 6, single buffered']
    #allocation13 [shape = 'u8[524288]{0}', space=vmem, size = 0x80000, scoped, tag = 'input window, operand 7, single buffered']
    #allocation14 [shape = 's32[1]{0}', space=sflag, size = 0x4, scoped, tag = 'scoped memory for tpu_custom_call.1']
    #allocation15 [shape = 'u8[4096]{0}', space=vmem, size = 0x1000, scoped, tag = 'output window, operand 0, single buffered']
    %14 = vsyncpa [#allocation5], 0
    %15 = vsyncpa [#allocation8], 0
    %16 = vsyncpa [#allocation11], 0
    %17 = vsyncpa [#allocation14], 0
    %18 = vsyncpa [#allocation6], 0
    // Predicated region
    $region2: #{tpu_custom_call.1} parent=1 // pred_check
      _
    $region3: #{tpu_custom_call.1} parent=1 // pred_check_branch
      %20 = sbr.rel (0) target = $region5
    $region4: #{tpu_custom_call.1} parent=1 // pred_region
      %s22 = ssub.s32 1024, 256
      %23 = vsyncadd [#allocation5], %s22
      %s24 = sshll.u32 [#allocation4], 4
      %s25 = int_to_ptr.vmem [resolvable:$true] %s24
      %30 = dma.hbm_to_vmem [thread:$0]  %s0, 256, %s25, [#allocation5], 256, 256, 16
    $region5: #{tpu_custom_call.1} parent=1 // pred_fallthru
      _
    // Predicated region
    $region6: #{tpu_custom_call.1} parent=1 // pred_check
      _
    $region7: #{tpu_custom_call.1} parent=1 // pred_check_branch
      %32 = sbr.rel (0) target = $region9
    $region8: #{tpu_custom_call.1} parent=1 // pred_region
      _
    $region9: #{tpu_custom_call.1} parent=1 // pred_fallthru
      _
    // Predicated region
    $region10: #{tpu_custom_call.1} parent=1 // pred_check
      _
    $region11: #{tpu_custom_call.1} parent=1 // pred_check_branch
      %34 = sbr.rel (0) target = $region13
    $region12: #{tpu_custom_call.1} parent=1 // pred_region
      %s36 = ssub.s32 256, 256
      %37 = vsyncadd [#allocation8], %s36
      %s39 = sshll.u32 [#allocation7], 4
      %s40 = int_to_ptr.vmem [resolvable:$true] %s39
      %42 = dma.hbm_to_vmem [thread:$0]  %s2, 256, %s40, [#allocation8]
    $region13: #{tpu_custom_call.1} parent=1 // pred_fallthru
      _
    // Predicated region
    $region14: #{tpu_custom_call.1} parent=1 // pred_check
      _
    $region15: #{tpu_custom_call.1} parent=1 // pred_check_branch
      %44 = sbr.rel (0) target = $region17
    $region16: #{tpu_custom_call.1} parent=1 // pred_region
      %s46 = ssub.s32 128, 128
      %47 = vsyncadd [#allocation8], %s46
      %s49 = sshll.u32 [#allocation9], 4
      %s50 = int_to_ptr.vmem [resolvable:$true] %s49
      %52 = dma.hbm_to_vmem [thread:$0]  %s3, 128, %s50, [#allocation8]
    $region17: #{tpu_custom_call.1} parent=1 // pred_fallthru
      _
    // Predicated region
    $region18: #{tpu_custom_call.1} parent=1 // pred_check
      _
    $region19: #{tpu_custom_call.1} parent=1 // pred_check_branch
      %54 = sbr.rel (0) target = $region21
    $region20: #{tpu_custom_call.1} parent=1 // pred_region
      %s56 = ssub.s32 16384, 16384
      %57 = vsyncadd [#allocation11], %s56
      %s58 = sshll.u32 [#allocation10], 4
      %s59 = int_to_ptr.vmem [resolvable:$true] %s58
      %64 = dma.hbm_to_vmem [thread:$0]  %s4, 16384, %s59, [#allocation11], 1024, 1024, 64
    $region21: #{tpu_custom_call.1} parent=1 // pred_fallthru
      _
    // Predicated region
    $region22: #{tpu_custom_call.1} parent=1 // pred_check
      _
    $region23: #{tpu_custom_call.1} parent=1 // pred_check_branch
      %66 = sbr.rel (0) target = $region25
    $region24: #{tpu_custom_call.1} parent=1 // pred_region
      _
    $region25: #{tpu_custom_call.1} parent=1 // pred_fallthru
      _
    // Predicated region
    $region26: #{tpu_custom_call.1} parent=1 // pred_check
      _
    $region27: #{tpu_custom_call.1} parent=1 // pred_check_branch
      %68 = sbr.rel (0) target = $region29
    $region28: #{tpu_custom_call.1} parent=1 // pred_region
      %s70 = ssub.s32 8192, 8192
      %71 = vsyncadd [#allocation11], %s70
      %s72 = sshll.u32 [#allocation12], 4
      %s73 = int_to_ptr.vmem [resolvable:$true] %s72
      %78 = dma.hbm_to_vmem [thread:$0]  %s6, 8192, %s73, [#allocation11], 64, 64, 4
    $region29: #{tpu_custom_call.1} parent=1 // pred_fallthru
      _
    // Predicated region
    $region30: #{tpu_custom_call.1} parent=1 // pred_check
      _
    $region31: #{tpu_custom_call.1} parent=1 // pred_check_branch
      %80 = sbr.rel (0) target = $region33
    $region32: #{tpu_custom_call.1} parent=1 // pred_region
      %s82 = ssub.s32 16384, 16384
      %83 = vsyncadd [#allocation14], %s82
      %s84 = sshll.u32 [#allocation13], 4
      %s85 = int_to_ptr.vmem [resolvable:$true] %s84
      %90 = dma.hbm_to_vmem [thread:$0]  %s7, 16384, %s85, [#allocation14], 64, 64, 4
    $region33: #{tpu_custom_call.1} parent=1 // pred_fallthru
      _
    // Predicated region
    $region34: #{tpu_custom_call.1} parent=1 // pred_check
      _
    $region35: #{tpu_custom_call.1} parent=1 // pred_check_branch
      %92 = sbr.rel (0) target = $region37
    $region36: #{tpu_custom_call.1} parent=1 // pred_region
      _
    $region37: #{tpu_custom_call.1} parent=1 // pred_fallthru
      _
    // Predicated region
    $region38: #{tpu_custom_call.1} parent=1 // pred_check
      _
    $region39: #{tpu_custom_call.1} parent=1 // pred_check_branch
      %94 = sbr.rel (0) target = $region41
    $region40: #{tpu_custom_call.1} parent=1 // pred_region
      %95 = dma.done [#allocation5], 1024
    $region41: #{tpu_custom_call.1} parent=1 // pred_fallthru
      _
    // Predicated region
    $region42: #{tpu_custom_call.1} parent=1 // pred_check
      _
    $region43: #{tpu_custom_call.1} parent=1 // pred_check_branch
      %97 = sbr.rel (0) target = $region45
    $region44: #{tpu_custom_call.1} parent=1 // pred_region
      %98 = dma.done [#allocation8], 256
    $region45: #{tpu_custom_call.1} parent=1 // pred_fallthru
      _
    // Predicated region
    $region46: #{tpu_custom_call.1} parent=1 // pred_check
      _
    $region47: #{tpu_custom_call.1} parent=1 // pred_check_branch
      %100 = sbr.rel (0) target = $region49
    $region48: #{tpu_custom_call.1} parent=1 // pred_region
      %101 = dma.done [#allocation8], 128
    $region49: #{tpu_custom_call.1} parent=1 // pred_fallthru
      _
    // Predicated region
    $region50: #{tpu_custom_call.1} parent=1 // pred_check
      _
    $region51: #{tpu_custom_call.1} parent=1 // pred_check_branch
      %103 = sbr.rel (0) target = $region53
    $region52: #{tpu_custom_call.1} parent=1 // pred_region
      %104 = dma.done [#allocation11], 16384
    $region53: #{tpu_custom_call.1} parent=1 // pred_fallthru
      _
    // Predicated region
    $region54: #{tpu_custom_call.1} parent=1 // pred_check
      _
    $region55: #{tpu_custom_call.1} parent=1 // pred_check_branch
      %106 = sbr.rel (0) target = $region57
    $region56: #{tpu_custom_call.1} parent=1 // pred_region
      %107 = dma.done [#allocation11], 8192
    $region57: #{tpu_custom_call.1} parent=1 // pred_fallthru
      _
    // Predicated region
    $region58: #{tpu_custom_call.1} parent=1 // pred_check
      _
    $region59: #{tpu_custom_call.1} parent=1 // pred_check_branch
      %109 = sbr.rel (0) target = $region61
    $region60: #{tpu_custom_call.1} parent=1 // pred_region
      %110 = dma.done [#allocation14], 16384
    $region61: #{tpu_custom_call.1} parent=1 // pred_fallthru
      _
    %p112 = scmp.eq.s32.totalorder 0, 0
    // Predicated region
    $region62: #{tpu_custom_call.1} parent=1 // pred_check
      %p113 = pneg %p112
    $region63: #{tpu_custom_call.1} parent=1 // pred_check_branch
      %115 = sbr.rel (%p113) target = $region65
    $region64: #{tpu_custom_call.1} parent=1 // pred_region
      %vm116 = vcmask 31744
      %117 = vst.msk [vmem:[#allocation2] sm:$0xff] %vm116, 0.0
      %v118 = vld [vmem:[%s1] sm:$0x1]
      %v119 = vld [vmem:[%s1 + $0x1] sm:$0x1]
      %v120 = vld [vmem:[%s1 + $0x2] sm:$0x1]
      %v121 = vld [vmem:[%s1 + $0x3] sm:$0x1]
      %v122 = vld [vmem:[#allocation10] sm:$0xff]
      %v123 = vld [vmem:[#allocation10 + $0x8] sm:$0xff]
      %v124 = vld [vmem:[#allocation10 + $0x10] sm:$0xff]
      %v125 = vld [vmem:[#allocation10 + $0x18] sm:$0xff]
      %v126 = vld [vmem:[#allocation10 + $0x20] sm:$0xff]
      %v127 = vld [vmem:[#allocation10 + $0x28] sm:$0xff]
      %v128 = vld [vmem:[#allocation10 + $0x30] sm:$0xff]
      %v129 = vld [vmem:[#allocation10 + $0x38] sm:$0xff]
      %v130 = vld [vmem:[#allocation10 + $0x40] sm:$0xff]
      %v131 = vld [vmem:[#allocation10 + $0x48] sm:$0xff]
      %v132 = vld [vmem:[#allocation10 + $0x50] sm:$0xff]
      %v133 = vld [vmem:[#allocation10 + $0x58] sm:$0xff]
      %v134 = vld [vmem:[#allocation10 + $0x60] sm:$0xff]
      %v135 = vld [vmem:[#allocation10 + $0x68] sm:$0xff]
      %v136 = vld [vmem:[#allocation10 + $0x70] sm:$0xff]
      %v137 = vld [vmem:[#allocation10 + $0x78] sm:$0xff]
      %v138 = vld [vmem:[#allocation10 + $0x80] sm:$0xff]
      %v139 = vld [vmem:[#allocation10 + $0x88] sm:$0xff]
      %v140 = vld [vmem:[#allocation10 + $0x90] sm:$0xff]
      %v141 = vld [vmem:[#allocation10 + $0x98] sm:$0xff]
      %v142 = vld [vmem:[#allocation10 + $0xa0] sm:$0xff]
      %v143 = vld [vmem:[#allocation10 + $0xa8] sm:$0xff]
      %v144 = vld [vmem:[#allocation10 + $0xb0] sm:$0xff]
      %v145 = vld [vmem:[#allocation10 + $0xb8] sm:$0xff]
      %v146 = vld [vmem:[#allocation10 + $0xc0] sm:$0xff]
      %v147 = vld [vmem:[#allocation10 + $0xc8] sm:$0xff]
      %v148 = vld [vmem:[#allocation10 + $0xd0] sm:$0xff]
      %v149 = vld [vmem:[#allocation10 + $0xd8] sm:$0xff]
      %v150 = vld [vmem:[#allocation10 + $0xe0] sm:$0xff]
      %v151 = vld [vmem:[#allocation10 + $0xe8] sm:$0xff]
      %v152 = vld [vmem:[#allocation10 + $0xf0] sm:$0xff]
      %v153 = vld [vmem:[#allocation10 + $0xf8] sm:$0xff]
      %v154 = vld [vmem:[#allocation10 + $0x100] sm:$0xff]
      %v155 = vld [vmem:[#allocation10 + $0x108] sm:$0xff]
      %v156 = vld [vmem:[#allocation10 + $0x110] sm:$0xff]
      %v157 = vld [vmem:[#allocation10 + $0x118] sm:$0xff]
      %v158 = vld [vmem:[#allocation10 + $0x120] sm:$0xff]
      %v159 = vld [vmem:[#allocation10 + $0x128] sm:$0xff]
      %v160 = vld [vmem:[#allocation10 + $0x130] sm:$0xff]
      %v161 = vld [vmem:[#allocation10 + $0x138] sm:$0xff]
      %v162 = vld [vmem:[#allocation10 + $0x140] sm:$0xff]
      %v163 = vld [vmem:[#allocation10 + $0x148] sm:$0xff]
      %v164 = vld [vmem:[#allocation10 + $0x150] sm:$0xff]
      %v165 = vld [vmem:[#allocation10 + $0x158] sm:$0xff]
      %v166 = vld [vmem:[#allocation10 + $0x160] sm:$0xff]
      %v167 = vld [vmem:[#allocation10 + $0x168] sm:$0xff]
      %v168 = vld [vmem:[#allocation10 + $0x170] sm:$0xff]
      %v169 = vld [vmem:[#allocation10 + $0x178] sm:$0xff]
      %v170 = vld [vmem:[#allocation10 + $0x180] sm:$0xff]
      %v171 = vld [vmem:[#allocation10 + $0x188] sm:$0xff]
      %v172 = vld [vmem:[#allocation10 + $0x190] sm:$0xff]
      %v173 = vld [vmem:[#allocation10 + $0x198] sm:$0xff]
      %v174 = vld [vmem:[#allocation10 + $0x1a0] sm:$0xff]
      %v175 = vld [vmem:[#allocation10 + $0x1a8] sm:$0xff]
      %v176 = vld [vmem:[#allocation10 + $0x1b0] sm:$0xff]
      %v177 = vld [vmem:[#allocation10 + $0x1b8] sm:$0xff]
      %v178 = vld [vmem:[#allocation10 + $0x1c0] sm:$0xff]
      %v179 = vld [vmem:[#allocation10 + $0x1c8] sm:$0xff]
      %v180 = vld [vmem:[#allocation10 + $0x1d0] sm:$0xff]
      %v181 = vld [vmem:[#allocation10 + $0x1d8] sm:$0xff]
      %v182 = vld [vmem:[#allocation10 + $0x1e0] sm:$0xff]
      %v183 = vld [vmem:[#allocation10 + $0x1e8] sm:$0xff]
      %v184 = vld [vmem:[#allocation10 + $0x1f0] sm:$0xff]
      %v185 = vld [vmem:[#allocation10 + $0x1f8] sm:$0xff]
      %v186 = vld [vmem:[#allocation10 + $0x200] sm:$0xff]
      %v187 = vld [vmem:[#allocation10 + $0x208] sm:$0xff]
      %v188 = vld [vmem:[#allocation10 + $0x210] sm:$0xff]
      %v189 = vld [vmem:[#allocation10 + $0x218] sm:$0xff]
      %v190 = vld [vmem:[#allocation10 + $0x220] sm:$0xff]
      %v191 = vld [vmem:[#allocation10 + $0x228] sm:$0xff]
      %v192 = vld [vmem:[#allocation10 + $0x230] sm:$0xff]
      %v193 = vld [vmem:[#allocation10 + $0x238] sm:$0xff]
      %v194 = vld [vmem:[#allocation10 + $0x240] sm:$0xff]
      %v195 = vld [vmem:[#allocation10 + $0x248] sm:$0xff]
      %v196 = vld [vmem:[#allocation10 + $0x250] sm:$0xff]
      %v197 = vld [vmem:[#allocation10 + $0x258] sm:$0xff]
      %v198 = vld [vmem:[#allocation10 + $0x260] sm:$0xff]
      %v199 = vld [vmem:[#allocation10 + $0x268] sm:$0xff]
      %v200 = vld [vmem:[#allocation10 + $0x270] sm:$0xff]
      %v201 = vld [vmem:[#allocation10 + $0x278] sm:$0xff]
      %v202 = vld [vmem:[#allocation10 + $0x280] sm:$0xff]
      %v203 = vld [vmem:[#allocation10 + $0x288] sm:$0xff]
      %v204 = vld [vmem:[#allocation10 + $0x290] sm:$0xff]
      %v205 = vld [vmem:[#allocation10 + $0x298] sm:$0xff]
      %v206 = vld [vmem:[#allocation10 + $0x2a0] sm:$0xff]
      %v207 = vld [vmem:[#allocation10 + $0x2a8] sm:$0xff]
      %v208 = vld [vmem:[#allocation10 + $0x2b0] sm:$0xff]
      %v209 = vld [vmem:[#allocation10 + $0x2b8] sm:$0xff]
      %v210 = vld [vmem:[#allocation10 + $0x2c0] sm:$0xff]
      %v211 = vld [vmem:[#allocation10 + $0x2c8] sm:$0xff]
      %v212 = vld [vmem:[#allocation10 + $0x2d0] sm:$0xff]
      %v213 = vld [vmem:[#allocation10 + $0x2d8] sm:$0xff]
      %v214 = vld [vmem:[#allocation10 + $0x2e0] sm:$0xff]
      %v215 = vld [vmem:[#allocation10 + $0x2e8] sm:$0xff]
      %v216 = vld [vmem:[#allocation10 + $0x2f0] sm:$0xff]
      %v217 = vld [vmem:[#allocation10 + $0x2f8] sm:$0xff]
      %v218 = vld [vmem:[#allocation10 + $0x300] sm:$0xff]
      %v219 = vld [vmem:[#allocation10 + $0x308] sm:$0xff]
      %v220 = vld [vmem:[#allocation10 + $0x310] sm:$0xff]
      %v221 = vld [vmem:[#allocation10 + $0x318] sm:$0xff]
      %v222 = vld [vmem:[#allocation10 + $0x320] sm:$0xff]
      %v223 = vld [vmem:[#allocation10 + $0x328] sm:$0xff]
      %v224 = vld [vmem:[#allocation10 + $0x330] sm:$0xff]
      %v225 = vld [vmem:[#allocation10 + $0x338] sm:$0xff]
      %v226 = vld [vmem:[#allocation10 + $0x340] sm:$0xff]
      %v227 = vld [vmem:[#allocation10 + $0x348] sm:$0xff]
      %v228 = vld [vmem:[#allocation10 + $0x350] sm:$0xff]
      %v229 = vld [vmem:[#allocation10 + $0x358] sm:$0xff]
      %v230 = vld [vmem:[#allocation10 + $0x360] sm:$0xff]
      %v231 = vld [vmem:[#allocation10 + $0x368] sm:$0xff]
      %v232 = vld [vmem:[#allocation10 + $0x370] sm:$0xff]
      %v233 = vld [vmem:[#allocation10 + $0x378] sm:$0xff]
      %v234 = vld [vmem:[#allocation10 + $0x380] sm:$0xff]
      %v235 = vld [vmem:[#allocation10 + $0x388] sm:$0xff]
      %v236 = vld [vmem:[#allocation10 + $0x390] sm:$0xff]
      %v237 = vld [vmem:[#allocation10 + $0x398] sm:$0xff]
      %v238 = vld [vmem:[#allocation10 + $0x3a0] sm:$0xff]
      %v239 = vld [vmem:[#allocation10 + $0x3a8] sm:$0xff]
      %v240 = vld [vmem:[#allocation10 + $0x3b0] sm:$0xff]
      %v241 = vld [vmem:[#allocation10 + $0x3b8] sm:$0xff]
      %v242 = vld [vmem:[#allocation10 + $0x3c0] sm:$0xff]
      %v243 = vld [vmem:[#allocation10 + $0x3c8] sm:$0xff]
      %v244 = vld [vmem:[#allocation10 + $0x3d0] sm:$0xff]
      %v245 = vld [vmem:[#allocation10 + $0x3d8] sm:$0xff]
      %v246 = vld [vmem:[#allocation10 + $0x3e0] sm:$0xff]
      %v247 = vld [vmem:[#allocation10 + $0x3e8] sm:$0xff]
      %v248 = vld [vmem:[#allocation10 + $0x3f0] sm:$0xff]
      %v249 = vld [vmem:[#allocation10 + $0x3f8] sm:$0xff]
      %v250 = vld [vmem:[%s5] sm:$0xff]
      %v251 = vld [vmem:[%s5 + $0x8] sm:$0xff]
      %v254 = vlaneseq
      %v255 = vshrl.u32 %v254, 7
      %v256 = vsub.s32 0, %v255
      %v257 = vrot.slane %v250, %v256
      %v258 = vlaneseq
      %v259 = vshrl.u32 %v258, 7
      %v260 = vsub.s32 1, %v259
      %v261 = vrot.slane %v250, %v260
      %v262 = vlaneseq
      %v263 = vshrl.u32 %v262, 7
      %v264 = vsub.s32 2, %v263
      %v265 = vrot.slane %v250, %v264
      %v266 = vlaneseq
      %v267 = vshrl.u32 %v266, 7
      %v268 = vsub.s32 3, %v267
      %v269 = vrot.slane %v250, %v268
      %v270 = vlaneseq
      %v271 = vshrl.u32 %v270, 7
      %v272 = vsub.s32 4, %v271
      %v273 = vrot.slane %v250, %v272
      %v274 = vlaneseq
      %v275 = vshrl.u32 %v274, 7
      %v276 = vsub.s32 5, %v275
      %v277 = vrot.slane %v250, %v276
      %v278 = vlaneseq
      %v279 = vshrl.u32 %v278, 7
      %v280 = vsub.s32 6, %v279
      %v281 = vrot.slane %v250, %v280
      %v282 = vlaneseq
      %v283 = vshrl.u32 %v282, 7
      %v284 = vsub.s32 7, %v283
      %v285 = vrot.slane %v250, %v284
      %v286 = vlaneseq
      %v287 = vshrl.u32 %v286, 7
      %v288 = vsub.s32 0, %v287
      %v289 = vrot.slane %v251, %v288
      %v290 = vlaneseq
      %v291 = vshrl.u32 %v290, 7
      %v292 = vsub.s32 1, %v291
      %v293 = vrot.slane %v251, %v292
      %v294 = vlaneseq
      %v295 = vshrl.u32 %v294, 7
      %v296 = vsub.s32 2, %v295
      %v297 = vrot.slane %v251, %v296
      %v298 = vlaneseq
      %v299 = vshrl.u32 %v298, 7
      %v300 = vsub.s32 3, %v299
      %v301 = vrot.slane %v251, %v300
      %v302 = vlaneseq
      %v303 = vshrl.u32 %v302, 7
      %v304 = vsub.s32 4, %v303
      %v305 = vrot.slane %v251, %v304
      %v306 = vlaneseq
      %v307 = vshrl.u32 %v306, 7
      %v308 = vsub.s32 5, %v307
      %v309 = vrot.slane %v251, %v308
      %v310 = vlaneseq
      %v311 = vshrl.u32 %v310, 7
      %v312 = vsub.s32 6, %v311
      %v313 = vrot.slane %v251, %v312
      %v314 = vlaneseq
      %v315 = vshrl.u32 %v314, 7
      %v316 = vsub.s32 7, %v315
      %v317 = vrot.slane %v251, %v316
      %v338 = vcombine.low %v118, %v119
      %v339 = vcombine.low %v120, %v121
      %v341 = vunpack.c.l.s4 1966171168
      %v342 = vunpack.c.0.s8 %v341
      %v343 = vlaneseq
      %v344 = vshrl.u32 %v343, 7
      %v345 = vsub.s32 %v342, %v344
      %v346 = vrot.slane %v338, %v345
      %v348 = vunpack.c.l.s4 1966171168
      %v349 = vunpack.c.0.s8 %v348
      %v350 = vlaneseq
      %v351 = vshrl.u32 %v350, 7
      %v352 = vsub.s32 %v349, %v351
      %v353 = vrot.slane %v339, %v352
      %v354 = vcombine.low %v346, %v353
      %v356 = vunpack.c.l.s4 1966171168
      %v357 = vunpack.c.0.s8 %v356
      %v358 = vlaneseq
      %v359 = vshrl.u32 %v358, 7
      %v360 = vsub.s32 %v357, %v359
      %v361 = vrot.slane %v354, %v360
      %v491 = vunpack.c.l.b16 %v122
      %v492 = vunpack.c.h.b16 %v122
      %v493 = vunpack.c.l.b16 %v123
      %v494 = vunpack.c.h.b16 %v123
      %v495 = vunpack.c.l.b16 %v124
      %v496 = vunpack.c.h.b16 %v124
      %v497 = vunpack.c.l.b16 %v125
      %v498 = vunpack.c.h.b16 %v125
      %v499 = vunpack.c.l.b16 %v126
      %v500 = vunpack.c.h.b16 %v126
      %v501 = vunpack.c.l.b16 %v127
      %v502 = vunpack.c.h.b16 %v127
      %v503 = vunpack.c.l.b16 %v128
      %v504 = vunpack.c.h.b16 %v128
      %v505 = vunpack.c.l.b16 %v129
      %v506 = vunpack.c.h.b16 %v129
      %v507 = vunpack.c.l.b16 %v130
      %v508 = vunpack.c.h.b16 %v130
      %v509 = vunpack.c.l.b16 %v131
      %v510 = vunpack.c.h.b16 %v131
      %v511 = vunpack.c.l.b16 %v132
      %v512 = vunpack.c.h.b16 %v132
      %v513 = vunpack.c.l.b16 %v133
      %v514 = vunpack.c.h.b16 %v133
      %v515 = vunpack.c.l.b16 %v134
      %v516 = vunpack.c.h.b16 %v134
      %v517 = vunpack.c.l.b16 %v135
      %v518 = vunpack.c.h.b16 %v135
      %v519 = vunpack.c.l.b16 %v136
      %v520 = vunpack.c.h.b16 %v136
      %v521 = vunpack.c.l.b16 %v137
      %v522 = vunpack.c.h.b16 %v137
      %v523 = vunpack.c.l.b16 %v138
      %v524 = vunpack.c.h.b16 %v138
      %v525 = vunpack.c.l.b16 %v139
      %v526 = vunpack.c.h.b16 %v139
      %v527 = vunpack.c.l.b16 %v140
      %v528 = vunpack.c.h.b16 %v140
      %v529 = vunpack.c.l.b16 %v141
      %v530 = vunpack.c.h.b16 %v141
      %v531 = vunpack.c.l.b16 %v142
      %v532 = vunpack.c.h.b16 %v142
      %v533 = vunpack.c.l.b16 %v143
      %v534 = vunpack.c.h.b16 %v143
      %v535 = vunpack.c.l.b16 %v144
      %v536 = vunpack.c.h.b16 %v144
      %v537 = vunpack.c.l.b16 %v145
      %v538 = vunpack.c.h.b16 %v145
      %v539 = vunpack.c.l.b16 %v146
      %v540 = vunpack.c.h.b16 %v146
      %v541 = vunpack.c.l.b16 %v147
      %v542 = vunpack.c.h.b16 %v147
      %v543 = vunpack.c.l.b16 %v148
      %v544 = vunpack.c.h.b16 %v148
      %v545 = vunpack.c.l.b16 %v149
      %v546 = vunpack.c.h.b16 %v149
      %v547 = vunpack.c.l.b16 %v150
      %v548 = vunpack.c.h.b16 %v150
      %v549 = vunpack.c.l.b16 %v151
      %v550 = vunpack.c.h.b16 %v151
      %v551 = vunpack.c.l.b16 %v152
      %v552 = vunpack.c.h.b16 %v152
      %v553 = vunpack.c.l.b16 %v153
      %v554 = vunpack.c.h.b16 %v153
      %v555 = vunpack.c.l.b16 %v154
      %v556 = vunpack.c.h.b16 %v154
      %v557 = vunpack.c.l.b16 %v155
      %v558 = vunpack.c.h.b16 %v155
      %v559 = vunpack.c.l.b16 %v156
      %v560 = vunpack.c.h.b16 %v156
      %v561 = vunpack.c.l.b16 %v157
      %v562 = vunpack.c.h.b16 %v157
      %v563 = vunpack.c.l.b16 %v158
      %v564 = vunpack.c.h.b16 %v158
      %v565 = vunpack.c.l.b16 %v159
      %v566 = vunpack.c.h.b16 %v159
      %v567 = vunpack.c.l.b16 %v160
      %v568 = vunpack.c.h.b16 %v160
      %v569 = vunpack.c.l.b16 %v161
      %v570 = vunpack.c.h.b16 %v161
      %v571 = vunpack.c.l.b16 %v162
      %v572 = vunpack.c.h.b16 %v162
      %v573 = vunpack.c.l.b16 %v163
      %v574 = vunpack.c.h.b16 %v163
      %v575 = vunpack.c.l.b16 %v164
      %v576 = vunpack.c.h.b16 %v164
      %v577 = vunpack.c.l.b16 %v165
      %v578 = vunpack.c.h.b16 %v165
      %v579 = vunpack.c.l.b16 %v166
      %v580 = vunpack.c.h.b16 %v166
      %v581 = vunpack.c.l.b16 %v167
      %v582 = vunpack.c.h.b16 %v167
      %v583 = vunpack.c.l.b16 %v168
      %v584 = vunpack.c.h.b16 %v168
      %v585 = vunpack.c.l.b16 %v169
      %v586 = vunpack.c.h.b16 %v169
      %v587 = vunpack.c.l.b16 %v170
      %v588 = vunpack.c.h.b16 %v170
      %v589 = vunpack.c.l.b16 %v171
      %v590 = vunpack.c.h.b16 %v171
      %v591 = vunpack.c.l.b16 %v172
      %v592 = vunpack.c.h.b16 %v172
      %v593 = vunpack.c.l.b16 %v173
      %v594 = vunpack.c.h.b16 %v173
      %v595 = vunpack.c.l.b16 %v174
      %v596 = vunpack.c.h.b16 %v174
      %v597 = vunpack.c.l.b16 %v175
      %v598 = vunpack.c.h.b16 %v175
      %v599 = vunpack.c.l.b16 %v176
      %v600 = vunpack.c.h.b16 %v176
      %v601 = vunpack.c.l.b16 %v177
      %v602 = vunpack.c.h.b16 %v177
      %v603 = vunpack.c.l.b16 %v178
      %v604 = vunpack.c.h.b16 %v178
      %v605 = vunpack.c.l.b16 %v179
      %v606 = vunpack.c.h.b16 %v179
      %v607 = vunpack.c.l.b16 %v180
      %v608 = vunpack.c.h.b16 %v180
      %v609 = vunpack.c.l.b16 %v181
      %v610 = vunpack.c.h.b16 %v181
      %v611 = vunpack.c.l.b16 %v182
      %v612 = vunpack.c.h.b16 %v182
      %v613 = vunpack.c.l.b16 %v183
      %v614 = vunpack.c.h.b16 %v183
      %v615 = vunpack.c.l.b16 %v184
      %v616 = vunpack.c.h.b16 %v184
      %v617 = vunpack.c.l.b16 %v185
      %v618 = vunpack.c.h.b16 %v185
      %v619 = vunpack.c.l.b16 %v186
      %v620 = vunpack.c.h.b16 %v186
      %v621 = vunpack.c.l.b16 %v187
      %v622 = vunpack.c.h.b16 %v187
      %v623 = vunpack.c.l.b16 %v188
      %v624 = vunpack.c.h.b16 %v188
      %v625 = vunpack.c.l.b16 %v189
      %v626 = vunpack.c.h.b16 %v189
      %v627 = vunpack.c.l.b16 %v190
      %v628 = vunpack.c.h.b16 %v190
      %v629 = vunpack.c.l.b16 %v191
      %v630 = vunpack.c.h.b16 %v191
      %v631 = vunpack.c.l.b16 %v192
      %v632 = vunpack.c.h.b16 %v192
      %v633 = vunpack.c.l.b16 %v193
      %v634 = vunpack.c.h.b16 %v193
      %v635 = vunpack.c.l.b16 %v194
      %v636 = vunpack.c.h.b16 %v194
      %v637 = vunpack.c.l.b16 %v195
      %v638 = vunpack.c.h.b16 %v195
      %v639 = vunpack.c.l.b16 %v196
      %v640 = vunpack.c.h.b16 %v196
      %v641 = vunpack.c.l.b16 %v197
      %v642 = vunpack.c.h.b16 %v197
      %v643 = vunpack.c.l.b16 %v198
      %v644 = vunpack.c.h.b16 %v198
      %v645 = vunpack.c.l.b16 %v199
      %v646 = vunpack.c.h.b16 %v199
      %v647 = vunpack.c.l.b16 %v200
      %v648 = vunpack.c.h.b16 %v200
      %v649 = vunpack.c.l.b16 %v201
      %v650 = vunpack.c.h.b16 %v201
      %v651 = vunpack.c.l.b16 %v202
      %v652 = vunpack.c.h.b16 %v202
      %v653 = vunpack.c.l.b16 %v203
      %v654 = vunpack.c.h.b16 %v203
      %v655 = vunpack.c.l.b16 %v204
      %v656 = vunpack.c.h.b16 %v204
      %v657 = vunpack.c.l.b16 %v205
      %v658 = vunpack.c.h.b16 %v205
      %v659 = vunpack.c.l.b16 %v206
      %v660 = vunpack.c.h.b16 %v206
      %v661 = vunpack.c.l.b16 %v207
      %v662 = vunpack.c.h.b16 %v207
      %v663 = vunpack.c.l.b16 %v208
      %v664 = vunpack.c.h.b16 %v208
      %v665 = vunpack.c.l.b16 %v209
      %v666 = vunpack.c.h.b16 %v209
      %v667 = vunpack.c.l.b16 %v210
      %v668 = vunpack.c.h.b16 %v210
      %v669 = vunpack.c.l.b16 %v211
      %v670 = vunpack.c.h.b16 %v211
      %v671 = vunpack.c.l.b16 %v212
      %v672 = vunpack.c.h.b16 %v212
      %v673 = vunpack.c.l.b16 %v213
      %v674 = vunpack.c.h.b16 %v213
      %v675 = vunpack.c.l.b16 %v214
      %v676 = vunpack.c.h.b16 %v214
      %v677 = vunpack.c.l.b16 %v215
      %v678 = vunpack.c.h.b16 %v215
      %v679 = vunpack.c.l.b16 %v216
      %v680 = vunpack.c.h.b16 %v216
      %v681 = vunpack.c.l.b16 %v217
      %v682 = vunpack.c.h.b16 %v217
      %v683 = vunpack.c.l.b16 %v218
      %v684 = vunpack.c.h.b16 %v218
      %v685 = vunpack.c.l.b16 %v219
      %v686 = vunpack.c.h.b16 %v219
      %v687 = vunpack.c.l.b16 %v220
      %v688 = vunpack.c.h.b16 %v220
      %v689 = vunpack.c.l.b16 %v221
      %v690 = vunpack.c.h.b16 %v221
      %v691 = vunpack.c.l.b16 %v222
      %v692 = vunpack.c.h.b16 %v222
      %v693 = vunpack.c.l.b16 %v223
      %v694 = vunpack.c.h.b16 %v223
      %v695 = vunpack.c.l.b16 %v224
      %v696 = vunpack.c.h.b16 %v224
      %v697 = vunpack.c.l.b16 %v225
      %v698 = vunpack.c.h.b16 %v225
      %v699 = vunpack.c.l.b16 %v226
      %v700 = vunpack.c.h.b16 %v226
      %v701 = vunpack.c.l.b16 %v227
      %v702 = vunpack.c.h.b16 %v227
      %v703 = vunpack.c.l.b16 %v228
      %v704 = vunpack.c.h.b16 %v228
      %v705 = vunpack.c.l.b16 %v229
      %v706 = vunpack.c.h.b16 %v229
      %v707 = vunpack.c.l.b16 %v230
      %v708 = vunpack.c.h.b16 %v230
      %v709 = vunpack.c.l.b16 %v231
      %v710 = vunpack.c.h.b16 %v231
      %v711 = vunpack.c.l.b16 %v232
      %v712 = vunpack.c.h.b16 %v232
      %v713 = vunpack.c.l.b16 %v233
      %v714 = vunpack.c.h.b16 %v233
      %v715 = vunpack.c.l.b16 %v234
      %v716 = vunpack.c.h.b16 %v234
      %v717 = vunpack.c.l.b16 %v235
      %v718 = vunpack.c.h.b16 %v235
      %v719 = vunpack.c.l.b16 %v236
      %v720 = vunpack.c.h.b16 %v236
      %v721 = vunpack.c.l.b16 %v237
      %v722 = vunpack.c.h.b16 %v237
      %v723 = vunpack.c.l.b16 %v238
      %v724 = vunpack.c.h.b16 %v238
      %v725 = vunpack.c.l.b16 %v239
      %v726 = vunpack.c.h.b16 %v239
      %v727 = vunpack.c.l.b16 %v240
      %v728 = vunpack.c.h.b16 %v240
      %v729 = vunpack.c.l.b16 %v241
      %v730 = vunpack.c.h.b16 %v241
      %v731 = vunpack.c.l.b16 %v242
      %v732 = vunpack.c.h.b16 %v242
      %v733 = vunpack.c.l.b16 %v243
      %v734 = vunpack.c.h.b16 %v243
      %v735 = vunpack.c.l.b16 %v244
      %v736 = vunpack.c.h.b16 %v244
      %v737 = vunpack.c.l.b16 %v245
      %v738 = vunpack.c.h.b16 %v245
      %v739 = vunpack.c.l.b16 %v246
      %v740 = vunpack.c.h.b16 %v246
      %v741 = vunpack.c.l.b16 %v247
      %v742 = vunpack.c.h.b16 %v247
      %v743 = vunpack.c.l.b16 %v248
      %v744 = vunpack.c.h.b16 %v248
      %v745 = vunpack.c.l.b16 %v249
      %v746 = vunpack.c.h.b16 %v249
      %v747 = vpack.c.b16 %v507, %v491
      %v748 = vpack.c.b16 %v508, %v492
      %v749 = vpack.c.b16 %v509, %v493
      %v750 = vpack.c.b16 %v510, %v494
      %v751 = vpack.c.b16 %v511, %v495
      %v752 = vpack.c.b16 %v512, %v496
      %v753 = vpack.c.b16 %v513, %v497
      %v754 = vpack.c.b16 %v514, %v498
      %v755 = vpack.c.b16 %v515, %v499
      %v756 = vpack.c.b16 %v516, %v500
      %v757 = vpack.c.b16 %v517, %v501
      %v758 = vpack.c.b16 %v518, %v502
      %v759 = vpack.c.b16 %v519, %v503
      %v760 = vpack.c.b16 %v520, %v504
      %v761 = vpack.c.b16 %v521, %v505
      %v762 = vpack.c.b16 %v522, %v506
      %v763 = vpack.c.b16 %v539, %v523
      %v764 = vpack.c.b16 %v540, %v524
      %v765 = vpack.c.b16 %v541, %v525
      %v766 = vpack.c.b16 %v542, %v526
      %v767 = vpack.c.b16 %v543, %v527
      %v768 = vpack.c.b16 %v544, %v528
      %v769 = vpack.c.b16 %v545, %v529
      %v770 = vpack.c.b16 %v546, %v530
      %v771 = vpack.c.b16 %v547, %v531
      %v772 = vpack.c.b16 %v548, %v532
      %v773 = vpack.c.b16 %v549, %v533
      %v774 = vpack.c.b16 %v550, %v534
      %v775 = vpack.c.b16 %v551, %v535
      %v776 = vpack.c.b16 %v552, %v536
      %v777 = vpack.c.b16 %v553, %v537
      %v778 = vpack.c.b16 %v554, %v538
      %v779 = vpack.c.b16 %v571, %v555
      %v780 = vpack.c.b16 %v572, %v556
      %v781 = vpack.c.b16 %v573, %v557
      %v782 = vpack.c.b16 %v574, %v558
      %v783 = vpack.c.b16 %v575, %v559
      %v784 = vpack.c.b16 %v576, %v560
      %v785 = vpack.c.b16 %v577, %v561
      %v786 = vpack.c.b16 %v578, %v562
      %v787 = vpack.c.b16 %v579, %v563
      %v788 = vpack.c.b16 %v580, %v564
      %v789 = vpack.c.b16 %v581, %v565
      %v790 = vpack.c.b16 %v582, %v566
      %v791 = vpack.c.b16 %v583, %v567
      %v792 = vpack.c.b16 %v584, %v568
      %v793 = vpack.c.b16 %v585, %v569
      %v794 = vpack.c.b16 %v586, %v570
      %v795 = vpack.c.b16 %v603, %v587
      %v796 = vpack.c.b16 %v604, %v588
      %v797 = vpack.c.b16 %v605, %v589
      %v798 = vpack.c.b16 %v606, %v590
      %v799 = vpack.c.b16 %v607, %v591
      %v800 = vpack.c.b16 %v608, %v592
      %v801 = vpack.c.b16 %v609, %v593
      %v802 = vpack.c.b16 %v610, %v594
      %v803 = vpack.c.b16 %v611, %v595
      %v804 = vpack.c.b16 %v612, %v596
      %v805 = vpack.c.b16 %v613, %v597
      %v806 = vpack.c.b16 %v614, %v598
      %v807 = vpack.c.b16 %v615, %v599
      %v808 = vpack.c.b16 %v616, %v600
      %v809 = vpack.c.b16 %v617, %v601
      %v810 = vpack.c.b16 %v618, %v602
      %v811 = vpack.c.b16 %v635, %v619
      %v812 = vpack.c.b16 %v636, %v620
      %v813 = vpack.c.b16 %v637, %v621
      %v814 = vpack.c.b16 %v638, %v622
      %v815 = vpack.c.b16 %v639, %v623
      %v816 = vpack.c.b16 %v640, %v624
      %v817 = vpack.c.b16 %v641, %v625
      %v818 = vpack.c.b16 %v642, %v626
      %v819 = vpack.c.b16 %v643, %v627
      %v820 = vpack.c.b16 %v644, %v628
      %v821 = vpack.c.b16 %v645, %v629
      %v822 = vpack.c.b16 %v646, %v630
      %v823 = vpack.c.b16 %v647, %v631
      %v824 = vpack.c.b16 %v648, %v632
      %v825 = vpack.c.b16 %v649, %v633
      %v826 = vpack.c.b16 %v650, %v634
      %v827 = vpack.c.b16 %v667, %v651
      %v828 = vpack.c.b16 %v668, %v652
      %v829 = vpack.c.b16 %v669, %v653
      %v830 = vpack.c.b16 %v670, %v654
      %v831 = vpack.c.b16 %v671, %v655
      %v832 = vpack.c.b16 %v672, %v656
      %v833 = vpack.c.b16 %v673, %v657
      %v834 = vpack.c.b16 %v674, %v658
      %v835 = vpack.c.b16 %v675, %v659
      %v836 = vpack.c.b16 %v676, %v660
      %v837 = vpack.c.b16 %v677, %v661
      %v838 = vpack.c.b16 %v678, %v662
      %v839 = vpack.c.b16 %v679, %v663
      %v840 = vpack.c.b16 %v680, %v664
      %v841 = vpack.c.b16 %v681, %v665
      %v842 = vpack.c.b16 %v682, %v666
      %v843 = vpack.c.b16 %v699, %v683
      %v844 = vpack.c.b16 %v700, %v684
      %v845 = vpack.c.b16 %v701, %v685
      %v846 = vpack.c.b16 %v702, %v686
      %v847 = vpack.c.b16 %v703, %v687
      %v848 = vpack.c.b16 %v704, %v688
      %v849 = vpack.c.b16 %v705, %v689
      %v850 = vpack.c.b16 %v706, %v690
      %v851 = vpack.c.b16 %v707, %v691
      %v852 = vpack.c.b16 %v708, %v692
      %v853 = vpack.c.b16 %v709, %v693
      %v854 = vpack.c.b16 %v710, %v694
      %v855 = vpack.c.b16 %v711, %v695
      %v856 = vpack.c.b16 %v712, %v696
      %v857 = vpack.c.b16 %v713, %v697
      %v858 = vpack.c.b16 %v714, %v698
      %v859 = vpack.c.b16 %v731, %v715
      %v860 = vpack.c.b16 %v732, %v716
      %v861 = vpack.c.b16 %v733, %v717
      %v862 = vpack.c.b16 %v734, %v718
      %v863 = vpack.c.b16 %v735, %v719
      %v864 = vpack.c.b16 %v736, %v720
      %v865 = vpack.c.b16 %v737, %v721
      %v866 = vpack.c.b16 %v738, %v722
      %v867 = vpack.c.b16 %v739, %v723
      %v868 = vpack.c.b16 %v740, %v724
      %v869 = vpack.c.b16 %v741, %v725
      %v870 = vpack.c.b16 %v742, %v726
      %v871 = vpack.c.b16 %v743, %v727
      %v872 = vpack.c.b16 %v744, %v728
      %v873 = vpack.c.b16 %v745, %v729
      %v874 = vpack.c.b16 %v746, %v730
      %1003 = vmatprep.subr.bf16.mxu0 %v748
      %1004 = vmatpush1.bf16.msra.mxu0 %v747
      %1005 = vmatprep.subr.bf16.mxu0 %v764
      %1006 = vmatpush1.bf16.msra.mxu0 %v763
      %1007 = vmatprep.subr.bf16.mxu0 %v780
      %1008 = vmatpush1.bf16.msra.mxu0 %v779
      %1009 = vmatprep.subr.bf16.mxu0 %v796
      %1010 = vmatpush1.bf16.msra.mxu0 %v795
      %1011 = vmatprep.subr.bf16.mxu0 %v812
      %1012 = vmatpush1.bf16.msra.mxu0 %v811
      %1013 = vmatprep.subr.bf16.mxu0 %v828
      %1014 = vmatpush1.bf16.msra.mxu0 %v827
      %1015 = vmatprep.subr.bf16.mxu0 %v844
      %1016 = vmatpush1.bf16.msra.mxu0 %v843
      %1017 = vmatprep.subr.bf16.mxu0 %v860
      %1018 = vmatpush1.bf16.msra.mxu0 %v859
      %1019 = vmatprep.subr.bf16.mxu0 0
      %1020 = vmatpush1.bf16.msra.mxu0 0
      %1021 = vmatprep.subr.bf16.mxu0 0
      %1022 = vmatpush1.bf16.msra.mxu0 0
      %1023 = vmatprep.subr.bf16.mxu0 0
      %1024 = vmatpush1.bf16.msra.mxu0 0
      %1025 = vmatprep.subr.bf16.mxu0 0
      %1026 = vmatpush1.bf16.msra.mxu0 0
      %1027 = vmatprep.subr.bf16.mxu0 0
      %1028 = vmatpush1.bf16.msra.mxu0 0
      %1029 = vmatprep.subr.bf16.mxu0 0
      %1030 = vmatpush1.bf16.msra.mxu0 0
      %1031 = vmatprep.subr.bf16.mxu0 0
      %1032 = vmatpush1.bf16.msra.mxu0 0
      %1033 = vmatprep.subr.bf16.mxu0 0
      %1034 = vmatpush1.bf16.msra.mxu0 0
      %1035 = vmatprep.mubr.bf16.mxu0 0
      %1036 = vmatmul.mubr.bf16.gmra.mrb[0].mxu0 %v361
      %v1037 = vpop.f32.mrb[0].mxu0
      %v1038 = vadd.f32 %v257, %v1037
      %v1039 = vpop.f32.mrb[0].mxu0
      %v1040 = vadd.f32 %v261, %v1039
      %v1041 = vpop.f32.mrb[0].mxu0
      %v1042 = vpop.f32.mrb[0].mxu0
      %1043 = vdwg.mxu0
      %1044 = vmatprep.subr.bf16.mxu0 %v750
      %1045 = vmatpush1.bf16.msra.mxu0 %v749
      %1046 = vmatprep.subr.bf16.mxu0 %v766
      %1047 = vmatpush1.bf16.msra.mxu0 %v765
      %1048 = vmatprep.subr.bf16.mxu0 %v782
      %1049 = vmatpush1.bf16.msra.mxu0 %v781
      %1050 = vmatprep.subr.bf16.mxu0 %v798
      %1051 = vmatpush1.bf16.msra.mxu0 %v797
      %1052 = vmatprep.subr.bf16.mxu0 %v814
      %1053 = vmatpush1.bf16.msra.mxu0 %v813
      %1054 = vmatprep.subr.bf16.mxu0 %v830
      %1055 = vmatpush1.bf16.msra.mxu0 %v829
      %1056 = vmatprep.subr.bf16.mxu0 %v846
      %1057 = vmatpush1.bf16.msra.mxu0 %v845
      %1058 = vmatprep.subr.bf16.mxu0 %v862
      %1059 = vmatpush1.bf16.msra.mxu0 %v861
      %1060 = vmatprep.subr.bf16.mxu0 0
      %1061 = vmatpush1.bf16.msra.mxu0 0
      %1062 = vmatprep.subr.bf16.mxu0 0
      %1063 = vmatpush1.bf16.msra.mxu0 0
      %1064 = vmatprep.subr.bf16.mxu0 0
      %1065 = vmatpush1.bf16.msra.mxu0 0
      %1066 = vmatprep.subr.bf16.mxu0 0
      %1067 = vmatpush1.bf16.msra.mxu0 0
      %1068 = vmatprep.subr.bf16.mxu0 0
      %1069 = vmatpush1.bf16.msra.mxu0 0
      %1070 = vmatprep.subr.bf16.mxu0 0
      %1071 = vmatpush1.bf16.msra.mxu0 0
      %1072 = vmatprep.subr.bf16.mxu0 0
      %1073 = vmatpush1.bf16.msra.mxu0 0
      %1074 = vmatprep.subr.bf16.mxu0 0
      %1075 = vmatpush1.bf16.msra.mxu0 0
      %1076 = vmatprep.mubr.bf16.mxu0 0
      %1077 = vmatmul.mubr.bf16.gmra.mrb[0].mxu0 %v361
      %v1078 = vpop.f32.mrb[0].mxu0
      %v1079 = vadd.f32 %v265, %v1078
      %v1080 = vpop.f32.mrb[0].mxu0
      %v1081 = vadd.f32 %v269, %v1080
      %v1082 = vpop.f32.mrb[0].mxu0
      %v1083 = vpop.f32.mrb[0].mxu0
      %1084 = vdwg.mxu0
      %1085 = vmatprep.subr.bf16.mxu0 %v752
      %1086 = vmatpush1.bf16.msra.mxu0 %v751
      %1087 = vmatprep.subr.bf16.mxu0 %v768
      %1088 = vmatpush1.bf16.msra.mxu0 %v767
      %1089 = vmatprep.subr.bf16.mxu0 %v784
      %1090 = vmatpush1.bf16.msra.mxu0 %v783
      %1091 = vmatprep.subr.bf16.mxu0 %v800
      %1092 = vmatpush1.bf16.msra.mxu0 %v799
      %1093 = vmatprep.subr.bf16.mxu0 %v816
      %1094 = vmatpush1.bf16.msra.mxu0 %v815
      %1095 = vmatprep.subr.bf16.mxu0 %v832
      %1096 = vmatpush1.bf16.msra.mxu0 %v831
      %1097 = vmatprep.subr.bf16.mxu0 %v848
      %1098 = vmatpush1.bf16.msra.mxu0 %v847
      %1099 = vmatprep.subr.bf16.mxu0 %v864
      %1100 = vmatpush1.bf16.msra.mxu0 %v863
      %1101 = vmatprep.subr.bf16.mxu0 0
      %1102 = vmatpush1.bf16.msra.mxu0 0
      %1103 = vmatprep.subr.bf16.mxu0 0
      %1104 = vmatpush1.bf16.msra.mxu0 0
      %1105 = vmatprep.subr.bf16.mxu0 0
      %1106 = vmatpush1.bf16.msra.mxu0 0
      %1107 = vmatprep.subr.bf16.mxu0 0
      %1108 = vmatpush1.bf16.msra.mxu0 0
      %1109 = vmatprep.subr.bf16.mxu0 0
      %1110 = vmatpush1.bf16.msra.mxu0 0
      %1111 = vmatprep.subr.bf16.mxu0 0
      %1112 = vmatpush1.bf16.msra.mxu0 0
      %1113 = vmatprep.subr.bf16.mxu0 0
      %1114 = vmatpush1.bf16.msra.mxu0 0
      %1115 = vmatprep.subr.bf16.mxu0 0
      %1116 = vmatpush1.bf16.msra.mxu0 0
      %1117 = vmatprep.mubr.bf16.mxu0 0
      %1118 = vmatmul.mubr.bf16.gmra.mrb[0].mxu0 %v361
      %v1119 = vpop.f32.mrb[0].mxu0
      %v1120 = vadd.f32 %v273, %v1119
      %v1121 = vpop.f32.mrb[0].mxu0
      %v1122 = vadd.f32 %v277, %v1121
      %v1123 = vpop.f32.mrb[0].mxu0
      %v1124 = vpop.f32.mrb[0].mxu0
      %1125 = vdwg.mxu0
      %1126 = vmatprep.subr.bf16.mxu0 %v754
      %1127 = vmatpush1.bf16.msra.mxu0 %v753
      %1128 = vmatprep.subr.bf16.mxu0 %v770
      %1129 = vmatpush1.bf16.msra.mxu0 %v769
      %1130 = vmatprep.subr.bf16.mxu0 %v786
      %1131 = vmatpush1.bf16.msra.mxu0 %v785
      %1132 = vmatprep.subr.bf16.mxu0 %v802
      %1133 = vmatpush1.bf16.msra.mxu0 %v801
      %1134 = vmatprep.subr.bf16.mxu0 %v818
      %1135 = vmatpush1.bf16.msra.mxu0 %v817
      %1136 = vmatprep.subr.bf16.mxu0 %v834
      %1137 = vmatpush1.bf16.msra.mxu0 %v833
      %1138 = vmatprep.subr.bf16.mxu0 %v850
      %1139 = vmatpush1.bf16.msra.mxu0 %v849
      %1140 = vmatprep.subr.bf16.mxu0 %v866
      %1141 = vmatpush1.bf16.msra.mxu0 %v865
      %1142 = vmatprep.subr.bf16.mxu0 0
      %1143 = vmatpush1.bf16.msra.mxu0 0
      %1144 = vmatprep.subr.bf16.mxu0 0
      %1145 = vmatpush1.bf16.msra.mxu0 0
      %1146 = vmatprep.subr.bf16.mxu0 0
      %1147 = vmatpush1.bf16.msra.mxu0 0
      %1148 = vmatprep.subr.bf16.mxu0 0
      %1149 = vmatpush1.bf16.msra.mxu0 0
      %1150 = vmatprep.subr.bf16.mxu0 0
      %1151 = vmatpush1.bf16.msra.mxu0 0
      %1152 = vmatprep.subr.bf16.mxu0 0
      %1153 = vmatpush1.bf16.msra.mxu0 0
      %1154 = vmatprep.subr.bf16.mxu0 0
      %1155 = vmatpush1.bf16.msra.mxu0 0
      %1156 = vmatprep.subr.bf16.mxu0 0
      %1157 = vmatpush1.bf16.msra.mxu0 0
      %1158 = vmatprep.mubr.bf16.mxu0 0
      %1159 = vmatmul.mubr.bf16.gmra.mrb[0].mxu0 %v361
      %v1160 = vpop.f32.mrb[0].mxu0
      %v1161 = vadd.f32 %v281, %v1160
      %v1162 = vpop.f32.mrb[0].mxu0
      %v1163 = vadd.f32 %v285, %v1162
      %v1164 = vpop.f32.mrb[0].mxu0
      %v1165 = vpop.f32.mrb[0].mxu0
      %1166 = vdwg.mxu0
      %1167 = vmatprep.subr.bf16.mxu0 %v756
      %1168 = vmatpush1.bf16.msra.mxu0 %v755
      %1169 = vmatprep.subr.bf16.mxu0 %v772
      %1170 = vmatpush1.bf16.msra.mxu0 %v771
      %1171 = vmatprep.subr.bf16.mxu0 %v788
      %1172 = vmatpush1.bf16.msra.mxu0 %v787
      %1173 = vmatprep.subr.bf16.mxu0 %v804
      %1174 = vmatpush1.bf16.msra.mxu0 %v803
      %1175 = vmatprep.subr.bf16.mxu0 %v820
      %1176 = vmatpush1.bf16.msra.mxu0 %v819
      %1177 = vmatprep.subr.bf16.mxu0 %v836
      %1178 = vmatpush1.bf16.msra.mxu0 %v835
      %1179 = vmatprep.subr.bf16.mxu0 %v852
      %1180 = vmatpush1.bf16.msra.mxu0 %v851
      %1181 = vmatprep.subr.bf16.mxu0 %v868
      %1182 = vmatpush1.bf16.msra.mxu0 %v867
      %1183 = vmatprep.subr.bf16.mxu0 0
      %1184 = vmatpush1.bf16.msra.mxu0 0
      %1185 = vmatprep.subr.bf16.mxu0 0
      %1186 = vmatpush1.bf16.msra.mxu0 0
      %1187 = vmatprep.subr.bf16.mxu0 0
      %1188 = vmatpush1.bf16.msra.mxu0 0
      %1189 = vmatprep.subr.bf16.mxu0 0
      %1190 = vmatpush1.bf16.msra.mxu0 0
      %1191 = vmatprep.subr.bf16.mxu0 0
      %1192 = vmatpush1.bf16.msra.mxu0 0
      %1193 = vmatprep.subr.bf16.mxu0 0
      %1194 = vmatpush1.bf16.msra.mxu0 0
      %1195 = vmatprep.subr.bf16.mxu0 0
      %1196 = vmatpush1.bf16.msra.mxu0 0
      %1197 = vmatprep.subr.bf16.mxu0 0
      %1198 = vmatpush1.bf16.msra.mxu0 0
      %1199 = vmatprep.mubr.bf16.mxu0 0
      %1200 = vmatmul.mubr.bf16.gmra.mrb[0].mxu0 %v361
      %v1201 = vpop.f32.mrb[0].mxu0
      %v1202 = vadd.f32 %v289, %v1201
      %v1203 = vpop.f32.mrb[0].mxu0
      %v1204 = vadd.f32 %v293, %v1203
      %v1205 = vpop.f32.mrb[0].mxu0
      %v1206 = vpop.f32.mrb[0].mxu0
      %1207 = vdwg.mxu0
      %1208 = vmatprep.subr.bf16.mxu0 %v758
      %1209 = vmatpush1.bf16.msra.mxu0 %v757
      %1210 = vmatprep.subr.bf16.mxu0 %v774
      %1211 = vmatpush1.bf16.msra.mxu0 %v773
      %1212 = vmatprep.subr.bf16.mxu0 %v790
      %1213 = vmatpush1.bf16.msra.mxu0 %v789
      %1214 = vmatprep.subr.bf16.mxu0 %v806
      %1215 = vmatpush1.bf16.msra.mxu0 %v805
      %1216 = vmatprep.subr.bf16.mxu0 %v822
      %1217 = vmatpush1.bf16.msra.mxu0 %v821
      %1218 = vmatprep.subr.bf16.mxu0 %v838
      %1219 = vmatpush1.bf16.msra.mxu0 %v837
      %1220 = vmatprep.subr.bf16.mxu0 %v854
      %1221 = vmatpush1.bf16.msra.mxu0 %v853
      %1222 = vmatprep.subr.bf16.mxu0 %v870
      %1223 = vmatpush1.bf16.msra.mxu0 %v869
      %1224 = vmatprep.subr.bf16.mxu0 0
      %1225 = vmatpush1.bf16.msra.mxu0 0
      %1226 = vmatprep.subr.bf16.mxu0 0
      %1227 = vmatpush1.bf16.msra.mxu0 0
      %1228 = vmatprep.subr.bf16.mxu0 0
      %1229 = vmatpush1.bf16.msra.mxu0 0
      %1230 = vmatprep.subr.bf16.mxu0 0
      %1231 = vmatpush1.bf16.msra.mxu0 0
      %1232 = vmatprep.subr.bf16.mxu0 0
      %1233 = vmatpush1.bf16.msra.mxu0 0
      %1234 = vmatprep.subr.bf16.mxu0 0
      %1235 = vmatpush1.bf16.msra.mxu0 0
      %1236 = vmatprep.subr.bf16.mxu0 0
      %1237 = vmatpush1.bf16.msra.mxu0 0
      %1238 = vmatprep.subr.bf16.mxu0 0
      %1239 = vmatpush1.bf16.msra.mxu0 0
      %1240 = vmatprep.mubr.bf16.mxu0 0
      %1241 = vmatmul.mubr.bf16.gmra.mrb[0].mxu0 %v361
      %v1242 = vpop.f32.mrb[0].mxu0
      %v1243 = vadd.f32 %v297, %v1242
      %v1244 = vpop.f32.mrb[0].mxu0
      %v1245 = vadd.f32 %v301, %v1244
      %v1246 = vpop.f32.mrb[0].mxu0
      %v1247 = vpop.f32.mrb[0].mxu0
      %1248 = vdwg.mxu0
      %1249 = vmatprep.subr.bf16.mxu0 %v760
      %1250 = vmatpush1.bf16.msra.mxu0 %v759
      %1251 = vmatprep.subr.bf16.mxu0 %v776
      %1252 = vmatpush1.bf16.msra.mxu0 %v775
      %1253 = vmatprep.subr.bf16.mxu0 %v792
      %1254 = vmatpush1.bf16.msra.mxu0 %v791
      %1255 = vmatprep.subr.bf16.mxu0 %v808
      %1256 = vmatpush1.bf16.msra.mxu0 %v807
      %1257 = vmatprep.subr.bf16.mxu0 %v824
      %1258 = vmatpush1.bf16.msra.mxu0 %v823
      %1259 = vmatprep.subr.bf16.mxu0 %v840
      %1260 = vmatpush1.bf16.msra.mxu0 %v839
      %1261 = vmatprep.subr.bf16.mxu0 %v856
      %1262 = vmatpush1.bf16.msra.mxu0 %v855
      %1263 = vmatprep.subr.bf16.mxu0 %v872
      %1264 = vmatpush1.bf16.msra.mxu0 %v871
      %1265 = vmatprep.subr.bf16.mxu0 0
      %1266 = vmatpush1.bf16.msra.mxu0 0
      %1267 = vmatprep.subr.bf16.mxu0 0
      %1268 = vmatpush1.bf16.msra.mxu0 0
      %1269 = vmatprep.subr.bf16.mxu0 0
      %1270 = vmatpush1.bf16.msra.mxu0 0
      %1271 = vmatprep.subr.bf16.mxu0 0
      %1272 = vmatpush1.bf16.msra.mxu0 0
      %1273 = vmatprep.subr.bf16.mxu0 0
      %1274 = vmatpush1.bf16.msra.mxu0 0
      %1275 = vmatprep.subr.bf16.mxu0 0
      %1276 = vmatpush1.bf16.msra.mxu0 0
      %1277 = vmatprep.subr.bf16.mxu0 0
      %1278 = vmatpush1.bf16.msra.mxu0 0
      %1279 = vmatprep.subr.bf16.mxu0 0
      %1280 = vmatpush1.bf16.msra.mxu0 0
      %1281 = vmatprep.mubr.bf16.mxu0 0
      %1282 = vmatmul.mubr.bf16.gmra.mrb[0].mxu0 %v361
      %v1283 = vpop.f32.mrb[0].mxu0
      %v1284 = vadd.f32 %v305, %v1283
      %v1285 = vpop.f32.mrb[0].mxu0
      %v1286 = vadd.f32 %v309, %v1285
      %v1287 = vpop.f32.mrb[0].mxu0
      %v1288 = vpop.f32.mrb[0].mxu0
      %1289 = vdwg.mxu0
      %1290 = vmatprep.subr.bf16.mxu0 %v762
      %1291 = vmatpush1.bf16.msra.mxu0 %v761
      %1292 = vmatprep.subr.bf16.mxu0 %v778
      %1293 = vmatpush1.bf16.msra.mxu0 %v777
      %1294 = vmatprep.subr.bf16.mxu0 %v794
      %1295 = vmatpush1.bf16.msra.mxu0 %v793
      %1296 = vmatprep.subr.bf16.mxu0 %v810
      %1297 = vmatpush1.bf16.msra.mxu0 %v809
      %1298 = vmatprep.subr.bf16.mxu0 %v826
      %1299 = vmatpush1.bf16.msra.mxu0 %v825
      %1300 = vmatprep.subr.bf16.mxu0 %v842
      %1301 = vmatpush1.bf16.msra.mxu0 %v841
      %1302 = vmatprep.subr.bf16.mxu0 %v858
      %1303 = vmatpush1.bf16.msra.mxu0 %v857
      %1304 = vmatprep.subr.bf16.mxu0 %v874
      %1305 = vmatpush1.bf16.msra.mxu0 %v873
      %1306 = vmatprep.subr.bf16.mxu0 0
      %1307 = vmatpush1.bf16.msra.mxu0 0
      %1308 = vmatprep.subr.bf16.mxu0 0
      %1309 = vmatpush1.bf16.msra.mxu0 0
      %1310 = vmatprep.subr.bf16.mxu0 0
      %1311 = vmatpush1.bf16.msra.mxu0 0
      %1312 = vmatprep.subr.bf16.mxu0 0
      %1313 = vmatpush1.bf16.msra.mxu0 0
      %1314 = vmatprep.subr.bf16.mxu0 0
      %1315 = vmatpush1.bf16.msra.mxu0 0
      %1316 = vmatprep.subr.bf16.mxu0 0
      %1317 = vmatpush1.bf16.msra.mxu0 0
      %1318 = vmatprep.subr.bf16.mxu0 0
      %1319 = vmatpush1.bf16.msra.mxu0 0
      %1320 = vmatprep.subr.bf16.mxu0 0
      %1321 = vmatpush1.bf16.msra.mxu0 0
      %1322 = vmatprep.mubr.bf16.mxu0 0
      %1323 = vmatmul.mubr.bf16.gmra.mrb[0].mxu0 %v361
      %v1324 = vpop.f32.mrb[0].mxu0
      %v1325 = vadd.f32 %v313, %v1324
      %v1326 = vpop.f32.mrb[0].mxu0
      %v1327 = vadd.f32 %v317, %v1326
      %v1328 = vpop.f32.mrb[0].mxu0
      %v1329 = vpop.f32.mrb[0].mxu0
      %1330 = vdwg.mxu0
      %v1331 = vpack.c.bf16 %v1038, %v1038
      %v1332 = vpack.c.bf16 %v1040, %v1040
      %v1333 = vpack.c.bf16 %v1079, %v1079
      %v1334 = vpack.c.bf16 %v1081, %v1081
      %v1335 = vpack.c.bf16 %v1120, %v1120
      %v1336 = vpack.c.bf16 %v1122, %v1122
      %v1337 = vpack.c.bf16 %v1161, %v1161
      %v1338 = vpack.c.bf16 %v1163, %v1163
      %v1339 = vpack.c.bf16 %v1202, %v1202
      %v1340 = vpack.c.bf16 %v1204, %v1204
      %v1341 = vpack.c.bf16 %v1243, %v1243
      %v1342 = vpack.c.bf16 %v1245, %v1245
      %v1343 = vpack.c.bf16 %v1284, %v1284
      %v1344 = vpack.c.bf16 %v1286, %v1286
      %v1345 = vpack.c.bf16 %v1325, %v1325
      %v1346 = vpack.c.bf16 %v1327, %v1327
      %v1363 = vunpack.c.l.b16 %v1331
      %v1364 = vunpack.c.l.b16 %v1332
      %v1365 = vunpack.c.l.b16 %v1333
      %v1366 = vunpack.c.l.b16 %v1334
      %v1367 = vunpack.c.l.b16 %v1335
      %v1368 = vunpack.c.l.b16 %v1336
      %v1369 = vunpack.c.l.b16 %v1337
      %v1370 = vunpack.c.l.b16 %v1338
      %v1371 = vunpack.c.l.b16 %v1339
      %v1372 = vunpack.c.l.b16 %v1340
      %v1373 = vunpack.c.l.b16 %v1341
      %v1374 = vunpack.c.l.b16 %v1342
      %v1375 = vunpack.c.l.b16 %v1343
      %v1376 = vunpack.c.l.b16 %v1344
      %v1377 = vunpack.c.l.b16 %v1345
      %v1378 = vunpack.c.l.b16 %v1346
      %v1379 = vpack.c.b16 %v1364, %v1363
      %v1380 = vpack.c.b16 %v1366, %v1365
      %v1381 = vpack.c.b16 %v1368, %v1367
      %v1382 = vpack.c.b16 %v1370, %v1369
      %v1383 = vpack.c.b16 %v1372, %v1371
      %v1384 = vpack.c.b16 %v1374, %v1373
      %v1385 = vpack.c.b16 %v1376, %v1375
      %v1386 = vpack.c.b16 %v1378, %v1377
      %1395 = vst [vmem:[#allocation3] sm:$0xff] %v1379
      %1396 = vst [vmem:[#allocation3 + $0x8] sm:$0xff] %v1380
      %1397 = vst [vmem:[#allocation3 + $0x10] sm:$0xff] %v1381
      %1398 = vst [vmem:[#allocation3 + $0x18] sm:$0xff] %v1382
      %1399 = vst [vmem:[#allocation3 + $0x20] sm:$0xff] %v1383
      %1400 = vst [vmem:[#allocation3 + $0x28] sm:$0xff] %v1384
      %1401 = vst [vmem:[#allocation3 + $0x30] sm:$0xff] %v1385
      %1402 = vst [vmem:[#allocation3 + $0x38] sm:$0xff] %v1386
    $region65: #{tpu_custom_call.1} parent=1 // pred_fallthru
      _
    %v1403 = vld [vmem:[#allocation4] sm:$0xff]
    %v1404 = vld [vmem:[#allocation4 + $0x8] sm:$0xff]
    %v1405 = vld [vmem:[#allocation4 + $0x10] sm:$0xff]
    %v1406 = vld [vmem:[#allocation4 + $0x18] sm:$0xff]
    %v1407 = vld [vmem:[#allocation4 + $0x20] sm:$0xff]
    %v1408 = vld [vmem:[#allocation4 + $0x28] sm:$0xff]
    %v1409 = vld [vmem:[#allocation4 + $0x30] sm:$0xff]
    %v1410 = vld [vmem:[#allocation4 + $0x38] sm:$0xff]
    %v1411 = vlaneseq
    %v1412 = vand.u32 %v1411, 127
    %v1413 = vadd.s32 %v1412, 128
    %v1414 = vadd.s32 %v1412, 256
    %v1415 = vadd.s32 %v1412, 384
    %v1416 = vadd.s32 %v1412, 512
    %v1417 = vadd.s32 %v1412, 640
    %v1418 = vadd.s32 %v1412, 768
    %v1419 = vadd.s32 %v1412, 896
    %s1420 = smul.u32 0, 1024
    %v1421 = vstv %s1420
    %v1422 = vadd.s32 %v1412, %v1421
    %v1423 = vadd.s32 %v1413, %v1421
    %v1424 = vadd.s32 %v1414, %v1421
    %v1425 = vadd.s32 %v1415, %v1421
    %v1426 = vadd.s32 %v1416, %v1421
    %v1427 = vadd.s32 %v1417, %v1421
    %v1428 = vadd.s32 %v1418, %v1421
    %v1429 = vadd.s32 %v1419, %v1421
    %vm1430 = vcmp.ge.s32.totalorder %v1422, 0
    %vm1431 = vcmp.ge.s32.totalorder %v1423, 0
    %vm1432 = vcmp.ge.s32.totalorder %v1424, 0
    %vm1433 = vcmp.ge.s32.totalorder %v1425, 0
    %vm1434 = vcmp.ge.s32.totalorder %v1426, 0
    %vm1435 = vcmp.ge.s32.totalorder %v1427, 0
    %vm1436 = vcmp.ge.s32.totalorder %v1428, 0
    %vm1437 = vcmp.ge.s32.totalorder %v1429, 0
    %vm1438 = vcmp.lt.s32.totalorder %v1422, 256
    %vm1439 = vcmp.lt.s32.totalorder %v1423, 256
    %vm1440 = vcmp.lt.s32.totalorder %v1424, 256
    %vm1441 = vcmp.lt.s32.totalorder %v1425, 256
    %vm1442 = vcmp.lt.s32.totalorder %v1426, 256
    %vm1443 = vcmp.lt.s32.totalorder %v1427, 256
    %vm1444 = vcmp.lt.s32.totalorder %v1428, 256
    %vm1445 = vcmp.lt.s32.totalorder %v1429, 256
    %vm1446 = vmand %vm1430, %vm1438
    %vm1447 = vmand %vm1431, %vm1439
    %vm1448 = vmand %vm1432, %vm1440
    %vm1449 = vmand %vm1433, %vm1441
    %vm1450 = vmand %vm1434, %vm1442
    %vm1451 = vmand %vm1435, %vm1443
    %vm1452 = vmand %vm1436, %vm1444
    %vm1453 = vmand %vm1437, %vm1445
    %v1454 = vsel %vm1446, 1, 0
    %v1455 = vsel %vm1447, 1, 0
    %v1456 = vsel %vm1448, 1, 0
    %v1457 = vsel %vm1449, 1, 0
    %v1458 = vsel %vm1450, 1, 0
    %v1459 = vsel %vm1451, 1, 0
    %v1460 = vsel %vm1452, 1, 0
    %v1461 = vsel %vm1453, 1, 0
    %vm1462 = vcmp.eq.s32.totalorder %v1454, 1
    %vm1463 = vcmp.eq.s32.totalorder %v1455, 1
    %vm1464 = vcmp.eq.s32.totalorder %v1456, 1
    %vm1465 = vcmp.eq.s32.totalorder %v1457, 1
    %vm1466 = vcmp.eq.s32.totalorder %v1458, 1
    %vm1467 = vcmp.eq.s32.totalorder %v1459, 1
    %vm1468 = vcmp.eq.s32.totalorder %v1460, 1
    %vm1469 = vcmp.eq.s32.totalorder %v1461, 1
    %v1478 = vcombine.low %v1403, %v1405
    %v1479 = vcombine.high %v1403, %v1405
    %v1480 = vcombine.low %v1407, %v1409
    %v1481 = vcombine.high %v1407, %v1409
    %v1483 = vunpack.c.l.s4 1983009808
    %v1484 = vunpack.c.0.s8 %v1483
    %v1485 = vlaneseq
    %v1486 = vshrl.u32 %v1485, 7
    %v1487 = vsub.s32 %v1484, %v1486
    %v1488 = vrot.slane %v1478, %v1487
    %v1490 = vunpack.c.l.s4 1983009808
    %v1491 = vunpack.c.0.s8 %v1490
    %v1492 = vlaneseq
    %v1493 = vshrl.u32 %v1492, 7
    %v1494 = vsub.s32 %v1491, %v1493
    %v1495 = vrot.slane %v1479, %v1494
    %v1497 = vunpack.c.l.s4 1983009808
    %v1498 = vunpack.c.0.s8 %v1497
    %v1499 = vlaneseq
    %v1500 = vshrl.u32 %v1499, 7
    %v1501 = vsub.s32 %v1498, %v1500
    %v1502 = vrot.slane %v1480, %v1501
    %v1504 = vunpack.c.l.s4 1983009808
    %v1505 = vunpack.c.0.s8 %v1504
    %v1506 = vlaneseq
    %v1507 = vshrl.u32 %v1506, 7
    %v1508 = vsub.s32 %v1505, %v1507
    %v1509 = vrot.slane %v1481, %v1508
    %v1510 = vcombine.low %v1488, %v1502
    %v1511 = vcombine.high %v1488, %v1502
    %v1512 = vcombine.low %v1495, %v1509
    %v1513 = vcombine.high %v1495, %v1509
    %v1514 = vcombine.low %v1404, %v1406
    %v1515 = vcombine.high %v1404, %v1406
    %v1516 = vcombine.low %v1408, %v1410
    %v1517 = vcombine.high %v1408, %v1410
    %v1519 = vunpack.c.l.s4 1983009808
    %v1520 = vunpack.c.0.s8 %v1519
    %v1521 = vlaneseq
    %v1522 = vshrl.u32 %v1521, 7
    %v1523 = vsub.s32 %v1520, %v1522
    %v1524 = vrot.slane %v1514, %v1523
    %v1526 = vunpack.c.l.s4 1983009808
    %v1527 = vunpack.c.0.s8 %v1526
    %v1528 = vlaneseq
    %v1529 = vshrl.u32 %v1528, 7
    %v1530 = vsub.s32 %v1527, %v1529
    %v1531 = vrot.slane %v1515, %v1530
    %v1533 = vunpack.c.l.s4 1983009808
    %v1534 = vunpack.c.0.s8 %v1533
    %v1535 = vlaneseq
    %v1536 = vshrl.u32 %v1535, 7
    %v1537 = vsub.s32 %v1534, %v1536
    %v1538 = vrot.slane %v1516, %v1537
    %v1540 = vunpack.c.l.s4 1983009808
    %v1541 = vunpack.c.0.s8 %v1540
    %v1542 = vlaneseq
    %v1543 = vshrl.u32 %v1542, 7
    %v1544 = vsub.s32 %v1541, %v1543
    %v1545 = vrot.slane %v1517, %v1544
    %v1546 = vcombine.low %v1524, %v1538
    %v1547 = vcombine.high %v1524, %v1538
    %v1548 = vcombine.low %v1531, %v1545
    %v1549 = vcombine.high %v1531, %v1545
    %v1558 = vsel %vm1462, %v1510, 0.0
    %v1559 = vsel %vm1463, %v1511, 0.0
    %v1560 = vsel %vm1464, %v1512, 0.0
    %v1561 = vsel %vm1465, %v1513, 0.0
    %v1562 = vsel %vm1466, %v1546, 0.0
    %v1563 = vsel %vm1467, %v1547, 0.0
    %v1564 = vsel %vm1468, %v1548, 0.0
    %v1565 = vsel %vm1469, %v1549, 0.0
    %v1566 = vadd.f32 %v1558, %v1559
    %v1567 = vadd.f32 %v1566, %v1560
    %v1568 = vadd.f32 %v1567, %v1561
    %v1569 = vadd.f32 %v1568, %v1562
    %v1570 = vadd.f32 %v1569, %v1563
    %v1571 = vadd.f32 %v1570, %v1564
    %v1572 = vadd.f32 %v1571, %v1565
    %1573 = vadd.xlane.f32.xlu0 %v1572
    %v1574 = vpop.xlane.xlu0 %1573
    %vm1575 = vcmp.eq.s32.totalorder %v1412, 0
    %v1576 = vsel %vm1575, 1, 0
    %v1577 = vcvt.s32.f32 %v1576
    %v1578 = vmul.f32 %v1574, %v1577
    %v1579 = vadd.f32 %v1578, 0.0
    %vm1580 = vcmp.ge.s32.totalorder %v1422, 256
    %vm1581 = vcmp.ge.s32.totalorder %v1423, 256
    %vm1582 = vcmp.ge.s32.totalorder %v1424, 256
    %vm1583 = vcmp.ge.s32.totalorder %v1425, 256
    %vm1584 = vcmp.ge.s32.totalorder %v1426, 256
    %vm1585 = vcmp.ge.s32.totalorder %v1427, 256
    %vm1586 = vcmp.ge.s32.totalorder %v1428, 256
    %vm1587 = vcmp.ge.s32.totalorder %v1429, 256
    %vm1588 = vcmp.lt.s32.totalorder %v1422, 512
    %vm1589 = vcmp.lt.s32.totalorder %v1423, 512
    %vm1590 = vcmp.lt.s32.totalorder %v1424, 512
    %vm1591 = vcmp.lt.s32.totalorder %v1425, 512
    %vm1592 = vcmp.lt.s32.totalorder %v1426, 512
    %vm1593 = vcmp.lt.s32.totalorder %v1427, 512
    %vm1594 = vcmp.lt.s32.totalorder %v1428, 512
    %vm1595 = vcmp.lt.s32.totalorder %v1429, 512
    %vm1596 = vmand %vm1580, %vm1588
    %vm1597 = vmand %vm1581, %vm1589
    %vm1598 = vmand %vm1582, %vm1590
    %vm1599 = vmand %vm1583, %vm1591
    %vm1600 = vmand %vm1584, %vm1592
    %vm1601 = vmand %vm1585, %vm1593
    %vm1602 = vmand %vm1586, %vm1594
    %vm1603 = vmand %vm1587, %vm1595
    %v1604 = vsel %vm1596, 1, 0
    %v1605 = vsel %vm1597, 1, 0
    %v1606 = vsel %vm1598, 1, 0
    %v1607 = vsel %vm1599, 1, 0
    %v1608 = vsel %vm1600, 1, 0
    %v1609 = vsel %vm1601, 1, 0
    %v1610 = vsel %vm1602, 1, 0
    %v1611 = vsel %vm1603, 1, 0
    %vm1612 = vcmp.eq.s32.totalorder %v1604, 1
    %vm1613 = vcmp.eq.s32.totalorder %v1605, 1
    %vm1614 = vcmp.eq.s32.totalorder %v1606, 1
    %vm1615 = vcmp.eq.s32.totalorder %v1607, 1
    %vm1616 = vcmp.eq.s32.totalorder %v1608, 1
    %vm1617 = vcmp.eq.s32.totalorder %v1609, 1
    %vm1618 = vcmp.eq.s32.totalorder %v1610, 1
    %vm1619 = vcmp.eq.s32.totalorder %v1611, 1
    %v1620 = vsel %vm1612, %v1510, 0.0
    %v1621 = vsel %vm1613, %v1511, 0.0
    %v1622 = vsel %vm1614, %v1512, 0.0
    %v1623 = vsel %vm1615, %v1513, 0.0
    %v1624 = vsel %vm1616, %v1546, 0.0
    %v1625 = vsel %vm1617, %v1547, 0.0
    %v1626 = vsel %vm1618, %v1548, 0.0
    %v1627 = vsel %vm1619, %v1549, 0.0
    %v1628 = vadd.f32 %v1620, %v1621
    %v1629 = vadd.f32 %v1628, %v1622
    %v1630 = vadd.f32 %v1629, %v1623
    %v1631 = vadd.f32 %v1630, %v1624
    %v1632 = vadd.f32 %v1631, %v1625
    %v1633 = vadd.f32 %v1632, %v1626
    %v1634 = vadd.f32 %v1633, %v1627
    %1635 = vadd.xlane.f32.xlu0 %v1634
    %v1636 = vpop.xlane.xlu0 %1635
    %vm1637 = vcmp.eq.s32.totalorder %v1412, 1
    %v1638 = vsel %vm1637, 1, 0
    %v1639 = vcvt.s32.f32 %v1638
    %v1640 = vmul.f32 %v1636, %v1639
    %v1641 = vadd.f32 %v1579, %v1640
    %vm1642 = vcmp.ge.s32.totalorder %v1422, 512
    %vm1643 = vcmp.ge.s32.totalorder %v1423, 512
    %vm1644 = vcmp.ge.s32.totalorder %v1424, 512
    %vm1645 = vcmp.ge.s32.totalorder %v1425, 512
    %vm1646 = vcmp.ge.s32.totalorder %v1426, 512
    %vm1647 = vcmp.ge.s32.totalorder %v1427, 512
    %vm1648 = vcmp.ge.s32.totalorder %v1428, 512
    %vm1649 = vcmp.ge.s32.totalorder %v1429, 512
    %vm1650 = vcmp.lt.s32.totalorder %v1422, 768
    %vm1651 = vcmp.lt.s32.totalorder %v1423, 768
    %vm1652 = vcmp.lt.s32.totalorder %v1424, 768
    %vm1653 = vcmp.lt.s32.totalorder %v1425, 768
    %vm1654 = vcmp.lt.s32.totalorder %v1426, 768
    %vm1655 = vcmp.lt.s32.totalorder %v1427, 768
    %vm1656 = vcmp.lt.s32.totalorder %v1428, 768
    %vm1657 = vcmp.lt.s32.totalorder %v1429, 768
    %vm1658 = vmand %vm1642, %vm1650
    %vm1659 = vmand %vm1643, %vm1651
    %vm1660 = vmand %vm1644, %vm1652
    %vm1661 = vmand %vm1645, %vm1653
    %vm1662 = vmand %vm1646, %vm1654
    %vm1663 = vmand %vm1647, %vm1655
    %vm1664 = vmand %vm1648, %vm1656
    %vm1665 = vmand %vm1649, %vm1657
    %v1666 = vsel %vm1658, 1, 0
    %v1667 = vsel %vm1659, 1, 0
    %v1668 = vsel %vm1660, 1, 0
    %v1669 = vsel %vm1661, 1, 0
    %v1670 = vsel %vm1662, 1, 0
    %v1671 = vsel %vm1663, 1, 0
    %v1672 = vsel %vm1664, 1, 0
    %v1673 = vsel %vm1665, 1, 0
    %vm1674 = vcmp.eq.s32.totalorder %v1666, 1
    %vm1675 = vcmp.eq.s32.totalorder %v1667, 1
    %vm1676 = vcmp.eq.s32.totalorder %v1668, 1
    %vm1677 = vcmp.eq.s32.totalorder %v1669, 1
    %vm1678 = vcmp.eq.s32.totalorder %v1670, 1
    %vm1679 = vcmp.eq.s32.totalorder %v1671, 1
    %vm1680 = vcmp.eq.s32.totalorder %v1672, 1
    %vm1681 = vcmp.eq.s32.totalorder %v1673, 1
    %v1682 = vsel %vm1674, %v1510, 0.0
    %v1683 = vsel %vm1675, %v1511, 0.0
    %v1684 = vsel %vm1676, %v1512, 0.0
    %v1685 = vsel %vm1677, %v1513, 0.0
    %v1686 = vsel %vm1678, %v1546, 0.0
    %v1687 = vsel %vm1679, %v1547, 0.0
    %v1688 = vsel %vm1680, %v1548, 0.0
    %v1689 = vsel %vm1681, %v1549, 0.0
    %v1690 = vadd.f32 %v1682, %v1683
    %v1691 = vadd.f32 %v1690, %v1684
    %v1692 = vadd.f32 %v1691, %v1685
    %v1693 = vadd.f32 %v1692, %v1686
    %v1694 = vadd.f32 %v1693, %v1687
    %v1695 = vadd.f32 %v1694, %v1688
    %v1696 = vadd.f32 %v1695, %v1689
    %1697 = vadd.xlane.f32.xlu0 %v1696
    %v1698 = vpop.xlane.xlu0 %1697
    %vm1699 = vcmp.eq.s32.totalorder %v1412, 2
    %v1700 = vsel %vm1699, 1, 0
    %v1701 = vcvt.s32.f32 %v1700
    %v1702 = vmul.f32 %v1698, %v1701
    %v1703 = vadd.f32 %v1641, %v1702
    %vm1704 = vcmp.ge.s32.totalorder %v1422, 768
    %vm1705 = vcmp.ge.s32.totalorder %v1423, 768
    %vm1706 = vcmp.ge.s32.totalorder %v1424, 768
    %vm1707 = vcmp.ge.s32.totalorder %v1425, 768
    %vm1708 = vcmp.ge.s32.totalorder %v1426, 768
    %vm1709 = vcmp.ge.s32.totalorder %v1427, 768
    %vm1710 = vcmp.ge.s32.totalorder %v1428, 768
    %vm1711 = vcmp.ge.s32.totalorder %v1429, 768
    %vm1712 = vcmp.lt.s32.totalorder %v1422, 1024
    %vm1713 = vcmp.lt.s32.totalorder %v1423, 1024
    %vm1714 = vcmp.lt.s32.totalorder %v1424, 1024
    %vm1715 = vcmp.lt.s32.totalorder %v1425, 1024
    %vm1716 = vcmp.lt.s32.totalorder %v1426, 1024
    %vm1717 = vcmp.lt.s32.totalorder %v1427, 1024
    %vm1718 = vcmp.lt.s32.totalorder %v1428, 1024
    %vm1719 = vcmp.lt.s32.totalorder %v1429, 1024
    %vm1720 = vmand %vm1704, %vm1712
    %vm1721 = vmand %vm1705, %vm1713
    %vm1722 = vmand %vm1706, %vm1714
    %vm1723 = vmand %vm1707, %vm1715
    %vm1724 = vmand %vm1708, %vm1716
    %vm1725 = vmand %vm1709, %vm1717
    %vm1726 = vmand %vm1710, %vm1718
    %vm1727 = vmand %vm1711, %vm1719
    %v1728 = vsel %vm1720, 1, 0
    %v1729 = vsel %vm1721, 1, 0
    %v1730 = vsel %vm1722, 1, 0
    %v1731 = vsel %vm1723, 1, 0
    %v1732 = vsel %vm1724, 1, 0
    %v1733 = vsel %vm1725, 1, 0
    %v1734 = vsel %vm1726, 1, 0
    %v1735 = vsel %vm1727, 1, 0
    %vm1736 = vcmp.eq.s32.totalorder %v1728, 1
    %vm1737 = vcmp.eq.s32.totalorder %v1729, 1
    %vm1738 = vcmp.eq.s32.totalorder %v1730, 1
    %vm1739 = vcmp.eq.s32.totalorder %v1731, 1
    %vm1740 = vcmp.eq.s32.totalorder %v1732, 1
    %vm1741 = vcmp.eq.s32.totalorder %v1733, 1
    %vm1742 = vcmp.eq.s32.totalorder %v1734, 1
    %vm1743 = vcmp.eq.s32.totalorder %v1735, 1
    %v1744 = vsel %vm1736, %v1510, 0.0
    %v1745 = vsel %vm1737, %v1511, 0.0
    %v1746 = vsel %vm1738, %v1512, 0.0
    %v1747 = vsel %vm1739, %v1513, 0.0
    %v1748 = vsel %vm1740, %v1546, 0.0
    %v1749 = vsel %vm1741, %v1547, 0.0
    %v1750 = vsel %vm1742, %v1548, 0.0
    %v1751 = vsel %vm1743, %v1549, 0.0
    %v1752 = vadd.f32 %v1744, %v1745
    %v1753 = vadd.f32 %v1752, %v1746
    %v1754 = vadd.f32 %v1753, %v1747
    %v1755 = vadd.f32 %v1754, %v1748
    %v1756 = vadd.f32 %v1755, %v1749
    %v1757 = vadd.f32 %v1756, %v1750
    %v1758 = vadd.f32 %v1757, %v1751
    %1759 = vadd.xlane.f32.xlu0 %v1758
    %v1760 = vpop.xlane.xlu0 %1759
    %vm1761 = vcmp.eq.s32.totalorder %v1412, 3
    %v1762 = vsel %vm1761, 1, 0
    %v1763 = vcvt.s32.f32 %v1762
    %v1764 = vmul.f32 %v1760, %v1763
    %v1765 = vadd.f32 %v1703, %v1764
    %v1766 = vld [vmem:[#allocation2] sm:$0xff]
    %v1767 = vadd.f32 %v1766, %v1765
    %vm1768 = vcmask 31744
    %1769 = vst.msk [vmem:[#allocation2] sm:$0xff] %vm1768, %v1767
    // Predicated region
    $region66: #{tpu_custom_call.1} parent=1 // pred_check
      %p1770 = pneg %p112
    $region67: #{tpu_custom_call.1} parent=1 // pred_check_branch
      %1772 = sbr.rel (%p1770) target = $region69
    $region68: #{tpu_custom_call.1} parent=1 // pred_region
      %v1773 = vld [vmem:[#allocation2] sm:$0xff]
      %v1774 = vmul.f32 %v1773, 0.00390625
      %v1775 = vpack.c.bf16 %v1774, %v1774
      %v1776 = vld [vmem:[#allocation7] sm:$0xff]
      %v1777 = vld [vmem:[#allocation7 + $0x8] sm:$0xff]
      %v1778 = vld [vmem:[#allocation9] sm:$0xff]
      %v1780 = vlaneseq
      %v1781 = vshrl.u32 %v1780, 7
      %v1782 = vsub.s32 0, %v1781
      %v1783 = vrot.slane %v1778, %v1782
      %v1784 = vlaneseq
      %v1785 = vshrl.u32 %v1784, 7
      %v1786 = vsub.s32 1, %v1785
      %v1787 = vrot.slane %v1778, %v1786
      %v1788 = vlaneseq
      %v1789 = vshrl.u32 %v1788, 7
      %v1790 = vsub.s32 2, %v1789
      %v1791 = vrot.slane %v1778, %v1790
      %v1792 = vlaneseq
      %v1793 = vshrl.u32 %v1792, 7
      %v1794 = vsub.s32 3, %v1793
      %v1795 = vrot.slane %v1778, %v1794
      %v1796 = vlaneseq
      %v1797 = vshrl.u32 %v1796, 7
      %v1798 = vsub.s32 4, %v1797
      %v1799 = vrot.slane %v1778, %v1798
      %v1800 = vlaneseq
      %v1801 = vshrl.u32 %v1800, 7
      %v1802 = vsub.s32 5, %v1801
      %v1803 = vrot.slane %v1778, %v1802
      %v1804 = vlaneseq
      %v1805 = vshrl.u32 %v1804, 7
      %v1806 = vsub.s32 6, %v1805
      %v1807 = vrot.slane %v1778, %v1806
      %v1808 = vlaneseq
      %v1809 = vshrl.u32 %v1808, 7
      %v1810 = vsub.s32 7, %v1809
      %v1811 = vrot.slane %v1778, %v1810
      %v1822 = vcombine.high %v1776, %v1776
      %v1824 = vunpack.c.l.s4 1983009808
      %v1825 = vunpack.c.0.s8 %v1824
      %v1826 = vlaneseq
      %v1827 = vshrl.u32 %v1826, 7
      %v1828 = vsub.s32 %v1825, %v1827
      %v1829 = vrot.slane %v1776, %v1828
      %v1831 = vunpack.c.l.s4 1983009808
      %v1832 = vunpack.c.0.s8 %v1831
      %v1833 = vlaneseq
      %v1834 = vshrl.u32 %v1833, 7
      %v1835 = vsub.s32 %v1832, %v1834
      %v1836 = vrot.slane %v1822, %v1835
      %v1837 = vcombine.high %v1829, %v1829
      %v1838 = vcombine.high %v1836, %v1836
      %v1839 = vcombine.high %v1777, %v1777
      %v1841 = vunpack.c.l.s4 1983009808
      %v1842 = vunpack.c.0.s8 %v1841
      %v1843 = vlaneseq
      %v1844 = vshrl.u32 %v1843, 7
      %v1845 = vsub.s32 %v1842, %v1844
      %v1846 = vrot.slane %v1777, %v1845
      %v1848 = vunpack.c.l.s4 1983009808
      %v1849 = vunpack.c.0.s8 %v1848
      %v1850 = vlaneseq
      %v1851 = vshrl.u32 %v1850, 7
      %v1852 = vsub.s32 %v1849, %v1851
      %v1853 = vrot.slane %v1839, %v1852
      %v1854 = vcombine.high %v1846, %v1846
      %v1855 = vcombine.high %v1853, %v1853
      %v1857 = vsel %vm1768, %v1775, 0
      %vm1859 = vcmask 1041408
      %v1861 = vsel %vm1859, %v1829, 0
      %v1864 = vsel %vm1859, %v1837, 0
      %v1867 = vsel %vm1859, %v1836, 0
      %v1870 = vsel %vm1859, %v1838, 0
      %v1873 = vsel %vm1859, %v1846, 0
      %v1876 = vsel %vm1859, %v1854, 0
      %v1879 = vsel %vm1859, %v1853, 0
      %v1882 = vsel %vm1859, %v1855, 0
      %1884 = vmatprep.subr.bf16.mxu0 %v1864
      %1885 = vmatpush1.bf16.msra.mxu0 %v1861
      %1886 = vmatprep.subr.bf16.mxu0 0
      %1887 = vmatpush1.bf16.msra.mxu0 0
      %1888 = vmatprep.subr.bf16.mxu0 0
      %1889 = vmatpush1.bf16.msra.mxu0 0
      %1890 = vmatprep.subr.bf16.mxu0 0
      %1891 = vmatpush1.bf16.msra.mxu0 0
      %1892 = vmatprep.subr.bf16.mxu0 0
      %1893 = vmatpush1.bf16.msra.mxu0 0
      %1894 = vmatprep.subr.bf16.mxu0 0
      %1895 = vmatpush1.bf16.msra.mxu0 0
      %1896 = vmatprep.subr.bf16.mxu0 0
      %1897 = vmatpush1.bf16.msra.mxu0 0
      %1898 = vmatprep.subr.bf16.mxu0 0
      %1899 = vmatpush1.bf16.msra.mxu0 0
      %1900 = vmatprep.subr.bf16.mxu0 0
      %1901 = vmatpush1.bf16.msra.mxu0 0
      %1902 = vmatprep.subr.bf16.mxu0 0
      %1903 = vmatpush1.bf16.msra.mxu0 0
      %1904 = vmatprep.subr.bf16.mxu0 0
      %1905 = vmatpush1.bf16.msra.mxu0 0
      %1906 = vmatprep.subr.bf16.mxu0 0
      %1907 = vmatpush1.bf16.msra.mxu0 0
      %1908 = vmatprep.subr.bf16.mxu0 0
      %1909 = vmatpush1.bf16.msra.mxu0 0
      %1910 = vmatprep.subr.bf16.mxu0 0
      %1911 = vmatpush1.bf16.msra.mxu0 0
      %1912 = vmatprep.subr.bf16.mxu0 0
      %1913 = vmatpush1.bf16.msra.mxu0 0
      %1914 = vmatprep.subr.bf16.mxu0 0
      %1915 = vmatpush1.bf16.msra.mxu0 0
      %1916 = vmatprep.mubr.bf16.mxu0 0
      %1917 = vmatmul.mubr.bf16.gmra.mrb[0].mxu0 %v1857
      %v1918 = vpop.f32.mrb[0].mxu0
      %v1919 = vadd.f32 %v1783, %v1918
      %v1920 = vpop.f32.mrb[0].mxu0
      %v1921 = vadd.f32 %v1787, %v1920
      %v1922 = vpop.f32.mrb[0].mxu0
      %v1923 = vpop.f32.mrb[0].mxu0
      %1924 = vdwg.mxu0
      %1925 = vmatprep.subr.bf16.mxu0 %v1870
      %1926 = vmatpush1.bf16.msra.mxu0 %v1867
      %1927 = vmatprep.subr.bf16.mxu0 0
      %1928 = vmatpush1.bf16.msra.mxu0 0
      %1929 = vmatprep.subr.bf16.mxu0 0
      %1930 = vmatpush1.bf16.msra.mxu0 0
      %1931 = vmatprep.subr.bf16.mxu0 0
      %1932 = vmatpush1.bf16.msra.mxu0 0
      %1933 = vmatprep.subr.bf16.mxu0 0
      %1934 = vmatpush1.bf16.msra.mxu0 0
      %1935 = vmatprep.subr.bf16.mxu0 0
      %1936 = vmatpush1.bf16.msra.mxu0 0
      %1937 = vmatprep.subr.bf16.mxu0 0
      %1938 = vmatpush1.bf16.msra.mxu0 0
      %1939 = vmatprep.subr.bf16.mxu0 0
      %1940 = vmatpush1.bf16.msra.mxu0 0
      %1941 = vmatprep.subr.bf16.mxu0 0
      %1942 = vmatpush1.bf16.msra.mxu0 0
      %1943 = vmatprep.subr.bf16.mxu0 0
      %1944 = vmatpush1.bf16.msra.mxu0 0
      %1945 = vmatprep.subr.bf16.mxu0 0
      %1946 = vmatpush1.bf16.msra.mxu0 0
      %1947 = vmatprep.subr.bf16.mxu0 0
      %1948 = vmatpush1.bf16.msra.mxu0 0
      %1949 = vmatprep.subr.bf16.mxu0 0
      %1950 = vmatpush1.bf16.msra.mxu0 0
      %1951 = vmatprep.subr.bf16.mxu0 0
      %1952 = vmatpush1.bf16.msra.mxu0 0
      %1953 = vmatprep.subr.bf16.mxu0 0
      %1954 = vmatpush1.bf16.msra.mxu0 0
      %1955 = vmatprep.subr.bf16.mxu0 0
      %1956 = vmatpush1.bf16.msra.mxu0 0
      %1957 = vmatprep.mubr.bf16.mxu0 0
      %1958 = vmatmul.mubr.bf16.gmra.mrb[0].mxu0 %v1857
      %v1959 = vpop.f32.mrb[0].mxu0
      %v1960 = vadd.f32 %v1791, %v1959
      %v1961 = vpop.f32.mrb[0].mxu0
      %v1962 = vadd.f32 %v1795, %v1961
      %v1963 = vpop.f32.mrb[0].mxu0
      %v1964 = vpop.f32.mrb[0].mxu0
      %1965 = vdwg.mxu0
      %1966 = vmatprep.subr.bf16.mxu0 %v1876
      %1967 = vmatpush1.bf16.msra.mxu0 %v1873
      %1968 = vmatprep.subr.bf16.mxu0 0
      %1969 = vmatpush1.bf16.msra.mxu0 0
      %1970 = vmatprep.subr.bf16.mxu0 0
      %1971 = vmatpush1.bf16.msra.mxu0 0
      %1972 = vmatprep.subr.bf16.mxu0 0
      %1973 = vmatpush1.bf16.msra.mxu0 0
      %1974 = vmatprep.subr.bf16.mxu0 0
      %1975 = vmatpush1.bf16.msra.mxu0 0
      %1976 = vmatprep.subr.bf16.mxu0 0
      %1977 = vmatpush1.bf16.msra.mxu0 0
      %1978 = vmatprep.subr.bf16.mxu0 0
      %1979 = vmatpush1.bf16.msra.mxu0 0
      %1980 = vmatprep.subr.bf16.mxu0 0
      %1981 = vmatpush1.bf16.msra.mxu0 0
      %1982 = vmatprep.subr.bf16.mxu0 0
      %1983 = vmatpush1.bf16.msra.mxu0 0
      %1984 = vmatprep.subr.bf16.mxu0 0
      %1985 = vmatpush1.bf16.msra.mxu0 0
      %1986 = vmatprep.subr.bf16.mxu0 0
      %1987 = vmatpush1.bf16.msra.mxu0 0
      %1988 = vmatprep.subr.bf16.mxu0 0
      %1989 = vmatpush1.bf16.msra.mxu0 0
      %1990 = vmatprep.subr.bf16.mxu0 0
      %1991 = vmatpush1.bf16.msra.mxu0 0
      %1992 = vmatprep.subr.bf16.mxu0 0
      %1993 = vmatpush1.bf16.msra.mxu0 0
      %1994 = vmatprep.subr.bf16.mxu0 0
      %1995 = vmatpush1.bf16.msra.mxu0 0
      %1996 = vmatprep.subr.bf16.mxu0 0
      %1997 = vmatpush1.bf16.msra.mxu0 0
      %1998 = vmatprep.mubr.bf16.mxu0 0
      %1999 = vmatmul.mubr.bf16.gmra.mrb[0].mxu0 %v1857
      %v2000 = vpop.f32.mrb[0].mxu0
      %v2001 = vadd.f32 %v1799, %v2000
      %v2002 = vpop.f32.mrb[0].mxu0
      %v2003 = vadd.f32 %v1803, %v2002
      %v2004 = vpop.f32.mrb[0].mxu0
      %v2005 = vpop.f32.mrb[0].mxu0
      %2006 = vdwg.mxu0
      %2007 = vmatprep.subr.bf16.mxu0 %v1882
      %2008 = vmatpush1.bf16.msra.mxu0 %v1879
      %2009 = vmatprep.subr.bf16.mxu0 0
      %2010 = vmatpush1.bf16.msra.mxu0 0
      %2011 = vmatprep.subr.bf16.mxu0 0
      %2012 = vmatpush1.bf16.msra.mxu0 0
      %2013 = vmatprep.subr.bf16.mxu0 0
      %2014 = vmatpush1.bf16.msra.mxu0 0
      %2015 = vmatprep.subr.bf16.mxu0 0
      %2016 = vmatpush1.bf16.msra.mxu0 0
      %2017 = vmatprep.subr.bf16.mxu0 0
      %2018 = vmatpush1.bf16.msra.mxu0 0
      %2019 = vmatprep.subr.bf16.mxu0 0
      %2020 = vmatpush1.bf16.msra.mxu0 0
      %2021 = vmatprep.subr.bf16.mxu0 0
      %2022 = vmatpush1.bf16.msra.mxu0 0
      %2023 = vmatprep.subr.bf16.mxu0 0
      %2024 = vmatpush1.bf16.msra.mxu0 0
      %2025 = vmatprep.subr.bf16.mxu0 0
      %2026 = vmatpush1.bf16.msra.mxu0 0
      %2027 = vmatprep.subr.bf16.mxu0 0
      %2028 = vmatpush1.bf16.msra.mxu0 0
      %2029 = vmatprep.subr.bf16.mxu0 0
      %2030 = vmatpush1.bf16.msra.mxu0 0
      %2031 = vmatprep.subr.bf16.mxu0 0
      %2032 = vmatpush1.bf16.msra.mxu0 0
      %2033 = vmatprep.subr.bf16.mxu0 0
      %2034 = vmatpush1.bf16.msra.mxu0 0
      %2035 = vmatprep.subr.bf16.mxu0 0
      %2036 = vmatpush1.bf16.msra.mxu0 0
      %2037 = vmatprep.subr.bf16.mxu0 0
      %2038 = vmatpush1.bf16.msra.mxu0 0
      %2039 = vmatprep.mubr.bf16.mxu0 0
      %2040 = vmatmul.mubr.bf16.gmra.mrb[0].mxu0 %v1857
      %v2041 = vpop.f32.mrb[0].mxu0
      %v2042 = vadd.f32 %v1807, %v2041
      %v2043 = vpop.f32.mrb[0].mxu0
      %v2044 = vadd.f32 %v1811, %v2043
      %v2045 = vpop.f32.mrb[0].mxu0
      %v2046 = vpop.f32.mrb[0].mxu0
      %2047 = vdwg.mxu0
      %v2048 = vpack.c.bf16 %v1919, %v1919
      %v2049 = vpack.c.bf16 %v1921, %v1921
      %v2050 = vpack.c.bf16 %v1960, %v1960
      %v2051 = vpack.c.bf16 %v1962, %v1962
      %v2052 = vpack.c.bf16 %v2001, %v2001
      %v2053 = vpack.c.bf16 %v2003, %v2003
      %v2054 = vpack.c.bf16 %v2042, %v2042
      %v2055 = vpack.c.bf16 %v2044, %v2044
      %v2056 = vld [vmem:[#allocation12] sm:$0xf]
      %v2057 = vld [vmem:[#allocation12 + $0x4] sm:$0xf]
      %v2058 = vld [vmem:[#allocation12 + $0x8] sm:$0xf]
      %v2059 = vld [vmem:[#allocation12 + $0xc] sm:$0xf]
      %v2060 = vld [vmem:[#allocation12 + $0x10] sm:$0xf]
      %v2061 = vld [vmem:[#allocation12 + $0x14] sm:$0xf]
      %v2062 = vld [vmem:[#allocation12 + $0x18] sm:$0xf]
      %v2063 = vld [vmem:[#allocation12 + $0x1c] sm:$0xf]
      %v2064 = vld [vmem:[#allocation12 + $0x20] sm:$0xf]
      %v2065 = vld [vmem:[#allocation12 + $0x24] sm:$0xf]
      %v2066 = vld [vmem:[#allocation12 + $0x28] sm:$0xf]
      %v2067 = vld [vmem:[#allocation12 + $0x2c] sm:$0xf]
      %v2068 = vld [vmem:[#allocation12 + $0x30] sm:$0xf]
      %v2069 = vld [vmem:[#allocation12 + $0x34] sm:$0xf]
      %v2070 = vld [vmem:[#allocation12 + $0x38] sm:$0xf]
      %v2071 = vld [vmem:[#allocation12 + $0x3c] sm:$0xf]
      %v2072 = vld [vmem:[#allocation12 + $0x40] sm:$0xf]
      %v2073 = vld [vmem:[#allocation12 + $0x44] sm:$0xf]
      %v2074 = vld [vmem:[#allocation12 + $0x48] sm:$0xf]
      %v2075 = vld [vmem:[#allocation12 + $0x4c] sm:$0xf]
      %v2076 = vld [vmem:[#allocation12 + $0x50] sm:$0xf]
      %v2077 = vld [vmem:[#allocation12 + $0x54] sm:$0xf]
      %v2078 = vld [vmem:[#allocation12 + $0x58] sm:$0xf]
      %v2079 = vld [vmem:[#allocation12 + $0x5c] sm:$0xf]
      %v2080 = vld [vmem:[#allocation12 + $0x60] sm:$0xf]
      %v2081 = vld [vmem:[#allocation12 + $0x64] sm:$0xf]
      %v2082 = vld [vmem:[#allocation12 + $0x68] sm:$0xf]
      %v2083 = vld [vmem:[#allocation12 + $0x6c] sm:$0xf]
      %v2084 = vld [vmem:[#allocation12 + $0x70] sm:$0xf]
      %v2085 = vld [vmem:[#allocation12 + $0x74] sm:$0xf]
      %v2086 = vld [vmem:[#allocation12 + $0x78] sm:$0xf]
      %v2087 = vld [vmem:[#allocation12 + $0x7c] sm:$0xf]
      %v2088 = vld [vmem:[#allocation12 + $0x80] sm:$0xf]
      %v2089 = vld [vmem:[#allocation12 + $0x84] sm:$0xf]
      %v2090 = vld [vmem:[#allocation12 + $0x88] sm:$0xf]
      %v2091 = vld [vmem:[#allocation12 + $0x8c] sm:$0xf]
      %v2092 = vld [vmem:[#allocation12 + $0x90] sm:$0xf]
      %v2093 = vld [vmem:[#allocation12 + $0x94] sm:$0xf]
      %v2094 = vld [vmem:[#allocation12 + $0x98] sm:$0xf]
      %v2095 = vld [vmem:[#allocation12 + $0x9c] sm:$0xf]
      %v2096 = vld [vmem:[#allocation12 + $0xa0] sm:$0xf]
      %v2097 = vld [vmem:[#allocation12 + $0xa4] sm:$0xf]
      %v2098 = vld [vmem:[#allocation12 + $0xa8] sm:$0xf]
      %v2099 = vld [vmem:[#allocation12 + $0xac] sm:$0xf]
      %v2100 = vld [vmem:[#allocation12 + $0xb0] sm:$0xf]
      %v2101 = vld [vmem:[#allocation12 + $0xb4] sm:$0xf]
      %v2102 = vld [vmem:[#allocation12 + $0xb8] sm:$0xf]
      %v2103 = vld [vmem:[#allocation12 + $0xbc] sm:$0xf]
      %v2104 = vld [vmem:[#allocation12 + $0xc0] sm:$0xf]
      %v2105 = vld [vmem:[#allocation12 + $0xc4] sm:$0xf]
      %v2106 = vld [vmem:[#allocation12 + $0xc8] sm:$0xf]
      %v2107 = vld [vmem:[#allocation12 + $0xcc] sm:$0xf]
      %v2108 = vld [vmem:[#allocation12 + $0xd0] sm:$0xf]
      %v2109 = vld [vmem:[#allocation12 + $0xd4] sm:$0xf]
      %v2110 = vld [vmem:[#allocation12 + $0xd8] sm:$0xf]
      %v2111 = vld [vmem:[#allocation12 + $0xdc] sm:$0xf]
      %v2112 = vld [vmem:[#allocation12 + $0xe0] sm:$0xf]
      %v2113 = vld [vmem:[#allocation12 + $0xe4] sm:$0xf]
      %v2114 = vld [vmem:[#allocation12 + $0xe8] sm:$0xf]
      %v2115 = vld [vmem:[#allocation12 + $0xec] sm:$0xf]
      %v2116 = vld [vmem:[#allocation12 + $0xf0] sm:$0xf]
      %v2117 = vld [vmem:[#allocation12 + $0xf4] sm:$0xf]
      %v2118 = vld [vmem:[#allocation12 + $0xf8] sm:$0xf]
      %v2119 = vld [vmem:[#allocation12 + $0xfc] sm:$0xf]
      %v2120 = vld [vmem:[#allocation12 + $0x100] sm:$0xf]
      %v2121 = vld [vmem:[#allocation12 + $0x104] sm:$0xf]
      %v2122 = vld [vmem:[#allocation12 + $0x108] sm:$0xf]
      %v2123 = vld [vmem:[#allocation12 + $0x10c] sm:$0xf]
      %v2124 = vld [vmem:[#allocation12 + $0x110] sm:$0xf]
      %v2125 = vld [vmem:[#allocation12 + $0x114] sm:$0xf]
      %v2126 = vld [vmem:[#allocation12 + $0x118] sm:$0xf]
      %v2127 = vld [vmem:[#allocation12 + $0x11c] sm:$0xf]
      %v2128 = vld [vmem:[#allocation12 + $0x120] sm:$0xf]
      %v2129 = vld [vmem:[#allocation12 + $0x124] sm:$0xf]
      %v2130 = vld [vmem:[#allocation12 + $0x128] sm:$0xf]
      %v2131 = vld [vmem:[#allocation12 + $0x12c] sm:$0xf]
      %v2132 = vld [vmem:[#allocation12 + $0x130] sm:$0xf]
      %v2133 = vld [vmem:[#allocation12 + $0x134] sm:$0xf]
      %v2134 = vld [vmem:[#allocation12 + $0x138] sm:$0xf]
      %v2135 = vld [vmem:[#allocation12 + $0x13c] sm:$0xf]
      %v2136 = vld [vmem:[#allocation12 + $0x140] sm:$0xf]
      %v2137 = vld [vmem:[#allocation12 + $0x144] sm:$0xf]
      %v2138 = vld [vmem:[#allocation12 + $0x148] sm:$0xf]
      %v2139 = vld [vmem:[#allocation12 + $0x14c] sm:$0xf]
      %v2140 = vld [vmem:[#allocation12 + $0x150] sm:$0xf]
      %v2141 = vld [vmem:[#allocation12 + $0x154] sm:$0xf]
      %v2142 = vld [vmem:[#allocation12 + $0x158] sm:$0xf]
      %v2143 = vld [vmem:[#allocation12 + $0x15c] sm:$0xf]
      %v2144 = vld [vmem:[#allocation12 + $0x160] sm:$0xf]
      %v2145 = vld [vmem:[#allocation12 + $0x164] sm:$0xf]
      %v2146 = vld [vmem:[#allocation12 + $0x168] sm:$0xf]
      %v2147 = vld [vmem:[#allocation12 + $0x16c] sm:$0xf]
      %v2148 = vld [vmem:[#allocation12 + $0x170] sm:$0xf]
      %v2149 = vld [vmem:[#allocation12 + $0x174] sm:$0xf]
      %v2150 = vld [vmem:[#allocation12 + $0x178] sm:$0xf]
      %v2151 = vld [vmem:[#allocation12 + $0x17c] sm:$0xf]
      %v2152 = vld [vmem:[#allocation12 + $0x180] sm:$0xf]
      %v2153 = vld [vmem:[#allocation12 + $0x184] sm:$0xf]
      %v2154 = vld [vmem:[#allocation12 + $0x188] sm:$0xf]
      %v2155 = vld [vmem:[#allocation12 + $0x18c] sm:$0xf]
      %v2156 = vld [vmem:[#allocation12 + $0x190] sm:$0xf]
      %v2157 = vld [vmem:[#allocation12 + $0x194] sm:$0xf]
      %v2158 = vld [vmem:[#allocation12 + $0x198] sm:$0xf]
      %v2159 = vld [vmem:[#allocation12 + $0x19c] sm:$0xf]
      %v2160 = vld [vmem:[#allocation12 + $0x1a0] sm:$0xf]
      %v2161 = vld [vmem:[#allocation12 + $0x1a4] sm:$0xf]
      %v2162 = vld [vmem:[#allocation12 + $0x1a8] sm:$0xf]
      %v2163 = vld [vmem:[#allocation12 + $0x1ac] sm:$0xf]
      %v2164 = vld [vmem:[#allocation12 + $0x1b0] sm:$0xf]
      %v2165 = vld [vmem:[#allocation12 + $0x1b4] sm:$0xf]
      %v2166 = vld [vmem:[#allocation12 + $0x1b8] sm:$0xf]
      %v2167 = vld [vmem:[#allocation12 + $0x1bc] sm:$0xf]
      %v2168 = vld [vmem:[#allocation12 + $0x1c0] sm:$0xf]
      %v2169 = vld [vmem:[#allocation12 + $0x1c4] sm:$0xf]
      %v2170 = vld [vmem:[#allocation12 + $0x1c8] sm:$0xf]
      %v2171 = vld [vmem:[#allocation12 + $0x1cc] sm:$0xf]
      %v2172 = vld [vmem:[#allocation12 + $0x1d0] sm:$0xf]
      %v2173 = vld [vmem:[#allocation12 + $0x1d4] sm:$0xf]
      %v2174 = vld [vmem:[#allocation12 + $0x1d8] sm:$0xf]
      %v2175 = vld [vmem:[#allocation12 + $0x1dc] sm:$0xf]
      %v2176 = vld [vmem:[#allocation12 + $0x1e0] sm:$0xf]
      %v2177 = vld [vmem:[#allocation12 + $0x1e4] sm:$0xf]
      %v2178 = vld [vmem:[#allocation12 + $0x1e8] sm:$0xf]
      %v2179 = vld [vmem:[#allocation12 + $0x1ec] sm:$0xf]
      %v2180 = vld [vmem:[#allocation12 + $0x1f0] sm:$0xf]
      %v2181 = vld [vmem:[#allocation12 + $0x1f4] sm:$0xf]
      %v2182 = vld [vmem:[#allocation12 + $0x1f8] sm:$0xf]
      %v2183 = vld [vmem:[#allocation12 + $0x1fc] sm:$0xf]
      %v2184 = vld [vmem:[#allocation3] sm:$0xff]
      %v2185 = vld [vmem:[#allocation3 + $0x8] sm:$0xff]
      %v2186 = vld [vmem:[#allocation3 + $0x10] sm:$0xff]
      %v2187 = vld [vmem:[#allocation3 + $0x18] sm:$0xff]
      %v2188 = vld [vmem:[#allocation3 + $0x20] sm:$0xff]
      %v2189 = vld [vmem:[#allocation3 + $0x28] sm:$0xff]
      %v2190 = vld [vmem:[#allocation3 + $0x30] sm:$0xff]
      %v2191 = vld [vmem:[#allocation3 + $0x38] sm:$0xff]
      %v2192 = vld [vmem:[#allocation13] sm:$0xf]
      %v2193 = vld [vmem:[#allocation13 + $0x4] sm:$0xf]
      %v2194 = vld [vmem:[#allocation13 + $0x8] sm:$0xf]
      %v2195 = vld [vmem:[#allocation13 + $0xc] sm:$0xf]
      %v2196 = vld [vmem:[#allocation13 + $0x10] sm:$0xf]
      %v2197 = vld [vmem:[#allocation13 + $0x14] sm:$0xf]
      %v2198 = vld [vmem:[#allocation13 + $0x18] sm:$0xf]
      %v2199 = vld [vmem:[#allocation13 + $0x1c] sm:$0xf]
      %v2200 = vld [vmem:[#allocation13 + $0x20] sm:$0xf]
      %v2201 = vld [vmem:[#allocation13 + $0x24] sm:$0xf]
      %v2202 = vld [vmem:[#allocation13 + $0x28] sm:$0xf]
      %v2203 = vld [vmem:[#allocation13 + $0x2c] sm:$0xf]
      %v2204 = vld [vmem:[#allocation13 + $0x30] sm:$0xf]
      %v2205 = vld [vmem:[#allocation13 + $0x34] sm:$0xf]
      %v2206 = vld [vmem:[#allocation13 + $0x38] sm:$0xf]
      %v2207 = vld [vmem:[#allocation13 + $0x3c] sm:$0xf]
      %v2208 = vld [vmem:[#allocation13 + $0x40] sm:$0xf]
      %v2209 = vld [vmem:[#allocation13 + $0x44] sm:$0xf]
      %v2210 = vld [vmem:[#allocation13 + $0x48] sm:$0xf]
      %v2211 = vld [vmem:[#allocation13 + $0x4c] sm:$0xf]
      %v2212 = vld [vmem:[#allocation13 + $0x50] sm:$0xf]
      %v2213 = vld [vmem:[#allocation13 + $0x54] sm:$0xf]
      %v2214 = vld [vmem:[#allocation13 + $0x58] sm:$0xf]
      %v2215 = vld [vmem:[#allocation13 + $0x5c] sm:$0xf]
      %v2216 = vld [vmem:[#allocation13 + $0x60] sm:$0xf]
      %v2217 = vld [vmem:[#allocation13 + $0x64] sm:$0xf]
      %v2218 = vld [vmem:[#allocation13 + $0x68] sm:$0xf]
      %v2219 = vld [vmem:[#allocation13 + $0x6c] sm:$0xf]
      %v2220 = vld [vmem:[#allocation13 + $0x70] sm:$0xf]
      %v2221 = vld [vmem:[#allocation13 + $0x74] sm:$0xf]
      %v2222 = vld [vmem:[#allocation13 + $0x78] sm:$0xf]
      %v2223 = vld [vmem:[#allocation13 + $0x7c] sm:$0xf]
      %v2224 = vld [vmem:[#allocation13 + $0x80] sm:$0xf]
      %v2225 = vld [vmem:[#allocation13 + $0x84] sm:$0xf]
      %v2226 = vld [vmem:[#allocation13 + $0x88] sm:$0xf]
      %v2227 = vld [vmem:[#allocation13 + $0x8c] sm:$0xf]
      %v2228 = vld [vmem:[#allocation13 + $0x90] sm:$0xf]
      %v2229 = vld [vmem:[#allocation13 + $0x94] sm:$0xf]
      %v2230 = vld [vmem:[#allocation13 + $0x98] sm:$0xf]
      %v2231 = vld [vmem:[#allocation13 + $0x9c] sm:$0xf]
      %v2232 = vld [vmem:[#allocation13 + $0xa0] sm:$0xf]
      %v2233 = vld [vmem:[#allocation13 + $0xa4] sm:$0xf]
      %v2234 = vld [vmem:[#allocation13 + $0xa8] sm:$0xf]
      %v2235 = vld [vmem:[#allocation13 + $0xac] sm:$0xf]
      %v2236 = vld [vmem:[#allocation13 + $0xb0] sm:$0xf]
      %v2237 = vld [vmem:[#allocation13 + $0xb4] sm:$0xf]
      %v2238 = vld [vmem:[#allocation13 + $0xb8] sm:$0xf]
      %v2239 = vld [vmem:[#allocation13 + $0xbc] sm:$0xf]
      %v2240 = vld [vmem:[#allocation13 + $0xc0] sm:$0xf]
      %v2241 = vld [vmem:[#allocation13 + $0xc4] sm:$0xf]
      %v2242 = vld [vmem:[#allocation13 + $0xc8] sm:$0xf]
      %v2243 = vld [vmem:[#allocation13 + $0xcc] sm:$0xf]
      %v2244 = vld [vmem:[#allocation13 + $0xd0] sm:$0xf]
      %v2245 = vld [vmem:[#allocation13 + $0xd4] sm:$0xf]
      %v2246 = vld [vmem:[#allocation13 + $0xd8] sm:$0xf]
      %v2247 = vld [vmem:[#allocation13 + $0xdc] sm:$0xf]
      %v2248 = vld [vmem:[#allocation13 + $0xe0] sm:$0xf]
      %v2249 = vld [vmem:[#allocation13 + $0xe4] sm:$0xf]
      %v2250 = vld [vmem:[#allocation13 + $0xe8] sm:$0xf]
      %v2251 = vld [vmem:[#allocation13 + $0xec] sm:$0xf]
      %v2252 = vld [vmem:[#allocation13 + $0xf0] sm:$0xf]
      %v2253 = vld [vmem:[#allocation13 + $0xf4] sm:$0xf]
      %v2254 = vld [vmem:[#allocation13 + $0xf8] sm:$0xf]
      %v2255 = vld [vmem:[#allocation13 + $0xfc] sm:$0xf]
      %v2256 = vld [vmem:[#allocation13 + $0x100] sm:$0xf]
      %v2257 = vld [vmem:[#allocation13 + $0x104] sm:$0xf]
      %v2258 = vld [vmem:[#allocation13 + $0x108] sm:$0xf]
      %v2259 = vld [vmem:[#allocation13 + $0x10c] sm:$0xf]
      %v2260 = vld [vmem:[#allocation13 + $0x110] sm:$0xf]
      %v2261 = vld [vmem:[#allocation13 + $0x114] sm:$0xf]
      %v2262 = vld [vmem:[#allocation13 + $0x118] sm:$0xf]
      %v2263 = vld [vmem:[#allocation13 + $0x11c] sm:$0xf]
      %v2264 = vld [vmem:[#allocation13 + $0x120] sm:$0xf]
      %v2265 = vld [vmem:[#allocation13 + $0x124] sm:$0xf]
      %v2266 = vld [vmem:[#allocation13 + $0x128] sm:$0xf]
      %v2267 = vld [vmem:[#allocation13 + $0x12c] sm:$0xf]
      %v2268 = vld [vmem:[#allocation13 + $0x130] sm:$0xf]
      %v2269 = vld [vmem:[#allocation13 + $0x134] sm:$0xf]
      %v2270 = vld [vmem:[#allocation13 + $0x138] sm:$0xf]
      %v2271 = vld [vmem:[#allocation13 + $0x13c] sm:$0xf]
      %v2272 = vld [vmem:[#allocation13 + $0x140] sm:$0xf]
      %v2273 = vld [vmem:[#allocation13 + $0x144] sm:$0xf]
      %v2274 = vld [vmem:[#allocation13 + $0x148] sm:$0xf]
      %v2275 = vld [vmem:[#allocation13 + $0x14c] sm:$0xf]
      %v2276 = vld [vmem:[#allocation13 + $0x150] sm:$0xf]
      %v2277 = vld [vmem:[#allocation13 + $0x154] sm:$0xf]
      %v2278 = vld [vmem:[#allocation13 + $0x158] sm:$0xf]
      %v2279 = vld [vmem:[#allocation13 + $0x15c] sm:$0xf]
      %v2280 = vld [vmem:[#allocation13 + $0x160] sm:$0xf]
      %v2281 = vld [vmem:[#allocation13 + $0x164] sm:$0xf]
      %v2282 = vld [vmem:[#allocation13 + $0x168] sm:$0xf]
      %v2283 = vld [vmem:[#allocation13 + $0x16c] sm:$0xf]
      %v2284 = vld [vmem:[#allocation13 + $0x170] sm:$0xf]
      %v2285 = vld [vmem:[#allocation13 + $0x174] sm:$0xf]
      %v2286 = vld [vmem:[#allocation13 + $0x178] sm:$0xf]
      %v2287 = vld [vmem:[#allocation13 + $0x17c] sm:$0xf]
      %v2288 = vld [vmem:[#allocation13 + $0x180] sm:$0xf]
      %v2289 = vld [vmem:[#allocation13 + $0x184] sm:$0xf]
      %v2290 = vld [vmem:[#allocation13 + $0x188] sm:$0xf]
      %v2291 = vld [vmem:[#allocation13 + $0x18c] sm:$0xf]
      %v2292 = vld [vmem:[#allocation13 + $0x190] sm:$0xf]
      %v2293 = vld [vmem:[#allocation13 + $0x194] sm:$0xf]
      %v2294 = vld [vmem:[#allocation13 + $0x198] sm:$0xf]
      %v2295 = vld [vmem:[#allocation13 + $0x19c] sm:$0xf]
      %v2296 = vld [vmem:[#allocation13 + $0x1a0] sm:$0xf]
      %v2297 = vld [vmem:[#allocation13 + $0x1a4] sm:$0xf]
      %v2298 = vld [vmem:[#allocation13 + $0x1a8] sm:$0xf]
      %v2299 = vld [vmem:[#allocation13 + $0x1ac] sm:$0xf]
      %v2300 = vld [vmem:[#allocation13 + $0x1b0] sm:$0xf]
      %v2301 = vld [vmem:[#allocation13 + $0x1b4] sm:$0xf]
      %v2302 = vld [vmem:[#allocation13 + $0x1b8] sm:$0xf]
      %v2303 = vld [vmem:[#allocation13 + $0x1bc] sm:$0xf]
      %v2304 = vld [vmem:[#allocation13 + $0x1c0] sm:$0xf]
      %v2305 = vld [vmem:[#allocation13 + $0x1c4] sm:$0xf]
      %v2306 = vld [vmem:[#allocation13 + $0x1c8] sm:$0xf]
      %v2307 = vld [vmem:[#allocation13 + $0x1cc] sm:$0xf]
      %v2308 = vld [vmem:[#allocation13 + $0x1d0] sm:$0xf]
      %v2309 = vld [vmem:[#allocation13 + $0x1d4] sm:$0xf]
      %v2310 = vld [vmem:[#allocation13 + $0x1d8] sm:$0xf]
      %v2311 = vld [vmem:[#allocation13 + $0x1dc] sm:$0xf]
      %v2312 = vld [vmem:[#allocation13 + $0x1e0] sm:$0xf]
      %v2313 = vld [vmem:[#allocation13 + $0x1e4] sm:$0xf]
      %v2314 = vld [vmem:[#allocation13 + $0x1e8] sm:$0xf]
      %v2315 = vld [vmem:[#allocation13 + $0x1ec] sm:$0xf]
      %v2316 = vld [vmem:[#allocation13 + $0x1f0] sm:$0xf]
      %v2317 = vld [vmem:[#allocation13 + $0x1f4] sm:$0xf]
      %v2318 = vld [vmem:[#allocation13 + $0x1f8] sm:$0xf]
      %v2319 = vld [vmem:[#allocation13 + $0x1fc] sm:$0xf]
      %v2320 = vld [vmem:[#allocation13 + $0x200] sm:$0xf]
      %v2321 = vld [vmem:[#allocation13 + $0x204] sm:$0xf]
      %v2322 = vld [vmem:[#allocation13 + $0x208] sm:$0xf]
      %v2323 = vld [vmem:[#allocation13 + $0x20c] sm:$0xf]
      %v2324 = vld [vmem:[#allocation13 + $0x210] sm:$0xf]
      %v2325 = vld [vmem:[#allocation13 + $0x214] sm:$0xf]
      %v2326 = vld [vmem:[#allocation13 + $0x218] sm:$0xf]
      %v2327 = vld [vmem:[#allocation13 + $0x21c] sm:$0xf]
      %v2328 = vld [vmem:[#allocation13 + $0x220] sm:$0xf]
      %v2329 = vld [vmem:[#allocation13 + $0x224] sm:$0xf]
      %v2330 = vld [vmem:[#allocation13 + $0x228] sm:$0xf]
      %v2331 = vld [vmem:[#allocation13 + $0x22c] sm:$0xf]
      %v2332 = vld [vmem:[#allocation13 + $0x230] sm:$0xf]
      %v2333 = vld [vmem:[#allocation13 + $0x234] sm:$0xf]
      %v2334 = vld [vmem:[#allocation13 + $0x238] sm:$0xf]
      %v2335 = vld [vmem:[#allocation13 + $0x23c] sm:$0xf]
      %v2336 = vld [vmem:[#allocation13 + $0x240] sm:$0xf]
      %v2337 = vld [vmem:[#allocation13 + $0x244] sm:$0xf]
      %v2338 = vld [vmem:[#allocation13 + $0x248] sm:$0xf]
      %v2339 = vld [vmem:[#allocation13 + $0x24c] sm:$0xf]
      %v2340 = vld [vmem:[#allocation13 + $0x250] sm:$0xf]
      %v2341 = vld [vmem:[#allocation13 + $0x254] sm:$0xf]
      %v2342 = vld [vmem:[#allocation13 + $0x258] sm:$0xf]
      %v2343 = vld [vmem:[#allocation13 + $0x25c] sm:$0xf]
      %v2344 = vld [vmem:[#allocation13 + $0x260] sm:$0xf]
      %v2345 = vld [vmem:[#allocation13 + $0x264] sm:$0xf]
      %v2346 = vld [vmem:[#allocation13 + $0x268] sm:$0xf]
      %v2347 = vld [vmem:[#allocation13 + $0x26c] sm:$0xf]
      %v2348 = vld [vmem:[#allocation13 + $0x270] sm:$0xf]
      %v2349 = vld [vmem:[#allocation13 + $0x274] sm:$0xf]
      %v2350 = vld [vmem:[#allocation13 + $0x278] sm:$0xf]
      %v2351 = vld [vmem:[#allocation13 + $0x27c] sm:$0xf]
      %v2352 = vld [vmem:[#allocation13 + $0x280] sm:$0xf]
      %v2353 = vld [vmem:[#allocation13 + $0x284] sm:$0xf]
      %v2354 = vld [vmem:[#allocation13 + $0x288] sm:$0xf]
      %v2355 = vld [vmem:[#allocation13 + $0x28c] sm:$0xf]
      %v2356 = vld [vmem:[#allocation13 + $0x290] sm:$0xf]
      %v2357 = vld [vmem:[#allocation13 + $0x294] sm:$0xf]
      %v2358 = vld [vmem:[#allocation13 + $0x298] sm:$0xf]
      %v2359 = vld [vmem:[#allocation13 + $0x29c] sm:$0xf]
      %v2360 = vld [vmem:[#allocation13 + $0x2a0] sm:$0xf]
      %v2361 = vld [vmem:[#allocation13 + $0x2a4] sm:$0xf]
      %v2362 = vld [vmem:[#allocation13 + $0x2a8] sm:$0xf]
      %v2363 = vld [vmem:[#allocation13 + $0x2ac] sm:$0xf]
      %v2364 = vld [vmem:[#allocation13 + $0x2b0] sm:$0xf]
      %v2365 = vld [vmem:[#allocation13 + $0x2b4] sm:$0xf]
      %v2366 = vld [vmem:[#allocation13 + $0x2b8] sm:$0xf]
      %v2367 = vld [vmem:[#allocation13 + $0x2bc] sm:$0xf]
      %v2368 = vld [vmem:[#allocation13 + $0x2c0] sm:$0xf]
      %v2369 = vld [vmem:[#allocation13 + $0x2c4] sm:$0xf]
      %v2370 = vld [vmem:[#allocation13 + $0x2c8] sm:$0xf]
      %v2371 = vld [vmem:[#allocation13 + $0x2cc] sm:$0xf]
      %v2372 = vld [vmem:[#allocation13 + $0x2d0] sm:$0xf]
      %v2373 = vld [vmem:[#allocation13 + $0x2d4] sm:$0xf]
      %v2374 = vld [vmem:[#allocation13 + $0x2d8] sm:$0xf]
      %v2375 = vld [vmem:[#allocation13 + $0x2dc] sm:$0xf]
      %v2376 = vld [vmem:[#allocation13 + $0x2e0] sm:$0xf]
      %v2377 = vld [vmem:[#allocation13 + $0x2e4] sm:$0xf]
      %v2378 = vld [vmem:[#allocation13 + $0x2e8] sm:$0xf]
      %v2379 = vld [vmem:[#allocation13 + $0x2ec] sm:$0xf]
      %v2380 = vld [vmem:[#allocation13 + $0x2f0] sm:$0xf]
      %v2381 = vld [vmem:[#allocation13 + $0x2f4] sm:$0xf]
      %v2382 = vld [vmem:[#allocation13 + $0x2f8] sm:$0xf]
      %v2383 = vld [vmem:[#allocation13 + $0x2fc] sm:$0xf]
      %v2384 = vld [vmem:[#allocation13 + $0x300] sm:$0xf]
      %v2385 = vld [vmem:[#allocation13 + $0x304] sm:$0xf]
      %v2386 = vld [vmem:[#allocation13 + $0x308] sm:$0xf]
      %v2387 = vld [vmem:[#allocation13 + $0x30c] sm:$0xf]
      %v2388 = vld [vmem:[#allocation13 + $0x310] sm:$0xf]
      %v2389 = vld [vmem:[#allocation13 + $0x314] sm:$0xf]
      %v2390 = vld [vmem:[#allocation13 + $0x318] sm:$0xf]
      %v2391 = vld [vmem:[#allocation13 + $0x31c] sm:$0xf]
      %v2392 = vld [vmem:[#allocation13 + $0x320] sm:$0xf]
      %v2393 = vld [vmem:[#allocation13 + $0x324] sm:$0xf]
      %v2394 = vld [vmem:[#allocation13 + $0x328] sm:$0xf]
      %v2395 = vld [vmem:[#allocation13 + $0x32c] sm:$0xf]
      %v2396 = vld [vmem:[#allocation13 + $0x330] sm:$0xf]
      %v2397 = vld [vmem:[#allocation13 + $0x334] sm:$0xf]
      %v2398 = vld [vmem:[#allocation13 + $0x338] sm:$0xf]
      %v2399 = vld [vmem:[#allocation13 + $0x33c] sm:$0xf]
      %v2400 = vld [vmem:[#allocation13 + $0x340] sm:$0xf]
      %v2401 = vld [vmem:[#allocation13 + $0x344] sm:$0xf]
      %v2402 = vld [vmem:[#allocation13 + $0x348] sm:$0xf]
      %v2403 = vld [vmem:[#allocation13 + $0x34c] sm:$0xf]
      %v2404 = vld [vmem:[#allocation13 + $0x350] sm:$0xf]
      %v2405 = vld [vmem:[#allocation13 + $0x354] sm:$0xf]
      %v2406 = vld [vmem:[#allocation13 + $0x358] sm:$0xf]
      %v2407 = vld [vmem:[#allocation13 + $0x35c] sm:$0xf]
      %v2408 = vld [vmem:[#allocation13 + $0x360] sm:$0xf]
      %v2409 = vld [vmem:[#allocation13 + $0x364] sm:$0xf]
      %v2410 = vld [vmem:[#allocation13 + $0x368] sm:$0xf]
      %v2411 = vld [vmem:[#allocation13 + $0x36c] sm:$0xf]
      %v2412 = vld [vmem:[#allocation13 + $0x370] sm:$0xf]
      %v2413 = vld [vmem:[#allocation13 + $0x374] sm:$0xf]
      %v2414 = vld [vmem:[#allocation13 + $0x378] sm:$0xf]
      %v2415 = vld [vmem:[#allocation13 + $0x37c] sm:$0xf]
      %v2416 = vld [vmem:[#allocation13 + $0x380] sm:$0xf]
      %v2417 = vld [vmem:[#allocation13 + $0x384] sm:$0xf]
      %v2418 = vld [vmem:[#allocation13 + $0x388] sm:$0xf]
      %v2419 = vld [vmem:[#allocation13 + $0x38c] sm:$0xf]
      %v2420 = vld [vmem:[#allocation13 + $0x390] sm:$0xf]
      %v2421 = vld [vmem:[#allocation13 + $0x394] sm:$0xf]
      %v2422 = vld [vmem:[#allocation13 + $0x398] sm:$0xf]
      %v2423 = vld [vmem:[#allocation13 + $0x39c] sm:$0xf]
      %v2424 = vld [vmem:[#allocation13 + $0x3a0] sm:$0xf]
      %v2425 = vld [vmem:[#allocation13 + $0x3a4] sm:$0xf]
      %v2426 = vld [vmem:[#allocation13 + $0x3a8] sm:$0xf]
      %v2427 = vld [vmem:[#allocation13 + $0x3ac] sm:$0xf]
      %v2428 = vld [vmem:[#allocation13 + $0x3b0] sm:$0xf]
      %v2429 = vld [vmem:[#allocation13 + $0x3b4] sm:$0xf]
      %v2430 = vld [vmem:[#allocation13 + $0x3b8] sm:$0xf]
      %v2431 = vld [vmem:[#allocation13 + $0x3bc] sm:$0xf]
      %v2432 = vld [vmem:[#allocation13 + $0x3c0] sm:$0xf]
      %v2433 = vld [vmem:[#allocation13 + $0x3c4] sm:$0xf]
      %v2434 = vld [vmem:[#allocation13 + $0x3c8] sm:$0xf]
      %v2435 = vld [vmem:[#allocation13 + $0x3cc] sm:$0xf]
      %v2436 = vld [vmem:[#allocation13 + $0x3d0] sm:$0xf]
      %v2437 = vld [vmem:[#allocation13 + $0x3d4] sm:$0xf]
      %v2438 = vld [vmem:[#allocation13 + $0x3d8] sm:$0xf]
      %v2439 = vld [vmem:[#allocation13 + $0x3dc] sm:$0xf]
      %v2440 = vld [vmem:[#allocation13 + $0x3e0] sm:$0xf]
      %v2441 = vld [vmem:[#allocation13 + $0x3e4] sm:$0xf]
      %v2442 = vld [vmem:[#allocation13 + $0x3e8] sm:$0xf]
      %v2443 = vld [vmem:[#allocation13 + $0x3ec] sm:$0xf]
      %v2444 = vld [vmem:[#allocation13 + $0x3f0] sm:$0xf]
      %v2445 = vld [vmem:[#allocation13 + $0x3f4] sm:$0xf]
      %v2446 = vld [vmem:[#allocation13 + $0x3f8] sm:$0xf]
      %v2447 = vld [vmem:[#allocation13 + $0x3fc] sm:$0xf]
      %v2456 = vunpack.c.l.b16 %v2184
      %v2457 = vunpack.c.h.b16 %v2184
      %v2458 = vunpack.c.l.b16 %v2185
      %v2459 = vunpack.c.h.b16 %v2185
      %v2460 = vunpack.c.l.b16 %v2186
      %v2461 = vunpack.c.h.b16 %v2186
      %v2462 = vunpack.c.l.b16 %v2187
      %v2463 = vunpack.c.h.b16 %v2187
      %v2464 = vunpack.c.l.b16 %v2188
      %v2465 = vunpack.c.h.b16 %v2188
      %v2466 = vunpack.c.l.b16 %v2189
      %v2467 = vunpack.c.h.b16 %v2189
      %v2468 = vunpack.c.l.b16 %v2190
      %v2469 = vunpack.c.h.b16 %v2190
      %v2470 = vunpack.c.l.b16 %v2191
      %v2471 = vunpack.c.h.b16 %v2191
      %v2472 = vpack.c.b16 %v2456, %v2456
      %v2473 = vpack.c.b16 %v2457, %v2457
      %v2474 = vpack.c.b16 %v2458, %v2458
      %v2475 = vpack.c.b16 %v2459, %v2459
      %v2476 = vpack.c.b16 %v2460, %v2460
      %v2477 = vpack.c.b16 %v2461, %v2461
      %v2478 = vpack.c.b16 %v2462, %v2462
      %v2479 = vpack.c.b16 %v2463, %v2463
      %v2480 = vpack.c.b16 %v2464, %v2464
      %v2481 = vpack.c.b16 %v2465, %v2465
      %v2482 = vpack.c.b16 %v2466, %v2466
      %v2483 = vpack.c.b16 %v2467, %v2467
      %v2484 = vpack.c.b16 %v2468, %v2468
      %v2485 = vpack.c.b16 %v2469, %v2469
      %v2486 = vpack.c.b16 %v2470, %v2470
      %v2487 = vpack.c.b16 %v2471, %v2471
      %v2760 = vunpack.c.l.b16 %v2192
      %v2761 = vunpack.c.l.b16 %v2193
      %v2762 = vunpack.c.l.b16 %v2194
      %v2763 = vunpack.c.l.b16 %v2195
      %v2764 = vunpack.c.l.b16 %v2196
      %v2765 = vunpack.c.l.b16 %v2197
      %v2766 = vunpack.c.l.b16 %v2198
      %v2767 = vunpack.c.l.b16 %v2199
      %v2768 = vunpack.c.l.b16 %v2200
      %v2769 = vunpack.c.l.b16 %v2201
      %v2770 = vunpack.c.l.b16 %v2202
      %v2771 = vunpack.c.l.b16 %v2203
      %v2772 = vunpack.c.l.b16 %v2204
      %v2773 = vunpack.c.l.b16 %v2205
      %v2774 = vunpack.c.l.b16 %v2206
      %v2775 = vunpack.c.l.b16 %v2207
      %v2776 = vunpack.c.l.b16 %v2208
      %v2777 = vunpack.c.l.b16 %v2209
      %v2778 = vunpack.c.l.b16 %v2210
      %v2779 = vunpack.c.l.b16 %v2211
      %v2780 = vunpack.c.l.b16 %v2212
      %v2781 = vunpack.c.l.b16 %v2213
      %v2782 = vunpack.c.l.b16 %v2214
      %v2783 = vunpack.c.l.b16 %v2215
      %v2784 = vunpack.c.l.b16 %v2216
      %v2785 = vunpack.c.l.b16 %v2217
      %v2786 = vunpack.c.l.b16 %v2218
      %v2787 = vunpack.c.l.b16 %v2219
      %v2788 = vunpack.c.l.b16 %v2220
      %v2789 = vunpack.c.l.b16 %v2221
      %v2790 = vunpack.c.l.b16 %v2222
      %v2791 = vunpack.c.l.b16 %v2223
      %v2792 = vunpack.c.l.b16 %v2224
      %v2793 = vunpack.c.l.b16 %v2225
      %v2794 = vunpack.c.l.b16 %v2226
      %v2795 = vunpack.c.l.b16 %v2227
      %v2796 = vunpack.c.l.b16 %v2228
      %v2797 = vunpack.c.l.b16 %v2229
      %v2798 = vunpack.c.l.b16 %v2230
      %v2799 = vunpack.c.l.b16 %v2231
      %v2800 = vunpack.c.l.b16 %v2232
      %v2801 = vunpack.c.l.b16 %v2233
      %v2802 = vunpack.c.l.b16 %v2234
      %v2803 = vunpack.c.l.b16 %v2235
      %v2804 = vunpack.c.l.b16 %v2236
      %v2805 = vunpack.c.l.b16 %v2237
      %v2806 = vunpack.c.l.b16 %v2238
      %v2807 = vunpack.c.l.b16 %v2239
      %v2808 = vunpack.c.l.b16 %v2240
      %v2809 = vunpack.c.l.b16 %v2241
      %v2810 = vunpack.c.l.b16 %v2242
      %v2811 = vunpack.c.l.b16 %v2243
      %v2812 = vunpack.c.l.b16 %v2244
      %v2813 = vunpack.c.l.b16 %v2245
      %v2814 = vunpack.c.l.b16 %v2246
      %v2815 = vunpack.c.l.b16 %v2247
      %v2816 = vunpack.c.l.b16 %v2248
      %v2817 = vunpack.c.l.b16 %v2249
      %v2818 = vunpack.c.l.b16 %v2250
      %v2819 = vunpack.c.l.b16 %v2251
      %v2820 = vunpack.c.l.b16 %v2252
      %v2821 = vunpack.c.l.b16 %v2253
      %v2822 = vunpack.c.l.b16 %v2254
      %v2823 = vunpack.c.l.b16 %v2255
      %v2824 = vunpack.c.l.b16 %v2256
      %v2825 = vunpack.c.l.b16 %v2257
      %v2826 = vunpack.c.l.b16 %v2258
      %v2827 = vunpack.c.l.b16 %v2259
      %v2828 = vunpack.c.l.b16 %v2260
      %v2829 = vunpack.c.l.b16 %v2261
      %v2830 = vunpack.c.l.b16 %v2262
      %v2831 = vunpack.c.l.b16 %v2263
      %v2832 = vunpack.c.l.b16 %v2264
      %v2833 = vunpack.c.l.b16 %v2265
      %v2834 = vunpack.c.l.b16 %v2266
      %v2835 = vunpack.c.l.b16 %v2267
      %v2836 = vunpack.c.l.b16 %v2268
      %v2837 = vunpack.c.l.b16 %v2269
      %v2838 = vunpack.c.l.b16 %v2270
      %v2839 = vunpack.c.l.b16 %v2271
      %v2840 = vunpack.c.l.b16 %v2272
      %v2841 = vunpack.c.l.b16 %v2273
      %v2842 = vunpack.c.l.b16 %v2274
      %v2843 = vunpack.c.l.b16 %v2275
      %v2844 = vunpack.c.l.b16 %v2276
      %v2845 = vunpack.c.l.b16 %v2277
      %v2846 = vunpack.c.l.b16 %v2278
      %v2847 = vunpack.c.l.b16 %v2279
      %v2848 = vunpack.c.l.b16 %v2280
      %v2849 = vunpack.c.l.b16 %v2281
      %v2850 = vunpack.c.l.b16 %v2282
      %v2851 = vunpack.c.l.b16 %v2283
      %v2852 = vunpack.c.l.b16 %v2284
      %v2853 = vunpack.c.l.b16 %v2285
      %v2854 = vunpack.c.l.b16 %v2286
      %v2855 = vunpack.c.l.b16 %v2287
      %v2856 = vunpack.c.l.b16 %v2288
      %v2857 = vunpack.c.l.b16 %v2289
      %v2858 = vunpack.c.l.b16 %v2290
      %v2859 = vunpack.c.l.b16 %v2291
      %v2860 = vunpack.c.l.b16 %v2292
      %v2861 = vunpack.c.l.b16 %v2293
      %v2862 = vunpack.c.l.b16 %v2294
      %v2863 = vunpack.c.l.b16 %v2295
      %v2864 = vunpack.c.l.b16 %v2296
      %v2865 = vunpack.c.l.b16 %v2297
      %v2866 = vunpack.c.l.b16 %v2298
      %v2867 = vunpack.c.l.b16 %v2299
      %v2868 = vunpack.c.l.b16 %v2300
      %v2869 = vunpack.c.l.b16 %v2301
      %v2870 = vunpack.c.l.b16 %v2302
      %v2871 = vunpack.c.l.b16 %v2303
      %v2872 = vunpack.c.l.b16 %v2304
      %v2873 = vunpack.c.l.b16 %v2305
      %v2874 = vunpack.c.l.b16 %v2306
      %v2875 = vunpack.c.l.b16 %v2307
      %v2876 = vunpack.c.l.b16 %v2308
      %v2877 = vunpack.c.l.b16 %v2309
      %v2878 = vunpack.c.l.b16 %v2310
      %v2879 = vunpack.c.l.b16 %v2311
      %v2880 = vunpack.c.l.b16 %v2312
      %v2881 = vunpack.c.l.b16 %v2313
      %v2882 = vunpack.c.l.b16 %v2314
      %v2883 = vunpack.c.l.b16 %v2315
      %v2884 = vunpack.c.l.b16 %v2316
      %v2885 = vunpack.c.l.b16 %v2317
      %v2886 = vunpack.c.l.b16 %v2318
      %v2887 = vunpack.c.l.b16 %v2319
      %v2888 = vunpack.c.l.b16 %v2320
      %v2889 = vunpack.c.l.b16 %v2321
      %v2890 = vunpack.c.l.b16 %v2322
      %v2891 = vunpack.c.l.b16 %v2323
      %v2892 = vunpack.c.l.b16 %v2324
      %v2893 = vunpack.c.l.b16 %v2325
      %v2894 = vunpack.c.l.b16 %v2326
      %v2895 = vunpack.c.l.b16 %v2327
      %v2896 = vunpack.c.l.b16 %v2328
      %v2897 = vunpack.c.l.b16 %v2329
      %v2898 = vunpack.c.l.b16 %v2330
      %v2899 = vunpack.c.l.b16 %v2331
      %v2900 = vunpack.c.l.b16 %v2332
      %v2901 = vunpack.c.l.b16 %v2333
      %v2902 = vunpack.c.l.b16 %v2334
      %v2903 = vunpack.c.l.b16 %v2335
      %v2904 = vunpack.c.l.b16 %v2336
      %v2905 = vunpack.c.l.b16 %v2337
      %v2906 = vunpack.c.l.b16 %v2338
      %v2907 = vunpack.c.l.b16 %v2339
      %v2908 = vunpack.c.l.b16 %v2340
      %v2909 = vunpack.c.l.b16 %v2341
      %v2910 = vunpack.c.l.b16 %v2342
      %v2911 = vunpack.c.l.b16 %v2343
      %v2912 = vunpack.c.l.b16 %v2344
      %v2913 = vunpack.c.l.b16 %v2345
      %v2914 = vunpack.c.l.b16 %v2346
      %v2915 = vunpack.c.l.b16 %v2347
      %v2916 = vunpack.c.l.b16 %v2348
      %v2917 = vunpack.c.l.b16 %v2349
      %v2918 = vunpack.c.l.b16 %v2350
      %v2919 = vunpack.c.l.b16 %v2351
      %v2920 = vunpack.c.l.b16 %v2352
      %v2921 = vunpack.c.l.b16 %v2353
      %v2922 = vunpack.c.l.b16 %v2354
      %v2923 = vunpack.c.l.b16 %v2355
      %v2924 = vunpack.c.l.b16 %v2356
      %v2925 = vunpack.c.l.b16 %v2357
      %v2926 = vunpack.c.l.b16 %v2358
      %v2927 = vunpack.c.l.b16 %v2359
      %v2928 = vunpack.c.l.b16 %v2360
      %v2929 = vunpack.c.l.b16 %v2361
      %v2930 = vunpack.c.l.b16 %v2362
      %v2931 = vunpack.c.l.b16 %v2363
      %v2932 = vunpack.c.l.b16 %v2364
      %v2933 = vunpack.c.l.b16 %v2365
      %v2934 = vunpack.c.l.b16 %v2366
      %v2935 = vunpack.c.l.b16 %v2367
      %v2936 = vunpack.c.l.b16 %v2368
      %v2937 = vunpack.c.l.b16 %v2369
      %v2938 = vunpack.c.l.b16 %v2370
      %v2939 = vunpack.c.l.b16 %v2371
      %v2940 = vunpack.c.l.b16 %v2372
      %v2941 = vunpack.c.l.b16 %v2373
      %v2942 = vunpack.c.l.b16 %v2374
      %v2943 = vunpack.c.l.b16 %v2375
      %v2944 = vunpack.c.l.b16 %v2376
      %v2945 = vunpack.c.l.b16 %v2377
      %v2946 = vunpack.c.l.b16 %v2378
      %v2947 = vunpack.c.l.b16 %v2379
      %v2948 = vunpack.c.l.b16 %v2380
      %v2949 = vunpack.c.l.b16 %v2381
      %v2950 = vunpack.c.l.b16 %v2382
      %v2951 = vunpack.c.l.b16 %v2383
      %v2952 = vunpack.c.l.b16 %v2384
      %v2953 = vunpack.c.l.b16 %v2385
      %v2954 = vunpack.c.l.b16 %v2386
      %v2955 = vunpack.c.l.b16 %v2387
      %v2956 = vunpack.c.l.b16 %v2388
      %v2957 = vunpack.c.l.b16 %v2389
      %v2958 = vunpack.c.l.b16 %v2390
      %v2959 = vunpack.c.l.b16 %v2391
      %v2960 = vunpack.c.l.b16 %v2392
      %v2961 = vunpack.c.l.b16 %v2393
      %v2962 = vunpack.c.l.b16 %v2394
      %v2963 = vunpack.c.l.b16 %v2395
      %v2964 = vunpack.c.l.b16 %v2396
      %v2965 = vunpack.c.l.b16 %v2397
      %v2966 = vunpack.c.l.b16 %v2398
      %v2967 = vunpack.c.l.b16 %v2399
      %v2968 = vunpack.c.l.b16 %v2400
      %v2969 = vunpack.c.l.b16 %v2401
      %v2970 = vunpack.c.l.b16 %v2402
      %v2971 = vunpack.c.l.b16 %v2403
      %v2972 = vunpack.c.l.b16 %v2404
      %v2973 = vunpack.c.l.b16 %v2405
      %v2974 = vunpack.c.l.b16 %v2406
      %v2975 = vunpack.c.l.b16 %v2407
      %v2976 = vunpack.c.l.b16 %v2408
      %v2977 = vunpack.c.l.b16 %v2409
      %v2978 = vunpack.c.l.b16 %v2410
      %v2979 = vunpack.c.l.b16 %v2411
      %v2980 = vunpack.c.l.b16 %v2412
      %v2981 = vunpack.c.l.b16 %v2413
      %v2982 = vunpack.c.l.b16 %v2414
      %v2983 = vunpack.c.l.b16 %v2415
      %v2984 = vunpack.c.l.b16 %v2416
      %v2985 = vunpack.c.l.b16 %v2417
      %v2986 = vunpack.c.l.b16 %v2418
      %v2987 = vunpack.c.l.b16 %v2419
      %v2988 = vunpack.c.l.b16 %v2420
      %v2989 = vunpack.c.l.b16 %v2421
      %v2990 = vunpack.c.l.b16 %v2422
      %v2991 = vunpack.c.l.b16 %v2423
      %v2992 = vunpack.c.l.b16 %v2424
      %v2993 = vunpack.c.l.b16 %v2425
      %v2994 = vunpack.c.l.b16 %v2426
      %v2995 = vunpack.c.l.b16 %v2427
      %v2996 = vunpack.c.l.b16 %v2428
      %v2997 = vunpack.c.l.b16 %v2429
      %v2998 = vunpack.c.l.b16 %v2430
      %v2999 = vunpack.c.l.b16 %v2431
      %v3000 = vunpack.c.l.b16 %v2432
      %v3001 = vunpack.c.l.b16 %v2433
      %v3002 = vunpack.c.l.b16 %v2434
      %v3003 = vunpack.c.l.b16 %v2435
      %v3004 = vunpack.c.l.b16 %v2436
      %v3005 = vunpack.c.l.b16 %v2437
      %v3006 = vunpack.c.l.b16 %v2438
      %v3007 = vunpack.c.l.b16 %v2439
      %v3008 = vunpack.c.l.b16 %v2440
      %v3009 = vunpack.c.l.b16 %v2441
      %v3010 = vunpack.c.l.b16 %v2442
      %v3011 = vunpack.c.l.b16 %v2443
      %v3012 = vunpack.c.l.b16 %v2444
      %v3013 = vunpack.c.l.b16 %v2445
      %v3014 = vunpack.c.l.b16 %v2446
      %v3015 = vunpack.c.l.b16 %v2447
      %v3016 = vpack.c.b16 %v2761, %v2760
      %v3017 = vpack.c.b16 %v2763, %v2762
      %v3018 = vpack.c.b16 %v2765, %v2764
      %v3019 = vpack.c.b16 %v2767, %v2766
      %v3020 = vpack.c.b16 %v2769, %v2768
      %v3021 = vpack.c.b16 %v2771, %v2770
      %v3022 = vpack.c.b16 %v2773, %v2772
      %v3023 = vpack.c.b16 %v2775, %v2774
      %v3024 = vpack.c.b16 %v2777, %v2776
      %v3025 = vpack.c.b16 %v2779, %v2778
      %v3026 = vpack.c.b16 %v2781, %v2780
      %v3027 = vpack.c.b16 %v2783, %v2782
      %v3028 = vpack.c.b16 %v2785, %v2784
      %v3029 = vpack.c.b16 %v2787, %v2786
      %v3030 = vpack.c.b16 %v2789, %v2788
      %v3031 = vpack.c.b16 %v2791, %v2790
      %v3032 = vpack.c.b16 %v2793, %v2792
      %v3033 = vpack.c.b16 %v2795, %v2794
      %v3034 = vpack.c.b16 %v2797, %v2796
      %v3035 = vpack.c.b16 %v2799, %v2798
      %v3036 = vpack.c.b16 %v2801, %v2800
      %v3037 = vpack.c.b16 %v2803, %v2802
      %v3038 = vpack.c.b16 %v2805, %v2804
      %v3039 = vpack.c.b16 %v2807, %v2806
      %v3040 = vpack.c.b16 %v2809, %v2808
      %v3041 = vpack.c.b16 %v2811, %v2810
      %v3042 = vpack.c.b16 %v2813, %v2812
      %v3043 = vpack.c.b16 %v2815, %v2814
      %v3044 = vpack.c.b16 %v2817, %v2816
      %v3045 = vpack.c.b16 %v2819, %v2818
      %v3046 = vpack.c.b16 %v2821, %v2820
      %v3047 = vpack.c.b16 %v2823, %v2822
      %v3048 = vpack.c.b16 %v2825, %v2824
      %v3049 = vpack.c.b16 %v2827, %v2826
      %v3050 = vpack.c.b16 %v2829, %v2828
      %v3051 = vpack.c.b16 %v2831, %v2830
      %v3052 = vpack.c.b16 %v2833, %v2832
      %v3053 = vpack.c.b16 %v2835, %v2834
      %v3054 = vpack.c.b16 %v2837, %v2836
      %v3055 = vpack.c.b16 %v2839, %v2838
      %v3056 = vpack.c.b16 %v2841, %v2840
      %v3057 = vpack.c.b16 %v2843, %v2842
      %v3058 = vpack.c.b16 %v2845, %v2844
      %v3059 = vpack.c.b16 %v2847, %v2846
      %v3060 = vpack.c.b16 %v2849, %v2848
      %v3061 = vpack.c.b16 %v2851, %v2850
      %v3062 = vpack.c.b16 %v2853, %v2852
      %v3063 = vpack.c.b16 %v2855, %v2854
      %v3064 = vpack.c.b16 %v2857, %v2856
      %v3065 = vpack.c.b16 %v2859, %v2858
      %v3066 = vpack.c.b16 %v2861, %v2860
      %v3067 = vpack.c.b16 %v2863, %v2862
      %v3068 = vpack.c.b16 %v2865, %v2864
      %v3069 = vpack.c.b16 %v2867, %v2866
      %v3070 = vpack.c.b16 %v2869, %v2868
      %v3071 = vpack.c.b16 %v2871, %v2870
      %v3072 = vpack.c.b16 %v2873, %v2872
      %v3073 = vpack.c.b16 %v2875, %v2874
      %v3074 = vpack.c.b16 %v2877, %v2876
      %v3075 = vpack.c.b16 %v2879, %v2878
      %v3076 = vpack.c.b16 %v2881, %v2880
      %v3077 = vpack.c.b16 %v2883, %v2882
      %v3078 = vpack.c.b16 %v2885, %v2884
      %v3079 = vpack.c.b16 %v2887, %v2886
      %v3080 = vpack.c.b16 %v2889, %v2888
      %v3081 = vpack.c.b16 %v2891, %v2890
      %v3082 = vpack.c.b16 %v2893, %v2892
      %v3083 = vpack.c.b16 %v2895, %v2894
      %v3084 = vpack.c.b16 %v2897, %v2896
      %v3085 = vpack.c.b16 %v2899, %v2898
      %v3086 = vpack.c.b16 %v2901, %v2900
      %v3087 = vpack.c.b16 %v2903, %v2902
      %v3088 = vpack.c.b16 %v2905, %v2904
      %v3089 = vpack.c.b16 %v2907, %v2906
      %v3090 = vpack.c.b16 %v2909, %v2908
      %v3091 = vpack.c.b16 %v2911, %v2910
      %v3092 = vpack.c.b16 %v2913, %v2912
      %v3093 = vpack.c.b16 %v2915, %v2914
      %v3094 = vpack.c.b16 %v2917, %v2916
      %v3095 = vpack.c.b16 %v2919, %v2918
      %v3096 = vpack.c.b16 %v2921, %v2920
      %v3097 = vpack.c.b16 %v2923, %v2922
      %v3098 = vpack.c.b16 %v2925, %v2924
      %v3099 = vpack.c.b16 %v2927, %v2926
      %v3100 = vpack.c.b16 %v2929, %v2928
      %v3101 = vpack.c.b16 %v2931, %v2930
      %v3102 = vpack.c.b16 %v2933, %v2932
      %v3103 = vpack.c.b16 %v2935, %v2934
      %v3104 = vpack.c.b16 %v2937, %v2936
      %v3105 = vpack.c.b16 %v2939, %v2938
      %v3106 = vpack.c.b16 %v2941, %v2940
      %v3107 = vpack.c.b16 %v2943, %v2942
      %v3108 = vpack.c.b16 %v2945, %v2944
      %v3109 = vpack.c.b16 %v2947, %v2946
      %v3110 = vpack.c.b16 %v2949, %v2948
      %v3111 = vpack.c.b16 %v2951, %v2950
      %v3112 = vpack.c.b16 %v2953, %v2952
      %v3113 = vpack.c.b16 %v2955, %v2954
      %v3114 = vpack.c.b16 %v2957, %v2956
      %v3115 = vpack.c.b16 %v2959, %v2958
      %v3116 = vpack.c.b16 %v2961, %v2960
      %v3117 = vpack.c.b16 %v2963, %v2962
      %v3118 = vpack.c.b16 %v2965, %v2964
      %v3119 = vpack.c.b16 %v2967, %v2966
      %v3120 = vpack.c.b16 %v2969, %v2968
      %v3121 = vpack.c.b16 %v2971, %v2970
      %v3122 = vpack.c.b16 %v2973, %v2972
      %v3123 = vpack.c.b16 %v2975, %v2974
      %v3124 = vpack.c.b16 %v2977, %v2976
      %v3125 = vpack.c.b16 %v2979, %v2978
      %v3126 = vpack.c.b16 %v2981, %v2980
      %v3127 = vpack.c.b16 %v2983, %v2982
      %v3128 = vpack.c.b16 %v2985, %v2984
      %v3129 = vpack.c.b16 %v2987, %v2986
      %v3130 = vpack.c.b16 %v2989, %v2988
      %v3131 = vpack.c.b16 %v2991, %v2990
      %v3132 = vpack.c.b16 %v2993, %v2992
      %v3133 = vpack.c.b16 %v2995, %v2994
      %v3134 = vpack.c.b16 %v2997, %v2996
      %v3135 = vpack.c.b16 %v2999, %v2998
      %v3136 = vpack.c.b16 %v3001, %v3000
      %v3137 = vpack.c.b16 %v3003, %v3002
      %v3138 = vpack.c.b16 %v3005, %v3004
      %v3139 = vpack.c.b16 %v3007, %v3006
      %v3140 = vpack.c.b16 %v3009, %v3008
      %v3141 = vpack.c.b16 %v3011, %v3010
      %v3142 = vpack.c.b16 %v3013, %v3012
      %v3143 = vpack.c.b16 %v3015, %v3014
      %3272 = vmatprep.subr.bf16.mxu0 0
      %3273 = vmatpush1.bf16.msra.mxu0 %v3016
      %3274 = vmatprep.subr.bf16.mxu0 0
      %3275 = vmatpush1.bf16.msra.mxu0 %v3017
      %3276 = vmatprep.subr.bf16.mxu0 0
      %3277 = vmatpush1.bf16.msra.mxu0 %v3018
      %3278 = vmatprep.subr.bf16.mxu0 0
      %3279 = vmatpush1.bf16.msra.mxu0 %v3019
      %3280 = vmatprep.subr.bf16.mxu0 0
      %3281 = vmatpush1.bf16.msra.mxu0 %v3020
      %3282 = vmatprep.subr.bf16.mxu0 0
      %3283 = vmatpush1.bf16.msra.mxu0 %v3021
      %3284 = vmatprep.subr.bf16.mxu0 0
      %3285 = vmatpush1.bf16.msra.mxu0 %v3022
      %3286 = vmatprep.subr.bf16.mxu0 0
      %3287 = vmatpush1.bf16.msra.mxu0 %v3023
      %3288 = vmatprep.subr.bf16.mxu0 0
      %3289 = vmatpush1.bf16.msra.mxu0 %v3024
      %3290 = vmatprep.subr.bf16.mxu0 0
      %3291 = vmatpush1.bf16.msra.mxu0 %v3025
      %3292 = vmatprep.subr.bf16.mxu0 0
      %3293 = vmatpush1.bf16.msra.mxu0 %v3026
      %3294 = vmatprep.subr.bf16.mxu0 0
      %3295 = vmatpush1.bf16.msra.mxu0 %v3027
      %3296 = vmatprep.subr.bf16.mxu0 0
      %3297 = vmatpush1.bf16.msra.mxu0 %v3028
      %3298 = vmatprep.subr.bf16.mxu0 0
      %3299 = vmatpush1.bf16.msra.mxu0 %v3029
      %3300 = vmatprep.subr.bf16.mxu0 0
      %3301 = vmatpush1.bf16.msra.mxu0 %v3030
      %3302 = vmatprep.subr.bf16.mxu0 0
      %3303 = vmatpush1.bf16.msra.mxu0 %v3031
      %3304 = vmatprep.mubr.bf16.mxu0 %v2473
      %3305 = vmatmul.mubr.bf16.gmra.mrb[0].mxu0 %v2472
      %v3306 = vpop.f32.mrb[0].mxu0
      %v3307 = vadd.f32 0.0, %v3306
      %v3308 = vpop.f32.mrb[0].mxu0
      %v3309 = vpop.f32.mrb[0].mxu0
      %v3310 = vpop.f32.mrb[0].mxu0
      %3311 = vdwg.mxu0
      %3312 = vmatprep.subr.bf16.mxu0 0
      %3313 = vmatpush1.bf16.msra.mxu0 %v3032
      %3314 = vmatprep.subr.bf16.mxu0 0
      %3315 = vmatpush1.bf16.msra.mxu0 %v3033
      %3316 = vmatprep.subr.bf16.mxu0 0
      %3317 = vmatpush1.bf16.msra.mxu0 %v3034
      %3318 = vmatprep.subr.bf16.mxu0 0
      %3319 = vmatpush1.bf16.msra.mxu0 %v3035
      %3320 = vmatprep.subr.bf16.mxu0 0
      %3321 = vmatpush1.bf16.msra.mxu0 %v3036
      %3322 = vmatprep.subr.bf16.mxu0 0
      %3323 = vmatpush1.bf16.msra.mxu0 %v3037
      %3324 = vmatprep.subr.bf16.mxu0 0
      %3325 = vmatpush1.bf16.msra.mxu0 %v3038
      %3326 = vmatprep.subr.bf16.mxu0 0
      %3327 = vmatpush1.bf16.msra.mxu0 %v3039
      %3328 = vmatprep.subr.bf16.mxu0 0
      %3329 = vmatpush1.bf16.msra.mxu0 %v3040
      %3330 = vmatprep.subr.bf16.mxu0 0
      %3331 = vmatpush1.bf16.msra.mxu0 %v3041
      %3332 = vmatprep.subr.bf16.mxu0 0
      %3333 = vmatpush1.bf16.msra.mxu0 %v3042
      %3334 = vmatprep.subr.bf16.mxu0 0
      %3335 = vmatpush1.bf16.msra.mxu0 %v3043
      %3336 = vmatprep.subr.bf16.mxu0 0
      %3337 = vmatpush1.bf16.msra.mxu0 %v3044
      %3338 = vmatprep.subr.bf16.mxu0 0
      %3339 = vmatpush1.bf16.msra.mxu0 %v3045
      %3340 = vmatprep.subr.bf16.mxu0 0
      %3341 = vmatpush1.bf16.msra.mxu0 %v3046
      %3342 = vmatprep.subr.bf16.mxu0 0
      %3343 = vmatpush1.bf16.msra.mxu0 %v3047
      %3344 = vmatprep.mubr.bf16.mxu0 %v2475
      %3345 = vmatmul.mubr.bf16.gmra.mrb[0].mxu0 %v2474
      %v3346 = vpop.f32.mrb[0].mxu0
      %v3347 = vadd.f32 %v3307, %v3346
      %v3348 = vpop.f32.mrb[0].mxu0
      %v3349 = vpop.f32.mrb[0].mxu0
      %v3350 = vpop.f32.mrb[0].mxu0
      %3351 = vdwg.mxu0
      %3352 = vmatprep.subr.bf16.mxu0 0
      %3353 = vmatpush1.bf16.msra.mxu0 %v3048
      %3354 = vmatprep.subr.bf16.mxu0 0
      %3355 = vmatpush1.bf16.msra.mxu0 %v3049
      %3356 = vmatprep.subr.bf16.mxu0 0
      %3357 = vmatpush1.bf16.msra.mxu0 %v3050
      %3358 = vmatprep.subr.bf16.mxu0 0
      %3359 = vmatpush1.bf16.msra.mxu0 %v3051
      %3360 = vmatprep.subr.bf16.mxu0 0
      %3361 = vmatpush1.bf16.msra.mxu0 %v3052
      %3362 = vmatprep.subr.bf16.mxu0 0
      %3363 = vmatpush1.bf16.msra.mxu0 %v3053
      %3364 = vmatprep.subr.bf16.mxu0 0
      %3365 = vmatpush1.bf16.msra.mxu0 %v3054
      %3366 = vmatprep.subr.bf16.mxu0 0
      %3367 = vmatpush1.bf16.msra.mxu0 %v3055
      %3368 = vmatprep.subr.bf16.mxu0 0
      %3369 = vmatpush1.bf16.msra.mxu0 %v3056
      %3370 = vmatprep.subr.bf16.mxu0 0
      %3371 = vmatpush1.bf16.msra.mxu0 %v3057
      %3372 = vmatprep.subr.bf16.mxu0 0
      %3373 = vmatpush1.bf16.msra.mxu0 %v3058
      %3374 = vmatprep.subr.bf16.mxu0 0
      %3375 = vmatpush1.bf16.msra.mxu0 %v3059
      %3376 = vmatprep.subr.bf16.mxu0 0
      %3377 = vmatpush1.bf16.msra.mxu0 %v3060
      %3378 = vmatprep.subr.bf16.mxu0 0
      %3379 = vmatpush1.bf16.msra.mxu0 %v3061
      %3380 = vmatprep.subr.bf16.mxu0 0
      %3381 = vmatpush1.bf16.msra.mxu0 %v3062
      %3382 = vmatprep.subr.bf16.mxu0 0
      %3383 = vmatpush1.bf16.msra.mxu0 %v3063
      %3384 = vmatprep.mubr.bf16.mxu0 %v2477
      %3385 = vmatmul.mubr.bf16.gmra.mrb[0].mxu0 %v2476
      %v3386 = vpop.f32.mrb[0].mxu0
      %v3387 = vadd.f32 %v3347, %v3386
      %v3388 = vpop.f32.mrb[0].mxu0
      %v3389 = vpop.f32.mrb[0].mxu0
      %v3390 = vpop.f32.mrb[0].mxu0
      %3391 = vdwg.mxu0
      %3392 = vmatprep.subr.bf16.mxu0 0
      %3393 = vmatpush1.bf16.msra.mxu0 %v3064
      %3394 = vmatprep.subr.bf16.mxu0 0
      %3395 = vmatpush1.bf16.msra.mxu0 %v3065
      %3396 = vmatprep.subr.bf16.mxu0 0
      %3397 = vmatpush1.bf16.msra.mxu0 %v3066
      %3398 = vmatprep.subr.bf16.mxu0 0
      %3399 = vmatpush1.bf16.msra.mxu0 %v3067
      %3400 = vmatprep.subr.bf16.mxu0 0
      %3401 = vmatpush1.bf16.msra.mxu0 %v3068
      %3402 = vmatprep.subr.bf16.mxu0 0
      %3403 = vmatpush1.bf16.msra.mxu0 %v3069
      %3404 = vmatprep.subr.bf16.mxu0 0
      %3405 = vmatpush1.bf16.msra.mxu0 %v3070
      %3406 = vmatprep.subr.bf16.mxu0 0
      %3407 = vmatpush1.bf16.msra.mxu0 %v3071
      %3408 = vmatprep.subr.bf16.mxu0 0
      %3409 = vmatpush1.bf16.msra.mxu0 %v3072
      %3410 = vmatprep.subr.bf16.mxu0 0
      %3411 = vmatpush1.bf16.msra.mxu0 %v3073
      %3412 = vmatprep.subr.bf16.mxu0 0
      %3413 = vmatpush1.bf16.msra.mxu0 %v3074
      %3414 = vmatprep.subr.bf16.mxu0 0
      %3415 = vmatpush1.bf16.msra.mxu0 %v3075
      %3416 = vmatprep.subr.bf16.mxu0 0
      %3417 = vmatpush1.bf16.msra.mxu0 %v3076
      %3418 = vmatprep.subr.bf16.mxu0 0
      %3419 = vmatpush1.bf16.msra.mxu0 %v3077
      %3420 = vmatprep.subr.bf16.mxu0 0
      %3421 = vmatpush1.bf16.msra.mxu0 %v3078
      %3422 = vmatprep.subr.bf16.mxu0 0
      %3423 = vmatpush1.bf16.msra.mxu0 %v3079
      %3424 = vmatprep.mubr.bf16.mxu0 %v2479
      %3425 = vmatmul.mubr.bf16.gmra.mrb[0].mxu0 %v2478
      %v3426 = vpop.f32.mrb[0].mxu0
      %v3427 = vadd.f32 %v3387, %v3426
      %v3428 = vpop.f32.mrb[0].mxu0
      %v3429 = vpop.f32.mrb[0].mxu0
      %v3430 = vpop.f32.mrb[0].mxu0
      %3431 = vdwg.mxu0
      %3432 = vmatprep.subr.bf16.mxu0 0
      %3433 = vmatpush1.bf16.msra.mxu0 %v3080
      %3434 = vmatprep.subr.bf16.mxu0 0
      %3435 = vmatpush1.bf16.msra.mxu0 %v3081
      %3436 = vmatprep.subr.bf16.mxu0 0
      %3437 = vmatpush1.bf16.msra.mxu0 %v3082
      %3438 = vmatprep.subr.bf16.mxu0 0
      %3439 = vmatpush1.bf16.msra.mxu0 %v3083
      %3440 = vmatprep.subr.bf16.mxu0 0
      %3441 = vmatpush1.bf16.msra.mxu0 %v3084
      %3442 = vmatprep.subr.bf16.mxu0 0
      %3443 = vmatpush1.bf16.msra.mxu0 %v3085
      %3444 = vmatprep.subr.bf16.mxu0 0
      %3445 = vmatpush1.bf16.msra.mxu0 %v3086
      %3446 = vmatprep.subr.bf16.mxu0 0
      %3447 = vmatpush1.bf16.msra.mxu0 %v3087
      %3448 = vmatprep.subr.bf16.mxu0 0
      %3449 = vmatpush1.bf16.msra.mxu0 %v3088
      %3450 = vmatprep.subr.bf16.mxu0 0
      %3451 = vmatpush1.bf16.msra.mxu0 %v3089
      %3452 = vmatprep.subr.bf16.mxu0 0
      %3453 = vmatpush1.bf16.msra.mxu0 %v3090
      %3454 = vmatprep.subr.bf16.mxu0 0
      %3455 = vmatpush1.bf16.msra.mxu0 %v3091
      %3456 = vmatprep.subr.bf16.mxu0 0
      %3457 = vmatpush1.bf16.msra.mxu0 %v3092
      %3458 = vmatprep.subr.bf16.mxu0 0
      %3459 = vmatpush1.bf16.msra.mxu0 %v3093
      %3460 = vmatprep.subr.bf16.mxu0 0
      %3461 = vmatpush1.bf16.msra.mxu0 %v3094
      %3462 = vmatprep.subr.bf16.mxu0 0
      %3463 = vmatpush1.bf16.msra.mxu0 %v3095
      %3464 = vmatprep.mubr.bf16.mxu0 %v2481
      %3465 = vmatmul.mubr.bf16.gmra.mrb[0].mxu0 %v2480
      %v3466 = vpop.f32.mrb[0].mxu0
      %v3467 = vadd.f32 %v3427, %v3466
      %v3468 = vpop.f32.mrb[0].mxu0
      %v3469 = vpop.f32.mrb[0].mxu0
      %v3470 = vpop.f32.mrb[0].mxu0
      %3471 = vdwg.mxu0
      %3472 = vmatprep.subr.bf16.mxu0 0
      %3473 = vmatpush1.bf16.msra.mxu0 %v3096
      %3474 = vmatprep.subr.bf16.mxu0 0
      %3475 = vmatpush1.bf16.msra.mxu0 %v3097
      %3476 = vmatprep.subr.bf16.mxu0 0
      %3477 = vmatpush1.bf16.msra.mxu0 %v3098
      %3478 = vmatprep.subr.bf16.mxu0 0
      %3479 = vmatpush1.bf16.msra.mxu0 %v3099
      %3480 = vmatprep.subr.bf16.mxu0 0
      %3481 = vmatpush1.bf16.msra.mxu0 %v3100
      %3482 = vmatprep.subr.bf16.mxu0 0
      %3483 = vmatpush1.bf16.msra.mxu0 %v3101
      %3484 = vmatprep.subr.bf16.mxu0 0
      %3485 = vmatpush1.bf16.msra.mxu0 %v3102
      %3486 = vmatprep.subr.bf16.mxu0 0
      %3487 = vmatpush1.bf16.msra.mxu0 %v3103
      %3488 = vmatprep.subr.bf16.mxu0 0
      %3489 = vmatpush1.bf16.msra.mxu0 %v3104
      %3490 = vmatprep.subr.bf16.mxu0 0
      %3491 = vmatpush1.bf16.msra.mxu0 %v3105
      %3492 = vmatprep.subr.bf16.mxu0 0
      %3493 = vmatpush1.bf16.msra.mxu0 %v3106
      %3494 = vmatprep.subr.bf16.mxu0 0
      %3495 = vmatpush1.bf16.msra.mxu0 %v3107
      %3496 = vmatprep.subr.bf16.mxu0 0
      %3497 = vmatpush1.bf16.msra.mxu0 %v3108
      %3498 = vmatprep.subr.bf16.mxu0 0
      %3499 = vmatpush1.bf16.msra.mxu0 %v3109
      %3500 = vmatprep.subr.bf16.mxu0 0
      %3501 = vmatpush1.bf16.msra.mxu0 %v3110
      %3502 = vmatprep.subr.bf16.mxu0 0
      %3503 = vmatpush1.bf16.msra.mxu0 %v3111
      %3504 = vmatprep.mubr.bf16.mxu0 %v2483
      %3505 = vmatmul.mubr.bf16.gmra.mrb[0].mxu0 %v2482
      %v3506 = vpop.f32.mrb[0].mxu0
      %v3507 = vadd.f32 %v3467, %v3506
      %v3508 = vpop.f32.mrb[0].mxu0
      %v3509 = vpop.f32.mrb[0].mxu0
      %v3510 = vpop.f32.mrb[0].mxu0
      %3511 = vdwg.mxu0
      %3512 = vmatprep.subr.bf16.mxu0 0
      %3513 = vmatpush1.bf16.msra.mxu0 %v3112
      %3514 = vmatprep.subr.bf16.mxu0 0
      %3515 = vmatpush1.bf16.msra.mxu0 %v3113
      %3516 = vmatprep.subr.bf16.mxu0 0
      %3517 = vmatpush1.bf16.msra.mxu0 %v3114
      %3518 = vmatprep.subr.bf16.mxu0 0
      %3519 = vmatpush1.bf16.msra.mxu0 %v3115
      %3520 = vmatprep.subr.bf16.mxu0 0
      %3521 = vmatpush1.bf16.msra.mxu0 %v3116
      %3522 = vmatprep.subr.bf16.mxu0 0
      %3523 = vmatpush1.bf16.msra.mxu0 %v3117
      %3524 = vmatprep.subr.bf16.mxu0 0
      %3525 = vmatpush1.bf16.msra.mxu0 %v3118
      %3526 = vmatprep.subr.bf16.mxu0 0
      %3527 = vmatpush1.bf16.msra.mxu0 %v3119
      %3528 = vmatprep.subr.bf16.mxu0 0
      %3529 = vmatpush1.bf16.msra.mxu0 %v3120
      %3530 = vmatprep.subr.bf16.mxu0 0
      %3531 = vmatpush1.bf16.msra.mxu0 %v3121
      %3532 = vmatprep.subr.bf16.mxu0 0
      %3533 = vmatpush1.bf16.msra.mxu0 %v3122
      %3534 = vmatprep.subr.bf16.mxu0 0
      %3535 = vmatpush1.bf16.msra.mxu0 %v3123
      %3536 = vmatprep.subr.bf16.mxu0 0
      %3537 = vmatpush1.bf16.msra.mxu0 %v3124
      %3538 = vmatprep.subr.bf16.mxu0 0
      %3539 = vmatpush1.bf16.msra.mxu0 %v3125
      %3540 = vmatprep.subr.bf16.mxu0 0
      %3541 = vmatpush1.bf16.msra.mxu0 %v3126
      %3542 = vmatprep.subr.bf16.mxu0 0
      %3543 = vmatpush1.bf16.msra.mxu0 %v3127
      %3544 = vmatprep.mubr.bf16.mxu0 %v2485
      %3545 = vmatmul.mubr.bf16.gmra.mrb[0].mxu0 %v2484
      %v3546 = vpop.f32.mrb[0].mxu0
      %v3547 = vadd.f32 %v3507, %v3546
      %v3548 = vpop.f32.mrb[0].mxu0
      %v3549 = vpop.f32.mrb[0].mxu0
      %v3550 = vpop.f32.mrb[0].mxu0
      %3551 = vdwg.mxu0
      %3552 = vmatprep.subr.bf16.mxu0 0
      %3553 = vmatpush1.bf16.msra.mxu0 %v3128
      %3554 = vmatprep.subr.bf16.mxu0 0
      %3555 = vmatpush1.bf16.msra.mxu0 %v3129
      %3556 = vmatprep.subr.bf16.mxu0 0
      %3557 = vmatpush1.bf16.msra.mxu0 %v3130
      %3558 = vmatprep.subr.bf16.mxu0 0
      %3559 = vmatpush1.bf16.msra.mxu0 %v3131
      %3560 = vmatprep.subr.bf16.mxu0 0
      %3561 = vmatpush1.bf16.msra.mxu0 %v3132
      %3562 = vmatprep.subr.bf16.mxu0 0
      %3563 = vmatpush1.bf16.msra.mxu0 %v3133
      %3564 = vmatprep.subr.bf16.mxu0 0
      %3565 = vmatpush1.bf16.msra.mxu0 %v3134
      %3566 = vmatprep.subr.bf16.mxu0 0
      %3567 = vmatpush1.bf16.msra.mxu0 %v3135
      %3568 = vmatprep.subr.bf16.mxu0 0
      %3569 = vmatpush1.bf16.msra.mxu0 %v3136
      %3570 = vmatprep.subr.bf16.mxu0 0
      %3571 = vmatpush1.bf16.msra.mxu0 %v3137
      %3572 = vmatprep.subr.bf16.mxu0 0
      %3573 = vmatpush1.bf16.msra.mxu0 %v3138
      %3574 = vmatprep.subr.bf16.mxu0 0
      %3575 = vmatpush1.bf16.msra.mxu0 %v3139
      %3576 = vmatprep.subr.bf16.mxu0 0
      %3577 = vmatpush1.bf16.msra.mxu0 %v3140
      %3578 = vmatprep.subr.bf16.mxu0 0
      %3579 = vmatpush1.bf16.msra.mxu0 %v3141
      %3580 = vmatprep.subr.bf16.mxu0 0
      %3581 = vmatpush1.bf16.msra.mxu0 %v3142
      %3582 = vmatprep.subr.bf16.mxu0 0
      %3583 = vmatpush1.bf16.msra.mxu0 %v3143
      %3584 = vmatprep.mubr.bf16.mxu0 %v2487
      %3585 = vmatmul.mubr.bf16.gmra.mrb[0].mxu0 %v2486
      %v3586 = vpop.f32.mrb[0].mxu0
      %v3587 = vadd.f32 %v3547, %v3586
      %v3588 = vpop.f32.mrb[0].mxu0
      %v3589 = vpop.f32.mrb[0].mxu0
      %v3590 = vpop.f32.mrb[0].mxu0
      %3591 = vdwg.mxu0
      %v3720 = vunpack.c.l.b16 %v2056
      %v3721 = vunpack.c.l.b16 %v2057
      %v3722 = vunpack.c.l.b16 %v2058
      %v3723 = vunpack.c.l.b16 %v2059
      %v3724 = vunpack.c.l.b16 %v2060
      %v3725 = vunpack.c.l.b16 %v2061
      %v3726 = vunpack.c.l.b16 %v2062
      %v3727 = vunpack.c.l.b16 %v2063
      %v3728 = vunpack.c.l.b16 %v2064
      %v3729 = vunpack.c.l.b16 %v2065
      %v3730 = vunpack.c.l.b16 %v2066
      %v3731 = vunpack.c.l.b16 %v2067
      %v3732 = vunpack.c.l.b16 %v2068
      %v3733 = vunpack.c.l.b16 %v2069
      %v3734 = vunpack.c.l.b16 %v2070
      %v3735 = vunpack.c.l.b16 %v2071
      %v3736 = vunpack.c.l.b16 %v2072
      %v3737 = vunpack.c.l.b16 %v2073
      %v3738 = vunpack.c.l.b16 %v2074
      %v3739 = vunpack.c.l.b16 %v2075
      %v3740 = vunpack.c.l.b16 %v2076
      %v3741 = vunpack.c.l.b16 %v2077
      %v3742 = vunpack.c.l.b16 %v2078
      %v3743 = vunpack.c.l.b16 %v2079
      %v3744 = vunpack.c.l.b16 %v2080
      %v3745 = vunpack.c.l.b16 %v2081
      %v3746 = vunpack.c.l.b16 %v2082
      %v3747 = vunpack.c.l.b16 %v2083
      %v3748 = vunpack.c.l.b16 %v2084
      %v3749 = vunpack.c.l.b16 %v2085
      %v3750 = vunpack.c.l.b16 %v2086
      %v3751 = vunpack.c.l.b16 %v2087
      %v3752 = vunpack.c.l.b16 %v2088
      %v3753 = vunpack.c.l.b16 %v2089
      %v3754 = vunpack.c.l.b16 %v2090
      %v3755 = vunpack.c.l.b16 %v2091
      %v3756 = vunpack.c.l.b16 %v2092
      %v3757 = vunpack.c.l.b16 %v2093
      %v3758 = vunpack.c.l.b16 %v2094
      %v3759 = vunpack.c.l.b16 %v2095
      %v3760 = vunpack.c.l.b16 %v2096
      %v3761 = vunpack.c.l.b16 %v2097
      %v3762 = vunpack.c.l.b16 %v2098
      %v3763 = vunpack.c.l.b16 %v2099
      %v3764 = vunpack.c.l.b16 %v2100
      %v3765 = vunpack.c.l.b16 %v2101
      %v3766 = vunpack.c.l.b16 %v2102
      %v3767 = vunpack.c.l.b16 %v2103
      %v3768 = vunpack.c.l.b16 %v2104
      %v3769 = vunpack.c.l.b16 %v2105
      %v3770 = vunpack.c.l.b16 %v2106
      %v3771 = vunpack.c.l.b16 %v2107
      %v3772 = vunpack.c.l.b16 %v2108
      %v3773 = vunpack.c.l.b16 %v2109
      %v3774 = vunpack.c.l.b16 %v2110
      %v3775 = vunpack.c.l.b16 %v2111
      %v3776 = vunpack.c.l.b16 %v2112
      %v3777 = vunpack.c.l.b16 %v2113
      %v3778 = vunpack.c.l.b16 %v2114
      %v3779 = vunpack.c.l.b16 %v2115
      %v3780 = vunpack.c.l.b16 %v2116
      %v3781 = vunpack.c.l.b16 %v2117
      %v3782 = vunpack.c.l.b16 %v2118
      %v3783 = vunpack.c.l.b16 %v2119
      %v3784 = vunpack.c.l.b16 %v2120
      %v3785 = vunpack.c.l.b16 %v2121
      %v3786 = vunpack.c.l.b16 %v2122
      %v3787 = vunpack.c.l.b16 %v2123
      %v3788 = vunpack.c.l.b16 %v2124
      %v3789 = vunpack.c.l.b16 %v2125
      %v3790 = vunpack.c.l.b16 %v2126
      %v3791 = vunpack.c.l.b16 %v2127
      %v3792 = vunpack.c.l.b16 %v2128
      %v3793 = vunpack.c.l.b16 %v2129
      %v3794 = vunpack.c.l.b16 %v2130
      %v3795 = vunpack.c.l.b16 %v2131
      %v3796 = vunpack.c.l.b16 %v2132
      %v3797 = vunpack.c.l.b16 %v2133
      %v3798 = vunpack.c.l.b16 %v2134
      %v3799 = vunpack.c.l.b16 %v2135
      %v3800 = vunpack.c.l.b16 %v2136
      %v3801 = vunpack.c.l.b16 %v2137
      %v3802 = vunpack.c.l.b16 %v2138
      %v3803 = vunpack.c.l.b16 %v2139
      %v3804 = vunpack.c.l.b16 %v2140
      %v3805 = vunpack.c.l.b16 %v2141
      %v3806 = vunpack.c.l.b16 %v2142
      %v3807 = vunpack.c.l.b16 %v2143
      %v3808 = vunpack.c.l.b16 %v2144
      %v3809 = vunpack.c.l.b16 %v2145
      %v3810 = vunpack.c.l.b16 %v2146
      %v3811 = vunpack.c.l.b16 %v2147
      %v3812 = vunpack.c.l.b16 %v2148
      %v3813 = vunpack.c.l.b16 %v2149
      %v3814 = vunpack.c.l.b16 %v2150
      %v3815 = vunpack.c.l.b16 %v2151
      %v3816 = vunpack.c.l.b16 %v2152
      %v3817 = vunpack.c.l.b16 %v2153
      %v3818 = vunpack.c.l.b16 %v2154
      %v3819 = vunpack.c.l.b16 %v2155
      %v3820 = vunpack.c.l.b16 %v2156
      %v3821 = vunpack.c.l.b16 %v2157
      %v3822 = vunpack.c.l.b16 %v2158
      %v3823 = vunpack.c.l.b16 %v2159
      %v3824 = vunpack.c.l.b16 %v2160
      %v3825 = vunpack.c.l.b16 %v2161
      %v3826 = vunpack.c.l.b16 %v2162
      %v3827 = vunpack.c.l.b16 %v2163
      %v3828 = vunpack.c.l.b16 %v2164
      %v3829 = vunpack.c.l.b16 %v2165
      %v3830 = vunpack.c.l.b16 %v2166
      %v3831 = vunpack.c.l.b16 %v2167
      %v3832 = vunpack.c.l.b16 %v2168
      %v3833 = vunpack.c.l.b16 %v2169
      %v3834 = vunpack.c.l.b16 %v2170
      %v3835 = vunpack.c.l.b16 %v2171
      %v3836 = vunpack.c.l.b16 %v2172
      %v3837 = vunpack.c.l.b16 %v2173
      %v3838 = vunpack.c.l.b16 %v2174
      %v3839 = vunpack.c.l.b16 %v2175
      %v3840 = vunpack.c.l.b16 %v2176
      %v3841 = vunpack.c.l.b16 %v2177
      %v3842 = vunpack.c.l.b16 %v2178
      %v3843 = vunpack.c.l.b16 %v2179
      %v3844 = vunpack.c.l.b16 %v2180
      %v3845 = vunpack.c.l.b16 %v2181
      %v3846 = vunpack.c.l.b16 %v2182
      %v3847 = vunpack.c.l.b16 %v2183
      %v3848 = vpack.c.b16 %v3721, %v3720
      %v3849 = vpack.c.b16 %v3723, %v3722
      %v3850 = vpack.c.b16 %v3725, %v3724
      %v3851 = vpack.c.b16 %v3727, %v3726
      %v3852 = vpack.c.b16 %v3729, %v3728
      %v3853 = vpack.c.b16 %v3731, %v3730
      %v3854 = vpack.c.b16 %v3733, %v3732
      %v3855 = vpack.c.b16 %v3735, %v3734
      %v3856 = vpack.c.b16 %v3737, %v3736
      %v3857 = vpack.c.b16 %v3739, %v3738
      %v3858 = vpack.c.b16 %v3741, %v3740
      %v3859 = vpack.c.b16 %v3743, %v3742
      %v3860 = vpack.c.b16 %v3745, %v3744
      %v3861 = vpack.c.b16 %v3747, %v3746
      %v3862 = vpack.c.b16 %v3749, %v3748
      %v3863 = vpack.c.b16 %v3751, %v3750
      %v3864 = vpack.c.b16 %v3753, %v3752
      %v3865 = vpack.c.b16 %v3755, %v3754
      %v3866 = vpack.c.b16 %v3757, %v3756
      %v3867 = vpack.c.b16 %v3759, %v3758
      %v3868 = vpack.c.b16 %v3761, %v3760
      %v3869 = vpack.c.b16 %v3763, %v3762
      %v3870 = vpack.c.b16 %v3765, %v3764
      %v3871 = vpack.c.b16 %v3767, %v3766
      %v3872 = vpack.c.b16 %v3769, %v3768
      %v3873 = vpack.c.b16 %v3771, %v3770
      %v3874 = vpack.c.b16 %v3773, %v3772
      %v3875 = vpack.c.b16 %v3775, %v3774
      %v3876 = vpack.c.b16 %v3777, %v3776
      %v3877 = vpack.c.b16 %v3779, %v3778
      %v3878 = vpack.c.b16 %v3781, %v3780
      %v3879 = vpack.c.b16 %v3783, %v3782
      %v3880 = vpack.c.b16 %v3785, %v3784
      %v3881 = vpack.c.b16 %v3787, %v3786
      %v3882 = vpack.c.b16 %v3789, %v3788
      %v3883 = vpack.c.b16 %v3791, %v3790
      %v3884 = vpack.c.b16 %v3793, %v3792
      %v3885 = vpack.c.b16 %v3795, %v3794
      %v3886 = vpack.c.b16 %v3797, %v3796
      %v3887 = vpack.c.b16 %v3799, %v3798
      %v3888 = vpack.c.b16 %v3801, %v3800
      %v3889 = vpack.c.b16 %v3803, %v3802
      %v3890 = vpack.c.b16 %v3805, %v3804
      %v3891 = vpack.c.b16 %v3807, %v3806
      %v3892 = vpack.c.b16 %v3809, %v3808
      %v3893 = vpack.c.b16 %v3811, %v3810
      %v3894 = vpack.c.b16 %v3813, %v3812
      %v3895 = vpack.c.b16 %v3815, %v3814
      %v3896 = vpack.c.b16 %v3817, %v3816
      %v3897 = vpack.c.b16 %v3819, %v3818
      %v3898 = vpack.c.b16 %v3821, %v3820
      %v3899 = vpack.c.b16 %v3823, %v3822
      %v3900 = vpack.c.b16 %v3825, %v3824
      %v3901 = vpack.c.b16 %v3827, %v3826
      %v3902 = vpack.c.b16 %v3829, %v3828
      %v3903 = vpack.c.b16 %v3831, %v3830
      %v3904 = vpack.c.b16 %v3833, %v3832
      %v3905 = vpack.c.b16 %v3835, %v3834
      %v3906 = vpack.c.b16 %v3837, %v3836
      %v3907 = vpack.c.b16 %v3839, %v3838
      %v3908 = vpack.c.b16 %v3841, %v3840
      %v3909 = vpack.c.b16 %v3843, %v3842
      %v3910 = vpack.c.b16 %v3845, %v3844
      %v3911 = vpack.c.b16 %v3847, %v3846
      %3976 = vmatprep.subr.bf16.mxu0 0
      %3977 = vmatpush1.bf16.msra.mxu0 %v3848
      %3978 = vmatprep.subr.bf16.mxu0 0
      %3979 = vmatpush1.bf16.msra.mxu0 %v3849
      %3980 = vmatprep.subr.bf16.mxu0 0
      %3981 = vmatpush1.bf16.msra.mxu0 %v3850
      %3982 = vmatprep.subr.bf16.mxu0 0
      %3983 = vmatpush1.bf16.msra.mxu0 %v3851
      %3984 = vmatprep.subr.bf16.mxu0 0
      %3985 = vmatpush1.bf16.msra.mxu0 %v3852
      %3986 = vmatprep.subr.bf16.mxu0 0
      %3987 = vmatpush1.bf16.msra.mxu0 %v3853
      %3988 = vmatprep.subr.bf16.mxu0 0
      %3989 = vmatpush1.bf16.msra.mxu0 %v3854
      %3990 = vmatprep.subr.bf16.mxu0 0
      %3991 = vmatpush1.bf16.msra.mxu0 %v3855
      %3992 = vmatprep.subr.bf16.mxu0 0
      %3993 = vmatpush1.bf16.msra.mxu0 %v3856
      %3994 = vmatprep.subr.bf16.mxu0 0
      %3995 = vmatpush1.bf16.msra.mxu0 %v3857
      %3996 = vmatprep.subr.bf16.mxu0 0
      %3997 = vmatpush1.bf16.msra.mxu0 %v3858
      %3998 = vmatprep.subr.bf16.mxu0 0
      %3999 = vmatpush1.bf16.msra.mxu0 %v3859
      %4000 = vmatprep.subr.bf16.mxu0 0
      %4001 = vmatpush1.bf16.msra.mxu0 %v3860
      %4002 = vmatprep.subr.bf16.mxu0 0
      %4003 = vmatpush1.bf16.msra.mxu0 %v3861
      %4004 = vmatprep.subr.bf16.mxu0 0
      %4005 = vmatpush1.bf16.msra.mxu0 %v3862
      %4006 = vmatprep.subr.bf16.mxu0 0
      %4007 = vmatpush1.bf16.msra.mxu0 %v3863
      %4008 = vmatprep.mubr.bf16.mxu0 %v2049
      %4009 = vmatmul.mubr.bf16.gmra.mrb[0].mxu0 %v2048
      %v4010 = vpop.f32.mrb[0].mxu0
      %v4011 = vadd.f32 %v3587, %v4010
      %v4012 = vpop.f32.mrb[0].mxu0
      %v4013 = vpop.f32.mrb[0].mxu0
      %v4014 = vpop.f32.mrb[0].mxu0
      %4015 = vdwg.mxu0
      %4016 = vmatprep.subr.bf16.mxu0 0
      %4017 = vmatpush1.bf16.msra.mxu0 %v3864
      %4018 = vmatprep.subr.bf16.mxu0 0
      %4019 = vmatpush1.bf16.msra.mxu0 %v3865
      %4020 = vmatprep.subr.bf16.mxu0 0
      %4021 = vmatpush1.bf16.msra.mxu0 %v3866
      %4022 = vmatprep.subr.bf16.mxu0 0
      %4023 = vmatpush1.bf16.msra.mxu0 %v3867
      %4024 = vmatprep.subr.bf16.mxu0 0
      %4025 = vmatpush1.bf16.msra.mxu0 %v3868
      %4026 = vmatprep.subr.bf16.mxu0 0
      %4027 = vmatpush1.bf16.msra.mxu0 %v3869
      %4028 = vmatprep.subr.bf16.mxu0 0
      %4029 = vmatpush1.bf16.msra.mxu0 %v3870
      %4030 = vmatprep.subr.bf16.mxu0 0
      %4031 = vmatpush1.bf16.msra.mxu0 %v3871
      %4032 = vmatprep.subr.bf16.mxu0 0
      %4033 = vmatpush1.bf16.msra.mxu0 %v3872
      %4034 = vmatprep.subr.bf16.mxu0 0
      %4035 = vmatpush1.bf16.msra.mxu0 %v3873
      %4036 = vmatprep.subr.bf16.mxu0 0
      %4037 = vmatpush1.bf16.msra.mxu0 %v3874
      %4038 = vmatprep.subr.bf16.mxu0 0
      %4039 = vmatpush1.bf16.msra.mxu0 %v3875
      %4040 = vmatprep.subr.bf16.mxu0 0
      %4041 = vmatpush1.bf16.msra.mxu0 %v3876
      %4042 = vmatprep.subr.bf16.mxu0 0
      %4043 = vmatpush1.bf16.msra.mxu0 %v3877
      %4044 = vmatprep.subr.bf16.mxu0 0
      %4045 = vmatpush1.bf16.msra.mxu0 %v3878
      %4046 = vmatprep.subr.bf16.mxu0 0
      %4047 = vmatpush1.bf16.msra.mxu0 %v3879
      %4048 = vmatprep.mubr.bf16.mxu0 %v2051
      %4049 = vmatmul.mubr.bf16.gmra.mrb[0].mxu0 %v2050
      %v4050 = vpop.f32.mrb[0].mxu0
      %v4051 = vadd.f32 %v4011, %v4050
      %v4052 = vpop.f32.mrb[0].mxu0
      %v4053 = vpop.f32.mrb[0].mxu0
      %v4054 = vpop.f32.mrb[0].mxu0
      %4055 = vdwg.mxu0
      %4056 = vmatprep.subr.bf16.mxu0 0
      %4057 = vmatpush1.bf16.msra.mxu0 %v3880
      %4058 = vmatprep.subr.bf16.mxu0 0
      %4059 = vmatpush1.bf16.msra.mxu0 %v3881
      %4060 = vmatprep.subr.bf16.mxu0 0
      %4061 = vmatpush1.bf16.msra.mxu0 %v3882
      %4062 = vmatprep.subr.bf16.mxu0 0
      %4063 = vmatpush1.bf16.msra.mxu0 %v3883
      %4064 = vmatprep.subr.bf16.mxu0 0
      %4065 = vmatpush1.bf16.msra.mxu0 %v3884
      %4066 = vmatprep.subr.bf16.mxu0 0
      %4067 = vmatpush1.bf16.msra.mxu0 %v3885
      %4068 = vmatprep.subr.bf16.mxu0 0
      %4069 = vmatpush1.bf16.msra.mxu0 %v3886
      %4070 = vmatprep.subr.bf16.mxu0 0
      %4071 = vmatpush1.bf16.msra.mxu0 %v3887
      %4072 = vmatprep.subr.bf16.mxu0 0
      %4073 = vmatpush1.bf16.msra.mxu0 %v3888
      %4074 = vmatprep.subr.bf16.mxu0 0
      %4075 = vmatpush1.bf16.msra.mxu0 %v3889
      %4076 = vmatprep.subr.bf16.mxu0 0
      %4077 = vmatpush1.bf16.msra.mxu0 %v3890
      %4078 = vmatprep.subr.bf16.mxu0 0
      %4079 = vmatpush1.bf16.msra.mxu0 %v3891
      %4080 = vmatprep.subr.bf16.mxu0 0
      %4081 = vmatpush1.bf16.msra.mxu0 %v3892
      %4082 = vmatprep.subr.bf16.mxu0 0
      %4083 = vmatpush1.bf16.msra.mxu0 %v3893
      %4084 = vmatprep.subr.bf16.mxu0 0
      %4085 = vmatpush1.bf16.msra.mxu0 %v3894
      %4086 = vmatprep.subr.bf16.mxu0 0
      %4087 = vmatpush1.bf16.msra.mxu0 %v3895
      %4088 = vmatprep.mubr.bf16.mxu0 %v2053
      %4089 = vmatmul.mubr.bf16.gmra.mrb[0].mxu0 %v2052
      %v4090 = vpop.f32.mrb[0].mxu0
      %v4091 = vadd.f32 %v4051, %v4090
      %v4092 = vpop.f32.mrb[0].mxu0
      %v4093 = vpop.f32.mrb[0].mxu0
      %v4094 = vpop.f32.mrb[0].mxu0
      %4095 = vdwg.mxu0
      %4096 = vmatprep.subr.bf16.mxu0 0
      %4097 = vmatpush1.bf16.msra.mxu0 %v3896
      %4098 = vmatprep.subr.bf16.mxu0 0
      %4099 = vmatpush1.bf16.msra.mxu0 %v3897
      %4100 = vmatprep.subr.bf16.mxu0 0
      %4101 = vmatpush1.bf16.msra.mxu0 %v3898
      %4102 = vmatprep.subr.bf16.mxu0 0
      %4103 = vmatpush1.bf16.msra.mxu0 %v3899
      %4104 = vmatprep.subr.bf16.mxu0 0
      %4105 = vmatpush1.bf16.msra.mxu0 %v3900
      %4106 = vmatprep.subr.bf16.mxu0 0
      %4107 = vmatpush1.bf16.msra.mxu0 %v3901
      %4108 = vmatprep.subr.bf16.mxu0 0
      %4109 = vmatpush1.bf16.msra.mxu0 %v3902
      %4110 = vmatprep.subr.bf16.mxu0 0
      %4111 = vmatpush1.bf16.msra.mxu0 %v3903
      %4112 = vmatprep.subr.bf16.mxu0 0
      %4113 = vmatpush1.bf16.msra.mxu0 %v3904
      %4114 = vmatprep.subr.bf16.mxu0 0
      %4115 = vmatpush1.bf16.msra.mxu0 %v3905
      %4116 = vmatprep.subr.bf16.mxu0 0
      %4117 = vmatpush1.bf16.msra.mxu0 %v3906
      %4118 = vmatprep.subr.bf16.mxu0 0
      %4119 = vmatpush1.bf16.msra.mxu0 %v3907
      %4120 = vmatprep.subr.bf16.mxu0 0
      %4121 = vmatpush1.bf16.msra.mxu0 %v3908
      %4122 = vmatprep.subr.bf16.mxu0 0
      %4123 = vmatpush1.bf16.msra.mxu0 %v3909
      %4124 = vmatprep.subr.bf16.mxu0 0
      %4125 = vmatpush1.bf16.msra.mxu0 %v3910
      %4126 = vmatprep.subr.bf16.mxu0 0
      %4127 = vmatpush1.bf16.msra.mxu0 %v3911
      %4128 = vmatprep.mubr.bf16.mxu0 %v2055
      %4129 = vmatmul.mubr.bf16.gmra.mrb[0].mxu0 %v2054
      %v4130 = vpop.f32.mrb[0].mxu0
      %v4131 = vadd.f32 %v4091, %v4130
      %v4132 = vpop.f32.mrb[0].mxu0
      %v4133 = vpop.f32.mrb[0].mxu0
      %v4134 = vpop.f32.mrb[0].mxu0
      %4135 = vdwg.mxu0
      %v4136 = vld [vmem:[%s8] sm:$0x1]
      %v4138 = vlaneseq
      %v4139 = vshrl.u32 %v4138, 7
      %v4140 = vsub.s32 0, %v4139
      %v4141 = vrot.slane %v4136, %v4140
      %v4143 = vadd.f32 %v4131, %v4141
      %4144 = vst [vmem:[#allocation15] sm:$0xff] %v4143
    $region69: #{tpu_custom_call.1} parent=1 // pred_fallthru
      _
    // Predicated region
    $region70: #{tpu_custom_call.1} parent=1 // pred_check
      _
    $region71: #{tpu_custom_call.1} parent=1 // pred_check_branch
      %4146 = sbr.rel (0) target = $region73
    $region72: #{tpu_custom_call.1} parent=1 // pred_region
      %s4148 = ssub.s32 128, 32
      %4149 = vsyncadd [#allocation6], %s4148
      %s4150 = sshll.u32 [#allocation15], 4
      %s4151 = int_to_ptr.vmem [resolvable:$true] %s4150
      %4156 = dma.vmem_to_hbm [thread:$0]  %s4151, 32, %s9, [#allocation6], 32, 32, 2
    $region73: #{tpu_custom_call.1} parent=1 // pred_fallthru
      _
    // Predicated region
    $region74: #{tpu_custom_call.1} parent=1 // pred_check
      _
    $region75: #{tpu_custom_call.1} parent=1 // pred_check_branch
      %4158 = sbr.rel (0) target = $region77
    $region76: #{tpu_custom_call.1} parent=1 // pred_region
      %4159 = dma.done [#allocation6], 128
    $region77: #{tpu_custom_call.1} parent=1 // pred_fallthru
      _
    %4160 = vsyncpa [#allocation5], 1
    %4161 = vsyncpa [#allocation8], 1
    %4162 = vsyncpa [#allocation11], 1
    %4163 = vsyncpa [#allocation14], 1
    %4164 = vsyncpa [#allocation6], 1

</llo_original>
